<compile_context>
chip_gen: v5e
topology: v5e:2x2
jax: 0.10.0
libtpu: 0.0.40
codegen_flags: <defaults>
</compile_context>

<pallas_src>
from functools import reduce

import jax
import jax.numpy as jnp
from jax.experimental import pallas as pl
from jax.experimental.pallas import tpu as pltpu

IMAGE_SIZE = (1, 32, 32)
NUM_CLASS = 10
BN_EPS = 0.8  # nn.BatchNorm1d(out_channel, 0.8) -> eps = 0.8


def _generator_kernel(x_ref, w0_ref, b0_ref,
                      g1_ref, be1_ref, g2_ref, be2_ref, g3_ref, be3_ref,
                      b4_ref,
                      w1_hbm, w2_hbm, w3_hbm, w4_hbm,
                      out_ref,
                      w1_vmem, w2_vmem, w3_vmem, w4_vmem, dma_sem):
    f32 = jnp.float32
    bf16 = jnp.bfloat16

    # Kick off all big-weight DMAs immediately, in the order the layers consume
    # them, so each copy overlaps the compute of the layers before it.
    w1_cp = pltpu.make_async_copy(w1_hbm, w1_vmem, dma_sem.at[0])
    w2_cp = pltpu.make_async_copy(w2_hbm, w2_vmem, dma_sem.at[1])
    w3_cp = pltpu.make_async_copy(w3_hbm, w3_vmem, dma_sem.at[2])
    w4_cp = pltpu.make_async_copy(w4_hbm, w4_vmem, dma_sem.at[3])
    w1_cp.start()
    w2_cp.start()
    w3_cp.start()
    w4_cp.start()

    def mm(a_f32, w_ref):
        # bf16 x bf16 MXU dot with f32 accumulation.  Only the small (B, K)
        # activation is cast; the bf16 weight feeds the MXU directly.
        return jnp.dot(a_f32.astype(bf16), w_ref[...], preferred_element_type=f32)

    def bn_relu(z, g_ref, be_ref):
        # BatchNorm1d (training mode): batch mean, biased variance, eps=0.8,
        # fused into a single scale/shift.  rsqrt goes to the EUP slot.
        mean = jnp.mean(z, axis=0, keepdims=True)
        var = jnp.mean(z * z, axis=0, keepdims=True) - mean * mean
        scale = g_ref[...] * jax.lax.rsqrt(var + BN_EPS)
        shift = be_ref[...] - mean * scale
        return jnp.maximum(z * scale + shift, 0.0)

    # --- input_layer: Linear + ReLU (bias kept, no BN here) ---
    h = jnp.maximum(mm(x_ref[...], w0_ref) + b0_ref[...], 0.0)

    # --- layer1 / layer2 / layer3: Linear (bias cancels under BN) + BN + ReLU ---
    w1_cp.wait()
    h = bn_relu(mm(h, w1_vmem), g1_ref, be1_ref)
    w2_cp.wait()
    h = bn_relu(mm(h, w2_vmem), g2_ref, be2_ref)
    w3_cp.wait()
    h = bn_relu(mm(h, w3_vmem), g3_ref, be3_ref)

    # --- output_layer: Linear + Tanh ---
    w4_cp.wait()
    out_ref[...] = jnp.tanh(mm(h, w4_vmem) + b4_ref[...])


def init_generator_params(key, nz, image_size=IMAGE_SIZE, num_class=NUM_CLASS):
    """Deterministic synthetic parameters (same shapes as the PyTorch module).

    Weights are stored (in_features, out_features) in bfloat16; biases and
    BN gammas/betas in float32.
    """
    output_size = reduce(lambda a, b: a * b, image_size)
    dims = [nz + num_class, 128, 256, 512, 1024, output_size]
    keys = jax.random.split(key, 2 * (len(dims) - 1))
    params = {}
    for i in range(len(dims) - 1):
        fan_in, fan_out = dims[i], dims[i + 1]
        scale = 1.0 / jnp.sqrt(jnp.float32(fan_in))
        w = jax.random.uniform(keys[2 * i], (fan_in, fan_out),
                               jnp.float32, -1.0, 1.0) * scale
        params[f"w{i}"] = w.astype(jnp.bfloat16)  # bf16 storage: half the HBM bytes
        params[f"b{i}"] = (jax.random.uniform(keys[2 * i + 1], (1, fan_out),
                                              jnp.float32, -1.0, 1.0) * scale)
    # BatchNorm affine params for layers 1..3 (gamma=1, beta=0 like PyTorch init)
    for i, width in zip((1, 2, 3), (256, 512, 1024)):
        params[f"g{i}"] = jnp.ones((1, width), jnp.float32)
        params[f"be{i}"] = jnp.zeros((1, width), jnp.float32)
    return params


def generator_forward(x, params):
    output_size = reduce(lambda a, b: a * b, IMAGE_SIZE)
    batch = x.shape[0]

    vmem = pl.BlockSpec(memory_space=pltpu.MemorySpace.VMEM)
    hbm = pl.BlockSpec(memory_space=pl.ANY)  # big weights stay in HBM, manual DMA

    # b1/b2/b3 are intentionally NOT passed: they cancel under BatchNorm.
    operands = [
        x, params["w0"], params["b0"],
        params["g1"], params["be1"],
        params["g2"], params["be2"],
        params["g3"], params["be3"],
        params["b4"],
        params["w1"], params["w2"], params["w3"], params["w4"],
    ]
    in_specs = [vmem] * 10 + [hbm] * 4

    # TODO(synk): on v7x add grid=(2,), dimension_semantics=("parallel",) and
    # split w4 by output column so both TensorCores stream half the weights.
    return pl.pallas_call(
        _generator_kernel,
        out_shape=jax.ShapeDtypeStruct((batch, output_size), jnp.float32),
        in_specs=in_specs,
        out_specs=vmem,
        scratch_shapes=[
            pltpu.VMEM(params["w1"].shape, params["w1"].dtype),
            pltpu.VMEM(params["w2"].shape, params["w2"].dtype),
            pltpu.VMEM(params["w3"].shape, params["w3"].dtype),
            pltpu.VMEM(params["w4"].shape, params["w4"].dtype),
            pltpu.SemaphoreType.DMA((4,)),
        ],
        compiler_params=pltpu.CompilerParams(vmem_limit_bytes=12 << 20),
    )(*operands)


def generator_reference(x, params):
    """Pure-JAX reference mirroring the kernel's bf16 x bf16 / f32-acc dots.

    Includes the pre-BN biases (which cancel under mean subtraction).
    """
    f32 = jnp.float32

    def mm(a, w_bf16):
        return jax.lax.dot_general(a.astype(jnp.bfloat16), w_bf16,
                                   (((1,), (0,)), ((), ())),
                                   preferred_element_type=f32)

    h = jnp.maximum(mm(x, params["w0"]) + params["b0"], 0.0)
    for i in (1, 2, 3):
        z = mm(h, params[f"w{i}"]) + params[f"b{i}"]
        mean = jnp.mean(z, axis=0, keepdims=True)
        var = jnp.mean((z - mean) ** 2, axis=0, keepdims=True)
        zn = (z - mean) / jnp.sqrt(var + BN_EPS)
        h = jnp.maximum(zn * params[f"g{i}"] + params[f"be{i}"], 0.0)
    return jnp.tanh(mm(h, params["w4"]) + params["b4"])


if __name__ == "__main__":
    nz = 22        # latent dim -> nz + num_class = 32 input features
    batch = 64     # amortize the ~3.3 MiB weight stream over more MXU rows

    key = jax.random.PRNGKey(0)
    k_params, k_x = jax.random.split(key)
    params = init_generator_params(k_params, nz)

    # x is the concatenation of latent noise and one-hot class code, (B, nz+10)
    x = jax.random.normal(k_x, (batch, nz + NUM_CLASS), jnp.float32)

    out = jax.block_until_ready(generator_forward(x, params))
    ref = generator_reference(x, params)

    assert out.shape == (batch, reduce(lambda a, b: a * b, IMAGE_SIZE))
    assert bool(jnp.allclose(out, ref, atol=2e-3, rtol=2e-3)), "mismatch vs reference"

    print("KERNEL_OK")
</pallas_src>

<mosaic_0001>
module attributes {stable_mosaic.version = 11 : i64} {
  func.func @_generator_kernel(%arg0: memref<64x32xf32, #tpu.memory_space<vmem>>, %arg1: memref<32x128xbf16, #tpu.memory_space<vmem>>, %arg2: memref<1x128xf32, #tpu.memory_space<vmem>>, %arg3: memref<1x256xf32, #tpu.memory_space<vmem>>, %arg4: memref<1x256xf32, #tpu.memory_space<vmem>>, %arg5: memref<1x512xf32, #tpu.memory_space<vmem>>, %arg6: memref<1x512xf32, #tpu.memory_space<vmem>>, %arg7: memref<1x1024xf32, #tpu.memory_space<vmem>>, %arg8: memref<1x1024xf32, #tpu.memory_space<vmem>>, %arg9: memref<1x1024xf32, #tpu.memory_space<vmem>>, %arg10: memref<128x256xbf16, #tpu.memory_space<any>>, %arg11: memref<256x512xbf16, #tpu.memory_space<any>>, %arg12: memref<512x1024xbf16, #tpu.memory_space<any>>, %arg13: memref<1024x1024xbf16, #tpu.memory_space<any>>, %arg14: memref<64x1024xf32, #tpu.memory_space<vmem>>, %arg15: memref<128x256xbf16, #tpu.memory_space<vmem>>, %arg16: memref<256x512xbf16, #tpu.memory_space<vmem>>, %arg17: memref<512x1024xbf16, #tpu.memory_space<vmem>>, %arg18: memref<1024x1024xbf16, #tpu.memory_space<vmem>>, %arg19: memref<4x!tpu.dma_semaphore, #tpu.memory_space<semaphore_mem>>) attributes {dimension_semantics = [], scalar_prefetch = 0 : i64, scratch_operands = 5 : i64, tpu.core_type = #tpu.core_type<tc>} {
    %c0_i32 = arith.constant 0 : i32
    %0 = tpu.memref_slice %arg19[%c0_i32] : memref<4x!tpu.dma_semaphore, #tpu.memory_space<semaphore_mem>> -> memref<1x!tpu.dma_semaphore, #tpu.memory_space<semaphore_mem>>
    %1 = tpu.memref_squeeze %0 : memref<1x!tpu.dma_semaphore, #tpu.memory_space<semaphore_mem>> -> memref<!tpu.dma_semaphore, #tpu.memory_space<semaphore_mem>>
    tpu.enqueue_dma source(%arg10 : memref<128x256xbf16, #tpu.memory_space<any>>) target(%arg15 : memref<128x256xbf16, #tpu.memory_space<vmem>>) target_semaphore(%1 : memref<!tpu.dma_semaphore, #tpu.memory_space<semaphore_mem>>)
    %c1_i32 = arith.constant 1 : i32
    %2 = tpu.memref_slice %arg19[%c1_i32] : memref<4x!tpu.dma_semaphore, #tpu.memory_space<semaphore_mem>> -> memref<1x!tpu.dma_semaphore, #tpu.memory_space<semaphore_mem>>
    %3 = tpu.memref_squeeze %2 : memref<1x!tpu.dma_semaphore, #tpu.memory_space<semaphore_mem>> -> memref<!tpu.dma_semaphore, #tpu.memory_space<semaphore_mem>>
    tpu.enqueue_dma source(%arg11 : memref<256x512xbf16, #tpu.memory_space<any>>) target(%arg16 : memref<256x512xbf16, #tpu.memory_space<vmem>>) target_semaphore(%3 : memref<!tpu.dma_semaphore, #tpu.memory_space<semaphore_mem>>)
    %c2_i32 = arith.constant 2 : i32
    %4 = tpu.memref_slice %arg19[%c2_i32] : memref<4x!tpu.dma_semaphore, #tpu.memory_space<semaphore_mem>> -> memref<1x!tpu.dma_semaphore, #tpu.memory_space<semaphore_mem>>
    %5 = tpu.memref_squeeze %4 : memref<1x!tpu.dma_semaphore, #tpu.memory_space<semaphore_mem>> -> memref<!tpu.dma_semaphore, #tpu.memory_space<semaphore_mem>>
    tpu.enqueue_dma source(%arg12 : memref<512x1024xbf16, #tpu.memory_space<any>>) target(%arg17 : memref<512x1024xbf16, #tpu.memory_space<vmem>>) target_semaphore(%5 : memref<!tpu.dma_semaphore, #tpu.memory_space<semaphore_mem>>)
    %c3_i32 = arith.constant 3 : i32
    %6 = tpu.memref_slice %arg19[%c3_i32] : memref<4x!tpu.dma_semaphore, #tpu.memory_space<semaphore_mem>> -> memref<1x!tpu.dma_semaphore, #tpu.memory_space<semaphore_mem>>
    %7 = tpu.memref_squeeze %6 : memref<1x!tpu.dma_semaphore, #tpu.memory_space<semaphore_mem>> -> memref<!tpu.dma_semaphore, #tpu.memory_space<semaphore_mem>>
    tpu.enqueue_dma source(%arg13 : memref<1024x1024xbf16, #tpu.memory_space<any>>) target(%arg18 : memref<1024x1024xbf16, #tpu.memory_space<vmem>>) target_semaphore(%7 : memref<!tpu.dma_semaphore, #tpu.memory_space<semaphore_mem>>)
    %c0 = arith.constant 0 : index
    %c0_0 = arith.constant 0 : index
    %8 = vector.load %arg0[%c0, %c0_0] : memref<64x32xf32, #tpu.memory_space<vmem>>, vector<64x32xf32>
    %9 = arith.truncf %8 : vector<64x32xf32> to vector<64x32xbf16>
    %c0_1 = arith.constant 0 : index
    %c0_2 = arith.constant 0 : index
    %10 = vector.load %arg1[%c0_1, %c0_2] : memref<32x128xbf16, #tpu.memory_space<vmem>>, vector<32x128xbf16>
    %cst = arith.constant dense<0.000000e+00> : vector<64x128xf32>
    %11 = tpu.matmul %9, %10, %cst {dimension_numbers = #tpu.dot_dimension_numbers<[1], [0], [0], [1], [0, 0, 1, 1], [], []>} : vector<64x32xbf16>, vector<32x128xbf16>, vector<64x128xf32> -> vector<64x128xf32>
    %c0_3 = arith.constant 0 : index
    %c0_4 = arith.constant 0 : index
    %12 = vector.load %arg2[%c0_3, %c0_4] : memref<1x128xf32, #tpu.memory_space<vmem>>, vector<1x128xf32>
    %13 = vector.broadcast %12 : vector<1x128xf32> to vector<64x128xf32>
    %14 = arith.addf %11, %13 : vector<64x128xf32>
    %cst_5 = arith.constant 0.000000e+00 : f32
    %15 = vector.broadcast %cst_5 : f32 to vector<64x128xf32>
    %16 = arith.maximumf %14, %15 : vector<64x128xf32>
    %c0_i32_6 = arith.constant 0 : i32
    %17 = tpu.memref_slice %arg19[%c0_i32_6] : memref<4x!tpu.dma_semaphore, #tpu.memory_space<semaphore_mem>> -> memref<1x!tpu.dma_semaphore, #tpu.memory_space<semaphore_mem>>
    %18 = tpu.memref_squeeze %17 : memref<1x!tpu.dma_semaphore, #tpu.memory_space<semaphore_mem>> -> memref<!tpu.dma_semaphore, #tpu.memory_space<semaphore_mem>>
    tpu.wait_dma2 semaphore(%18 : memref<!tpu.dma_semaphore, #tpu.memory_space<semaphore_mem>>) src(%arg10 : memref<128x256xbf16, #tpu.memory_space<any>>) dst(%arg15 : memref<128x256xbf16, #tpu.memory_space<vmem>>)
    %19 = arith.truncf %16 : vector<64x128xf32> to vector<64x128xbf16>
    %c0_7 = arith.constant 0 : index
    %c0_8 = arith.constant 0 : index
    %20 = vector.load %arg15[%c0_7, %c0_8] : memref<128x256xbf16, #tpu.memory_space<vmem>>, vector<128x256xbf16>
    %cst_9 = arith.constant dense<0.000000e+00> : vector<64x256xf32>
    %21 = tpu.matmul %19, %20, %cst_9 {dimension_numbers = #tpu.dot_dimension_numbers<[1], [0], [0], [1], [0, 0, 1, 1], [], []>} : vector<64x128xbf16>, vector<128x256xbf16>, vector<64x256xf32> -> vector<64x256xf32>
    %cst_10 = arith.constant dense<0.000000e+00> : vector<256xf32>
    %22 = vector.multi_reduction <add>, %21, %cst_10 [0] : vector<64x256xf32> to vector<256xf32>
    %23 = vector.shape_cast %22 : vector<256xf32> to vector<1x256xf32>
    %cst_11 = arith.constant 6.400000e+01 : f32
    %24 = vector.broadcast %cst_11 : f32 to vector<1x256xf32>
    %25 = arith.divf %23, %24 : vector<1x256xf32>
    %26 = arith.mulf %21, %21 : vector<64x256xf32>
    %cst_12 = arith.constant dense<0.000000e+00> : vector<256xf32>
    %27 = vector.multi_reduction <add>, %26, %cst_12 [0] : vector<64x256xf32> to vector<256xf32>
    %28 = vector.shape_cast %27 : vector<256xf32> to vector<1x256xf32>
    %cst_13 = arith.constant 6.400000e+01 : f32
    %29 = vector.broadcast %cst_13 : f32 to vector<1x256xf32>
    %30 = arith.divf %28, %29 : vector<1x256xf32>
    %31 = arith.mulf %25, %25 : vector<1x256xf32>
    %32 = arith.subf %30, %31 : vector<1x256xf32>
    %c0_14 = arith.constant 0 : index
    %c0_15 = arith.constant 0 : index
    %33 = vector.load %arg3[%c0_14, %c0_15] : memref<1x256xf32, #tpu.memory_space<vmem>>, vector<1x256xf32>
    %cst_16 = arith.constant 8.000000e-01 : f32
    %34 = vector.broadcast %cst_16 : f32 to vector<1x256xf32>
    %35 = arith.addf %32, %34 : vector<1x256xf32>
    %36 = math.rsqrt %35 : vector<1x256xf32>
    %37 = arith.mulf %33, %36 : vector<1x256xf32>
    %c0_17 = arith.constant 0 : index
    %c0_18 = arith.constant 0 : index
    %38 = vector.load %arg4[%c0_17, %c0_18] : memref<1x256xf32, #tpu.memory_space<vmem>>, vector<1x256xf32>
    %39 = arith.mulf %25, %37 : vector<1x256xf32>
    %40 = arith.subf %38, %39 : vector<1x256xf32>
    %41 = vector.broadcast %37 : vector<1x256xf32> to vector<64x256xf32>
    %42 = arith.mulf %21, %41 : vector<64x256xf32>
    %43 = vector.broadcast %40 : vector<1x256xf32> to vector<64x256xf32>
    %44 = arith.addf %42, %43 : vector<64x256xf32>
    %cst_19 = arith.constant 0.000000e+00 : f32
    %45 = vector.broadcast %cst_19 : f32 to vector<64x256xf32>
    %46 = arith.maximumf %44, %45 : vector<64x256xf32>
    %c1_i32_20 = arith.constant 1 : i32
    %47 = tpu.memref_slice %arg19[%c1_i32_20] : memref<4x!tpu.dma_semaphore, #tpu.memory_space<semaphore_mem>> -> memref<1x!tpu.dma_semaphore, #tpu.memory_space<semaphore_mem>>
    %48 = tpu.memref_squeeze %47 : memref<1x!tpu.dma_semaphore, #tpu.memory_space<semaphore_mem>> -> memref<!tpu.dma_semaphore, #tpu.memory_space<semaphore_mem>>
    tpu.wait_dma2 semaphore(%48 : memref<!tpu.dma_semaphore, #tpu.memory_space<semaphore_mem>>) src(%arg11 : memref<256x512xbf16, #tpu.memory_space<any>>) dst(%arg16 : memref<256x512xbf16, #tpu.memory_space<vmem>>)
    %49 = arith.truncf %46 : vector<64x256xf32> to vector<64x256xbf16>
    %c0_21 = arith.constant 0 : index
    %c0_22 = arith.constant 0 : index
    %50 = vector.load %arg16[%c0_21, %c0_22] : memref<256x512xbf16, #tpu.memory_space<vmem>>, vector<256x512xbf16>
    %cst_23 = arith.constant dense<0.000000e+00> : vector<64x512xf32>
    %51 = tpu.matmul %49, %50, %cst_23 {dimension_numbers = #tpu.dot_dimension_numbers<[1], [0], [0], [1], [0, 0, 1, 1], [], []>} : vector<64x256xbf16>, vector<256x512xbf16>, vector<64x512xf32> -> vector<64x512xf32>
    %cst_24 = arith.constant dense<0.000000e+00> : vector<512xf32>
    %52 = vector.multi_reduction <add>, %51, %cst_24 [0] : vector<64x512xf32> to vector<512xf32>
    %53 = vector.shape_cast %52 : vector<512xf32> to vector<1x512xf32>
    %cst_25 = arith.constant 6.400000e+01 : f32
    %54 = vector.broadcast %cst_25 : f32 to vector<1x512xf32>
    %55 = arith.divf %53, %54 : vector<1x512xf32>
    %56 = arith.mulf %51, %51 : vector<64x512xf32>
    %cst_26 = arith.constant dense<0.000000e+00> : vector<512xf32>
    %57 = vector.multi_reduction <add>, %56, %cst_26 [0] : vector<64x512xf32> to vector<512xf32>
    %58 = vector.shape_cast %57 : vector<512xf32> to vector<1x512xf32>
    %cst_27 = arith.constant 6.400000e+01 : f32
    %59 = vector.broadcast %cst_27 : f32 to vector<1x512xf32>
    %60 = arith.divf %58, %59 : vector<1x512xf32>
    %61 = arith.mulf %55, %55 : vector<1x512xf32>
    %62 = arith.subf %60, %61 : vector<1x512xf32>
    %c0_28 = arith.constant 0 : index
    %c0_29 = arith.constant 0 : index
    %63 = vector.load %arg5[%c0_28, %c0_29] : memref<1x512xf32, #tpu.memory_space<vmem>>, vector<1x512xf32>
    %cst_30 = arith.constant 8.000000e-01 : f32
    %64 = vector.broadcast %cst_30 : f32 to vector<1x512xf32>
    %65 = arith.addf %62, %64 : vector<1x512xf32>
    %66 = math.rsqrt %65 : vector<1x512xf32>
    %67 = arith.mulf %63, %66 : vector<1x512xf32>
    %c0_31 = arith.constant 0 : index
    %c0_32 = arith.constant 0 : index
    %68 = vector.load %arg6[%c0_31, %c0_32] : memref<1x512xf32, #tpu.memory_space<vmem>>, vector<1x512xf32>
    %69 = arith.mulf %55, %67 : vector<1x512xf32>
    %70 = arith.subf %68, %69 : vector<1x512xf32>
    %71 = vector.broadcast %67 : vector<1x512xf32> to vector<64x512xf32>
    %72 = arith.mulf %51, %71 : vector<64x512xf32>
    %73 = vector.broadcast %70 : vector<1x512xf32> to vector<64x512xf32>
    %74 = arith.addf %72, %73 : vector<64x512xf32>
    %cst_33 = arith.constant 0.000000e+00 : f32
    %75 = vector.broadcast %cst_33 : f32 to vector<64x512xf32>
    %76 = arith.maximumf %74, %75 : vector<64x512xf32>
    %c2_i32_34 = arith.constant 2 : i32
    %77 = tpu.memref_slice %arg19[%c2_i32_34] : memref<4x!tpu.dma_semaphore, #tpu.memory_space<semaphore_mem>> -> memref<1x!tpu.dma_semaphore, #tpu.memory_space<semaphore_mem>>
    %78 = tpu.memref_squeeze %77 : memref<1x!tpu.dma_semaphore, #tpu.memory_space<semaphore_mem>> -> memref<!tpu.dma_semaphore, #tpu.memory_space<semaphore_mem>>
    tpu.wait_dma2 semaphore(%78 : memref<!tpu.dma_semaphore, #tpu.memory_space<semaphore_mem>>) src(%arg12 : memref<512x1024xbf16, #tpu.memory_space<any>>) dst(%arg17 : memref<512x1024xbf16, #tpu.memory_space<vmem>>)
    %79 = arith.truncf %76 : vector<64x512xf32> to vector<64x512xbf16>
    %c0_35 = arith.constant 0 : index
    %c0_36 = arith.constant 0 : index
    %80 = vector.load %arg17[%c0_35, %c0_36] : memref<512x1024xbf16, #tpu.memory_space<vmem>>, vector<512x1024xbf16>
    %cst_37 = arith.constant dense<0.000000e+00> : vector<64x1024xf32>
    %81 = tpu.matmul %79, %80, %cst_37 {dimension_numbers = #tpu.dot_dimension_numbers<[1], [0], [0], [1], [0, 0, 1, 1], [], []>} : vector<64x512xbf16>, vector<512x1024xbf16>, vector<64x1024xf32> -> vector<64x1024xf32>
    %cst_38 = arith.constant dense<0.000000e+00> : vector<1024xf32>
    %82 = vector.multi_reduction <add>, %81, %cst_38 [0] : vector<64x1024xf32> to vector<1024xf32>
    %83 = vector.shape_cast %82 : vector<1024xf32> to vector<1x1024xf32>
    %cst_39 = arith.constant 6.400000e+01 : f32
    %84 = vector.broadcast %cst_39 : f32 to vector<1x1024xf32>
    %85 = arith.divf %83, %84 : vector<1x1024xf32>
    %86 = arith.mulf %81, %81 : vector<64x1024xf32>
    %cst_40 = arith.constant dense<0.000000e+00> : vector<1024xf32>
    %87 = vector.multi_reduction <add>, %86, %cst_40 [0] : vector<64x1024xf32> to vector<1024xf32>
    %88 = vector.shape_cast %87 : vector<1024xf32> to vector<1x1024xf32>
    %cst_41 = arith.constant 6.400000e+01 : f32
    %89 = vector.broadcast %cst_41 : f32 to vector<1x1024xf32>
    %90 = arith.divf %88, %89 : vector<1x1024xf32>
    %91 = arith.mulf %85, %85 : vector<1x1024xf32>
    %92 = arith.subf %90, %91 : vector<1x1024xf32>
    %c0_42 = arith.constant 0 : index
    %c0_43 = arith.constant 0 : index
    %93 = vector.load %arg7[%c0_42, %c0_43] : memref<1x1024xf32, #tpu.memory_space<vmem>>, vector<1x1024xf32>
    %cst_44 = arith.constant 8.000000e-01 : f32
    %94 = vector.broadcast %cst_44 : f32 to vector<1x1024xf32>
    %95 = arith.addf %92, %94 : vector<1x1024xf32>
    %96 = math.rsqrt %95 : vector<1x1024xf32>
    %97 = arith.mulf %93, %96 : vector<1x1024xf32>
    %c0_45 = arith.constant 0 : index
    %c0_46 = arith.constant 0 : index
    %98 = vector.load %arg8[%c0_45, %c0_46] : memref<1x1024xf32, #tpu.memory_space<vmem>>, vector<1x1024xf32>
    %99 = arith.mulf %85, %97 : vector<1x1024xf32>
    %100 = arith.subf %98, %99 : vector<1x1024xf32>
    %101 = vector.broadcast %97 : vector<1x1024xf32> to vector<64x1024xf32>
    %102 = arith.mulf %81, %101 : vector<64x1024xf32>
    %103 = vector.broadcast %100 : vector<1x1024xf32> to vector<64x1024xf32>
    %104 = arith.addf %102, %103 : vector<64x1024xf32>
    %cst_47 = arith.constant 0.000000e+00 : f32
    %105 = vector.broadcast %cst_47 : f32 to vector<64x1024xf32>
    %106 = arith.maximumf %104, %105 : vector<64x1024xf32>
    %c3_i32_48 = arith.constant 3 : i32
    %107 = tpu.memref_slice %arg19[%c3_i32_48] : memref<4x!tpu.dma_semaphore, #tpu.memory_space<semaphore_mem>> -> memref<1x!tpu.dma_semaphore, #tpu.memory_space<semaphore_mem>>
    %108 = tpu.memref_squeeze %107 : memref<1x!tpu.dma_semaphore, #tpu.memory_space<semaphore_mem>> -> memref<!tpu.dma_semaphore, #tpu.memory_space<semaphore_mem>>
    tpu.wait_dma2 semaphore(%108 : memref<!tpu.dma_semaphore, #tpu.memory_space<semaphore_mem>>) src(%arg13 : memref<1024x1024xbf16, #tpu.memory_space<any>>) dst(%arg18 : memref<1024x1024xbf16, #tpu.memory_space<vmem>>)
    %109 = arith.truncf %106 : vector<64x1024xf32> to vector<64x1024xbf16>
    %c0_49 = arith.constant 0 : index
    %c0_50 = arith.constant 0 : index
    %110 = vector.load %arg18[%c0_49, %c0_50] : memref<1024x1024xbf16, #tpu.memory_space<vmem>>, vector<1024x1024xbf16>
    %cst_51 = arith.constant dense<0.000000e+00> : vector<64x1024xf32>
    %111 = tpu.matmul %109, %110, %cst_51 {dimension_numbers = #tpu.dot_dimension_numbers<[1], [0], [0], [1], [0, 0, 1, 1], [], []>} : vector<64x1024xbf16>, vector<1024x1024xbf16>, vector<64x1024xf32> -> vector<64x1024xf32>
    %c0_52 = arith.constant 0 : index
    %c0_53 = arith.constant 0 : index
    %112 = vector.load %arg9[%c0_52, %c0_53] : memref<1x1024xf32, #tpu.memory_space<vmem>>, vector<1x1024xf32>
    %113 = vector.broadcast %112 : vector<1x1024xf32> to vector<64x1024xf32>
    %114 = arith.addf %111, %113 : vector<64x1024xf32>
    %115 = math.tanh %114 : vector<64x1024xf32>
    %c0_54 = arith.constant 0 : index
    %c0_55 = arith.constant 0 : index
    %116 = vector.load %arg14[%c0_54, %c0_55] : memref<64x1024xf32, #tpu.memory_space<vmem>>, vector<64x1024xf32>
    tpu.vector_store %arg14[%c0_54, %c0_55], %115 {strides = array<i32>} : memref<64x1024xf32, #tpu.memory_space<vmem>>, vector<64x1024xf32>,
    return
  }
}

</mosaic_0001>

<llo_original>
// kernel: tpu_custom_call.1
$region0: #{tpu_custom_call.1}
  #allocation0 [shape = 'u32[]', space=smem, size = 0x4, offset = 0x4, fixed_abs, tag = 'smem constant byte address 0x4 - core index']
  #allocation1 [shape = 'u32[72,128]{1,0:T(1,128)}', space=vmem, size = 0x9000, scoped, tag = 'internal scratch']
  #allocation2 [shape = 'bf16[128,256]{1,0:T(8,128)(2,1)}', space=vmem, size = 0x10000, scoped, tag = 'scratch operand']
  #allocation3 [shape = 'bf16[256,512]{1,0:T(8,128)(2,1)}', space=vmem, size = 0x40000, scoped, tag = 'scratch operand']
  #allocation4 [shape = 'bf16[512,1024]{1,0:T(8,128)(2,1)}', space=vmem, size = 0x100000, scoped, tag = 'scratch operand']
  #allocation5 [shape = 'bf16[1024,1024]{1,0:T(8,128)(2,1)}', space=vmem, size = 0x200000, scoped, tag = 'scratch operand']
  #allocation6 [shape = 's32[4]{0}', space=sflag, size = 0x10, scoped, tag = 'scratch operand']
  #allocation23 [shape = 's32[]', space=sflag, size = 0x4, offset = 0, fixed_abs, tag = 'sflag constant byte address 0x0 - dummy sync flag']
  #allocation24 [shape = 's32[]', space=sflag, size = 0x4, offset = 0, fixed_abs, tag = 'sflag constant byte address 0x0 - dummy sync flag']
  #allocation25 [shape = 'u32[]', space=smem, size = 0x4, offset = 0x44, fixed_abs, tag = 'smem constant byte address 0x44 - assertion arg 0']
  #allocation26 [shape = 'u32[]', space=smem, size = 0x4, offset = 0x48, fixed_abs, tag = 'smem constant byte address 0x48 - assertion arg 1']
  #allocation27 [shape = 's32[]', space=sflag, size = 0x4, offset = 0, fixed_abs, tag = 'sflag constant byte address 0x0 - dummy sync flag']
  #allocation28 [shape = 's32[]', space=sflag, size = 0x4, offset = 0, fixed_abs, tag = 'sflag constant byte address 0x0 - dummy sync flag']
  #allocation29 [shape = 's32[]', space=sflag, size = 0x4, offset = 0, fixed_abs, tag = 'sflag constant byte address 0x0 - dummy sync flag']
  #allocation30 [shape = 's32[]', space=sflag, size = 0x4, offset = 0, fixed_abs, tag = 'sflag constant byte address 0x0 - dummy sync flag']
  #allocation31 [shape = 's32[]', space=sflag, size = 0x4, offset = 0, fixed_abs, tag = 'sflag constant byte address 0x0 - dummy sync flag']
  #allocation32 [shape = 's32[]', space=sflag, size = 0x4, offset = 0, fixed_abs, tag = 'sflag constant byte address 0x0 - dummy sync flag']
  %s0 = inlined_call_operand.vmem [shape: f32[64,32], index: 0, kind: input, shape index: {}]
  %s1 = inlined_call_operand.hbm [shape: bf16[32,128], index: 1, kind: input, shape index: {}]
  %s2 = inlined_call_operand.hbm [shape: f32[1,128], index: 2, kind: input, shape index: {}]
  %s3 = inlined_call_operand.hbm [shape: f32[1,256], index: 3, kind: input, shape index: {}]
  %s4 = inlined_call_operand.hbm [shape: f32[1,256], index: 4, kind: input, shape index: {}]
  %s5 = inlined_call_operand.hbm [shape: f32[1,512], index: 5, kind: input, shape index: {}]
  %s6 = inlined_call_operand.hbm [shape: f32[1,512], index: 6, kind: input, shape index: {}]
  %s7 = inlined_call_operand.hbm [shape: f32[1,1024], index: 7, kind: input, shape index: {}]
  %s8 = inlined_call_operand.hbm [shape: f32[1,1024], index: 8, kind: input, shape index: {}]
  %s9 = inlined_call_operand.hbm [shape: f32[1,1024], index: 9, kind: input, shape index: {}]
  %s10 = inlined_call_operand.hbm [shape: bf16[128,256], index: 10, kind: input, shape index: {}]
  %s11 = inlined_call_operand.hbm [shape: bf16[256,512], index: 11, kind: input, shape index: {}]
  %s12 = inlined_call_operand.hbm [shape: bf16[512,1024], index: 12, kind: input, shape index: {}]
  %s13 = inlined_call_operand.hbm [shape: bf16[1024,1024], index: 13, kind: input, shape index: {}]
  %s14 = inlined_call_operand.hbm [shape: f32[64,1024], index: 14, kind: output, shape index: {}]
  %s15 = sld [smem:[#allocation0]]
  $region102: #{tpu_custom_call.1} parent=0
    _
  %s17 = ssub.s32 1, %s15
  %s18 = scalar_select 0, %s17, %s15
  $region1: #{tpu_custom_call.1} parent=0
    #allocation7 [shape = 'u8[8192]{0}', space=vmem, size = 0x2000, scoped, tag = 'input window, operand 1, single buffered']
    #allocation8 [shape = 's32[1]{0}', space=sflag, size = 0x4, scoped, tag = 'scoped memory for tpu_custom_call.1']
    #allocation9 [shape = 's32[1]{0}', space=sflag, size = 0x4, scoped, tag = 'scoped memory for tpu_custom_call.1']
    #allocation10 [shape = 'u8[512]{0}', space=vmem, size = 0x400, scoped, tag = 'input window, operand 2, single buffered']
    #allocation11 [shape = 's32[1]{0}', space=sflag, size = 0x4, scoped, tag = 'scoped memory for tpu_custom_call.1']
    #allocation12 [shape = 'u8[1024]{0}', space=vmem, size = 0x400, scoped, tag = 'input window, operand 3, single buffered']
    #allocation13 [shape = 'u8[1024]{0}', space=vmem, size = 0x400, scoped, tag = 'input window, operand 4, single buffered']
    #allocation14 [shape = 's32[1]{0}', space=sflag, size = 0x4, scoped, tag = 'scoped memory for tpu_custom_call.1']
    #allocation15 [shape = 'u8[2048]{0}', space=vmem, size = 0x800, scoped, tag = 'input window, operand 5, single buffered']
    #allocation16 [shape = 'u8[2048]{0}', space=vmem, size = 0x800, scoped, tag = 'input window, operand 6, single buffered']
    #allocation17 [shape = 's32[1]{0}', space=sflag, size = 0x4, scoped, tag = 'scoped memory for tpu_custom_call.1']
    #allocation18 [shape = 'u8[4096]{0}', space=vmem, size = 0x1000, scoped, tag = 'input window, operand 7, single buffered']
    #allocation19 [shape = 'u8[4096]{0}', space=vmem, size = 0x1000, scoped, tag = 'input window, operand 8, single buffered']
    #allocation20 [shape = 's32[1]{0}', space=sflag, size = 0x4, scoped, tag = 'scoped memory for tpu_custom_call.1']
    #allocation21 [shape = 'u8[4096]{0}', space=vmem, size = 0x1000, scoped, tag = 'input window, operand 9, single buffered']
    #allocation22 [shape = 'u8[262144]{0}', space=vmem, size = 0x40000, scoped, tag = 'output window, operand 0, single buffered']
    %19 = vsyncpa [#allocation8], 0
    %20 = vsyncpa [#allocation11], 0
    %21 = vsyncpa [#allocation14], 0
    %22 = vsyncpa [#allocation17], 0
    %23 = vsyncpa [#allocation20], 0
    %24 = vsyncpa [#allocation9], 0
    // Predicated region
    $region2: #{tpu_custom_call.1} parent=1 // pred_check
      _
    $region3: #{tpu_custom_call.1} parent=1 // pred_check_branch
      %26 = sbr.rel (0) target = $region5
    $region4: #{tpu_custom_call.1} parent=1 // pred_region
      _
    $region5: #{tpu_custom_call.1} parent=1 // pred_fallthru
      _
    // Predicated region
    $region6: #{tpu_custom_call.1} parent=1 // pred_check
      _
    $region7: #{tpu_custom_call.1} parent=1 // pred_check_branch
      %28 = sbr.rel (0) target = $region9
    $region8: #{tpu_custom_call.1} parent=1 // pred_region
      %30 = vsyncadd [#allocation8], 0
      %s31 = sshll.u32 %s1, 4
      %s32 = int_to_ptr.hbm [resolvable:$true] %s31
      %s33 = sshll.u32 [#allocation7], 4
      %s34 = int_to_ptr.vmem [resolvable:$true] %s33
      %39 = dma.hbm_to_vmem [thread:$0]  %s32, 256, %s34, [#allocation8], 64, 64, 4
    $region9: #{tpu_custom_call.1} parent=1 // pred_fallthru
      _
    // Predicated region
    $region10: #{tpu_custom_call.1} parent=1 // pred_check
      _
    $region11: #{tpu_custom_call.1} parent=1 // pred_check_branch
      %41 = sbr.rel (0) target = $region13
    $region12: #{tpu_custom_call.1} parent=1 // pred_region
      %43 = vsyncadd [#allocation11], 0
      %s45 = sshll.u32 %s2, 4
      %s46 = int_to_ptr.hbm [resolvable:$true] %s45
      %s47 = sshll.u32 [#allocation10], 4
      %s48 = int_to_ptr.vmem [resolvable:$true] %s47
      %50 = dma.hbm_to_vmem [thread:$0]  %s46, 16, %s48, [#allocation11]
    $region13: #{tpu_custom_call.1} parent=1 // pred_fallthru
      _
    // Predicated region
    $region14: #{tpu_custom_call.1} parent=1 // pred_check
      _
    $region15: #{tpu_custom_call.1} parent=1 // pred_check_branch
      %52 = sbr.rel (0) target = $region17
    $region16: #{tpu_custom_call.1} parent=1 // pred_region
      %54 = vsyncadd [#allocation11], 0
      %s56 = sshll.u32 %s3, 4
      %s57 = int_to_ptr.hbm [resolvable:$true] %s56
      %s58 = sshll.u32 [#allocation12], 4
      %s59 = int_to_ptr.vmem [resolvable:$true] %s58
      %61 = dma.hbm_to_vmem [thread:$0]  %s57, 32, %s59, [#allocation11]
    $region17: #{tpu_custom_call.1} parent=1 // pred_fallthru
      _
    // Predicated region
    $region18: #{tpu_custom_call.1} parent=1 // pred_check
      _
    $region19: #{tpu_custom_call.1} parent=1 // pred_check_branch
      %63 = sbr.rel (0) target = $region21
    $region20: #{tpu_custom_call.1} parent=1 // pred_region
      %65 = vsyncadd [#allocation14], 0
      %s67 = sshll.u32 %s4, 4
      %s68 = int_to_ptr.hbm [resolvable:$true] %s67
      %s69 = sshll.u32 [#allocation13], 4
      %s70 = int_to_ptr.vmem [resolvable:$true] %s69
      %72 = dma.hbm_to_vmem [thread:$0]  %s68, 32, %s70, [#allocation14]
    $region21: #{tpu_custom_call.1} parent=1 // pred_fallthru
      _
    // Predicated region
    $region22: #{tpu_custom_call.1} parent=1 // pred_check
      _
    $region23: #{tpu_custom_call.1} parent=1 // pred_check_branch
      %74 = sbr.rel (0) target = $region25
    $region24: #{tpu_custom_call.1} parent=1 // pred_region
      %76 = vsyncadd [#allocation14], 0
      %s78 = sshll.u32 %s5, 4
      %s79 = int_to_ptr.hbm [resolvable:$true] %s78
      %s80 = sshll.u32 [#allocation15], 4
      %s81 = int_to_ptr.vmem [resolvable:$true] %s80
      %83 = dma.hbm_to_vmem [thread:$0]  %s79, 64, %s81, [#allocation14]
    $region25: #{tpu_custom_call.1} parent=1 // pred_fallthru
      _
    // Predicated region
    $region26: #{tpu_custom_call.1} parent=1 // pred_check
      _
    $region27: #{tpu_custom_call.1} parent=1 // pred_check_branch
      %85 = sbr.rel (0) target = $region29
    $region28: #{tpu_custom_call.1} parent=1 // pred_region
      %87 = vsyncadd [#allocation17], 0
      %s89 = sshll.u32 %s6, 4
      %s90 = int_to_ptr.hbm [resolvable:$true] %s89
      %s91 = sshll.u32 [#allocation16], 4
      %s92 = int_to_ptr.vmem [resolvable:$true] %s91
      %94 = dma.hbm_to_vmem [thread:$0]  %s90, 64, %s92, [#allocation17]
    $region29: #{tpu_custom_call.1} parent=1 // pred_fallthru
      _
    // Predicated region
    $region30: #{tpu_custom_call.1} parent=1 // pred_check
      _
    $region31: #{tpu_custom_call.1} parent=1 // pred_check_branch
      %96 = sbr.rel (0) target = $region33
    $region32: #{tpu_custom_call.1} parent=1 // pred_region
      %98 = vsyncadd [#allocation17], 0
      %s100 = sshll.u32 %s7, 4
      %s101 = int_to_ptr.hbm [resolvable:$true] %s100
      %s102 = sshll.u32 [#allocation18], 4
      %s103 = int_to_ptr.vmem [resolvable:$true] %s102
      %105 = dma.hbm_to_vmem [thread:$0]  %s101, 128, %s103, [#allocation17]
    $region33: #{tpu_custom_call.1} parent=1 // pred_fallthru
      _
    // Predicated region
    $region34: #{tpu_custom_call.1} parent=1 // pred_check
      _
    $region35: #{tpu_custom_call.1} parent=1 // pred_check_branch
      %107 = sbr.rel (0) target = $region37
    $region36: #{tpu_custom_call.1} parent=1 // pred_region
      %109 = vsyncadd [#allocation20], 0
      %s111 = sshll.u32 %s8, 4
      %s112 = int_to_ptr.hbm [resolvable:$true] %s111
      %s113 = sshll.u32 [#allocation19], 4
      %s114 = int_to_ptr.vmem [resolvable:$true] %s113
      %116 = dma.hbm_to_vmem [thread:$0]  %s112, 128, %s114, [#allocation20]
    $region37: #{tpu_custom_call.1} parent=1 // pred_fallthru
      _
    // Predicated region
    $region38: #{tpu_custom_call.1} parent=1 // pred_check
      _
    $region39: #{tpu_custom_call.1} parent=1 // pred_check_branch
      %118 = sbr.rel (0) target = $region41
    $region40: #{tpu_custom_call.1} parent=1 // pred_region
      %120 = vsyncadd [#allocation20], 0
      %s122 = sshll.u32 %s9, 4
      %s123 = int_to_ptr.hbm [resolvable:$true] %s122
      %s124 = sshll.u32 [#allocation21], 4
      %s125 = int_to_ptr.vmem [resolvable:$true] %s124
      %127 = dma.hbm_to_vmem [thread:$0]  %s123, 128, %s125, [#allocation20]
    $region41: #{tpu_custom_call.1} parent=1 // pred_fallthru
      _
    // Predicated region
    $region42: #{tpu_custom_call.1} parent=1 // pred_check
      _
    $region43: #{tpu_custom_call.1} parent=1 // pred_check_branch
      %129 = sbr.rel (0) target = $region45
    $region44: #{tpu_custom_call.1} parent=1 // pred_region
      %131 = dma.done [#allocation8], 256
    $region45: #{tpu_custom_call.1} parent=1 // pred_fallthru
      _
    // Predicated region
    $region46: #{tpu_custom_call.1} parent=1 // pred_check
      _
    $region47: #{tpu_custom_call.1} parent=1 // pred_check_branch
      %133 = sbr.rel (0) target = $region49
    $region48: #{tpu_custom_call.1} parent=1 // pred_region
      %135 = dma.done [#allocation11], 16
    $region49: #{tpu_custom_call.1} parent=1 // pred_fallthru
      _
    // Predicated region
    $region50: #{tpu_custom_call.1} parent=1 // pred_check
      _
    $region51: #{tpu_custom_call.1} parent=1 // pred_check_branch
      %137 = sbr.rel (0) target = $region53
    $region52: #{tpu_custom_call.1} parent=1 // pred_region
      %139 = dma.done [#allocation11], 32
    $region53: #{tpu_custom_call.1} parent=1 // pred_fallthru
      _
    // Predicated region
    $region54: #{tpu_custom_call.1} parent=1 // pred_check
      _
    $region55: #{tpu_custom_call.1} parent=1 // pred_check_branch
      %141 = sbr.rel (0) target = $region57
    $region56: #{tpu_custom_call.1} parent=1 // pred_region
      %143 = dma.done [#allocation14], 32
    $region57: #{tpu_custom_call.1} parent=1 // pred_fallthru
      _
    // Predicated region
    $region58: #{tpu_custom_call.1} parent=1 // pred_check
      _
    $region59: #{tpu_custom_call.1} parent=1 // pred_check_branch
      %145 = sbr.rel (0) target = $region61
    $region60: #{tpu_custom_call.1} parent=1 // pred_region
      %147 = dma.done [#allocation14], 64
    $region61: #{tpu_custom_call.1} parent=1 // pred_fallthru
      _
    // Predicated region
    $region62: #{tpu_custom_call.1} parent=1 // pred_check
      _
    $region63: #{tpu_custom_call.1} parent=1 // pred_check_branch
      %149 = sbr.rel (0) target = $region65
    $region64: #{tpu_custom_call.1} parent=1 // pred_region
      %151 = dma.done [#allocation17], 64
    $region65: #{tpu_custom_call.1} parent=1 // pred_fallthru
      _
    // Predicated region
    $region66: #{tpu_custom_call.1} parent=1 // pred_check
      _
    $region67: #{tpu_custom_call.1} parent=1 // pred_check_branch
      %153 = sbr.rel (0) target = $region69
    $region68: #{tpu_custom_call.1} parent=1 // pred_region
      %155 = dma.done [#allocation17], 128
    $region69: #{tpu_custom_call.1} parent=1 // pred_fallthru
      _
    // Predicated region
    $region70: #{tpu_custom_call.1} parent=1 // pred_check
      _
    $region71: #{tpu_custom_call.1} parent=1 // pred_check_branch
      %157 = sbr.rel (0) target = $region73
    $region72: #{tpu_custom_call.1} parent=1 // pred_region
      %159 = dma.done [#allocation20], 128
    $region73: #{tpu_custom_call.1} parent=1 // pred_fallthru
      _
    // Predicated region
    $region74: #{tpu_custom_call.1} parent=1 // pred_check
      _
    $region75: #{tpu_custom_call.1} parent=1 // pred_check_branch
      %161 = sbr.rel (0) target = $region77
    $region76: #{tpu_custom_call.1} parent=1 // pred_region
      %163 = dma.done [#allocation20], 128
    $region77: #{tpu_custom_call.1} parent=1 // pred_fallthru
      _
    // Predicated region
    $region78: #{tpu_custom_call.1} parent=1 // pred_check
      _
    $region79: #{tpu_custom_call.1} parent=1 // pred_check_branch
      %166 = sbr.rel target = $region81
    $region80: #{tpu_custom_call.1} parent=1 // pred_region
      %167 = sst [smem:[#allocation25]] [#allocation24]
      %168 = sst [smem:[#allocation26]] [#allocation23]
    $region81: #{tpu_custom_call.1} parent=1 // pred_fallthru
      _
    %170 = shalt.err (0)
    %s172 = sshll.u32 %s10, 4
    %s173 = int_to_ptr.hbm [resolvable:$true] %s172
    %s174 = sshll.u32 [#allocation2], 4
    %s175 = int_to_ptr.vmem [resolvable:$true] %s174
    %177 = dma.hbm_to_vmem [thread:$0]  %s173, 2048, %s175, [#allocation6]
    %s178 = scalar_lea.sflag [#allocation6], 1
    // Predicated region
    $region82: #{tpu_custom_call.1} parent=1 // pred_check
      _
    $region83: #{tpu_custom_call.1} parent=1 // pred_check_branch
      %180 = sbr.rel target = $region85
    $region84: #{tpu_custom_call.1} parent=1 // pred_region
      %181 = sst [smem:[#allocation25]] [#allocation28]
      %182 = sst [smem:[#allocation26]] [#allocation27]
    $region85: #{tpu_custom_call.1} parent=1 // pred_fallthru
      _
    %184 = shalt.err (0)
    %s186 = sshll.u32 %s11, 4
    %s187 = int_to_ptr.hbm [resolvable:$true] %s186
    %s188 = sshll.u32 [#allocation3], 4
    %s189 = int_to_ptr.vmem [resolvable:$true] %s188
    %191 = dma.hbm_to_vmem [thread:$0]  %s187, 8192, %s189, %s178
    %s192 = scalar_lea.sflag [#allocation6], 2
    // Predicated region
    $region86: #{tpu_custom_call.1} parent=1 // pred_check
      _
    $region87: #{tpu_custom_call.1} parent=1 // pred_check_branch
      %194 = sbr.rel target = $region89
    $region88: #{tpu_custom_call.1} parent=1 // pred_region
      %195 = sst [smem:[#allocation25]] [#allocation30]
      %196 = sst [smem:[#allocation26]] [#allocation29]
    $region89: #{tpu_custom_call.1} parent=1 // pred_fallthru
      _
    %198 = shalt.err (0)
    %s200 = sshll.u32 %s12, 4
    %s201 = int_to_ptr.hbm [resolvable:$true] %s200
    %s202 = sshll.u32 [#allocation4], 4
    %s203 = int_to_ptr.vmem [resolvable:$true] %s202
    %205 = dma.hbm_to_vmem [thread:$0]  %s201, 32768, %s203, %s192
    %s206 = scalar_lea.sflag [#allocation6], 3
    // Predicated region
    $region90: #{tpu_custom_call.1} parent=1 // pred_check
      _
    $region91: #{tpu_custom_call.1} parent=1 // pred_check_branch
      %208 = sbr.rel target = $region93
    $region92: #{tpu_custom_call.1} parent=1 // pred_region
      %209 = sst [smem:[#allocation25]] [#allocation32]
      %210 = sst [smem:[#allocation26]] [#allocation31]
    $region93: #{tpu_custom_call.1} parent=1 // pred_fallthru
      _
    %212 = shalt.err (0)
    %s214 = sshll.u32 %s13, 4
    %s215 = int_to_ptr.hbm [resolvable:$true] %s214
    %s216 = sshll.u32 [#allocation5], 4
    %s217 = int_to_ptr.vmem [resolvable:$true] %s216
    %219 = dma.hbm_to_vmem [thread:$0]  %s215, 65536, %s217, %s206
    %v220 = vld [vmem:[%s0] sm:$0xff]
    %v221 = vld [vmem:[%s0 + $0x8] sm:$0xff]
    %v222 = vld [vmem:[%s0 + $0x10] sm:$0xff]
    %v223 = vld [vmem:[%s0 + $0x18] sm:$0xff]
    %v224 = vld [vmem:[%s0 + $0x20] sm:$0xff]
    %v225 = vld [vmem:[%s0 + $0x28] sm:$0xff]
    %v226 = vld [vmem:[%s0 + $0x30] sm:$0xff]
    %v227 = vld [vmem:[%s0 + $0x38] sm:$0xff]
    %v228 = vpack.c.bf16 %v221, %v220
    %v229 = vpack.c.bf16 %v223, %v222
    %v230 = vpack.c.bf16 %v225, %v224
    %v231 = vpack.c.bf16 %v227, %v226
    %v232 = vld [vmem:[#allocation7] sm:$0xf]
    %v233 = vld [vmem:[#allocation7 + $0x4] sm:$0xf]
    %v234 = vld [vmem:[#allocation7 + $0x8] sm:$0xf]
    %v235 = vld [vmem:[#allocation7 + $0xc] sm:$0xf]
    %v236 = vld [vmem:[#allocation10] sm:$0x1]
    %v238 = vperm.slane %v236, 0
    %v244 = vunpack.c.l.b16 %v232
    %v245 = vunpack.c.l.b16 %v233
    %v246 = vunpack.c.l.b16 %v234
    %v247 = vunpack.c.l.b16 %v235
    %v248 = vpack.c.b16 %v245, %v244
    %v249 = vpack.c.b16 %v247, %v246
    %vm252 = vcmask 261120
    %v254 = vsel %vm252, %v228, 0
    %v257 = vsel %vm252, %v229, 0
    %v260 = vsel %vm252, %v230, 0
    %v263 = vsel %vm252, %v231, 0
    %265 = vmatpush.bf16.msra.mxu0 0
    %266 = vmatpush.bf16.msra.mxu0 0
    %267 = vmatpush.bf16.msra.mxu0 0
    %268 = vmatpush.bf16.msra.mxu0 0
    %269 = vmatpush.bf16.msra.mxu0 0
    %270 = vmatpush.bf16.msra.mxu0 0
    %271 = vmatpush.bf16.msra.mxu0 %v249
    %272 = vmatpush.bf16.msra.mxu0 %v248
    %273 = vmatmul.bf16.gmra.mxu0 %v254
    %v274 = vpop.f32.mrf.mxu0
    %v275 = vadd.f32 %v238, %v274
    %v276 = vpop.f32.mrf.mxu0
    %v277 = vadd.f32 %v238, %v276
    %278 = vmatmul.bf16.gmra.mxu0 %v257
    %v279 = vpop.f32.mrf.mxu0
    %v280 = vadd.f32 %v238, %v279
    %v281 = vpop.f32.mrf.mxu0
    %v282 = vadd.f32 %v238, %v281
    %283 = vmatmul.bf16.gmra.mxu0 %v260
    %v284 = vpop.f32.mrf.mxu0
    %v285 = vadd.f32 %v238, %v284
    %v286 = vpop.f32.mrf.mxu0
    %v287 = vadd.f32 %v238, %v286
    %288 = vmatmul.bf16.gmra.mxu0 %v263
    %v289 = vpop.f32.mrf.mxu0
    %v290 = vadd.f32 %v238, %v289
    %v291 = vpop.f32.mrf.mxu0
    %v292 = vadd.f32 %v238, %v291
    %293 = vdwg.mxu0
    %v294 = vmax.f32 %v275, 0.0
    %v295 = vmax.f32 %v277, 0.0
    %v296 = vmax.f32 %v280, 0.0
    %v297 = vmax.f32 %v282, 0.0
    %v298 = vmax.f32 %v285, 0.0
    %v299 = vmax.f32 %v287, 0.0
    %v300 = vmax.f32 %v290, 0.0
    %v301 = vmax.f32 %v292, 0.0
    %s302 = smul.u32 4, 16
    %s303 = smul.u32 %s302, 2
    %s304 = sshll.u32 %s303, 4
    %305 = dma.done [#allocation6], %s304
    %v306 = vpack.c.bf16 %v295, %v294
    %v307 = vpack.c.bf16 %v297, %v296
    %v308 = vpack.c.bf16 %v299, %v298
    %v309 = vpack.c.bf16 %v301, %v300
    %v310 = vld [vmem:[#allocation2] sm:$0xff]
    %v311 = vld [vmem:[#allocation2 + $0x8] sm:$0xff]
    %v312 = vld [vmem:[#allocation2 + $0x10] sm:$0xff]
    %v313 = vld [vmem:[#allocation2 + $0x18] sm:$0xff]
    %v314 = vld [vmem:[#allocation2 + $0x20] sm:$0xff]
    %v315 = vld [vmem:[#allocation2 + $0x28] sm:$0xff]
    %v316 = vld [vmem:[#allocation2 + $0x30] sm:$0xff]
    %v317 = vld [vmem:[#allocation2 + $0x38] sm:$0xff]
    %v318 = vld [vmem:[#allocation2 + $0x40] sm:$0xff]
    %v319 = vld [vmem:[#allocation2 + $0x48] sm:$0xff]
    %v320 = vld [vmem:[#allocation2 + $0x50] sm:$0xff]
    %v321 = vld [vmem:[#allocation2 + $0x58] sm:$0xff]
    %v322 = vld [vmem:[#allocation2 + $0x60] sm:$0xff]
    %v323 = vld [vmem:[#allocation2 + $0x68] sm:$0xff]
    %v324 = vld [vmem:[#allocation2 + $0x70] sm:$0xff]
    %v325 = vld [vmem:[#allocation2 + $0x78] sm:$0xff]
    %v342 = vunpack.c.l.b16 %v310
    %v343 = vunpack.c.h.b16 %v310
    %v344 = vunpack.c.l.b16 %v311
    %v345 = vunpack.c.h.b16 %v311
    %v346 = vunpack.c.l.b16 %v312
    %v347 = vunpack.c.h.b16 %v312
    %v348 = vunpack.c.l.b16 %v313
    %v349 = vunpack.c.h.b16 %v313
    %v350 = vunpack.c.l.b16 %v314
    %v351 = vunpack.c.h.b16 %v314
    %v352 = vunpack.c.l.b16 %v315
    %v353 = vunpack.c.h.b16 %v315
    %v354 = vunpack.c.l.b16 %v316
    %v355 = vunpack.c.h.b16 %v316
    %v356 = vunpack.c.l.b16 %v317
    %v357 = vunpack.c.h.b16 %v317
    %v358 = vunpack.c.l.b16 %v318
    %v359 = vunpack.c.h.b16 %v318
    %v360 = vunpack.c.l.b16 %v319
    %v361 = vunpack.c.h.b16 %v319
    %v362 = vunpack.c.l.b16 %v320
    %v363 = vunpack.c.h.b16 %v320
    %v364 = vunpack.c.l.b16 %v321
    %v365 = vunpack.c.h.b16 %v321
    %v366 = vunpack.c.l.b16 %v322
    %v367 = vunpack.c.h.b16 %v322
    %v368 = vunpack.c.l.b16 %v323
    %v369 = vunpack.c.h.b16 %v323
    %v370 = vunpack.c.l.b16 %v324
    %v371 = vunpack.c.h.b16 %v324
    %v372 = vunpack.c.l.b16 %v325
    %v373 = vunpack.c.h.b16 %v325
    %v374 = vpack.c.b16 %v344, %v342
    %v375 = vpack.c.b16 %v345, %v343
    %v376 = vpack.c.b16 %v348, %v346
    %v377 = vpack.c.b16 %v349, %v347
    %v378 = vpack.c.b16 %v352, %v350
    %v379 = vpack.c.b16 %v353, %v351
    %v380 = vpack.c.b16 %v356, %v354
    %v381 = vpack.c.b16 %v357, %v355
    %v382 = vpack.c.b16 %v360, %v358
    %v383 = vpack.c.b16 %v361, %v359
    %v384 = vpack.c.b16 %v364, %v362
    %v385 = vpack.c.b16 %v365, %v363
    %v386 = vpack.c.b16 %v368, %v366
    %v387 = vpack.c.b16 %v369, %v367
    %v388 = vpack.c.b16 %v372, %v370
    %v389 = vpack.c.b16 %v373, %v371
    %406 = vmatpush.bf16.msra.mxu0 %v388
    %407 = vmatpush.bf16.msra.mxu0 %v386
    %408 = vmatpush.bf16.msra.mxu0 %v384
    %409 = vmatpush.bf16.msra.mxu0 %v382
    %410 = vmatpush.bf16.msra.mxu0 %v380
    %411 = vmatpush.bf16.msra.mxu0 %v378
    %412 = vmatpush.bf16.msra.mxu0 %v376
    %413 = vmatpush.bf16.msra.mxu0 %v374
    %414 = vmatmul.bf16.gmra.mxu0 %v306
    %v415 = vpop.f32.mrf.mxu0
    %v416 = vadd.f32 0.0, %v415
    %v417 = vpop.f32.mrf.mxu0
    %v418 = vadd.f32 0.0, %v417
    %419 = vmatmul.bf16.gmra.mxu0 %v307
    %v420 = vpop.f32.mrf.mxu0
    %v421 = vadd.f32 0.0, %v420
    %v422 = vpop.f32.mrf.mxu0
    %v423 = vadd.f32 0.0, %v422
    %424 = vmatmul.bf16.gmra.mxu0 %v308
    %v425 = vpop.f32.mrf.mxu0
    %v426 = vadd.f32 0.0, %v425
    %v427 = vpop.f32.mrf.mxu0
    %v428 = vadd.f32 0.0, %v427
    %429 = vmatmul.bf16.gmra.mxu0 %v309
    %v430 = vpop.f32.mrf.mxu0
    %v431 = vadd.f32 0.0, %v430
    %v432 = vpop.f32.mrf.mxu0
    %v433 = vadd.f32 0.0, %v432
    %434 = vdwg.mxu0
    %435 = vmatpush.bf16.msra.mxu0 %v389
    %436 = vmatpush.bf16.msra.mxu0 %v387
    %437 = vmatpush.bf16.msra.mxu0 %v385
    %438 = vmatpush.bf16.msra.mxu0 %v383
    %439 = vmatpush.bf16.msra.mxu0 %v381
    %440 = vmatpush.bf16.msra.mxu0 %v379
    %441 = vmatpush.bf16.msra.mxu0 %v377
    %442 = vmatpush.bf16.msra.mxu0 %v375
    %443 = vmatmul.bf16.gmra.mxu0 %v306
    %v444 = vpop.f32.mrf.mxu0
    %v445 = vadd.f32 0.0, %v444
    %v446 = vpop.f32.mrf.mxu0
    %v447 = vadd.f32 0.0, %v446
    %448 = vmatmul.bf16.gmra.mxu0 %v307
    %v449 = vpop.f32.mrf.mxu0
    %v450 = vadd.f32 0.0, %v449
    %v451 = vpop.f32.mrf.mxu0
    %v452 = vadd.f32 0.0, %v451
    %453 = vmatmul.bf16.gmra.mxu0 %v308
    %v454 = vpop.f32.mrf.mxu0
    %v455 = vadd.f32 0.0, %v454
    %v456 = vpop.f32.mrf.mxu0
    %v457 = vadd.f32 0.0, %v456
    %458 = vmatmul.bf16.gmra.mxu0 %v309
    %v459 = vpop.f32.mrf.mxu0
    %v460 = vadd.f32 0.0, %v459
    %v461 = vpop.f32.mrf.mxu0
    %v462 = vadd.f32 0.0, %v461
    %463 = vdwg.mxu0
    %v464 = vadd.f32 %v416, %v418
    %v465 = vadd.f32 %v464, %v421
    %v466 = vadd.f32 %v465, %v423
    %v467 = vadd.f32 %v466, %v426
    %v468 = vadd.f32 %v467, %v428
    %v469 = vadd.f32 %v468, %v431
    %v470 = vadd.f32 %v469, %v433
    %v471 = vrot.slane %v470, 4
    %v472 = vadd.f32 %v470, %v471
    %v473 = vrot.slane %v472, 2
    %v474 = vadd.f32 %v472, %v473
    %v475 = vrot.slane %v474, 1
    %v476 = vadd.f32 %v474, %v475
    %v477 = vadd.f32 %v445, %v447
    %v478 = vadd.f32 %v477, %v450
    %v479 = vadd.f32 %v478, %v452
    %v480 = vadd.f32 %v479, %v455
    %v481 = vadd.f32 %v480, %v457
    %v482 = vadd.f32 %v481, %v460
    %v483 = vadd.f32 %v482, %v462
    %v484 = vrot.slane %v483, 4
    %v485 = vadd.f32 %v483, %v484
    %v486 = vrot.slane %v485, 2
    %v487 = vadd.f32 %v485, %v486
    %v488 = vrot.slane %v487, 1
    %v489 = vadd.f32 %v487, %v488
    %v490 = vrcp.pop 64.0
    %v491 = vmul.f32 64.0, %v490
    %v492 = vsub.f32 1.0, %v491
    %v493 = vmul.f32 %v490, %v492
    %v494 = vadd.f32 %v490, %v493
    %vm495 = vweird.f32 %v490
    %v496 = vsel %vm495, %v490, %v494
    %v497 = vmul.f32 %v476, %v496
    %v498 = vmul.f32 %v489, %v496
    %v499 = vmul.f32 %v416, %v416
    %v500 = vmul.f32 %v445, %v445
    %v501 = vmul.f32 %v418, %v418
    %v502 = vmul.f32 %v447, %v447
    %v503 = vmul.f32 %v421, %v421
    %v504 = vmul.f32 %v450, %v450
    %v505 = vmul.f32 %v423, %v423
    %v506 = vmul.f32 %v452, %v452
    %v507 = vmul.f32 %v426, %v426
    %v508 = vmul.f32 %v455, %v455
    %v509 = vmul.f32 %v428, %v428
    %v510 = vmul.f32 %v457, %v457
    %v511 = vmul.f32 %v431, %v431
    %v512 = vmul.f32 %v460, %v460
    %v513 = vmul.f32 %v433, %v433
    %v514 = vmul.f32 %v462, %v462
    %v515 = vadd.f32 %v499, %v501
    %v516 = vadd.f32 %v515, %v503
    %v517 = vadd.f32 %v516, %v505
    %v518 = vadd.f32 %v517, %v507
    %v519 = vadd.f32 %v518, %v509
    %v520 = vadd.f32 %v519, %v511
    %v521 = vadd.f32 %v520, %v513
    %v522 = vrot.slane %v521, 4
    %v523 = vadd.f32 %v521, %v522
    %v524 = vrot.slane %v523, 2
    %v525 = vadd.f32 %v523, %v524
    %v526 = vrot.slane %v525, 1
    %v527 = vadd.f32 %v525, %v526
    %v528 = vadd.f32 %v500, %v502
    %v529 = vadd.f32 %v528, %v504
    %v530 = vadd.f32 %v529, %v506
    %v531 = vadd.f32 %v530, %v508
    %v532 = vadd.f32 %v531, %v510
    %v533 = vadd.f32 %v532, %v512
    %v534 = vadd.f32 %v533, %v514
    %v535 = vrot.slane %v534, 4
    %v536 = vadd.f32 %v534, %v535
    %v537 = vrot.slane %v536, 2
    %v538 = vadd.f32 %v536, %v537
    %v539 = vrot.slane %v538, 1
    %v540 = vadd.f32 %v538, %v539
    %v541 = vmul.f32 %v527, %v496
    %v542 = vmul.f32 %v540, %v496
    %v543 = vmul.f32 %v497, %v497
    %v544 = vmul.f32 %v498, %v498
    %v545 = vsub.f32 %v541, %v543
    %v546 = vsub.f32 %v542, %v544
    %v547 = vld [vmem:[#allocation12] sm:$0x3]
    %v548 = vadd.f32 %v545, 0.8
    %v549 = vadd.f32 %v546, 0.8
    %v550 = vrsqrt.pop %v548
    %v551 = vmul.f32 %v550, %v548
    %v552 = vmul.f32 %v551, %v550
    %v553 = vmul.f32 0.5, %v552
    %v554 = vsub.f32 1.5, %v553
    %v555 = vmul.f32 %v550, %v554
    %vm556 = vweird.f32 %v548
    %vm557 = vweird.f32 %v550
    %vm558 = vmor %vm556, %vm557
    %v559 = vsel %vm558, %v550, %v555
    %v560 = vrsqrt.pop %v549
    %v561 = vmul.f32 %v560, %v549
    %v562 = vmul.f32 %v561, %v560
    %v563 = vmul.f32 0.5, %v562
    %v564 = vsub.f32 1.5, %v563
    %v565 = vmul.f32 %v560, %v564
    %vm566 = vweird.f32 %v549
    %vm567 = vweird.f32 %v560
    %vm568 = vmor %vm566, %vm567
    %v569 = vsel %vm568, %v560, %v565
    %v572 = vrot.slane %v569, 7
    %vm573 = vcmask 1040384
    %v574 = vsel %vm573, %v559, %v572
    %v576 = vmul.f32 %v547, %v574
    %v577 = vld [vmem:[#allocation13] sm:$0x3]
    %v579 = vperm.slane %v576, 0
    %v580 = vperm.slane %v576, 1
    %v583 = vmul.f32 %v497, %v579
    %v584 = vmul.f32 %v498, %v580
    %v587 = vrot.slane %v584, 7
    %v588 = vsel %vm573, %v583, %v587
    %v590 = vsub.f32 %v577, %v588
    %v591 = vmul.f32 %v416, %v579
    %v592 = vmul.f32 %v445, %v580
    %v593 = vmul.f32 %v418, %v579
    %v594 = vmul.f32 %v447, %v580
    %v595 = vmul.f32 %v421, %v579
    %v596 = vmul.f32 %v450, %v580
    %v597 = vmul.f32 %v423, %v579
    %v598 = vmul.f32 %v452, %v580
    %v599 = vmul.f32 %v426, %v579
    %v600 = vmul.f32 %v455, %v580
    %v601 = vmul.f32 %v428, %v579
    %v602 = vmul.f32 %v457, %v580
    %v603 = vmul.f32 %v431, %v579
    %v604 = vmul.f32 %v460, %v580
    %v605 = vmul.f32 %v433, %v579
    %v606 = vmul.f32 %v462, %v580
    %v608 = vperm.slane %v590, 0
    %v609 = vperm.slane %v590, 1
    %v612 = vadd.f32 %v591, %v608
    %v613 = vadd.f32 %v592, %v609
    %v614 = vadd.f32 %v593, %v608
    %v615 = vadd.f32 %v594, %v609
    %v616 = vadd.f32 %v595, %v608
    %v617 = vadd.f32 %v596, %v609
    %v618 = vadd.f32 %v597, %v608
    %v619 = vadd.f32 %v598, %v609
    %v620 = vadd.f32 %v599, %v608
    %v621 = vadd.f32 %v600, %v609
    %v622 = vadd.f32 %v601, %v608
    %v623 = vadd.f32 %v602, %v609
    %v624 = vadd.f32 %v603, %v608
    %v625 = vadd.f32 %v604, %v609
    %v626 = vadd.f32 %v605, %v608
    %v627 = vadd.f32 %v606, %v609
    %v628 = vmax.f32 %v612, 0.0
    %v629 = vmax.f32 %v613, 0.0
    %v630 = vmax.f32 %v614, 0.0
    %v631 = vmax.f32 %v615, 0.0
    %v632 = vmax.f32 %v616, 0.0
    %v633 = vmax.f32 %v617, 0.0
    %v634 = vmax.f32 %v618, 0.0
    %v635 = vmax.f32 %v619, 0.0
    %v636 = vmax.f32 %v620, 0.0
    %v637 = vmax.f32 %v621, 0.0
    %v638 = vmax.f32 %v622, 0.0
    %v639 = vmax.f32 %v623, 0.0
    %v640 = vmax.f32 %v624, 0.0
    %v641 = vmax.f32 %v625, 0.0
    %v642 = vmax.f32 %v626, 0.0
    %v643 = vmax.f32 %v627, 0.0
    %s644 = smul.u32 4, 32
    %s645 = smul.u32 %s644, 4
    %s646 = sshll.u32 %s645, 4
    %647 = dma.done %s178, %s646
    %v648 = vpack.c.bf16 %v630, %v628
    %v649 = vpack.c.bf16 %v631, %v629
    %v650 = vpack.c.bf16 %v634, %v632
    %v651 = vpack.c.bf16 %v635, %v633
    %v652 = vpack.c.bf16 %v638, %v636
    %v653 = vpack.c.bf16 %v639, %v637
    %v654 = vpack.c.bf16 %v642, %v640
    %v655 = vpack.c.bf16 %v643, %v641
    %v656 = vld [vmem:[#allocation3] sm:$0xff]
    %v657 = vld [vmem:[#allocation3 + $0x8] sm:$0xff]
    %v658 = vld [vmem:[#allocation3 + $0x10] sm:$0xff]
    %v659 = vld [vmem:[#allocation3 + $0x18] sm:$0xff]
    %v660 = vld [vmem:[#allocation3 + $0x20] sm:$0xff]
    %v661 = vld [vmem:[#allocation3 + $0x28] sm:$0xff]
    %v662 = vld [vmem:[#allocation3 + $0x30] sm:$0xff]
    %v663 = vld [vmem:[#allocation3 + $0x38] sm:$0xff]
    %v664 = vld [vmem:[#allocation3 + $0x40] sm:$0xff]
    %v665 = vld [vmem:[#allocation3 + $0x48] sm:$0xff]
    %v666 = vld [vmem:[#allocation3 + $0x50] sm:$0xff]
    %v667 = vld [vmem:[#allocation3 + $0x58] sm:$0xff]
    %v668 = vld [vmem:[#allocation3 + $0x60] sm:$0xff]
    %v669 = vld [vmem:[#allocation3 + $0x68] sm:$0xff]
    %v670 = vld [vmem:[#allocation3 + $0x70] sm:$0xff]
    %v671 = vld [vmem:[#allocation3 + $0x78] sm:$0xff]
    %v672 = vld [vmem:[#allocation3 + $0x80] sm:$0xff]
    %v673 = vld [vmem:[#allocation3 + $0x88] sm:$0xff]
    %v674 = vld [vmem:[#allocation3 + $0x90] sm:$0xff]
    %v675 = vld [vmem:[#allocation3 + $0x98] sm:$0xff]
    %v676 = vld [vmem:[#allocation3 + $0xa0] sm:$0xff]
    %v677 = vld [vmem:[#allocation3 + $0xa8] sm:$0xff]
    %v678 = vld [vmem:[#allocation3 + $0xb0] sm:$0xff]
    %v679 = vld [vmem:[#allocation3 + $0xb8] sm:$0xff]
    %v680 = vld [vmem:[#allocation3 + $0xc0] sm:$0xff]
    %v681 = vld [vmem:[#allocation3 + $0xc8] sm:$0xff]
    %v682 = vld [vmem:[#allocation3 + $0xd0] sm:$0xff]
    %v683 = vld [vmem:[#allocation3 + $0xd8] sm:$0xff]
    %v684 = vld [vmem:[#allocation3 + $0xe0] sm:$0xff]
    %v685 = vld [vmem:[#allocation3 + $0xe8] sm:$0xff]
    %v686 = vld [vmem:[#allocation3 + $0xf0] sm:$0xff]
    %v687 = vld [vmem:[#allocation3 + $0xf8] sm:$0xff]
    %v688 = vld [vmem:[#allocation3 + $0x100] sm:$0xff]
    %v689 = vld [vmem:[#allocation3 + $0x108] sm:$0xff]
    %v690 = vld [vmem:[#allocation3 + $0x110] sm:$0xff]
    %v691 = vld [vmem:[#allocation3 + $0x118] sm:$0xff]
    %v692 = vld [vmem:[#allocation3 + $0x120] sm:$0xff]
    %v693 = vld [vmem:[#allocation3 + $0x128] sm:$0xff]
    %v694 = vld [vmem:[#allocation3 + $0x130] sm:$0xff]
    %v695 = vld [vmem:[#allocation3 + $0x138] sm:$0xff]
    %v696 = vld [vmem:[#allocation3 + $0x140] sm:$0xff]
    %v697 = vld [vmem:[#allocation3 + $0x148] sm:$0xff]
    %v698 = vld [vmem:[#allocation3 + $0x150] sm:$0xff]
    %v699 = vld [vmem:[#allocation3 + $0x158] sm:$0xff]
    %v700 = vld [vmem:[#allocation3 + $0x160] sm:$0xff]
    %v701 = vld [vmem:[#allocation3 + $0x168] sm:$0xff]
    %v702 = vld [vmem:[#allocation3 + $0x170] sm:$0xff]
    %v703 = vld [vmem:[#allocation3 + $0x178] sm:$0xff]
    %v704 = vld [vmem:[#allocation3 + $0x180] sm:$0xff]
    %v705 = vld [vmem:[#allocation3 + $0x188] sm:$0xff]
    %v706 = vld [vmem:[#allocation3 + $0x190] sm:$0xff]
    %v707 = vld [vmem:[#allocation3 + $0x198] sm:$0xff]
    %v708 = vld [vmem:[#allocation3 + $0x1a0] sm:$0xff]
    %v709 = vld [vmem:[#allocation3 + $0x1a8] sm:$0xff]
    %v710 = vld [vmem:[#allocation3 + $0x1b0] sm:$0xff]
    %v711 = vld [vmem:[#allocation3 + $0x1b8] sm:$0xff]
    %v712 = vld [vmem:[#allocation3 + $0x1c0] sm:$0xff]
    %v713 = vld [vmem:[#allocation3 + $0x1c8] sm:$0xff]
    %v714 = vld [vmem:[#allocation3 + $0x1d0] sm:$0xff]
    %v715 = vld [vmem:[#allocation3 + $0x1d8] sm:$0xff]
    %v716 = vld [vmem:[#allocation3 + $0x1e0] sm:$0xff]
    %v717 = vld [vmem:[#allocation3 + $0x1e8] sm:$0xff]
    %v718 = vld [vmem:[#allocation3 + $0x1f0] sm:$0xff]
    %v719 = vld [vmem:[#allocation3 + $0x1f8] sm:$0xff]
    %v784 = vunpack.c.l.b16 %v656
    %v785 = vunpack.c.h.b16 %v656
    %v786 = vunpack.c.l.b16 %v657
    %v787 = vunpack.c.h.b16 %v657
    %v788 = vunpack.c.l.b16 %v658
    %v789 = vunpack.c.h.b16 %v658
    %v790 = vunpack.c.l.b16 %v659
    %v791 = vunpack.c.h.b16 %v659
    %v792 = vunpack.c.l.b16 %v660
    %v793 = vunpack.c.h.b16 %v660
    %v794 = vunpack.c.l.b16 %v661
    %v795 = vunpack.c.h.b16 %v661
    %v796 = vunpack.c.l.b16 %v662
    %v797 = vunpack.c.h.b16 %v662
    %v798 = vunpack.c.l.b16 %v663
    %v799 = vunpack.c.h.b16 %v663
    %v800 = vunpack.c.l.b16 %v664
    %v801 = vunpack.c.h.b16 %v664
    %v802 = vunpack.c.l.b16 %v665
    %v803 = vunpack.c.h.b16 %v665
    %v804 = vunpack.c.l.b16 %v666
    %v805 = vunpack.c.h.b16 %v666
    %v806 = vunpack.c.l.b16 %v667
    %v807 = vunpack.c.h.b16 %v667
    %v808 = vunpack.c.l.b16 %v668
    %v809 = vunpack.c.h.b16 %v668
    %v810 = vunpack.c.l.b16 %v669
    %v811 = vunpack.c.h.b16 %v669
    %v812 = vunpack.c.l.b16 %v670
    %v813 = vunpack.c.h.b16 %v670
    %v814 = vunpack.c.l.b16 %v671
    %v815 = vunpack.c.h.b16 %v671
    %v816 = vunpack.c.l.b16 %v672
    %v817 = vunpack.c.h.b16 %v672
    %v818 = vunpack.c.l.b16 %v673
    %v819 = vunpack.c.h.b16 %v673
    %v820 = vunpack.c.l.b16 %v674
    %v821 = vunpack.c.h.b16 %v674
    %v822 = vunpack.c.l.b16 %v675
    %v823 = vunpack.c.h.b16 %v675
    %v824 = vunpack.c.l.b16 %v676
    %v825 = vunpack.c.h.b16 %v676
    %v826 = vunpack.c.l.b16 %v677
    %v827 = vunpack.c.h.b16 %v677
    %v828 = vunpack.c.l.b16 %v678
    %v829 = vunpack.c.h.b16 %v678
    %v830 = vunpack.c.l.b16 %v679
    %v831 = vunpack.c.h.b16 %v679
    %v832 = vunpack.c.l.b16 %v680
    %v833 = vunpack.c.h.b16 %v680
    %v834 = vunpack.c.l.b16 %v681
    %v835 = vunpack.c.h.b16 %v681
    %v836 = vunpack.c.l.b16 %v682
    %v837 = vunpack.c.h.b16 %v682
    %v838 = vunpack.c.l.b16 %v683
    %v839 = vunpack.c.h.b16 %v683
    %v840 = vunpack.c.l.b16 %v684
    %v841 = vunpack.c.h.b16 %v684
    %v842 = vunpack.c.l.b16 %v685
    %v843 = vunpack.c.h.b16 %v685
    %v844 = vunpack.c.l.b16 %v686
    %v845 = vunpack.c.h.b16 %v686
    %v846 = vunpack.c.l.b16 %v687
    %v847 = vunpack.c.h.b16 %v687
    %v848 = vunpack.c.l.b16 %v688
    %v849 = vunpack.c.h.b16 %v688
    %v850 = vunpack.c.l.b16 %v689
    %v851 = vunpack.c.h.b16 %v689
    %v852 = vunpack.c.l.b16 %v690
    %v853 = vunpack.c.h.b16 %v690
    %v854 = vunpack.c.l.b16 %v691
    %v855 = vunpack.c.h.b16 %v691
    %v856 = vunpack.c.l.b16 %v692
    %v857 = vunpack.c.h.b16 %v692
    %v858 = vunpack.c.l.b16 %v693
    %v859 = vunpack.c.h.b16 %v693
    %v860 = vunpack.c.l.b16 %v694
    %v861 = vunpack.c.h.b16 %v694
    %v862 = vunpack.c.l.b16 %v695
    %v863 = vunpack.c.h.b16 %v695
    %v864 = vunpack.c.l.b16 %v696
    %v865 = vunpack.c.h.b16 %v696
    %v866 = vunpack.c.l.b16 %v697
    %v867 = vunpack.c.h.b16 %v697
    %v868 = vunpack.c.l.b16 %v698
    %v869 = vunpack.c.h.b16 %v698
    %v870 = vunpack.c.l.b16 %v699
    %v871 = vunpack.c.h.b16 %v699
    %v872 = vunpack.c.l.b16 %v700
    %v873 = vunpack.c.h.b16 %v700
    %v874 = vunpack.c.l.b16 %v701
    %v875 = vunpack.c.h.b16 %v701
    %v876 = vunpack.c.l.b16 %v702
    %v877 = vunpack.c.h.b16 %v702
    %v878 = vunpack.c.l.b16 %v703
    %v879 = vunpack.c.h.b16 %v703
    %v880 = vunpack.c.l.b16 %v704
    %v881 = vunpack.c.h.b16 %v704
    %v882 = vunpack.c.l.b16 %v705
    %v883 = vunpack.c.h.b16 %v705
    %v884 = vunpack.c.l.b16 %v706
    %v885 = vunpack.c.h.b16 %v706
    %v886 = vunpack.c.l.b16 %v707
    %v887 = vunpack.c.h.b16 %v707
    %v888 = vunpack.c.l.b16 %v708
    %v889 = vunpack.c.h.b16 %v708
    %v890 = vunpack.c.l.b16 %v709
    %v891 = vunpack.c.h.b16 %v709
    %v892 = vunpack.c.l.b16 %v710
    %v893 = vunpack.c.h.b16 %v710
    %v894 = vunpack.c.l.b16 %v711
    %v895 = vunpack.c.h.b16 %v711
    %v896 = vunpack.c.l.b16 %v712
    %v897 = vunpack.c.h.b16 %v712
    %v898 = vunpack.c.l.b16 %v713
    %v899 = vunpack.c.h.b16 %v713
    %v900 = vunpack.c.l.b16 %v714
    %v901 = vunpack.c.h.b16 %v714
    %v902 = vunpack.c.l.b16 %v715
    %v903 = vunpack.c.h.b16 %v715
    %v904 = vunpack.c.l.b16 %v716
    %v905 = vunpack.c.h.b16 %v716
    %v906 = vunpack.c.l.b16 %v717
    %v907 = vunpack.c.h.b16 %v717
    %v908 = vunpack.c.l.b16 %v718
    %v909 = vunpack.c.h.b16 %v718
    %v910 = vunpack.c.l.b16 %v719
    %v911 = vunpack.c.h.b16 %v719
    %v912 = vpack.c.b16 %v788, %v784
    %v913 = vpack.c.b16 %v789, %v785
    %v914 = vpack.c.b16 %v790, %v786
    %v915 = vpack.c.b16 %v791, %v787
    %v916 = vpack.c.b16 %v796, %v792
    %v917 = vpack.c.b16 %v797, %v793
    %v918 = vpack.c.b16 %v798, %v794
    %v919 = vpack.c.b16 %v799, %v795
    %v920 = vpack.c.b16 %v804, %v800
    %v921 = vpack.c.b16 %v805, %v801
    %v922 = vpack.c.b16 %v806, %v802
    %v923 = vpack.c.b16 %v807, %v803
    %v924 = vpack.c.b16 %v812, %v808
    %v925 = vpack.c.b16 %v813, %v809
    %v926 = vpack.c.b16 %v814, %v810
    %v927 = vpack.c.b16 %v815, %v811
    %v928 = vpack.c.b16 %v820, %v816
    %v929 = vpack.c.b16 %v821, %v817
    %v930 = vpack.c.b16 %v822, %v818
    %v931 = vpack.c.b16 %v823, %v819
    %v932 = vpack.c.b16 %v828, %v824
    %v933 = vpack.c.b16 %v829, %v825
    %v934 = vpack.c.b16 %v830, %v826
    %v935 = vpack.c.b16 %v831, %v827
    %v936 = vpack.c.b16 %v836, %v832
    %v937 = vpack.c.b16 %v837, %v833
    %v938 = vpack.c.b16 %v838, %v834
    %v939 = vpack.c.b16 %v839, %v835
    %v940 = vpack.c.b16 %v844, %v840
    %v941 = vpack.c.b16 %v845, %v841
    %v942 = vpack.c.b16 %v846, %v842
    %v943 = vpack.c.b16 %v847, %v843
    %v944 = vpack.c.b16 %v852, %v848
    %v945 = vpack.c.b16 %v853, %v849
    %v946 = vpack.c.b16 %v854, %v850
    %v947 = vpack.c.b16 %v855, %v851
    %v948 = vpack.c.b16 %v860, %v856
    %v949 = vpack.c.b16 %v861, %v857
    %v950 = vpack.c.b16 %v862, %v858
    %v951 = vpack.c.b16 %v863, %v859
    %v952 = vpack.c.b16 %v868, %v864
    %v953 = vpack.c.b16 %v869, %v865
    %v954 = vpack.c.b16 %v870, %v866
    %v955 = vpack.c.b16 %v871, %v867
    %v956 = vpack.c.b16 %v876, %v872
    %v957 = vpack.c.b16 %v877, %v873
    %v958 = vpack.c.b16 %v878, %v874
    %v959 = vpack.c.b16 %v879, %v875
    %v960 = vpack.c.b16 %v884, %v880
    %v961 = vpack.c.b16 %v885, %v881
    %v962 = vpack.c.b16 %v886, %v882
    %v963 = vpack.c.b16 %v887, %v883
    %v964 = vpack.c.b16 %v892, %v888
    %v965 = vpack.c.b16 %v893, %v889
    %v966 = vpack.c.b16 %v894, %v890
    %v967 = vpack.c.b16 %v895, %v891
    %v968 = vpack.c.b16 %v900, %v896
    %v969 = vpack.c.b16 %v901, %v897
    %v970 = vpack.c.b16 %v902, %v898
    %v971 = vpack.c.b16 %v903, %v899
    %v972 = vpack.c.b16 %v908, %v904
    %v973 = vpack.c.b16 %v909, %v905
    %v974 = vpack.c.b16 %v910, %v906
    %v975 = vpack.c.b16 %v911, %v907
    %1040 = vmatpush.bf16.msra.mxu0 %v940
    %1041 = vmatpush.bf16.msra.mxu0 %v936
    %1042 = vmatpush.bf16.msra.mxu0 %v932
    %1043 = vmatpush.bf16.msra.mxu0 %v928
    %1044 = vmatpush.bf16.msra.mxu0 %v924
    %1045 = vmatpush.bf16.msra.mxu0 %v920
    %1046 = vmatpush.bf16.msra.mxu0 %v916
    %1047 = vmatpush.bf16.msra.mxu0 %v912
    %1048 = vmatmul.bf16.gmra.mxu0 %v648
    %v1049 = vpop.f32.mrf.mxu0
    %v1050 = vadd.f32 0.0, %v1049
    %v1051 = vpop.f32.mrf.mxu0
    %v1052 = vadd.f32 0.0, %v1051
    %1053 = vmatmul.bf16.gmra.mxu0 %v650
    %v1054 = vpop.f32.mrf.mxu0
    %v1055 = vadd.f32 0.0, %v1054
    %v1056 = vpop.f32.mrf.mxu0
    %v1057 = vadd.f32 0.0, %v1056
    %1058 = vmatmul.bf16.gmra.mxu0 %v652
    %v1059 = vpop.f32.mrf.mxu0
    %v1060 = vadd.f32 0.0, %v1059
    %v1061 = vpop.f32.mrf.mxu0
    %v1062 = vadd.f32 0.0, %v1061
    %1063 = vmatmul.bf16.gmra.mxu0 %v654
    %v1064 = vpop.f32.mrf.mxu0
    %v1065 = vadd.f32 0.0, %v1064
    %v1066 = vpop.f32.mrf.mxu0
    %v1067 = vadd.f32 0.0, %v1066
    %1068 = vdwg.mxu0
    %1069 = vmatpush.bf16.msra.mxu0 %v972
    %1070 = vmatpush.bf16.msra.mxu0 %v968
    %1071 = vmatpush.bf16.msra.mxu0 %v964
    %1072 = vmatpush.bf16.msra.mxu0 %v960
    %1073 = vmatpush.bf16.msra.mxu0 %v956
    %1074 = vmatpush.bf16.msra.mxu0 %v952
    %1075 = vmatpush.bf16.msra.mxu0 %v948
    %1076 = vmatpush.bf16.msra.mxu0 %v944
    %1077 = vmatmul.bf16.gmra.mxu0 %v649
    %v1078 = vpop.f32.mrf.mxu0
    %v1079 = vadd.f32 %v1050, %v1078
    %v1080 = vpop.f32.mrf.mxu0
    %v1081 = vadd.f32 %v1052, %v1080
    %1082 = vmatmul.bf16.gmra.mxu0 %v651
    %v1083 = vpop.f32.mrf.mxu0
    %v1084 = vadd.f32 %v1055, %v1083
    %v1085 = vpop.f32.mrf.mxu0
    %v1086 = vadd.f32 %v1057, %v1085
    %1087 = vmatmul.bf16.gmra.mxu0 %v653
    %v1088 = vpop.f32.mrf.mxu0
    %v1089 = vadd.f32 %v1060, %v1088
    %v1090 = vpop.f32.mrf.mxu0
    %v1091 = vadd.f32 %v1062, %v1090
    %1092 = vmatmul.bf16.gmra.mxu0 %v655
    %v1093 = vpop.f32.mrf.mxu0
    %v1094 = vadd.f32 %v1065, %v1093
    %v1095 = vpop.f32.mrf.mxu0
    %v1096 = vadd.f32 %v1067, %v1095
    %1097 = vdwg.mxu0
    %1098 = vmatpush.bf16.msra.mxu0 %v941
    %1099 = vmatpush.bf16.msra.mxu0 %v937
    %1100 = vmatpush.bf16.msra.mxu0 %v933
    %1101 = vmatpush.bf16.msra.mxu0 %v929
    %1102 = vmatpush.bf16.msra.mxu0 %v925
    %1103 = vmatpush.bf16.msra.mxu0 %v921
    %1104 = vmatpush.bf16.msra.mxu0 %v917
    %1105 = vmatpush.bf16.msra.mxu0 %v913
    %1106 = vmatmul.bf16.gmra.mxu0 %v648
    %v1107 = vpop.f32.mrf.mxu0
    %v1108 = vadd.f32 0.0, %v1107
    %v1109 = vpop.f32.mrf.mxu0
    %v1110 = vadd.f32 0.0, %v1109
    %1111 = vmatmul.bf16.gmra.mxu0 %v650
    %v1112 = vpop.f32.mrf.mxu0
    %v1113 = vadd.f32 0.0, %v1112
    %v1114 = vpop.f32.mrf.mxu0
    %v1115 = vadd.f32 0.0, %v1114
    %1116 = vmatmul.bf16.gmra.mxu0 %v652
    %v1117 = vpop.f32.mrf.mxu0
    %v1118 = vadd.f32 0.0, %v1117
    %v1119 = vpop.f32.mrf.mxu0
    %v1120 = vadd.f32 0.0, %v1119
    %1121 = vmatmul.bf16.gmra.mxu0 %v654
    %v1122 = vpop.f32.mrf.mxu0
    %v1123 = vadd.f32 0.0, %v1122
    %v1124 = vpop.f32.mrf.mxu0
    %v1125 = vadd.f32 0.0, %v1124
    %1126 = vdwg.mxu0
    %1127 = vmatpush.bf16.msra.mxu0 %v973
    %1128 = vmatpush.bf16.msra.mxu0 %v969
    %1129 = vmatpush.bf16.msra.mxu0 %v965
    %1130 = vmatpush.bf16.msra.mxu0 %v961
    %1131 = vmatpush.bf16.msra.mxu0 %v957
    %1132 = vmatpush.bf16.msra.mxu0 %v953
    %1133 = vmatpush.bf16.msra.mxu0 %v949
    %1134 = vmatpush.bf16.msra.mxu0 %v945
    %1135 = vmatmul.bf16.gmra.mxu0 %v649
    %v1136 = vpop.f32.mrf.mxu0
    %v1137 = vadd.f32 %v1108, %v1136
    %v1138 = vpop.f32.mrf.mxu0
    %v1139 = vadd.f32 %v1110, %v1138
    %1140 = vmatmul.bf16.gmra.mxu0 %v651
    %v1141 = vpop.f32.mrf.mxu0
    %v1142 = vadd.f32 %v1113, %v1141
    %v1143 = vpop.f32.mrf.mxu0
    %v1144 = vadd.f32 %v1115, %v1143
    %1145 = vmatmul.bf16.gmra.mxu0 %v653
    %v1146 = vpop.f32.mrf.mxu0
    %v1147 = vadd.f32 %v1118, %v1146
    %v1148 = vpop.f32.mrf.mxu0
    %v1149 = vadd.f32 %v1120, %v1148
    %1150 = vmatmul.bf16.gmra.mxu0 %v655
    %v1151 = vpop.f32.mrf.mxu0
    %v1152 = vadd.f32 %v1123, %v1151
    %v1153 = vpop.f32.mrf.mxu0
    %v1154 = vadd.f32 %v1125, %v1153
    %1155 = vdwg.mxu0
    %1156 = vmatpush.bf16.msra.mxu0 %v942
    %1157 = vmatpush.bf16.msra.mxu0 %v938
    %1158 = vmatpush.bf16.msra.mxu0 %v934
    %1159 = vmatpush.bf16.msra.mxu0 %v930
    %1160 = vmatpush.bf16.msra.mxu0 %v926
    %1161 = vmatpush.bf16.msra.mxu0 %v922
    %1162 = vmatpush.bf16.msra.mxu0 %v918
    %1163 = vmatpush.bf16.msra.mxu0 %v914
    %1164 = vmatmul.bf16.gmra.mxu0 %v648
    %v1165 = vpop.f32.mrf.mxu0
    %v1166 = vadd.f32 0.0, %v1165
    %v1167 = vpop.f32.mrf.mxu0
    %v1168 = vadd.f32 0.0, %v1167
    %1169 = vmatmul.bf16.gmra.mxu0 %v650
    %v1170 = vpop.f32.mrf.mxu0
    %v1171 = vadd.f32 0.0, %v1170
    %v1172 = vpop.f32.mrf.mxu0
    %v1173 = vadd.f32 0.0, %v1172
    %1174 = vmatmul.bf16.gmra.mxu0 %v652
    %v1175 = vpop.f32.mrf.mxu0
    %v1176 = vadd.f32 0.0, %v1175
    %v1177 = vpop.f32.mrf.mxu0
    %v1178 = vadd.f32 0.0, %v1177
    %1179 = vmatmul.bf16.gmra.mxu0 %v654
    %v1180 = vpop.f32.mrf.mxu0
    %v1181 = vadd.f32 0.0, %v1180
    %v1182 = vpop.f32.mrf.mxu0
    %v1183 = vadd.f32 0.0, %v1182
    %1184 = vdwg.mxu0
    %1185 = vmatpush.bf16.msra.mxu0 %v974
    %1186 = vmatpush.bf16.msra.mxu0 %v970
    %1187 = vmatpush.bf16.msra.mxu0 %v966
    %1188 = vmatpush.bf16.msra.mxu0 %v962
    %1189 = vmatpush.bf16.msra.mxu0 %v958
    %1190 = vmatpush.bf16.msra.mxu0 %v954
    %1191 = vmatpush.bf16.msra.mxu0 %v950
    %1192 = vmatpush.bf16.msra.mxu0 %v946
    %1193 = vmatmul.bf16.gmra.mxu0 %v649
    %v1194 = vpop.f32.mrf.mxu0
    %v1195 = vadd.f32 %v1166, %v1194
    %v1196 = vpop.f32.mrf.mxu0
    %v1197 = vadd.f32 %v1168, %v1196
    %1198 = vmatmul.bf16.gmra.mxu0 %v651
    %v1199 = vpop.f32.mrf.mxu0
    %v1200 = vadd.f32 %v1171, %v1199
    %v1201 = vpop.f32.mrf.mxu0
    %v1202 = vadd.f32 %v1173, %v1201
    %1203 = vmatmul.bf16.gmra.mxu0 %v653
    %v1204 = vpop.f32.mrf.mxu0
    %v1205 = vadd.f32 %v1176, %v1204
    %v1206 = vpop.f32.mrf.mxu0
    %v1207 = vadd.f32 %v1178, %v1206
    %1208 = vmatmul.bf16.gmra.mxu0 %v655
    %v1209 = vpop.f32.mrf.mxu0
    %v1210 = vadd.f32 %v1181, %v1209
    %v1211 = vpop.f32.mrf.mxu0
    %v1212 = vadd.f32 %v1183, %v1211
    %1213 = vdwg.mxu0
    %1214 = vmatpush.bf16.msra.mxu0 %v943
    %1215 = vmatpush.bf16.msra.mxu0 %v939
    %1216 = vmatpush.bf16.msra.mxu0 %v935
    %1217 = vmatpush.bf16.msra.mxu0 %v931
    %1218 = vmatpush.bf16.msra.mxu0 %v927
    %1219 = vmatpush.bf16.msra.mxu0 %v923
    %1220 = vmatpush.bf16.msra.mxu0 %v919
    %1221 = vmatpush.bf16.msra.mxu0 %v915
    %1222 = vmatmul.bf16.gmra.mxu0 %v648
    %v1223 = vpop.f32.mrf.mxu0
    %v1224 = vadd.f32 0.0, %v1223
    %v1225 = vpop.f32.mrf.mxu0
    %v1226 = vadd.f32 0.0, %v1225
    %1227 = vmatmul.bf16.gmra.mxu0 %v650
    %v1228 = vpop.f32.mrf.mxu0
    %v1229 = vadd.f32 0.0, %v1228
    %v1230 = vpop.f32.mrf.mxu0
    %v1231 = vadd.f32 0.0, %v1230
    %1232 = vmatmul.bf16.gmra.mxu0 %v652
    %v1233 = vpop.f32.mrf.mxu0
    %v1234 = vadd.f32 0.0, %v1233
    %v1235 = vpop.f32.mrf.mxu0
    %v1236 = vadd.f32 0.0, %v1235
    %1237 = vmatmul.bf16.gmra.mxu0 %v654
    %v1238 = vpop.f32.mrf.mxu0
    %v1239 = vadd.f32 0.0, %v1238
    %v1240 = vpop.f32.mrf.mxu0
    %v1241 = vadd.f32 0.0, %v1240
    %1242 = vdwg.mxu0
    %1243 = vmatpush.bf16.msra.mxu0 %v975
    %1244 = vmatpush.bf16.msra.mxu0 %v971
    %1245 = vmatpush.bf16.msra.mxu0 %v967
    %1246 = vmatpush.bf16.msra.mxu0 %v963
    %1247 = vmatpush.bf16.msra.mxu0 %v959
    %1248 = vmatpush.bf16.msra.mxu0 %v955
    %1249 = vmatpush.bf16.msra.mxu0 %v951
    %1250 = vmatpush.bf16.msra.mxu0 %v947
    %1251 = vmatmul.bf16.gmra.mxu0 %v649
    %v1252 = vpop.f32.mrf.mxu0
    %v1253 = vadd.f32 %v1224, %v1252
    %v1254 = vpop.f32.mrf.mxu0
    %v1255 = vadd.f32 %v1226, %v1254
    %1256 = vmatmul.bf16.gmra.mxu0 %v651
    %v1257 = vpop.f32.mrf.mxu0
    %v1258 = vadd.f32 %v1229, %v1257
    %v1259 = vpop.f32.mrf.mxu0
    %v1260 = vadd.f32 %v1231, %v1259
    %1261 = vmatmul.bf16.gmra.mxu0 %v653
    %v1262 = vpop.f32.mrf.mxu0
    %v1263 = vadd.f32 %v1234, %v1262
    %v1264 = vpop.f32.mrf.mxu0
    %v1265 = vadd.f32 %v1236, %v1264
    %1266 = vmatmul.bf16.gmra.mxu0 %v655
    %v1267 = vpop.f32.mrf.mxu0
    %v1268 = vadd.f32 %v1239, %v1267
    %v1269 = vpop.f32.mrf.mxu0
    %v1270 = vadd.f32 %v1241, %v1269
    %1271 = vdwg.mxu0
    %v1272 = vadd.f32 %v1079, %v1081
    %v1273 = vadd.f32 %v1272, %v1084
    %v1274 = vadd.f32 %v1273, %v1086
    %v1275 = vadd.f32 %v1274, %v1089
    %v1276 = vadd.f32 %v1275, %v1091
    %v1277 = vadd.f32 %v1276, %v1094
    %v1278 = vadd.f32 %v1277, %v1096
    %v1279 = vrot.slane %v1278, 4
    %v1280 = vadd.f32 %v1278, %v1279
    %v1281 = vrot.slane %v1280, 2
    %v1282 = vadd.f32 %v1280, %v1281
    %v1283 = vrot.slane %v1282, 1
    %v1284 = vadd.f32 %v1282, %v1283
    %v1285 = vadd.f32 %v1137, %v1139
    %v1286 = vadd.f32 %v1285, %v1142
    %v1287 = vadd.f32 %v1286, %v1144
    %v1288 = vadd.f32 %v1287, %v1147
    %v1289 = vadd.f32 %v1288, %v1149
    %v1290 = vadd.f32 %v1289, %v1152
    %v1291 = vadd.f32 %v1290, %v1154
    %v1292 = vrot.slane %v1291, 4
    %v1293 = vadd.f32 %v1291, %v1292
    %v1294 = vrot.slane %v1293, 2
    %v1295 = vadd.f32 %v1293, %v1294
    %v1296 = vrot.slane %v1295, 1
    %v1297 = vadd.f32 %v1295, %v1296
    %v1298 = vadd.f32 %v1195, %v1197
    %v1299 = vadd.f32 %v1298, %v1200
    %v1300 = vadd.f32 %v1299, %v1202
    %v1301 = vadd.f32 %v1300, %v1205
    %v1302 = vadd.f32 %v1301, %v1207
    %v1303 = vadd.f32 %v1302, %v1210
    %v1304 = vadd.f32 %v1303, %v1212
    %v1305 = vrot.slane %v1304, 4
    %v1306 = vadd.f32 %v1304, %v1305
    %v1307 = vrot.slane %v1306, 2
    %v1308 = vadd.f32 %v1306, %v1307
    %v1309 = vrot.slane %v1308, 1
    %v1310 = vadd.f32 %v1308, %v1309
    %v1311 = vadd.f32 %v1253, %v1255
    %v1312 = vadd.f32 %v1311, %v1258
    %v1313 = vadd.f32 %v1312, %v1260
    %v1314 = vadd.f32 %v1313, %v1263
    %v1315 = vadd.f32 %v1314, %v1265
    %v1316 = vadd.f32 %v1315, %v1268
    %v1317 = vadd.f32 %v1316, %v1270
    %v1318 = vrot.slane %v1317, 4
    %v1319 = vadd.f32 %v1317, %v1318
    %v1320 = vrot.slane %v1319, 2
    %v1321 = vadd.f32 %v1319, %v1320
    %v1322 = vrot.slane %v1321, 1
    %v1323 = vadd.f32 %v1321, %v1322
    %v1324 = vmul.f32 %v1284, %v496
    %v1325 = vmul.f32 %v1297, %v496
    %v1326 = vmul.f32 %v1310, %v496
    %v1327 = vmul.f32 %v1323, %v496
    %v1328 = vmul.f32 %v1079, %v1079
    %v1329 = vmul.f32 %v1137, %v1137
    %v1330 = vmul.f32 %v1195, %v1195
    %v1331 = vmul.f32 %v1253, %v1253
    %v1332 = vmul.f32 %v1081, %v1081
    %v1333 = vmul.f32 %v1139, %v1139
    %v1334 = vmul.f32 %v1197, %v1197
    %v1335 = vmul.f32 %v1255, %v1255
    %v1336 = vmul.f32 %v1084, %v1084
    %v1337 = vmul.f32 %v1142, %v1142
    %v1338 = vmul.f32 %v1200, %v1200
    %v1339 = vmul.f32 %v1258, %v1258
    %v1340 = vmul.f32 %v1086, %v1086
    %v1341 = vmul.f32 %v1144, %v1144
    %v1342 = vmul.f32 %v1202, %v1202
    %v1343 = vmul.f32 %v1260, %v1260
    %v1344 = vmul.f32 %v1089, %v1089
    %v1345 = vmul.f32 %v1147, %v1147
    %v1346 = vmul.f32 %v1205, %v1205
    %v1347 = vmul.f32 %v1263, %v1263
    %v1348 = vmul.f32 %v1091, %v1091
    %v1349 = vmul.f32 %v1149, %v1149
    %v1350 = vmul.f32 %v1207, %v1207
    %v1351 = vmul.f32 %v1265, %v1265
    %v1352 = vmul.f32 %v1094, %v1094
    %v1353 = vmul.f32 %v1152, %v1152
    %v1354 = vmul.f32 %v1210, %v1210
    %v1355 = vmul.f32 %v1268, %v1268
    %v1356 = vmul.f32 %v1096, %v1096
    %v1357 = vmul.f32 %v1154, %v1154
    %v1358 = vmul.f32 %v1212, %v1212
    %v1359 = vmul.f32 %v1270, %v1270
    %v1360 = vadd.f32 %v1328, %v1332
    %v1361 = vadd.f32 %v1360, %v1336
    %v1362 = vadd.f32 %v1361, %v1340
    %v1363 = vadd.f32 %v1362, %v1344
    %v1364 = vadd.f32 %v1363, %v1348
    %v1365 = vadd.f32 %v1364, %v1352
    %v1366 = vadd.f32 %v1365, %v1356
    %v1367 = vrot.slane %v1366, 4
    %v1368 = vadd.f32 %v1366, %v1367
    %v1369 = vrot.slane %v1368, 2
    %v1370 = vadd.f32 %v1368, %v1369
    %v1371 = vrot.slane %v1370, 1
    %v1372 = vadd.f32 %v1370, %v1371
    %v1373 = vadd.f32 %v1329, %v1333
    %v1374 = vadd.f32 %v1373, %v1337
    %v1375 = vadd.f32 %v1374, %v1341
    %v1376 = vadd.f32 %v1375, %v1345
    %v1377 = vadd.f32 %v1376, %v1349
    %v1378 = vadd.f32 %v1377, %v1353
    %v1379 = vadd.f32 %v1378, %v1357
    %v1380 = vrot.slane %v1379, 4
    %v1381 = vadd.f32 %v1379, %v1380
    %v1382 = vrot.slane %v1381, 2
    %v1383 = vadd.f32 %v1381, %v1382
    %v1384 = vrot.slane %v1383, 1
    %v1385 = vadd.f32 %v1383, %v1384
    %v1386 = vadd.f32 %v1330, %v1334
    %v1387 = vadd.f32 %v1386, %v1338
    %v1388 = vadd.f32 %v1387, %v1342
    %v1389 = vadd.f32 %v1388, %v1346
    %v1390 = vadd.f32 %v1389, %v1350
    %v1391 = vadd.f32 %v1390, %v1354
    %v1392 = vadd.f32 %v1391, %v1358
    %v1393 = vrot.slane %v1392, 4
    %v1394 = vadd.f32 %v1392, %v1393
    %v1395 = vrot.slane %v1394, 2
    %v1396 = vadd.f32 %v1394, %v1395
    %v1397 = vrot.slane %v1396, 1
    %v1398 = vadd.f32 %v1396, %v1397
    %v1399 = vadd.f32 %v1331, %v1335
    %v1400 = vadd.f32 %v1399, %v1339
    %v1401 = vadd.f32 %v1400, %v1343
    %v1402 = vadd.f32 %v1401, %v1347
    %v1403 = vadd.f32 %v1402, %v1351
    %v1404 = vadd.f32 %v1403, %v1355
    %v1405 = vadd.f32 %v1404, %v1359
    %v1406 = vrot.slane %v1405, 4
    %v1407 = vadd.f32 %v1405, %v1406
    %v1408 = vrot.slane %v1407, 2
    %v1409 = vadd.f32 %v1407, %v1408
    %v1410 = vrot.slane %v1409, 1
    %v1411 = vadd.f32 %v1409, %v1410
    %v1412 = vmul.f32 %v1372, %v496
    %v1413 = vmul.f32 %v1385, %v496
    %v1414 = vmul.f32 %v1398, %v496
    %v1415 = vmul.f32 %v1411, %v496
    %v1416 = vmul.f32 %v1324, %v1324
    %v1417 = vmul.f32 %v1325, %v1325
    %v1418 = vmul.f32 %v1326, %v1326
    %v1419 = vmul.f32 %v1327, %v1327
    %v1420 = vsub.f32 %v1412, %v1416
    %v1421 = vsub.f32 %v1413, %v1417
    %v1422 = vsub.f32 %v1414, %v1418
    %v1423 = vsub.f32 %v1415, %v1419
    %v1424 = vld [vmem:[#allocation15] sm:$0xf]
    %v1425 = vadd.f32 %v1420, 0.8
    %v1426 = vadd.f32 %v1421, 0.8
    %v1427 = vadd.f32 %v1422, 0.8
    %v1428 = vadd.f32 %v1423, 0.8
    %v1429 = vrsqrt.pop %v1425
    %v1430 = vmul.f32 %v1429, %v1425
    %v1431 = vmul.f32 %v1430, %v1429
    %v1432 = vmul.f32 0.5, %v1431
    %v1433 = vsub.f32 1.5, %v1432
    %v1434 = vmul.f32 %v1429, %v1433
    %vm1435 = vweird.f32 %v1425
    %vm1436 = vweird.f32 %v1429
    %vm1437 = vmor %vm1435, %vm1436
    %v1438 = vsel %vm1437, %v1429, %v1434
    %v1439 = vrsqrt.pop %v1426
    %v1440 = vmul.f32 %v1439, %v1426
    %v1441 = vmul.f32 %v1440, %v1439
    %v1442 = vmul.f32 0.5, %v1441
    %v1443 = vsub.f32 1.5, %v1442
    %v1444 = vmul.f32 %v1439, %v1443
    %vm1445 = vweird.f32 %v1426
    %vm1446 = vweird.f32 %v1439
    %vm1447 = vmor %vm1445, %vm1446
    %v1448 = vsel %vm1447, %v1439, %v1444
    %v1449 = vrsqrt.pop %v1427
    %v1450 = vmul.f32 %v1449, %v1427
    %v1451 = vmul.f32 %v1450, %v1449
    %v1452 = vmul.f32 0.5, %v1451
    %v1453 = vsub.f32 1.5, %v1452
    %v1454 = vmul.f32 %v1449, %v1453
    %vm1455 = vweird.f32 %v1427
    %vm1456 = vweird.f32 %v1449
    %vm1457 = vmor %vm1455, %vm1456
    %v1458 = vsel %vm1457, %v1449, %v1454
    %v1459 = vrsqrt.pop %v1428
    %v1460 = vmul.f32 %v1459, %v1428
    %v1461 = vmul.f32 %v1460, %v1459
    %v1462 = vmul.f32 0.5, %v1461
    %v1463 = vsub.f32 1.5, %v1462
    %v1464 = vmul.f32 %v1459, %v1463
    %vm1465 = vweird.f32 %v1428
    %vm1466 = vweird.f32 %v1459
    %vm1467 = vmor %vm1465, %vm1466
    %v1468 = vsel %vm1467, %v1459, %v1464
    %v1473 = vrot.slane %v1448, 7
    %v1474 = vrot.slane %v1458, 6
    %v1475 = vrot.slane %v1468, 5
    %v1476 = vsel %vm573, %v1438, %v1473
    %vm1477 = vcmask 1042434
    %v1478 = vsel %vm1477, %v1474, %v1475
    %vm1479 = vcmask 1041408
    %v1480 = vsel %vm1479, %v1476, %v1478
    %v1482 = vmul.f32 %v1424, %v1480
    %v1483 = vld [vmem:[#allocation16] sm:$0xf]
    %v1485 = vperm.slane %v1482, 0
    %v1486 = vperm.slane %v1482, 1
    %v1487 = vperm.slane %v1482, 2
    %v1488 = vperm.slane %v1482, 3
    %v1493 = vmul.f32 %v1324, %v1485
    %v1494 = vmul.f32 %v1325, %v1486
    %v1495 = vmul.f32 %v1326, %v1487
    %v1496 = vmul.f32 %v1327, %v1488
    %v1501 = vrot.slane %v1494, 7
    %v1502 = vrot.slane %v1495, 6
    %v1503 = vrot.slane %v1496, 5
    %v1504 = vsel %vm573, %v1493, %v1501
    %v1505 = vsel %vm1477, %v1502, %v1503
    %v1506 = vsel %vm1479, %v1504, %v1505
    %v1508 = vsub.f32 %v1483, %v1506
    %v1509 = vmul.f32 %v1079, %v1485
    %v1510 = vmul.f32 %v1137, %v1486
    %v1511 = vmul.f32 %v1195, %v1487
    %v1512 = vmul.f32 %v1253, %v1488
    %v1513 = vmul.f32 %v1081, %v1485
    %v1514 = vmul.f32 %v1139, %v1486
    %v1515 = vmul.f32 %v1197, %v1487
    %v1516 = vmul.f32 %v1255, %v1488
    %v1517 = vmul.f32 %v1084, %v1485
    %v1518 = vmul.f32 %v1142, %v1486
    %v1519 = vmul.f32 %v1200, %v1487
    %v1520 = vmul.f32 %v1258, %v1488
    %v1521 = vmul.f32 %v1086, %v1485
    %v1522 = vmul.f32 %v1144, %v1486
    %v1523 = vmul.f32 %v1202, %v1487
    %v1524 = vmul.f32 %v1260, %v1488
    %v1525 = vmul.f32 %v1089, %v1485
    %v1526 = vmul.f32 %v1147, %v1486
    %v1527 = vmul.f32 %v1205, %v1487
    %v1528 = vmul.f32 %v1263, %v1488
    %v1529 = vmul.f32 %v1091, %v1485
    %v1530 = vmul.f32 %v1149, %v1486
    %v1531 = vmul.f32 %v1207, %v1487
    %v1532 = vmul.f32 %v1265, %v1488
    %v1533 = vmul.f32 %v1094, %v1485
    %v1534 = vmul.f32 %v1152, %v1486
    %v1535 = vmul.f32 %v1210, %v1487
    %v1536 = vmul.f32 %v1268, %v1488
    %v1537 = vmul.f32 %v1096, %v1485
    %v1538 = vmul.f32 %v1154, %v1486
    %v1539 = vmul.f32 %v1212, %v1487
    %v1540 = vmul.f32 %v1270, %v1488
    %v1542 = vperm.slane %v1508, 0
    %v1543 = vperm.slane %v1508, 1
    %v1544 = vperm.slane %v1508, 2
    %v1545 = vperm.slane %v1508, 3
    %v1550 = vadd.f32 %v1509, %v1542
    %v1551 = vadd.f32 %v1510, %v1543
    %v1552 = vadd.f32 %v1511, %v1544
    %v1553 = vadd.f32 %v1512, %v1545
    %v1554 = vadd.f32 %v1513, %v1542
    %v1555 = vadd.f32 %v1514, %v1543
    %v1556 = vadd.f32 %v1515, %v1544
    %v1557 = vadd.f32 %v1516, %v1545
    %v1558 = vadd.f32 %v1517, %v1542
    %v1559 = vadd.f32 %v1518, %v1543
    %v1560 = vadd.f32 %v1519, %v1544
    %v1561 = vadd.f32 %v1520, %v1545
    %v1562 = vadd.f32 %v1521, %v1542
    %v1563 = vadd.f32 %v1522, %v1543
    %v1564 = vadd.f32 %v1523, %v1544
    %v1565 = vadd.f32 %v1524, %v1545
    %v1566 = vadd.f32 %v1525, %v1542
    %v1567 = vadd.f32 %v1526, %v1543
    %v1568 = vadd.f32 %v1527, %v1544
    %v1569 = vadd.f32 %v1528, %v1545
    %v1570 = vadd.f32 %v1529, %v1542
    %v1571 = vadd.f32 %v1530, %v1543
    %v1572 = vadd.f32 %v1531, %v1544
    %v1573 = vadd.f32 %v1532, %v1545
    %v1574 = vadd.f32 %v1533, %v1542
    %v1575 = vadd.f32 %v1534, %v1543
    %v1576 = vadd.f32 %v1535, %v1544
    %v1577 = vadd.f32 %v1536, %v1545
    %v1578 = vadd.f32 %v1537, %v1542
    %v1579 = vadd.f32 %v1538, %v1543
    %v1580 = vadd.f32 %v1539, %v1544
    %v1581 = vadd.f32 %v1540, %v1545
    %v1582 = vmax.f32 %v1550, 0.0
    %v1583 = vmax.f32 %v1551, 0.0
    %v1584 = vmax.f32 %v1552, 0.0
    %v1585 = vmax.f32 %v1553, 0.0
    %v1586 = vmax.f32 %v1554, 0.0
    %v1587 = vmax.f32 %v1555, 0.0
    %v1588 = vmax.f32 %v1556, 0.0
    %v1589 = vmax.f32 %v1557, 0.0
    %v1590 = vmax.f32 %v1558, 0.0
    %v1591 = vmax.f32 %v1559, 0.0
    %v1592 = vmax.f32 %v1560, 0.0
    %v1593 = vmax.f32 %v1561, 0.0
    %v1594 = vmax.f32 %v1562, 0.0
    %v1595 = vmax.f32 %v1563, 0.0
    %v1596 = vmax.f32 %v1564, 0.0
    %v1597 = vmax.f32 %v1565, 0.0
    %v1598 = vmax.f32 %v1566, 0.0
    %v1599 = vmax.f32 %v1567, 0.0
    %v1600 = vmax.f32 %v1568, 0.0
    %v1601 = vmax.f32 %v1569, 0.0
    %v1602 = vmax.f32 %v1570, 0.0
    %v1603 = vmax.f32 %v1571, 0.0
    %v1604 = vmax.f32 %v1572, 0.0
    %v1605 = vmax.f32 %v1573, 0.0
    %v1606 = vmax.f32 %v1574, 0.0
    %v1607 = vmax.f32 %v1575, 0.0
    %v1608 = vmax.f32 %v1576, 0.0
    %v1609 = vmax.f32 %v1577, 0.0
    %v1610 = vmax.f32 %v1578, 0.0
    %v1611 = vmax.f32 %v1579, 0.0
    %v1612 = vmax.f32 %v1580, 0.0
    %v1613 = vmax.f32 %v1581, 0.0
    %s1614 = smul.u32 4, 64
    %s1615 = smul.u32 %s1614, 8
    %s1616 = sshll.u32 %s1615, 4
    %1617 = dma.done %s192, %s1616
    %v1618 = vpack.c.bf16 %v1586, %v1582
    %v1619 = vpack.c.bf16 %v1587, %v1583
    %v1620 = vpack.c.bf16 %v1588, %v1584
    %v1621 = vpack.c.bf16 %v1589, %v1585
    %v1622 = vpack.c.bf16 %v1594, %v1590
    %v1623 = vpack.c.bf16 %v1595, %v1591
    %v1624 = vpack.c.bf16 %v1596, %v1592
    %v1625 = vpack.c.bf16 %v1597, %v1593
    %v1626 = vpack.c.bf16 %v1602, %v1598
    %v1627 = vpack.c.bf16 %v1603, %v1599
    %v1628 = vpack.c.bf16 %v1604, %v1600
    %v1629 = vpack.c.bf16 %v1605, %v1601
    %v1630 = vpack.c.bf16 %v1610, %v1606
    %v1631 = vpack.c.bf16 %v1611, %v1607
    %v1632 = vpack.c.bf16 %v1612, %v1608
    %v1633 = vpack.c.bf16 %v1613, %v1609
    %v1634 = vld [vmem:[#allocation4] sm:$0xff]
    %v1635 = vld [vmem:[#allocation4 + $0x8] sm:$0xff]
    %v1636 = vld [vmem:[#allocation4 + $0x10] sm:$0xff]
    %v1637 = vld [vmem:[#allocation4 + $0x18] sm:$0xff]
    %v1638 = vld [vmem:[#allocation4 + $0x20] sm:$0xff]
    %v1639 = vld [vmem:[#allocation4 + $0x28] sm:$0xff]
    %v1640 = vld [vmem:[#allocation4 + $0x30] sm:$0xff]
    %v1641 = vld [vmem:[#allocation4 + $0x38] sm:$0xff]
    %v1642 = vld [vmem:[#allocation4 + $0x40] sm:$0xff]
    %v1643 = vld [vmem:[#allocation4 + $0x48] sm:$0xff]
    %v1644 = vld [vmem:[#allocation4 + $0x50] sm:$0xff]
    %v1645 = vld [vmem:[#allocation4 + $0x58] sm:$0xff]
    %v1646 = vld [vmem:[#allocation4 + $0x60] sm:$0xff]
    %v1647 = vld [vmem:[#allocation4 + $0x68] sm:$0xff]
    %v1648 = vld [vmem:[#allocation4 + $0x70] sm:$0xff]
    %v1649 = vld [vmem:[#allocation4 + $0x78] sm:$0xff]
    %v1650 = vld [vmem:[#allocation4 + $0x80] sm:$0xff]
    %v1651 = vld [vmem:[#allocation4 + $0x88] sm:$0xff]
    %v1652 = vld [vmem:[#allocation4 + $0x90] sm:$0xff]
    %v1653 = vld [vmem:[#allocation4 + $0x98] sm:$0xff]
    %v1654 = vld [vmem:[#allocation4 + $0xa0] sm:$0xff]
    %v1655 = vld [vmem:[#allocation4 + $0xa8] sm:$0xff]
    %v1656 = vld [vmem:[#allocation4 + $0xb0] sm:$0xff]
    %v1657 = vld [vmem:[#allocation4 + $0xb8] sm:$0xff]
    %v1658 = vld [vmem:[#allocation4 + $0xc0] sm:$0xff]
    %v1659 = vld [vmem:[#allocation4 + $0xc8] sm:$0xff]
    %v1660 = vld [vmem:[#allocation4 + $0xd0] sm:$0xff]
    %v1661 = vld [vmem:[#allocation4 + $0xd8] sm:$0xff]
    %v1662 = vld [vmem:[#allocation4 + $0xe0] sm:$0xff]
    %v1663 = vld [vmem:[#allocation4 + $0xe8] sm:$0xff]
    %v1664 = vld [vmem:[#allocation4 + $0xf0] sm:$0xff]
    %v1665 = vld [vmem:[#allocation4 + $0xf8] sm:$0xff]
    %v1666 = vld [vmem:[#allocation4 + $0x100] sm:$0xff]
    %v1667 = vld [vmem:[#allocation4 + $0x108] sm:$0xff]
    %v1668 = vld [vmem:[#allocation4 + $0x110] sm:$0xff]
    %v1669 = vld [vmem:[#allocation4 + $0x118] sm:$0xff]
    %v1670 = vld [vmem:[#allocation4 + $0x120] sm:$0xff]
    %v1671 = vld [vmem:[#allocation4 + $0x128] sm:$0xff]
    %v1672 = vld [vmem:[#allocation4 + $0x130] sm:$0xff]
    %v1673 = vld [vmem:[#allocation4 + $0x138] sm:$0xff]
    %v1674 = vld [vmem:[#allocation4 + $0x140] sm:$0xff]
    %v1675 = vld [vmem:[#allocation4 + $0x148] sm:$0xff]
    %v1676 = vld [vmem:[#allocation4 + $0x150] sm:$0xff]
    %v1677 = vld [vmem:[#allocation4 + $0x158] sm:$0xff]
    %v1678 = vld [vmem:[#allocation4 + $0x160] sm:$0xff]
    %v1679 = vld [vmem:[#allocation4 + $0x168] sm:$0xff]
    %v1680 = vld [vmem:[#allocation4 + $0x170] sm:$0xff]
    %v1681 = vld [vmem:[#allocation4 + $0x178] sm:$0xff]
    %v1682 = vld [vmem:[#allocation4 + $0x180] sm:$0xff]
    %v1683 = vld [vmem:[#allocation4 + $0x188] sm:$0xff]
    %v1684 = vld [vmem:[#allocation4 + $0x190] sm:$0xff]
    %v1685 = vld [vmem:[#allocation4 + $0x198] sm:$0xff]
    %v1686 = vld [vmem:[#allocation4 + $0x1a0] sm:$0xff]
    %v1687 = vld [vmem:[#allocation4 + $0x1a8] sm:$0xff]
    %v1688 = vld [vmem:[#allocation4 + $0x1b0] sm:$0xff]
    %v1689 = vld [vmem:[#allocation4 + $0x1b8] sm:$0xff]
    %v1690 = vld [vmem:[#allocation4 + $0x1c0] sm:$0xff]
    %v1691 = vld [vmem:[#allocation4 + $0x1c8] sm:$0xff]
    %v1692 = vld [vmem:[#allocation4 + $0x1d0] sm:$0xff]
    %v1693 = vld [vmem:[#allocation4 + $0x1d8] sm:$0xff]
    %v1694 = vld [vmem:[#allocation4 + $0x1e0] sm:$0xff]
    %v1695 = vld [vmem:[#allocation4 + $0x1e8] sm:$0xff]
    %v1696 = vld [vmem:[#allocation4 + $0x1f0] sm:$0xff]
    %v1697 = vld [vmem:[#allocation4 + $0x1f8] sm:$0xff]
    %v1698 = vld [vmem:[#allocation4 + $0x200] sm:$0xff]
    %v1699 = vld [vmem:[#allocation4 + $0x208] sm:$0xff]
    %v1700 = vld [vmem:[#allocation4 + $0x210] sm:$0xff]
    %v1701 = vld [vmem:[#allocation4 + $0x218] sm:$0xff]
    %v1702 = vld [vmem:[#allocation4 + $0x220] sm:$0xff]
    %v1703 = vld [vmem:[#allocation4 + $0x228] sm:$0xff]
    %v1704 = vld [vmem:[#allocation4 + $0x230] sm:$0xff]
    %v1705 = vld [vmem:[#allocation4 + $0x238] sm:$0xff]
    %v1706 = vld [vmem:[#allocation4 + $0x240] sm:$0xff]
    %v1707 = vld [vmem:[#allocation4 + $0x248] sm:$0xff]
    %v1708 = vld [vmem:[#allocation4 + $0x250] sm:$0xff]
    %v1709 = vld [vmem:[#allocation4 + $0x258] sm:$0xff]
    %v1710 = vld [vmem:[#allocation4 + $0x260] sm:$0xff]
    %v1711 = vld [vmem:[#allocation4 + $0x268] sm:$0xff]
    %v1712 = vld [vmem:[#allocation4 + $0x270] sm:$0xff]
    %v1713 = vld [vmem:[#allocation4 + $0x278] sm:$0xff]
    %v1714 = vld [vmem:[#allocation4 + $0x280] sm:$0xff]
    %v1715 = vld [vmem:[#allocation4 + $0x288] sm:$0xff]
    %v1716 = vld [vmem:[#allocation4 + $0x290] sm:$0xff]
    %v1717 = vld [vmem:[#allocation4 + $0x298] sm:$0xff]
    %v1718 = vld [vmem:[#allocation4 + $0x2a0] sm:$0xff]
    %v1719 = vld [vmem:[#allocation4 + $0x2a8] sm:$0xff]
    %v1720 = vld [vmem:[#allocation4 + $0x2b0] sm:$0xff]
    %v1721 = vld [vmem:[#allocation4 + $0x2b8] sm:$0xff]
    %v1722 = vld [vmem:[#allocation4 + $0x2c0] sm:$0xff]
    %v1723 = vld [vmem:[#allocation4 + $0x2c8] sm:$0xff]
    %v1724 = vld [vmem:[#allocation4 + $0x2d0] sm:$0xff]
    %v1725 = vld [vmem:[#allocation4 + $0x2d8] sm:$0xff]
    %v1726 = vld [vmem:[#allocation4 + $0x2e0] sm:$0xff]
    %v1727 = vld [vmem:[#allocation4 + $0x2e8] sm:$0xff]
    %v1728 = vld [vmem:[#allocation4 + $0x2f0] sm:$0xff]
    %v1729 = vld [vmem:[#allocation4 + $0x2f8] sm:$0xff]
    %v1730 = vld [vmem:[#allocation4 + $0x300] sm:$0xff]
    %v1731 = vld [vmem:[#allocation4 + $0x308] sm:$0xff]
    %v1732 = vld [vmem:[#allocation4 + $0x310] sm:$0xff]
    %v1733 = vld [vmem:[#allocation4 + $0x318] sm:$0xff]
    %v1734 = vld [vmem:[#allocation4 + $0x320] sm:$0xff]
    %v1735 = vld [vmem:[#allocation4 + $0x328] sm:$0xff]
    %v1736 = vld [vmem:[#allocation4 + $0x330] sm:$0xff]
    %v1737 = vld [vmem:[#allocation4 + $0x338] sm:$0xff]
    %v1738 = vld [vmem:[#allocation4 + $0x340] sm:$0xff]
    %v1739 = vld [vmem:[#allocation4 + $0x348] sm:$0xff]
    %v1740 = vld [vmem:[#allocation4 + $0x350] sm:$0xff]
    %v1741 = vld [vmem:[#allocation4 + $0x358] sm:$0xff]
    %v1742 = vld [vmem:[#allocation4 + $0x360] sm:$0xff]
    %v1743 = vld [vmem:[#allocation4 + $0x368] sm:$0xff]
    %v1744 = vld [vmem:[#allocation4 + $0x370] sm:$0xff]
    %v1745 = vld [vmem:[#allocation4 + $0x378] sm:$0xff]
    %v1746 = vld [vmem:[#allocation4 + $0x380] sm:$0xff]
    %v1747 = vld [vmem:[#allocation4 + $0x388] sm:$0xff]
    %v1748 = vld [vmem:[#allocation4 + $0x390] sm:$0xff]
    %v1749 = vld [vmem:[#allocation4 + $0x398] sm:$0xff]
    %v1750 = vld [vmem:[#allocation4 + $0x3a0] sm:$0xff]
    %v1751 = vld [vmem:[#allocation4 + $0x3a8] sm:$0xff]
    %v1752 = vld [vmem:[#allocation4 + $0x3b0] sm:$0xff]
    %v1753 = vld [vmem:[#allocation4 + $0x3b8] sm:$0xff]
    %v1754 = vld [vmem:[#allocation4 + $0x3c0] sm:$0xff]
    %v1755 = vld [vmem:[#allocation4 + $0x3c8] sm:$0xff]
    %v1756 = vld [vmem:[#allocation4 + $0x3d0] sm:$0xff]
    %v1757 = vld [vmem:[#allocation4 + $0x3d8] sm:$0xff]
    %v1758 = vld [vmem:[#allocation4 + $0x3e0] sm:$0xff]
    %v1759 = vld [vmem:[#allocation4 + $0x3e8] sm:$0xff]
    %v1760 = vld [vmem:[#allocation4 + $0x3f0] sm:$0xff]
    %v1761 = vld [vmem:[#allocation4 + $0x3f8] sm:$0xff]
    %v1762 = vld [vmem:[#allocation4 + $0x400] sm:$0xff]
    %v1763 = vld [vmem:[#allocation4 + $0x408] sm:$0xff]
    %v1764 = vld [vmem:[#allocation4 + $0x410] sm:$0xff]
    %v1765 = vld [vmem:[#allocation4 + $0x418] sm:$0xff]
    %v1766 = vld [vmem:[#allocation4 + $0x420] sm:$0xff]
    %v1767 = vld [vmem:[#allocation4 + $0x428] sm:$0xff]
    %v1768 = vld [vmem:[#allocation4 + $0x430] sm:$0xff]
    %v1769 = vld [vmem:[#allocation4 + $0x438] sm:$0xff]
    %v1770 = vld [vmem:[#allocation4 + $0x440] sm:$0xff]
    %v1771 = vld [vmem:[#allocation4 + $0x448] sm:$0xff]
    %v1772 = vld [vmem:[#allocation4 + $0x450] sm:$0xff]
    %v1773 = vld [vmem:[#allocation4 + $0x458] sm:$0xff]
    %v1774 = vld [vmem:[#allocation4 + $0x460] sm:$0xff]
    %v1775 = vld [vmem:[#allocation4 + $0x468] sm:$0xff]
    %v1776 = vld [vmem:[#allocation4 + $0x470] sm:$0xff]
    %v1777 = vld [vmem:[#allocation4 + $0x478] sm:$0xff]
    %v1778 = vld [vmem:[#allocation4 + $0x480] sm:$0xff]
    %v1779 = vld [vmem:[#allocation4 + $0x488] sm:$0xff]
    %v1780 = vld [vmem:[#allocation4 + $0x490] sm:$0xff]
    %v1781 = vld [vmem:[#allocation4 + $0x498] sm:$0xff]
    %v1782 = vld [vmem:[#allocation4 + $0x4a0] sm:$0xff]
    %v1783 = vld [vmem:[#allocation4 + $0x4a8] sm:$0xff]
    %v1784 = vld [vmem:[#allocation4 + $0x4b0] sm:$0xff]
    %v1785 = vld [vmem:[#allocation4 + $0x4b8] sm:$0xff]
    %v1786 = vld [vmem:[#allocation4 + $0x4c0] sm:$0xff]
    %v1787 = vld [vmem:[#allocation4 + $0x4c8] sm:$0xff]
    %v1788 = vld [vmem:[#allocation4 + $0x4d0] sm:$0xff]
    %v1789 = vld [vmem:[#allocation4 + $0x4d8] sm:$0xff]
    %v1790 = vld [vmem:[#allocation4 + $0x4e0] sm:$0xff]
    %v1791 = vld [vmem:[#allocation4 + $0x4e8] sm:$0xff]
    %v1792 = vld [vmem:[#allocation4 + $0x4f0] sm:$0xff]
    %v1793 = vld [vmem:[#allocation4 + $0x4f8] sm:$0xff]
    %v1794 = vld [vmem:[#allocation4 + $0x500] sm:$0xff]
    %v1795 = vld [vmem:[#allocation4 + $0x508] sm:$0xff]
    %v1796 = vld [vmem:[#allocation4 + $0x510] sm:$0xff]
    %v1797 = vld [vmem:[#allocation4 + $0x518] sm:$0xff]
    %v1798 = vld [vmem:[#allocation4 + $0x520] sm:$0xff]
    %v1799 = vld [vmem:[#allocation4 + $0x528] sm:$0xff]
    %v1800 = vld [vmem:[#allocation4 + $0x530] sm:$0xff]
    %v1801 = vld [vmem:[#allocation4 + $0x538] sm:$0xff]
    %v1802 = vld [vmem:[#allocation4 + $0x540] sm:$0xff]
    %v1803 = vld [vmem:[#allocation4 + $0x548] sm:$0xff]
    %v1804 = vld [vmem:[#allocation4 + $0x550] sm:$0xff]
    %v1805 = vld [vmem:[#allocation4 + $0x558] sm:$0xff]
    %v1806 = vld [vmem:[#allocation4 + $0x560] sm:$0xff]
    %v1807 = vld [vmem:[#allocation4 + $0x568] sm:$0xff]
    %v1808 = vld [vmem:[#allocation4 + $0x570] sm:$0xff]
    %v1809 = vld [vmem:[#allocation4 + $0x578] sm:$0xff]
    %v1810 = vld [vmem:[#allocation4 + $0x580] sm:$0xff]
    %v1811 = vld [vmem:[#allocation4 + $0x588] sm:$0xff]
    %v1812 = vld [vmem:[#allocation4 + $0x590] sm:$0xff]
    %v1813 = vld [vmem:[#allocation4 + $0x598] sm:$0xff]
    %v1814 = vld [vmem:[#allocation4 + $0x5a0] sm:$0xff]
    %v1815 = vld [vmem:[#allocation4 + $0x5a8] sm:$0xff]
    %v1816 = vld [vmem:[#allocation4 + $0x5b0] sm:$0xff]
    %v1817 = vld [vmem:[#allocation4 + $0x5b8] sm:$0xff]
    %v1818 = vld [vmem:[#allocation4 + $0x5c0] sm:$0xff]
    %v1819 = vld [vmem:[#allocation4 + $0x5c8] sm:$0xff]
    %v1820 = vld [vmem:[#allocation4 + $0x5d0] sm:$0xff]
    %v1821 = vld [vmem:[#allocation4 + $0x5d8] sm:$0xff]
    %v1822 = vld [vmem:[#allocation4 + $0x5e0] sm:$0xff]
    %v1823 = vld [vmem:[#allocation4 + $0x5e8] sm:$0xff]
    %v1824 = vld [vmem:[#allocation4 + $0x5f0] sm:$0xff]
    %v1825 = vld [vmem:[#allocation4 + $0x5f8] sm:$0xff]
    %v1826 = vld [vmem:[#allocation4 + $0x600] sm:$0xff]
    %v1827 = vld [vmem:[#allocation4 + $0x608] sm:$0xff]
    %v1828 = vld [vmem:[#allocation4 + $0x610] sm:$0xff]
    %v1829 = vld [vmem:[#allocation4 + $0x618] sm:$0xff]
    %v1830 = vld [vmem:[#allocation4 + $0x620] sm:$0xff]
    %v1831 = vld [vmem:[#allocation4 + $0x628] sm:$0xff]
    %v1832 = vld [vmem:[#allocation4 + $0x630] sm:$0xff]
    %v1833 = vld [vmem:[#allocation4 + $0x638] sm:$0xff]
    %v1834 = vld [vmem:[#allocation4 + $0x640] sm:$0xff]
    %v1835 = vld [vmem:[#allocation4 + $0x648] sm:$0xff]
    %v1836 = vld [vmem:[#allocation4 + $0x650] sm:$0xff]
    %v1837 = vld [vmem:[#allocation4 + $0x658] sm:$0xff]
    %v1838 = vld [vmem:[#allocation4 + $0x660] sm:$0xff]
    %v1839 = vld [vmem:[#allocation4 + $0x668] sm:$0xff]
    %v1840 = vld [vmem:[#allocation4 + $0x670] sm:$0xff]
    %v1841 = vld [vmem:[#allocation4 + $0x678] sm:$0xff]
    %v1842 = vld [vmem:[#allocation4 + $0x680] sm:$0xff]
    %v1843 = vld [vmem:[#allocation4 + $0x688] sm:$0xff]
    %v1844 = vld [vmem:[#allocation4 + $0x690] sm:$0xff]
    %v1845 = vld [vmem:[#allocation4 + $0x698] sm:$0xff]
    %v1846 = vld [vmem:[#allocation4 + $0x6a0] sm:$0xff]
    %v1847 = vld [vmem:[#allocation4 + $0x6a8] sm:$0xff]
    %v1848 = vld [vmem:[#allocation4 + $0x6b0] sm:$0xff]
    %v1849 = vld [vmem:[#allocation4 + $0x6b8] sm:$0xff]
    %v1850 = vld [vmem:[#allocation4 + $0x6c0] sm:$0xff]
    %v1851 = vld [vmem:[#allocation4 + $0x6c8] sm:$0xff]
    %v1852 = vld [vmem:[#allocation4 + $0x6d0] sm:$0xff]
    %v1853 = vld [vmem:[#allocation4 + $0x6d8] sm:$0xff]
    %v1854 = vld [vmem:[#allocation4 + $0x6e0] sm:$0xff]
    %v1855 = vld [vmem:[#allocation4 + $0x6e8] sm:$0xff]
    %v1856 = vld [vmem:[#allocation4 + $0x6f0] sm:$0xff]
    %v1857 = vld [vmem:[#allocation4 + $0x6f8] sm:$0xff]
    %v1858 = vld [vmem:[#allocation4 + $0x700] sm:$0xff]
    %v1859 = vld [vmem:[#allocation4 + $0x708] sm:$0xff]
    %v1860 = vld [vmem:[#allocation4 + $0x710] sm:$0xff]
    %v1861 = vld [vmem:[#allocation4 + $0x718] sm:$0xff]
    %v1862 = vld [vmem:[#allocation4 + $0x720] sm:$0xff]
    %v1863 = vld [vmem:[#allocation4 + $0x728] sm:$0xff]
    %v1864 = vld [vmem:[#allocation4 + $0x730] sm:$0xff]
    %v1865 = vld [vmem:[#allocation4 + $0x738] sm:$0xff]
    %v1866 = vld [vmem:[#allocation4 + $0x740] sm:$0xff]
    %v1867 = vld [vmem:[#allocation4 + $0x748] sm:$0xff]
    %v1868 = vld [vmem:[#allocation4 + $0x750] sm:$0xff]
    %v1869 = vld [vmem:[#allocation4 + $0x758] sm:$0xff]
    %v1870 = vld [vmem:[#allocation4 + $0x760] sm:$0xff]
    %v1871 = vld [vmem:[#allocation4 + $0x768] sm:$0xff]
    %v1872 = vld [vmem:[#allocation4 + $0x770] sm:$0xff]
    %v1873 = vld [vmem:[#allocation4 + $0x778] sm:$0xff]
    %v1874 = vld [vmem:[#allocation4 + $0x780] sm:$0xff]
    %v1875 = vld [vmem:[#allocation4 + $0x788] sm:$0xff]
    %v1876 = vld [vmem:[#allocation4 + $0x790] sm:$0xff]
    %v1877 = vld [vmem:[#allocation4 + $0x798] sm:$0xff]
    %v1878 = vld [vmem:[#allocation4 + $0x7a0] sm:$0xff]
    %v1879 = vld [vmem:[#allocation4 + $0x7a8] sm:$0xff]
    %v1880 = vld [vmem:[#allocation4 + $0x7b0] sm:$0xff]
    %v1881 = vld [vmem:[#allocation4 + $0x7b8] sm:$0xff]
    %v1882 = vld [vmem:[#allocation4 + $0x7c0] sm:$0xff]
    %v1883 = vld [vmem:[#allocation4 + $0x7c8] sm:$0xff]
    %v1884 = vld [vmem:[#allocation4 + $0x7d0] sm:$0xff]
    %v1885 = vld [vmem:[#allocation4 + $0x7d8] sm:$0xff]
    %v1886 = vld [vmem:[#allocation4 + $0x7e0] sm:$0xff]
    %v1887 = vld [vmem:[#allocation4 + $0x7e8] sm:$0xff]
    %v1888 = vld [vmem:[#allocation4 + $0x7f0] sm:$0xff]
    %v1889 = vld [vmem:[#allocation4 + $0x7f8] sm:$0xff]
    %v2146 = vunpack.c.l.b16 %v1634
    %v2147 = vunpack.c.h.b16 %v1634
    %v2148 = vunpack.c.l.b16 %v1635
    %v2149 = vunpack.c.h.b16 %v1635
    %v2150 = vunpack.c.l.b16 %v1636
    %v2151 = vunpack.c.h.b16 %v1636
    %v2152 = vunpack.c.l.b16 %v1637
    %v2153 = vunpack.c.h.b16 %v1637
    %v2154 = vunpack.c.l.b16 %v1638
    %v2155 = vunpack.c.h.b16 %v1638
    %v2156 = vunpack.c.l.b16 %v1639
    %v2157 = vunpack.c.h.b16 %v1639
    %v2158 = vunpack.c.l.b16 %v1640
    %v2159 = vunpack.c.h.b16 %v1640
    %v2160 = vunpack.c.l.b16 %v1641
    %v2161 = vunpack.c.h.b16 %v1641
    %v2162 = vunpack.c.l.b16 %v1642
    %v2163 = vunpack.c.h.b16 %v1642
    %v2164 = vunpack.c.l.b16 %v1643
    %v2165 = vunpack.c.h.b16 %v1643
    %v2166 = vunpack.c.l.b16 %v1644
    %v2167 = vunpack.c.h.b16 %v1644
    %v2168 = vunpack.c.l.b16 %v1645
    %v2169 = vunpack.c.h.b16 %v1645
    %v2170 = vunpack.c.l.b16 %v1646
    %v2171 = vunpack.c.h.b16 %v1646
    %v2172 = vunpack.c.l.b16 %v1647
    %v2173 = vunpack.c.h.b16 %v1647
    %v2174 = vunpack.c.l.b16 %v1648
    %v2175 = vunpack.c.h.b16 %v1648
    %v2176 = vunpack.c.l.b16 %v1649
    %v2177 = vunpack.c.h.b16 %v1649
    %v2178 = vunpack.c.l.b16 %v1650
    %v2179 = vunpack.c.h.b16 %v1650
    %v2180 = vunpack.c.l.b16 %v1651
    %v2181 = vunpack.c.h.b16 %v1651
    %v2182 = vunpack.c.l.b16 %v1652
    %v2183 = vunpack.c.h.b16 %v1652
    %v2184 = vunpack.c.l.b16 %v1653
    %v2185 = vunpack.c.h.b16 %v1653
    %v2186 = vunpack.c.l.b16 %v1654
    %v2187 = vunpack.c.h.b16 %v1654
    %v2188 = vunpack.c.l.b16 %v1655
    %v2189 = vunpack.c.h.b16 %v1655
    %v2190 = vunpack.c.l.b16 %v1656
    %v2191 = vunpack.c.h.b16 %v1656
    %v2192 = vunpack.c.l.b16 %v1657
    %v2193 = vunpack.c.h.b16 %v1657
    %v2194 = vunpack.c.l.b16 %v1658
    %v2195 = vunpack.c.h.b16 %v1658
    %v2196 = vunpack.c.l.b16 %v1659
    %v2197 = vunpack.c.h.b16 %v1659
    %v2198 = vunpack.c.l.b16 %v1660
    %v2199 = vunpack.c.h.b16 %v1660
    %v2200 = vunpack.c.l.b16 %v1661
    %v2201 = vunpack.c.h.b16 %v1661
    %v2202 = vunpack.c.l.b16 %v1662
    %v2203 = vunpack.c.h.b16 %v1662
    %v2204 = vunpack.c.l.b16 %v1663
    %v2205 = vunpack.c.h.b16 %v1663
    %v2206 = vunpack.c.l.b16 %v1664
    %v2207 = vunpack.c.h.b16 %v1664
    %v2208 = vunpack.c.l.b16 %v1665
    %v2209 = vunpack.c.h.b16 %v1665
    %v2210 = vunpack.c.l.b16 %v1666
    %v2211 = vunpack.c.h.b16 %v1666
    %v2212 = vunpack.c.l.b16 %v1667
    %v2213 = vunpack.c.h.b16 %v1667
    %v2214 = vunpack.c.l.b16 %v1668
    %v2215 = vunpack.c.h.b16 %v1668
    %v2216 = vunpack.c.l.b16 %v1669
    %v2217 = vunpack.c.h.b16 %v1669
    %v2218 = vunpack.c.l.b16 %v1670
    %v2219 = vunpack.c.h.b16 %v1670
    %v2220 = vunpack.c.l.b16 %v1671
    %v2221 = vunpack.c.h.b16 %v1671
    %v2222 = vunpack.c.l.b16 %v1672
    %v2223 = vunpack.c.h.b16 %v1672
    %v2224 = vunpack.c.l.b16 %v1673
    %v2225 = vunpack.c.h.b16 %v1673
    %v2226 = vunpack.c.l.b16 %v1674
    %v2227 = vunpack.c.h.b16 %v1674
    %v2228 = vunpack.c.l.b16 %v1675
    %v2229 = vunpack.c.h.b16 %v1675
    %v2230 = vunpack.c.l.b16 %v1676
    %v2231 = vunpack.c.h.b16 %v1676
    %v2232 = vunpack.c.l.b16 %v1677
    %v2233 = vunpack.c.h.b16 %v1677
    %v2234 = vunpack.c.l.b16 %v1678
    %v2235 = vunpack.c.h.b16 %v1678
    %v2236 = vunpack.c.l.b16 %v1679
    %v2237 = vunpack.c.h.b16 %v1679
    %v2238 = vunpack.c.l.b16 %v1680
    %v2239 = vunpack.c.h.b16 %v1680
    %v2240 = vunpack.c.l.b16 %v1681
    %v2241 = vunpack.c.h.b16 %v1681
    %v2242 = vunpack.c.l.b16 %v1682
    %v2243 = vunpack.c.h.b16 %v1682
    %v2244 = vunpack.c.l.b16 %v1683
    %v2245 = vunpack.c.h.b16 %v1683
    %v2246 = vunpack.c.l.b16 %v1684
    %v2247 = vunpack.c.h.b16 %v1684
    %v2248 = vunpack.c.l.b16 %v1685
    %v2249 = vunpack.c.h.b16 %v1685
    %v2250 = vunpack.c.l.b16 %v1686
    %v2251 = vunpack.c.h.b16 %v1686
    %v2252 = vunpack.c.l.b16 %v1687
    %v2253 = vunpack.c.h.b16 %v1687
    %v2254 = vunpack.c.l.b16 %v1688
    %v2255 = vunpack.c.h.b16 %v1688
    %v2256 = vunpack.c.l.b16 %v1689
    %v2257 = vunpack.c.h.b16 %v1689
    %v2258 = vunpack.c.l.b16 %v1690
    %v2259 = vunpack.c.h.b16 %v1690
    %v2260 = vunpack.c.l.b16 %v1691
    %v2261 = vunpack.c.h.b16 %v1691
    %v2262 = vunpack.c.l.b16 %v1692
    %v2263 = vunpack.c.h.b16 %v1692
    %v2264 = vunpack.c.l.b16 %v1693
    %v2265 = vunpack.c.h.b16 %v1693
    %v2266 = vunpack.c.l.b16 %v1694
    %v2267 = vunpack.c.h.b16 %v1694
    %v2268 = vunpack.c.l.b16 %v1695
    %v2269 = vunpack.c.h.b16 %v1695
    %v2270 = vunpack.c.l.b16 %v1696
    %v2271 = vunpack.c.h.b16 %v1696
    %v2272 = vunpack.c.l.b16 %v1697
    %v2273 = vunpack.c.h.b16 %v1697
    %v2274 = vunpack.c.l.b16 %v1698
    %v2275 = vunpack.c.h.b16 %v1698
    %v2276 = vunpack.c.l.b16 %v1699
    %v2277 = vunpack.c.h.b16 %v1699
    %v2278 = vunpack.c.l.b16 %v1700
    %v2279 = vunpack.c.h.b16 %v1700
    %v2280 = vunpack.c.l.b16 %v1701
    %v2281 = vunpack.c.h.b16 %v1701
    %v2282 = vunpack.c.l.b16 %v1702
    %v2283 = vunpack.c.h.b16 %v1702
    %v2284 = vunpack.c.l.b16 %v1703
    %v2285 = vunpack.c.h.b16 %v1703
    %v2286 = vunpack.c.l.b16 %v1704
    %v2287 = vunpack.c.h.b16 %v1704
    %v2288 = vunpack.c.l.b16 %v1705
    %v2289 = vunpack.c.h.b16 %v1705
    %v2290 = vunpack.c.l.b16 %v1706
    %v2291 = vunpack.c.h.b16 %v1706
    %v2292 = vunpack.c.l.b16 %v1707
    %v2293 = vunpack.c.h.b16 %v1707
    %v2294 = vunpack.c.l.b16 %v1708
    %v2295 = vunpack.c.h.b16 %v1708
    %v2296 = vunpack.c.l.b16 %v1709
    %v2297 = vunpack.c.h.b16 %v1709
    %v2298 = vunpack.c.l.b16 %v1710
    %v2299 = vunpack.c.h.b16 %v1710
    %v2300 = vunpack.c.l.b16 %v1711
    %v2301 = vunpack.c.h.b16 %v1711
    %v2302 = vunpack.c.l.b16 %v1712
    %v2303 = vunpack.c.h.b16 %v1712
    %v2304 = vunpack.c.l.b16 %v1713
    %v2305 = vunpack.c.h.b16 %v1713
    %v2306 = vunpack.c.l.b16 %v1714
    %v2307 = vunpack.c.h.b16 %v1714
    %v2308 = vunpack.c.l.b16 %v1715
    %v2309 = vunpack.c.h.b16 %v1715
    %v2310 = vunpack.c.l.b16 %v1716
    %v2311 = vunpack.c.h.b16 %v1716
    %v2312 = vunpack.c.l.b16 %v1717
    %v2313 = vunpack.c.h.b16 %v1717
    %v2314 = vunpack.c.l.b16 %v1718
    %v2315 = vunpack.c.h.b16 %v1718
    %v2316 = vunpack.c.l.b16 %v1719
    %v2317 = vunpack.c.h.b16 %v1719
    %v2318 = vunpack.c.l.b16 %v1720
    %v2319 = vunpack.c.h.b16 %v1720
    %v2320 = vunpack.c.l.b16 %v1721
    %v2321 = vunpack.c.h.b16 %v1721
    %v2322 = vunpack.c.l.b16 %v1722
    %v2323 = vunpack.c.h.b16 %v1722
    %v2324 = vunpack.c.l.b16 %v1723
    %v2325 = vunpack.c.h.b16 %v1723
    %v2326 = vunpack.c.l.b16 %v1724
    %v2327 = vunpack.c.h.b16 %v1724
    %v2328 = vunpack.c.l.b16 %v1725
    %v2329 = vunpack.c.h.b16 %v1725
    %v2330 = vunpack.c.l.b16 %v1726
    %v2331 = vunpack.c.h.b16 %v1726
    %v2332 = vunpack.c.l.b16 %v1727
    %v2333 = vunpack.c.h.b16 %v1727
    %v2334 = vunpack.c.l.b16 %v1728
    %v2335 = vunpack.c.h.b16 %v1728
    %v2336 = vunpack.c.l.b16 %v1729
    %v2337 = vunpack.c.h.b16 %v1729
    %v2338 = vunpack.c.l.b16 %v1730
    %v2339 = vunpack.c.h.b16 %v1730
    %v2340 = vunpack.c.l.b16 %v1731
    %v2341 = vunpack.c.h.b16 %v1731
    %v2342 = vunpack.c.l.b16 %v1732
    %v2343 = vunpack.c.h.b16 %v1732
    %v2344 = vunpack.c.l.b16 %v1733
    %v2345 = vunpack.c.h.b16 %v1733
    %v2346 = vunpack.c.l.b16 %v1734
    %v2347 = vunpack.c.h.b16 %v1734
    %v2348 = vunpack.c.l.b16 %v1735
    %v2349 = vunpack.c.h.b16 %v1735
    %v2350 = vunpack.c.l.b16 %v1736
    %v2351 = vunpack.c.h.b16 %v1736
    %v2352 = vunpack.c.l.b16 %v1737
    %v2353 = vunpack.c.h.b16 %v1737
    %v2354 = vunpack.c.l.b16 %v1738
    %v2355 = vunpack.c.h.b16 %v1738
    %v2356 = vunpack.c.l.b16 %v1739
    %v2357 = vunpack.c.h.b16 %v1739
    %v2358 = vunpack.c.l.b16 %v1740
    %v2359 = vunpack.c.h.b16 %v1740
    %v2360 = vunpack.c.l.b16 %v1741
    %v2361 = vunpack.c.h.b16 %v1741
    %v2362 = vunpack.c.l.b16 %v1742
    %v2363 = vunpack.c.h.b16 %v1742
    %v2364 = vunpack.c.l.b16 %v1743
    %v2365 = vunpack.c.h.b16 %v1743
    %v2366 = vunpack.c.l.b16 %v1744
    %v2367 = vunpack.c.h.b16 %v1744
    %v2368 = vunpack.c.l.b16 %v1745
    %v2369 = vunpack.c.h.b16 %v1745
    %v2370 = vunpack.c.l.b16 %v1746
    %v2371 = vunpack.c.h.b16 %v1746
    %v2372 = vunpack.c.l.b16 %v1747
    %v2373 = vunpack.c.h.b16 %v1747
    %v2374 = vunpack.c.l.b16 %v1748
    %v2375 = vunpack.c.h.b16 %v1748
    %v2376 = vunpack.c.l.b16 %v1749
    %v2377 = vunpack.c.h.b16 %v1749
    %v2378 = vunpack.c.l.b16 %v1750
    %v2379 = vunpack.c.h.b16 %v1750
    %v2380 = vunpack.c.l.b16 %v1751
    %v2381 = vunpack.c.h.b16 %v1751
    %v2382 = vunpack.c.l.b16 %v1752
    %v2383 = vunpack.c.h.b16 %v1752
    %v2384 = vunpack.c.l.b16 %v1753
    %v2385 = vunpack.c.h.b16 %v1753
    %v2386 = vunpack.c.l.b16 %v1754
    %v2387 = vunpack.c.h.b16 %v1754
    %v2388 = vunpack.c.l.b16 %v1755
    %v2389 = vunpack.c.h.b16 %v1755
    %v2390 = vunpack.c.l.b16 %v1756
    %v2391 = vunpack.c.h.b16 %v1756
    %v2392 = vunpack.c.l.b16 %v1757
    %v2393 = vunpack.c.h.b16 %v1757
    %v2394 = vunpack.c.l.b16 %v1758
    %v2395 = vunpack.c.h.b16 %v1758
    %v2396 = vunpack.c.l.b16 %v1759
    %v2397 = vunpack.c.h.b16 %v1759
    %v2398 = vunpack.c.l.b16 %v1760
    %v2399 = vunpack.c.h.b16 %v1760
    %v2400 = vunpack.c.l.b16 %v1761
    %v2401 = vunpack.c.h.b16 %v1761
    %v2402 = vunpack.c.l.b16 %v1762
    %v2403 = vunpack.c.h.b16 %v1762
    %v2404 = vunpack.c.l.b16 %v1763
    %v2405 = vunpack.c.h.b16 %v1763
    %v2406 = vunpack.c.l.b16 %v1764
    %v2407 = vunpack.c.h.b16 %v1764
    %v2408 = vunpack.c.l.b16 %v1765
    %v2409 = vunpack.c.h.b16 %v1765
    %v2410 = vunpack.c.l.b16 %v1766
    %v2411 = vunpack.c.h.b16 %v1766
    %v2412 = vunpack.c.l.b16 %v1767
    %v2413 = vunpack.c.h.b16 %v1767
    %v2414 = vunpack.c.l.b16 %v1768
    %v2415 = vunpack.c.h.b16 %v1768
    %v2416 = vunpack.c.l.b16 %v1769
    %v2417 = vunpack.c.h.b16 %v1769
    %v2418 = vunpack.c.l.b16 %v1770
    %v2419 = vunpack.c.h.b16 %v1770
    %v2420 = vunpack.c.l.b16 %v1771
    %v2421 = vunpack.c.h.b16 %v1771
    %v2422 = vunpack.c.l.b16 %v1772
    %v2423 = vunpack.c.h.b16 %v1772
    %v2424 = vunpack.c.l.b16 %v1773
    %v2425 = vunpack.c.h.b16 %v1773
    %v2426 = vunpack.c.l.b16 %v1774
    %v2427 = vunpack.c.h.b16 %v1774
    %v2428 = vunpack.c.l.b16 %v1775
    %v2429 = vunpack.c.h.b16 %v1775
    %v2430 = vunpack.c.l.b16 %v1776
    %v2431 = vunpack.c.h.b16 %v1776
    %v2432 = vunpack.c.l.b16 %v1777
    %v2433 = vunpack.c.h.b16 %v1777
    %v2434 = vunpack.c.l.b16 %v1778
    %v2435 = vunpack.c.h.b16 %v1778
    %v2436 = vunpack.c.l.b16 %v1779
    %v2437 = vunpack.c.h.b16 %v1779
    %v2438 = vunpack.c.l.b16 %v1780
    %v2439 = vunpack.c.h.b16 %v1780
    %v2440 = vunpack.c.l.b16 %v1781
    %v2441 = vunpack.c.h.b16 %v1781
    %v2442 = vunpack.c.l.b16 %v1782
    %v2443 = vunpack.c.h.b16 %v1782
    %v2444 = vunpack.c.l.b16 %v1783
    %v2445 = vunpack.c.h.b16 %v1783
    %v2446 = vunpack.c.l.b16 %v1784
    %v2447 = vunpack.c.h.b16 %v1784
    %v2448 = vunpack.c.l.b16 %v1785
    %v2449 = vunpack.c.h.b16 %v1785
    %v2450 = vunpack.c.l.b16 %v1786
    %v2451 = vunpack.c.h.b16 %v1786
    %v2452 = vunpack.c.l.b16 %v1787
    %v2453 = vunpack.c.h.b16 %v1787
    %v2454 = vunpack.c.l.b16 %v1788
    %v2455 = vunpack.c.h.b16 %v1788
    %v2456 = vunpack.c.l.b16 %v1789
    %v2457 = vunpack.c.h.b16 %v1789
    %v2458 = vunpack.c.l.b16 %v1790
    %v2459 = vunpack.c.h.b16 %v1790
    %v2460 = vunpack.c.l.b16 %v1791
    %v2461 = vunpack.c.h.b16 %v1791
    %v2462 = vunpack.c.l.b16 %v1792
    %v2463 = vunpack.c.h.b16 %v1792
    %v2464 = vunpack.c.l.b16 %v1793
    %v2465 = vunpack.c.h.b16 %v1793
    %v2466 = vunpack.c.l.b16 %v1794
    %v2467 = vunpack.c.h.b16 %v1794
    %v2468 = vunpack.c.l.b16 %v1795
    %v2469 = vunpack.c.h.b16 %v1795
    %v2470 = vunpack.c.l.b16 %v1796
    %v2471 = vunpack.c.h.b16 %v1796
    %v2472 = vunpack.c.l.b16 %v1797
    %v2473 = vunpack.c.h.b16 %v1797
    %v2474 = vunpack.c.l.b16 %v1798
    %v2475 = vunpack.c.h.b16 %v1798
    %v2476 = vunpack.c.l.b16 %v1799
    %v2477 = vunpack.c.h.b16 %v1799
    %v2478 = vunpack.c.l.b16 %v1800
    %v2479 = vunpack.c.h.b16 %v1800
    %v2480 = vunpack.c.l.b16 %v1801
    %v2481 = vunpack.c.h.b16 %v1801
    %v2482 = vunpack.c.l.b16 %v1802
    %v2483 = vunpack.c.h.b16 %v1802
    %v2484 = vunpack.c.l.b16 %v1803
    %v2485 = vunpack.c.h.b16 %v1803
    %v2486 = vunpack.c.l.b16 %v1804
    %v2487 = vunpack.c.h.b16 %v1804
    %v2488 = vunpack.c.l.b16 %v1805
    %v2489 = vunpack.c.h.b16 %v1805
    %v2490 = vunpack.c.l.b16 %v1806
    %v2491 = vunpack.c.h.b16 %v1806
    %v2492 = vunpack.c.l.b16 %v1807
    %v2493 = vunpack.c.h.b16 %v1807
    %v2494 = vunpack.c.l.b16 %v1808
    %v2495 = vunpack.c.h.b16 %v1808
    %v2496 = vunpack.c.l.b16 %v1809
    %v2497 = vunpack.c.h.b16 %v1809
    %v2498 = vunpack.c.l.b16 %v1810
    %v2499 = vunpack.c.h.b16 %v1810
    %v2500 = vunpack.c.l.b16 %v1811
    %v2501 = vunpack.c.h.b16 %v1811
    %v2502 = vunpack.c.l.b16 %v1812
    %v2503 = vunpack.c.h.b16 %v1812
    %v2504 = vunpack.c.l.b16 %v1813
    %v2505 = vunpack.c.h.b16 %v1813
    %v2506 = vunpack.c.l.b16 %v1814
    %v2507 = vunpack.c.h.b16 %v1814
    %v2508 = vunpack.c.l.b16 %v1815
    %v2509 = vunpack.c.h.b16 %v1815
    %v2510 = vunpack.c.l.b16 %v1816
    %v2511 = vunpack.c.h.b16 %v1816
    %v2512 = vunpack.c.l.b16 %v1817
    %v2513 = vunpack.c.h.b16 %v1817
    %v2514 = vunpack.c.l.b16 %v1818
    %v2515 = vunpack.c.h.b16 %v1818
    %v2516 = vunpack.c.l.b16 %v1819
    %v2517 = vunpack.c.h.b16 %v1819
    %v2518 = vunpack.c.l.b16 %v1820
    %v2519 = vunpack.c.h.b16 %v1820
    %v2520 = vunpack.c.l.b16 %v1821
    %v2521 = vunpack.c.h.b16 %v1821
    %v2522 = vunpack.c.l.b16 %v1822
    %v2523 = vunpack.c.h.b16 %v1822
    %v2524 = vunpack.c.l.b16 %v1823
    %v2525 = vunpack.c.h.b16 %v1823
    %v2526 = vunpack.c.l.b16 %v1824
    %v2527 = vunpack.c.h.b16 %v1824
    %v2528 = vunpack.c.l.b16 %v1825
    %v2529 = vunpack.c.h.b16 %v1825
    %v2530 = vunpack.c.l.b16 %v1826
    %v2531 = vunpack.c.h.b16 %v1826
    %v2532 = vunpack.c.l.b16 %v1827
    %v2533 = vunpack.c.h.b16 %v1827
    %v2534 = vunpack.c.l.b16 %v1828
    %v2535 = vunpack.c.h.b16 %v1828
    %v2536 = vunpack.c.l.b16 %v1829
    %v2537 = vunpack.c.h.b16 %v1829
    %v2538 = vunpack.c.l.b16 %v1830
    %v2539 = vunpack.c.h.b16 %v1830
    %v2540 = vunpack.c.l.b16 %v1831
    %v2541 = vunpack.c.h.b16 %v1831
    %v2542 = vunpack.c.l.b16 %v1832
    %v2543 = vunpack.c.h.b16 %v1832
    %v2544 = vunpack.c.l.b16 %v1833
    %v2545 = vunpack.c.h.b16 %v1833
    %v2546 = vunpack.c.l.b16 %v1834
    %v2547 = vunpack.c.h.b16 %v1834
    %v2548 = vunpack.c.l.b16 %v1835
    %v2549 = vunpack.c.h.b16 %v1835
    %v2550 = vunpack.c.l.b16 %v1836
    %v2551 = vunpack.c.h.b16 %v1836
    %v2552 = vunpack.c.l.b16 %v1837
    %v2553 = vunpack.c.h.b16 %v1837
    %v2554 = vunpack.c.l.b16 %v1838
    %v2555 = vunpack.c.h.b16 %v1838
    %v2556 = vunpack.c.l.b16 %v1839
    %v2557 = vunpack.c.h.b16 %v1839
    %v2558 = vunpack.c.l.b16 %v1840
    %v2559 = vunpack.c.h.b16 %v1840
    %v2560 = vunpack.c.l.b16 %v1841
    %v2561 = vunpack.c.h.b16 %v1841
    %v2562 = vunpack.c.l.b16 %v1842
    %v2563 = vunpack.c.h.b16 %v1842
    %v2564 = vunpack.c.l.b16 %v1843
    %v2565 = vunpack.c.h.b16 %v1843
    %v2566 = vunpack.c.l.b16 %v1844
    %v2567 = vunpack.c.h.b16 %v1844
    %v2568 = vunpack.c.l.b16 %v1845
    %v2569 = vunpack.c.h.b16 %v1845
    %v2570 = vunpack.c.l.b16 %v1846
    %v2571 = vunpack.c.h.b16 %v1846
    %v2572 = vunpack.c.l.b16 %v1847
    %v2573 = vunpack.c.h.b16 %v1847
    %v2574 = vunpack.c.l.b16 %v1848
    %v2575 = vunpack.c.h.b16 %v1848
    %v2576 = vunpack.c.l.b16 %v1849
    %v2577 = vunpack.c.h.b16 %v1849
    %v2578 = vunpack.c.l.b16 %v1850
    %v2579 = vunpack.c.h.b16 %v1850
    %v2580 = vunpack.c.l.b16 %v1851
    %v2581 = vunpack.c.h.b16 %v1851
    %v2582 = vunpack.c.l.b16 %v1852
    %v2583 = vunpack.c.h.b16 %v1852
    %v2584 = vunpack.c.l.b16 %v1853
    %v2585 = vunpack.c.h.b16 %v1853
    %v2586 = vunpack.c.l.b16 %v1854
    %v2587 = vunpack.c.h.b16 %v1854
    %v2588 = vunpack.c.l.b16 %v1855
    %v2589 = vunpack.c.h.b16 %v1855
    %v2590 = vunpack.c.l.b16 %v1856
    %v2591 = vunpack.c.h.b16 %v1856
    %v2592 = vunpack.c.l.b16 %v1857
    %v2593 = vunpack.c.h.b16 %v1857
    %v2594 = vunpack.c.l.b16 %v1858
    %v2595 = vunpack.c.h.b16 %v1858
    %v2596 = vunpack.c.l.b16 %v1859
    %v2597 = vunpack.c.h.b16 %v1859
    %v2598 = vunpack.c.l.b16 %v1860
    %v2599 = vunpack.c.h.b16 %v1860
    %v2600 = vunpack.c.l.b16 %v1861
    %v2601 = vunpack.c.h.b16 %v1861
    %v2602 = vunpack.c.l.b16 %v1862
    %v2603 = vunpack.c.h.b16 %v1862
    %v2604 = vunpack.c.l.b16 %v1863
    %v2605 = vunpack.c.h.b16 %v1863
    %v2606 = vunpack.c.l.b16 %v1864
    %v2607 = vunpack.c.h.b16 %v1864
    %v2608 = vunpack.c.l.b16 %v1865
    %v2609 = vunpack.c.h.b16 %v1865
    %v2610 = vunpack.c.l.b16 %v1866
    %v2611 = vunpack.c.h.b16 %v1866
    %v2612 = vunpack.c.l.b16 %v1867
    %v2613 = vunpack.c.h.b16 %v1867
    %v2614 = vunpack.c.l.b16 %v1868
    %v2615 = vunpack.c.h.b16 %v1868
    %v2616 = vunpack.c.l.b16 %v1869
    %v2617 = vunpack.c.h.b16 %v1869
    %v2618 = vunpack.c.l.b16 %v1870
    %v2619 = vunpack.c.h.b16 %v1870
    %v2620 = vunpack.c.l.b16 %v1871
    %v2621 = vunpack.c.h.b16 %v1871
    %v2622 = vunpack.c.l.b16 %v1872
    %v2623 = vunpack.c.h.b16 %v1872
    %v2624 = vunpack.c.l.b16 %v1873
    %v2625 = vunpack.c.h.b16 %v1873
    %v2626 = vunpack.c.l.b16 %v1874
    %v2627 = vunpack.c.h.b16 %v1874
    %v2628 = vunpack.c.l.b16 %v1875
    %v2629 = vunpack.c.h.b16 %v1875
    %v2630 = vunpack.c.l.b16 %v1876
    %v2631 = vunpack.c.h.b16 %v1876
    %v2632 = vunpack.c.l.b16 %v1877
    %v2633 = vunpack.c.h.b16 %v1877
    %v2634 = vunpack.c.l.b16 %v1878
    %v2635 = vunpack.c.h.b16 %v1878
    %v2636 = vunpack.c.l.b16 %v1879
    %v2637 = vunpack.c.h.b16 %v1879
    %v2638 = vunpack.c.l.b16 %v1880
    %v2639 = vunpack.c.h.b16 %v1880
    %v2640 = vunpack.c.l.b16 %v1881
    %v2641 = vunpack.c.h.b16 %v1881
    %v2642 = vunpack.c.l.b16 %v1882
    %v2643 = vunpack.c.h.b16 %v1882
    %v2644 = vunpack.c.l.b16 %v1883
    %v2645 = vunpack.c.h.b16 %v1883
    %v2646 = vunpack.c.l.b16 %v1884
    %v2647 = vunpack.c.h.b16 %v1884
    %v2648 = vunpack.c.l.b16 %v1885
    %v2649 = vunpack.c.h.b16 %v1885
    %v2650 = vunpack.c.l.b16 %v1886
    %v2651 = vunpack.c.h.b16 %v1886
    %v2652 = vunpack.c.l.b16 %v1887
    %v2653 = vunpack.c.h.b16 %v1887
    %v2654 = vunpack.c.l.b16 %v1888
    %v2655 = vunpack.c.h.b16 %v1888
    %v2656 = vunpack.c.l.b16 %v1889
    %v2657 = vunpack.c.h.b16 %v1889
    %v2658 = vpack.c.b16 %v2154, %v2146
    %v2659 = vpack.c.b16 %v2155, %v2147
    %v2660 = vpack.c.b16 %v2156, %v2148
    %v2661 = vpack.c.b16 %v2157, %v2149
    %v2662 = vpack.c.b16 %v2158, %v2150
    %v2663 = vpack.c.b16 %v2159, %v2151
    %v2664 = vpack.c.b16 %v2160, %v2152
    %v2665 = vpack.c.b16 %v2161, %v2153
    %v2666 = vpack.c.b16 %v2170, %v2162
    %v2667 = vpack.c.b16 %v2171, %v2163
    %v2668 = vpack.c.b16 %v2172, %v2164
    %v2669 = vpack.c.b16 %v2173, %v2165
    %v2670 = vpack.c.b16 %v2174, %v2166
    %v2671 = vpack.c.b16 %v2175, %v2167
    %v2672 = vpack.c.b16 %v2176, %v2168
    %v2673 = vpack.c.b16 %v2177, %v2169
    %v2674 = vpack.c.b16 %v2186, %v2178
    %v2675 = vpack.c.b16 %v2187, %v2179
    %v2676 = vpack.c.b16 %v2188, %v2180
    %v2677 = vpack.c.b16 %v2189, %v2181
    %v2678 = vpack.c.b16 %v2190, %v2182
    %v2679 = vpack.c.b16 %v2191, %v2183
    %v2680 = vpack.c.b16 %v2192, %v2184
    %v2681 = vpack.c.b16 %v2193, %v2185
    %v2682 = vpack.c.b16 %v2202, %v2194
    %v2683 = vpack.c.b16 %v2203, %v2195
    %v2684 = vpack.c.b16 %v2204, %v2196
    %v2685 = vpack.c.b16 %v2205, %v2197
    %v2686 = vpack.c.b16 %v2206, %v2198
    %v2687 = vpack.c.b16 %v2207, %v2199
    %v2688 = vpack.c.b16 %v2208, %v2200
    %v2689 = vpack.c.b16 %v2209, %v2201
    %v2690 = vpack.c.b16 %v2218, %v2210
    %v2691 = vpack.c.b16 %v2219, %v2211
    %v2692 = vpack.c.b16 %v2220, %v2212
    %v2693 = vpack.c.b16 %v2221, %v2213
    %v2694 = vpack.c.b16 %v2222, %v2214
    %v2695 = vpack.c.b16 %v2223, %v2215
    %v2696 = vpack.c.b16 %v2224, %v2216
    %v2697 = vpack.c.b16 %v2225, %v2217
    %v2698 = vpack.c.b16 %v2234, %v2226
    %v2699 = vpack.c.b16 %v2235, %v2227
    %v2700 = vpack.c.b16 %v2236, %v2228
    %v2701 = vpack.c.b16 %v2237, %v2229
    %v2702 = vpack.c.b16 %v2238, %v2230
    %v2703 = vpack.c.b16 %v2239, %v2231
    %v2704 = vpack.c.b16 %v2240, %v2232
    %v2705 = vpack.c.b16 %v2241, %v2233
    %v2706 = vpack.c.b16 %v2250, %v2242
    %v2707 = vpack.c.b16 %v2251, %v2243
    %v2708 = vpack.c.b16 %v2252, %v2244
    %v2709 = vpack.c.b16 %v2253, %v2245
    %v2710 = vpack.c.b16 %v2254, %v2246
    %v2711 = vpack.c.b16 %v2255, %v2247
    %v2712 = vpack.c.b16 %v2256, %v2248
    %v2713 = vpack.c.b16 %v2257, %v2249
    %v2714 = vpack.c.b16 %v2266, %v2258
    %v2715 = vpack.c.b16 %v2267, %v2259
    %v2716 = vpack.c.b16 %v2268, %v2260
    %v2717 = vpack.c.b16 %v2269, %v2261
    %v2718 = vpack.c.b16 %v2270, %v2262
    %v2719 = vpack.c.b16 %v2271, %v2263
    %v2720 = vpack.c.b16 %v2272, %v2264
    %v2721 = vpack.c.b16 %v2273, %v2265
    %v2722 = vpack.c.b16 %v2282, %v2274
    %v2723 = vpack.c.b16 %v2283, %v2275
    %v2724 = vpack.c.b16 %v2284, %v2276
    %v2725 = vpack.c.b16 %v2285, %v2277
    %v2726 = vpack.c.b16 %v2286, %v2278
    %v2727 = vpack.c.b16 %v2287, %v2279
    %v2728 = vpack.c.b16 %v2288, %v2280
    %v2729 = vpack.c.b16 %v2289, %v2281
    %v2730 = vpack.c.b16 %v2298, %v2290
    %v2731 = vpack.c.b16 %v2299, %v2291
    %v2732 = vpack.c.b16 %v2300, %v2292
    %v2733 = vpack.c.b16 %v2301, %v2293
    %v2734 = vpack.c.b16 %v2302, %v2294
    %v2735 = vpack.c.b16 %v2303, %v2295
    %v2736 = vpack.c.b16 %v2304, %v2296
    %v2737 = vpack.c.b16 %v2305, %v2297
    %v2738 = vpack.c.b16 %v2314, %v2306
    %v2739 = vpack.c.b16 %v2315, %v2307
    %v2740 = vpack.c.b16 %v2316, %v2308
    %v2741 = vpack.c.b16 %v2317, %v2309
    %v2742 = vpack.c.b16 %v2318, %v2310
    %v2743 = vpack.c.b16 %v2319, %v2311
    %v2744 = vpack.c.b16 %v2320, %v2312
    %v2745 = vpack.c.b16 %v2321, %v2313
    %v2746 = vpack.c.b16 %v2330, %v2322
    %v2747 = vpack.c.b16 %v2331, %v2323
    %v2748 = vpack.c.b16 %v2332, %v2324
    %v2749 = vpack.c.b16 %v2333, %v2325
    %v2750 = vpack.c.b16 %v2334, %v2326
    %v2751 = vpack.c.b16 %v2335, %v2327
    %v2752 = vpack.c.b16 %v2336, %v2328
    %v2753 = vpack.c.b16 %v2337, %v2329
    %v2754 = vpack.c.b16 %v2346, %v2338
    %v2755 = vpack.c.b16 %v2347, %v2339
    %v2756 = vpack.c.b16 %v2348, %v2340
    %v2757 = vpack.c.b16 %v2349, %v2341
    %v2758 = vpack.c.b16 %v2350, %v2342
    %v2759 = vpack.c.b16 %v2351, %v2343
    %v2760 = vpack.c.b16 %v2352, %v2344
    %v2761 = vpack.c.b16 %v2353, %v2345
    %v2762 = vpack.c.b16 %v2362, %v2354
    %v2763 = vpack.c.b16 %v2363, %v2355
    %v2764 = vpack.c.b16 %v2364, %v2356
    %v2765 = vpack.c.b16 %v2365, %v2357
    %v2766 = vpack.c.b16 %v2366, %v2358
    %v2767 = vpack.c.b16 %v2367, %v2359
    %v2768 = vpack.c.b16 %v2368, %v2360
    %v2769 = vpack.c.b16 %v2369, %v2361
    %v2770 = vpack.c.b16 %v2378, %v2370
    %v2771 = vpack.c.b16 %v2379, %v2371
    %v2772 = vpack.c.b16 %v2380, %v2372
    %v2773 = vpack.c.b16 %v2381, %v2373
    %v2774 = vpack.c.b16 %v2382, %v2374
    %v2775 = vpack.c.b16 %v2383, %v2375
    %v2776 = vpack.c.b16 %v2384, %v2376
    %v2777 = vpack.c.b16 %v2385, %v2377
    %v2778 = vpack.c.b16 %v2394, %v2386
    %v2779 = vpack.c.b16 %v2395, %v2387
    %v2780 = vpack.c.b16 %v2396, %v2388
    %v2781 = vpack.c.b16 %v2397, %v2389
    %v2782 = vpack.c.b16 %v2398, %v2390
    %v2783 = vpack.c.b16 %v2399, %v2391
    %v2784 = vpack.c.b16 %v2400, %v2392
    %v2785 = vpack.c.b16 %v2401, %v2393
    %v2786 = vpack.c.b16 %v2410, %v2402
    %v2787 = vpack.c.b16 %v2411, %v2403
    %v2788 = vpack.c.b16 %v2412, %v2404
    %v2789 = vpack.c.b16 %v2413, %v2405
    %v2790 = vpack.c.b16 %v2414, %v2406
    %v2791 = vpack.c.b16 %v2415, %v2407
    %v2792 = vpack.c.b16 %v2416, %v2408
    %v2793 = vpack.c.b16 %v2417, %v2409
    %v2794 = vpack.c.b16 %v2426, %v2418
    %v2795 = vpack.c.b16 %v2427, %v2419
    %v2796 = vpack.c.b16 %v2428, %v2420
    %v2797 = vpack.c.b16 %v2429, %v2421
    %v2798 = vpack.c.b16 %v2430, %v2422
    %v2799 = vpack.c.b16 %v2431, %v2423
    %v2800 = vpack.c.b16 %v2432, %v2424
    %v2801 = vpack.c.b16 %v2433, %v2425
    %v2802 = vpack.c.b16 %v2442, %v2434
    %v2803 = vpack.c.b16 %v2443, %v2435
    %v2804 = vpack.c.b16 %v2444, %v2436
    %v2805 = vpack.c.b16 %v2445, %v2437
    %v2806 = vpack.c.b16 %v2446, %v2438
    %v2807 = vpack.c.b16 %v2447, %v2439
    %v2808 = vpack.c.b16 %v2448, %v2440
    %v2809 = vpack.c.b16 %v2449, %v2441
    %v2810 = vpack.c.b16 %v2458, %v2450
    %v2811 = vpack.c.b16 %v2459, %v2451
    %v2812 = vpack.c.b16 %v2460, %v2452
    %v2813 = vpack.c.b16 %v2461, %v2453
    %v2814 = vpack.c.b16 %v2462, %v2454
    %v2815 = vpack.c.b16 %v2463, %v2455
    %v2816 = vpack.c.b16 %v2464, %v2456
    %v2817 = vpack.c.b16 %v2465, %v2457
    %v2818 = vpack.c.b16 %v2474, %v2466
    %v2819 = vpack.c.b16 %v2475, %v2467
    %v2820 = vpack.c.b16 %v2476, %v2468
    %v2821 = vpack.c.b16 %v2477, %v2469
    %v2822 = vpack.c.b16 %v2478, %v2470
    %v2823 = vpack.c.b16 %v2479, %v2471
    %v2824 = vpack.c.b16 %v2480, %v2472
    %v2825 = vpack.c.b16 %v2481, %v2473
    %v2826 = vpack.c.b16 %v2490, %v2482
    %v2827 = vpack.c.b16 %v2491, %v2483
    %v2828 = vpack.c.b16 %v2492, %v2484
    %v2829 = vpack.c.b16 %v2493, %v2485
    %v2830 = vpack.c.b16 %v2494, %v2486
    %v2831 = vpack.c.b16 %v2495, %v2487
    %v2832 = vpack.c.b16 %v2496, %v2488
    %v2833 = vpack.c.b16 %v2497, %v2489
    %v2834 = vpack.c.b16 %v2506, %v2498
    %v2835 = vpack.c.b16 %v2507, %v2499
    %v2836 = vpack.c.b16 %v2508, %v2500
    %v2837 = vpack.c.b16 %v2509, %v2501
    %v2838 = vpack.c.b16 %v2510, %v2502
    %v2839 = vpack.c.b16 %v2511, %v2503
    %v2840 = vpack.c.b16 %v2512, %v2504
    %v2841 = vpack.c.b16 %v2513, %v2505
    %v2842 = vpack.c.b16 %v2522, %v2514
    %v2843 = vpack.c.b16 %v2523, %v2515
    %v2844 = vpack.c.b16 %v2524, %v2516
    %v2845 = vpack.c.b16 %v2525, %v2517
    %v2846 = vpack.c.b16 %v2526, %v2518
    %v2847 = vpack.c.b16 %v2527, %v2519
    %v2848 = vpack.c.b16 %v2528, %v2520
    %v2849 = vpack.c.b16 %v2529, %v2521
    %v2850 = vpack.c.b16 %v2538, %v2530
    %v2851 = vpack.c.b16 %v2539, %v2531
    %v2852 = vpack.c.b16 %v2540, %v2532
    %v2853 = vpack.c.b16 %v2541, %v2533
    %v2854 = vpack.c.b16 %v2542, %v2534
    %v2855 = vpack.c.b16 %v2543, %v2535
    %v2856 = vpack.c.b16 %v2544, %v2536
    %v2857 = vpack.c.b16 %v2545, %v2537
    %v2858 = vpack.c.b16 %v2554, %v2546
    %v2859 = vpack.c.b16 %v2555, %v2547
    %v2860 = vpack.c.b16 %v2556, %v2548
    %v2861 = vpack.c.b16 %v2557, %v2549
    %v2862 = vpack.c.b16 %v2558, %v2550
    %v2863 = vpack.c.b16 %v2559, %v2551
    %v2864 = vpack.c.b16 %v2560, %v2552
    %v2865 = vpack.c.b16 %v2561, %v2553
    %v2866 = vpack.c.b16 %v2570, %v2562
    %v2867 = vpack.c.b16 %v2571, %v2563
    %v2868 = vpack.c.b16 %v2572, %v2564
    %v2869 = vpack.c.b16 %v2573, %v2565
    %v2870 = vpack.c.b16 %v2574, %v2566
    %v2871 = vpack.c.b16 %v2575, %v2567
    %v2872 = vpack.c.b16 %v2576, %v2568
    %v2873 = vpack.c.b16 %v2577, %v2569
    %v2874 = vpack.c.b16 %v2586, %v2578
    %v2875 = vpack.c.b16 %v2587, %v2579
    %v2876 = vpack.c.b16 %v2588, %v2580
    %v2877 = vpack.c.b16 %v2589, %v2581
    %v2878 = vpack.c.b16 %v2590, %v2582
    %v2879 = vpack.c.b16 %v2591, %v2583
    %v2880 = vpack.c.b16 %v2592, %v2584
    %v2881 = vpack.c.b16 %v2593, %v2585
    %v2882 = vpack.c.b16 %v2602, %v2594
    %v2883 = vpack.c.b16 %v2603, %v2595
    %v2884 = vpack.c.b16 %v2604, %v2596
    %v2885 = vpack.c.b16 %v2605, %v2597
    %v2886 = vpack.c.b16 %v2606, %v2598
    %v2887 = vpack.c.b16 %v2607, %v2599
    %v2888 = vpack.c.b16 %v2608, %v2600
    %v2889 = vpack.c.b16 %v2609, %v2601
    %v2890 = vpack.c.b16 %v2618, %v2610
    %v2891 = vpack.c.b16 %v2619, %v2611
    %v2892 = vpack.c.b16 %v2620, %v2612
    %v2893 = vpack.c.b16 %v2621, %v2613
    %v2894 = vpack.c.b16 %v2622, %v2614
    %v2895 = vpack.c.b16 %v2623, %v2615
    %v2896 = vpack.c.b16 %v2624, %v2616
    %v2897 = vpack.c.b16 %v2625, %v2617
    %v2898 = vpack.c.b16 %v2634, %v2626
    %v2899 = vpack.c.b16 %v2635, %v2627
    %v2900 = vpack.c.b16 %v2636, %v2628
    %v2901 = vpack.c.b16 %v2637, %v2629
    %v2902 = vpack.c.b16 %v2638, %v2630
    %v2903 = vpack.c.b16 %v2639, %v2631
    %v2904 = vpack.c.b16 %v2640, %v2632
    %v2905 = vpack.c.b16 %v2641, %v2633
    %v2906 = vpack.c.b16 %v2650, %v2642
    %v2907 = vpack.c.b16 %v2651, %v2643
    %v2908 = vpack.c.b16 %v2652, %v2644
    %v2909 = vpack.c.b16 %v2653, %v2645
    %v2910 = vpack.c.b16 %v2654, %v2646
    %v2911 = vpack.c.b16 %v2655, %v2647
    %v2912 = vpack.c.b16 %v2656, %v2648
    %v2913 = vpack.c.b16 %v2657, %v2649
    %3170 = vmatpush.bf16.msra.mxu0 %v2714
    %3171 = vmatpush.bf16.msra.mxu0 %v2706
    %3172 = vmatpush.bf16.msra.mxu0 %v2698
    %3173 = vmatpush.bf16.msra.mxu0 %v2690
    %3174 = vmatpush.bf16.msra.mxu0 %v2682
    %3175 = vmatpush.bf16.msra.mxu0 %v2674
    %3176 = vmatpush.bf16.msra.mxu0 %v2666
    %3177 = vmatpush.bf16.msra.mxu0 %v2658
    %3178 = vmatmul.bf16.gmra.mxu0 %v1618
    %v3179 = vpop.f32.mrf.mxu0
    %v3180 = vadd.f32 0.0, %v3179
    %v3181 = vpop.f32.mrf.mxu0
    %v3182 = vadd.f32 0.0, %v3181
    %3183 = vmatmul.bf16.gmra.mxu0 %v1622
    %v3184 = vpop.f32.mrf.mxu0
    %v3185 = vadd.f32 0.0, %v3184
    %v3186 = vpop.f32.mrf.mxu0
    %v3187 = vadd.f32 0.0, %v3186
    %3188 = vmatmul.bf16.gmra.mxu0 %v1626
    %v3189 = vpop.f32.mrf.mxu0
    %v3190 = vadd.f32 0.0, %v3189
    %v3191 = vpop.f32.mrf.mxu0
    %v3192 = vadd.f32 0.0, %v3191
    %3193 = vmatmul.bf16.gmra.mxu0 %v1630
    %v3194 = vpop.f32.mrf.mxu0
    %v3195 = vadd.f32 0.0, %v3194
    %v3196 = vpop.f32.mrf.mxu0
    %v3197 = vadd.f32 0.0, %v3196
    %3198 = vdwg.mxu0
    %3199 = vmatpush.bf16.msra.mxu0 %v2778
    %3200 = vmatpush.bf16.msra.mxu0 %v2770
    %3201 = vmatpush.bf16.msra.mxu0 %v2762
    %3202 = vmatpush.bf16.msra.mxu0 %v2754
    %3203 = vmatpush.bf16.msra.mxu0 %v2746
    %3204 = vmatpush.bf16.msra.mxu0 %v2738
    %3205 = vmatpush.bf16.msra.mxu0 %v2730
    %3206 = vmatpush.bf16.msra.mxu0 %v2722
    %3207 = vmatmul.bf16.gmra.mxu0 %v1619
    %v3208 = vpop.f32.mrf.mxu0
    %v3209 = vadd.f32 %v3180, %v3208
    %v3210 = vpop.f32.mrf.mxu0
    %v3211 = vadd.f32 %v3182, %v3210
    %3212 = vmatmul.bf16.gmra.mxu0 %v1623
    %v3213 = vpop.f32.mrf.mxu0
    %v3214 = vadd.f32 %v3185, %v3213
    %v3215 = vpop.f32.mrf.mxu0
    %v3216 = vadd.f32 %v3187, %v3215
    %3217 = vmatmul.bf16.gmra.mxu0 %v1627
    %v3218 = vpop.f32.mrf.mxu0
    %v3219 = vadd.f32 %v3190, %v3218
    %v3220 = vpop.f32.mrf.mxu0
    %v3221 = vadd.f32 %v3192, %v3220
    %3222 = vmatmul.bf16.gmra.mxu0 %v1631
    %v3223 = vpop.f32.mrf.mxu0
    %v3224 = vadd.f32 %v3195, %v3223
    %v3225 = vpop.f32.mrf.mxu0
    %v3226 = vadd.f32 %v3197, %v3225
    %3227 = vdwg.mxu0
    %3228 = vmatpush.bf16.msra.mxu0 %v2842
    %3229 = vmatpush.bf16.msra.mxu0 %v2834
    %3230 = vmatpush.bf16.msra.mxu0 %v2826
    %3231 = vmatpush.bf16.msra.mxu0 %v2818
    %3232 = vmatpush.bf16.msra.mxu0 %v2810
    %3233 = vmatpush.bf16.msra.mxu0 %v2802
    %3234 = vmatpush.bf16.msra.mxu0 %v2794
    %3235 = vmatpush.bf16.msra.mxu0 %v2786
    %3236 = vmatmul.bf16.gmra.mxu0 %v1620
    %v3237 = vpop.f32.mrf.mxu0
    %v3238 = vadd.f32 %v3209, %v3237
    %v3239 = vpop.f32.mrf.mxu0
    %v3240 = vadd.f32 %v3211, %v3239
    %3241 = vmatmul.bf16.gmra.mxu0 %v1624
    %v3242 = vpop.f32.mrf.mxu0
    %v3243 = vadd.f32 %v3214, %v3242
    %v3244 = vpop.f32.mrf.mxu0
    %v3245 = vadd.f32 %v3216, %v3244
    %3246 = vmatmul.bf16.gmra.mxu0 %v1628
    %v3247 = vpop.f32.mrf.mxu0
    %v3248 = vadd.f32 %v3219, %v3247
    %v3249 = vpop.f32.mrf.mxu0
    %v3250 = vadd.f32 %v3221, %v3249
    %3251 = vmatmul.bf16.gmra.mxu0 %v1632
    %v3252 = vpop.f32.mrf.mxu0
    %v3253 = vadd.f32 %v3224, %v3252
    %v3254 = vpop.f32.mrf.mxu0
    %v3255 = vadd.f32 %v3226, %v3254
    %3256 = vdwg.mxu0
    %3257 = vmatpush.bf16.msra.mxu0 %v2906
    %3258 = vmatpush.bf16.msra.mxu0 %v2898
    %3259 = vmatpush.bf16.msra.mxu0 %v2890
    %3260 = vmatpush.bf16.msra.mxu0 %v2882
    %3261 = vmatpush.bf16.msra.mxu0 %v2874
    %3262 = vmatpush.bf16.msra.mxu0 %v2866
    %3263 = vmatpush.bf16.msra.mxu0 %v2858
    %3264 = vmatpush.bf16.msra.mxu0 %v2850
    %3265 = vmatmul.bf16.gmra.mxu0 %v1621
    %v3266 = vpop.f32.mrf.mxu0
    %v3267 = vadd.f32 %v3238, %v3266
    %v3268 = vpop.f32.mrf.mxu0
    %v3269 = vadd.f32 %v3240, %v3268
    %3270 = vmatmul.bf16.gmra.mxu0 %v1625
    %v3271 = vpop.f32.mrf.mxu0
    %v3272 = vadd.f32 %v3243, %v3271
    %v3273 = vpop.f32.mrf.mxu0
    %v3274 = vadd.f32 %v3245, %v3273
    %3275 = vmatmul.bf16.gmra.mxu0 %v1629
    %v3276 = vpop.f32.mrf.mxu0
    %v3277 = vadd.f32 %v3248, %v3276
    %v3278 = vpop.f32.mrf.mxu0
    %v3279 = vadd.f32 %v3250, %v3278
    %3280 = vmatmul.bf16.gmra.mxu0 %v1633
    %v3281 = vpop.f32.mrf.mxu0
    %v3282 = vadd.f32 %v3253, %v3281
    %v3283 = vpop.f32.mrf.mxu0
    %v3284 = vadd.f32 %v3255, %v3283
    %3285 = vdwg.mxu0
    %3286 = vmatpush.bf16.msra.mxu0 %v2715
    %3287 = vmatpush.bf16.msra.mxu0 %v2707
    %3288 = vmatpush.bf16.msra.mxu0 %v2699
    %3289 = vmatpush.bf16.msra.mxu0 %v2691
    %3290 = vmatpush.bf16.msra.mxu0 %v2683
    %3291 = vmatpush.bf16.msra.mxu0 %v2675
    %3292 = vmatpush.bf16.msra.mxu0 %v2667
    %3293 = vmatpush.bf16.msra.mxu0 %v2659
    %3294 = vmatmul.bf16.gmra.mxu0 %v1618
    %v3295 = vpop.f32.mrf.mxu0
    %v3296 = vadd.f32 0.0, %v3295
    %v3297 = vpop.f32.mrf.mxu0
    %v3298 = vadd.f32 0.0, %v3297
    %3299 = vmatmul.bf16.gmra.mxu0 %v1622
    %v3300 = vpop.f32.mrf.mxu0
    %v3301 = vadd.f32 0.0, %v3300
    %v3302 = vpop.f32.mrf.mxu0
    %v3303 = vadd.f32 0.0, %v3302
    %3304 = vmatmul.bf16.gmra.mxu0 %v1626
    %v3305 = vpop.f32.mrf.mxu0
    %v3306 = vadd.f32 0.0, %v3305
    %v3307 = vpop.f32.mrf.mxu0
    %v3308 = vadd.f32 0.0, %v3307
    %3309 = vmatmul.bf16.gmra.mxu0 %v1630
    %v3310 = vpop.f32.mrf.mxu0
    %v3311 = vadd.f32 0.0, %v3310
    %v3312 = vpop.f32.mrf.mxu0
    %v3313 = vadd.f32 0.0, %v3312
    %3314 = vdwg.mxu0
    %3315 = vmatpush.bf16.msra.mxu0 %v2779
    %3316 = vmatpush.bf16.msra.mxu0 %v2771
    %3317 = vmatpush.bf16.msra.mxu0 %v2763
    %3318 = vmatpush.bf16.msra.mxu0 %v2755
    %3319 = vmatpush.bf16.msra.mxu0 %v2747
    %3320 = vmatpush.bf16.msra.mxu0 %v2739
    %3321 = vmatpush.bf16.msra.mxu0 %v2731
    %3322 = vmatpush.bf16.msra.mxu0 %v2723
    %3323 = vmatmul.bf16.gmra.mxu0 %v1619
    %v3324 = vpop.f32.mrf.mxu0
    %v3325 = vadd.f32 %v3296, %v3324
    %v3326 = vpop.f32.mrf.mxu0
    %v3327 = vadd.f32 %v3298, %v3326
    %3328 = vmatmul.bf16.gmra.mxu0 %v1623
    %v3329 = vpop.f32.mrf.mxu0
    %v3330 = vadd.f32 %v3301, %v3329
    %v3331 = vpop.f32.mrf.mxu0
    %v3332 = vadd.f32 %v3303, %v3331
    %3333 = vmatmul.bf16.gmra.mxu0 %v1627
    %v3334 = vpop.f32.mrf.mxu0
    %v3335 = vadd.f32 %v3306, %v3334
    %v3336 = vpop.f32.mrf.mxu0
    %v3337 = vadd.f32 %v3308, %v3336
    %3338 = vmatmul.bf16.gmra.mxu0 %v1631
    %v3339 = vpop.f32.mrf.mxu0
    %v3340 = vadd.f32 %v3311, %v3339
    %v3341 = vpop.f32.mrf.mxu0
    %v3342 = vadd.f32 %v3313, %v3341
    %3343 = vdwg.mxu0
    %3344 = vmatpush.bf16.msra.mxu0 %v2843
    %3345 = vmatpush.bf16.msra.mxu0 %v2835
    %3346 = vmatpush.bf16.msra.mxu0 %v2827
    %3347 = vmatpush.bf16.msra.mxu0 %v2819
    %3348 = vmatpush.bf16.msra.mxu0 %v2811
    %3349 = vmatpush.bf16.msra.mxu0 %v2803
    %3350 = vmatpush.bf16.msra.mxu0 %v2795
    %3351 = vmatpush.bf16.msra.mxu0 %v2787
    %3352 = vmatmul.bf16.gmra.mxu0 %v1620
    %v3353 = vpop.f32.mrf.mxu0
    %v3354 = vadd.f32 %v3325, %v3353
    %v3355 = vpop.f32.mrf.mxu0
    %v3356 = vadd.f32 %v3327, %v3355
    %3357 = vmatmul.bf16.gmra.mxu0 %v1624
    %v3358 = vpop.f32.mrf.mxu0
    %v3359 = vadd.f32 %v3330, %v3358
    %v3360 = vpop.f32.mrf.mxu0
    %v3361 = vadd.f32 %v3332, %v3360
    %3362 = vmatmul.bf16.gmra.mxu0 %v1628
    %v3363 = vpop.f32.mrf.mxu0
    %v3364 = vadd.f32 %v3335, %v3363
    %v3365 = vpop.f32.mrf.mxu0
    %v3366 = vadd.f32 %v3337, %v3365
    %3367 = vmatmul.bf16.gmra.mxu0 %v1632
    %v3368 = vpop.f32.mrf.mxu0
    %v3369 = vadd.f32 %v3340, %v3368
    %v3370 = vpop.f32.mrf.mxu0
    %v3371 = vadd.f32 %v3342, %v3370
    %3372 = vdwg.mxu0
    %3373 = vmatpush.bf16.msra.mxu0 %v2907
    %3374 = vmatpush.bf16.msra.mxu0 %v2899
    %3375 = vmatpush.bf16.msra.mxu0 %v2891
    %3376 = vmatpush.bf16.msra.mxu0 %v2883
    %3377 = vmatpush.bf16.msra.mxu0 %v2875
    %3378 = vmatpush.bf16.msra.mxu0 %v2867
    %3379 = vmatpush.bf16.msra.mxu0 %v2859
    %3380 = vmatpush.bf16.msra.mxu0 %v2851
    %3381 = vmatmul.bf16.gmra.mxu0 %v1621
    %v3382 = vpop.f32.mrf.mxu0
    %v3383 = vadd.f32 %v3354, %v3382
    %v3384 = vpop.f32.mrf.mxu0
    %v3385 = vadd.f32 %v3356, %v3384
    %3386 = vmatmul.bf16.gmra.mxu0 %v1625
    %v3387 = vpop.f32.mrf.mxu0
    %v3388 = vadd.f32 %v3359, %v3387
    %v3389 = vpop.f32.mrf.mxu0
    %v3390 = vadd.f32 %v3361, %v3389
    %3391 = vmatmul.bf16.gmra.mxu0 %v1629
    %v3392 = vpop.f32.mrf.mxu0
    %v3393 = vadd.f32 %v3364, %v3392
    %v3394 = vpop.f32.mrf.mxu0
    %v3395 = vadd.f32 %v3366, %v3394
    %3396 = vmatmul.bf16.gmra.mxu0 %v1633
    %v3397 = vpop.f32.mrf.mxu0
    %v3398 = vadd.f32 %v3369, %v3397
    %v3399 = vpop.f32.mrf.mxu0
    %v3400 = vadd.f32 %v3371, %v3399
    %3401 = vdwg.mxu0
    %3402 = vmatpush.bf16.msra.mxu0 %v2716
    %3403 = vmatpush.bf16.msra.mxu0 %v2708
    %3404 = vmatpush.bf16.msra.mxu0 %v2700
    %3405 = vmatpush.bf16.msra.mxu0 %v2692
    %3406 = vmatpush.bf16.msra.mxu0 %v2684
    %3407 = vmatpush.bf16.msra.mxu0 %v2676
    %3408 = vmatpush.bf16.msra.mxu0 %v2668
    %3409 = vmatpush.bf16.msra.mxu0 %v2660
    %3410 = vmatmul.bf16.gmra.mxu0 %v1618
    %v3411 = vpop.f32.mrf.mxu0
    %v3412 = vadd.f32 0.0, %v3411
    %v3413 = vpop.f32.mrf.mxu0
    %v3414 = vadd.f32 0.0, %v3413
    %3415 = vmatmul.bf16.gmra.mxu0 %v1622
    %v3416 = vpop.f32.mrf.mxu0
    %v3417 = vadd.f32 0.0, %v3416
    %v3418 = vpop.f32.mrf.mxu0
    %v3419 = vadd.f32 0.0, %v3418
    %3420 = vmatmul.bf16.gmra.mxu0 %v1626
    %v3421 = vpop.f32.mrf.mxu0
    %v3422 = vadd.f32 0.0, %v3421
    %v3423 = vpop.f32.mrf.mxu0
    %v3424 = vadd.f32 0.0, %v3423
    %3425 = vmatmul.bf16.gmra.mxu0 %v1630
    %v3426 = vpop.f32.mrf.mxu0
    %v3427 = vadd.f32 0.0, %v3426
    %v3428 = vpop.f32.mrf.mxu0
    %v3429 = vadd.f32 0.0, %v3428
    %3430 = vdwg.mxu0
    %3431 = vmatpush.bf16.msra.mxu0 %v2780
    %3432 = vmatpush.bf16.msra.mxu0 %v2772
    %3433 = vmatpush.bf16.msra.mxu0 %v2764
    %3434 = vmatpush.bf16.msra.mxu0 %v2756
    %3435 = vmatpush.bf16.msra.mxu0 %v2748
    %3436 = vmatpush.bf16.msra.mxu0 %v2740
    %3437 = vmatpush.bf16.msra.mxu0 %v2732
    %3438 = vmatpush.bf16.msra.mxu0 %v2724
    %3439 = vmatmul.bf16.gmra.mxu0 %v1619
    %v3440 = vpop.f32.mrf.mxu0
    %v3441 = vadd.f32 %v3412, %v3440
    %v3442 = vpop.f32.mrf.mxu0
    %v3443 = vadd.f32 %v3414, %v3442
    %3444 = vmatmul.bf16.gmra.mxu0 %v1623
    %v3445 = vpop.f32.mrf.mxu0
    %v3446 = vadd.f32 %v3417, %v3445
    %v3447 = vpop.f32.mrf.mxu0
    %v3448 = vadd.f32 %v3419, %v3447
    %3449 = vmatmul.bf16.gmra.mxu0 %v1627
    %v3450 = vpop.f32.mrf.mxu0
    %v3451 = vadd.f32 %v3422, %v3450
    %v3452 = vpop.f32.mrf.mxu0
    %v3453 = vadd.f32 %v3424, %v3452
    %3454 = vmatmul.bf16.gmra.mxu0 %v1631
    %v3455 = vpop.f32.mrf.mxu0
    %v3456 = vadd.f32 %v3427, %v3455
    %v3457 = vpop.f32.mrf.mxu0
    %v3458 = vadd.f32 %v3429, %v3457
    %3459 = vdwg.mxu0
    %3460 = vmatpush.bf16.msra.mxu0 %v2844
    %3461 = vmatpush.bf16.msra.mxu0 %v2836
    %3462 = vmatpush.bf16.msra.mxu0 %v2828
    %3463 = vmatpush.bf16.msra.mxu0 %v2820
    %3464 = vmatpush.bf16.msra.mxu0 %v2812
    %3465 = vmatpush.bf16.msra.mxu0 %v2804
    %3466 = vmatpush.bf16.msra.mxu0 %v2796
    %3467 = vmatpush.bf16.msra.mxu0 %v2788
    %3468 = vmatmul.bf16.gmra.mxu0 %v1620
    %v3469 = vpop.f32.mrf.mxu0
    %v3470 = vadd.f32 %v3441, %v3469
    %v3471 = vpop.f32.mrf.mxu0
    %v3472 = vadd.f32 %v3443, %v3471
    %3473 = vmatmul.bf16.gmra.mxu0 %v1624
    %v3474 = vpop.f32.mrf.mxu0
    %v3475 = vadd.f32 %v3446, %v3474
    %v3476 = vpop.f32.mrf.mxu0
    %v3477 = vadd.f32 %v3448, %v3476
    %3478 = vmatmul.bf16.gmra.mxu0 %v1628
    %v3479 = vpop.f32.mrf.mxu0
    %v3480 = vadd.f32 %v3451, %v3479
    %v3481 = vpop.f32.mrf.mxu0
    %v3482 = vadd.f32 %v3453, %v3481
    %3483 = vmatmul.bf16.gmra.mxu0 %v1632
    %v3484 = vpop.f32.mrf.mxu0
    %v3485 = vadd.f32 %v3456, %v3484
    %v3486 = vpop.f32.mrf.mxu0
    %v3487 = vadd.f32 %v3458, %v3486
    %3488 = vdwg.mxu0
    %3489 = vmatpush.bf16.msra.mxu0 %v2908
    %3490 = vmatpush.bf16.msra.mxu0 %v2900
    %3491 = vmatpush.bf16.msra.mxu0 %v2892
    %3492 = vmatpush.bf16.msra.mxu0 %v2884
    %3493 = vmatpush.bf16.msra.mxu0 %v2876
    %3494 = vmatpush.bf16.msra.mxu0 %v2868
    %3495 = vmatpush.bf16.msra.mxu0 %v2860
    %3496 = vmatpush.bf16.msra.mxu0 %v2852
    %3497 = vmatmul.bf16.gmra.mxu0 %v1621
    %v3498 = vpop.f32.mrf.mxu0
    %v3499 = vadd.f32 %v3470, %v3498
    %v3500 = vpop.f32.mrf.mxu0
    %v3501 = vadd.f32 %v3472, %v3500
    %3502 = vmatmul.bf16.gmra.mxu0 %v1625
    %v3503 = vpop.f32.mrf.mxu0
    %v3504 = vadd.f32 %v3475, %v3503
    %v3505 = vpop.f32.mrf.mxu0
    %v3506 = vadd.f32 %v3477, %v3505
    %3507 = vmatmul.bf16.gmra.mxu0 %v1629
    %v3508 = vpop.f32.mrf.mxu0
    %v3509 = vadd.f32 %v3480, %v3508
    %v3510 = vpop.f32.mrf.mxu0
    %v3511 = vadd.f32 %v3482, %v3510
    %3512 = vmatmul.bf16.gmra.mxu0 %v1633
    %v3513 = vpop.f32.mrf.mxu0
    %v3514 = vadd.f32 %v3485, %v3513
    %v3515 = vpop.f32.mrf.mxu0
    %v3516 = vadd.f32 %v3487, %v3515
    %3517 = vdwg.mxu0
    %3518 = vmatpush.bf16.msra.mxu0 %v2717
    %3519 = vmatpush.bf16.msra.mxu0 %v2709
    %3520 = vmatpush.bf16.msra.mxu0 %v2701
    %3521 = vmatpush.bf16.msra.mxu0 %v2693
    %3522 = vmatpush.bf16.msra.mxu0 %v2685
    %3523 = vmatpush.bf16.msra.mxu0 %v2677
    %3524 = vmatpush.bf16.msra.mxu0 %v2669
    %3525 = vmatpush.bf16.msra.mxu0 %v2661
    %3526 = vmatmul.bf16.gmra.mxu0 %v1618
    %v3527 = vpop.f32.mrf.mxu0
    %v3528 = vadd.f32 0.0, %v3527
    %v3529 = vpop.f32.mrf.mxu0
    %v3530 = vadd.f32 0.0, %v3529
    %3531 = vmatmul.bf16.gmra.mxu0 %v1622
    %v3532 = vpop.f32.mrf.mxu0
    %v3533 = vadd.f32 0.0, %v3532
    %v3534 = vpop.f32.mrf.mxu0
    %v3535 = vadd.f32 0.0, %v3534
    %3536 = vmatmul.bf16.gmra.mxu0 %v1626
    %v3537 = vpop.f32.mrf.mxu0
    %v3538 = vadd.f32 0.0, %v3537
    %v3539 = vpop.f32.mrf.mxu0
    %v3540 = vadd.f32 0.0, %v3539
    %3541 = vmatmul.bf16.gmra.mxu0 %v1630
    %v3542 = vpop.f32.mrf.mxu0
    %v3543 = vadd.f32 0.0, %v3542
    %v3544 = vpop.f32.mrf.mxu0
    %v3545 = vadd.f32 0.0, %v3544
    %3546 = vdwg.mxu0
    %3547 = vmatpush.bf16.msra.mxu0 %v2781
    %3548 = vmatpush.bf16.msra.mxu0 %v2773
    %3549 = vmatpush.bf16.msra.mxu0 %v2765
    %3550 = vmatpush.bf16.msra.mxu0 %v2757
    %3551 = vmatpush.bf16.msra.mxu0 %v2749
    %3552 = vmatpush.bf16.msra.mxu0 %v2741
    %3553 = vmatpush.bf16.msra.mxu0 %v2733
    %3554 = vmatpush.bf16.msra.mxu0 %v2725
    %3555 = vmatmul.bf16.gmra.mxu0 %v1619
    %v3556 = vpop.f32.mrf.mxu0
    %v3557 = vadd.f32 %v3528, %v3556
    %v3558 = vpop.f32.mrf.mxu0
    %v3559 = vadd.f32 %v3530, %v3558
    %3560 = vmatmul.bf16.gmra.mxu0 %v1623
    %v3561 = vpop.f32.mrf.mxu0
    %v3562 = vadd.f32 %v3533, %v3561
    %v3563 = vpop.f32.mrf.mxu0
    %v3564 = vadd.f32 %v3535, %v3563
    %3565 = vmatmul.bf16.gmra.mxu0 %v1627
    %v3566 = vpop.f32.mrf.mxu0
    %v3567 = vadd.f32 %v3538, %v3566
    %v3568 = vpop.f32.mrf.mxu0
    %v3569 = vadd.f32 %v3540, %v3568
    %3570 = vmatmul.bf16.gmra.mxu0 %v1631
    %v3571 = vpop.f32.mrf.mxu0
    %v3572 = vadd.f32 %v3543, %v3571
    %v3573 = vpop.f32.mrf.mxu0
    %v3574 = vadd.f32 %v3545, %v3573
    %3575 = vdwg.mxu0
    %3576 = vmatpush.bf16.msra.mxu0 %v2845
    %3577 = vmatpush.bf16.msra.mxu0 %v2837
    %3578 = vmatpush.bf16.msra.mxu0 %v2829
    %3579 = vmatpush.bf16.msra.mxu0 %v2821
    %3580 = vmatpush.bf16.msra.mxu0 %v2813
    %3581 = vmatpush.bf16.msra.mxu0 %v2805
    %3582 = vmatpush.bf16.msra.mxu0 %v2797
    %3583 = vmatpush.bf16.msra.mxu0 %v2789
    %3584 = vmatmul.bf16.gmra.mxu0 %v1620
    %v3585 = vpop.f32.mrf.mxu0
    %v3586 = vadd.f32 %v3557, %v3585
    %v3587 = vpop.f32.mrf.mxu0
    %v3588 = vadd.f32 %v3559, %v3587
    %3589 = vmatmul.bf16.gmra.mxu0 %v1624
    %v3590 = vpop.f32.mrf.mxu0
    %v3591 = vadd.f32 %v3562, %v3590
    %v3592 = vpop.f32.mrf.mxu0
    %v3593 = vadd.f32 %v3564, %v3592
    %3594 = vmatmul.bf16.gmra.mxu0 %v1628
    %v3595 = vpop.f32.mrf.mxu0
    %v3596 = vadd.f32 %v3567, %v3595
    %v3597 = vpop.f32.mrf.mxu0
    %v3598 = vadd.f32 %v3569, %v3597
    %3599 = vmatmul.bf16.gmra.mxu0 %v1632
    %v3600 = vpop.f32.mrf.mxu0
    %v3601 = vadd.f32 %v3572, %v3600
    %v3602 = vpop.f32.mrf.mxu0
    %v3603 = vadd.f32 %v3574, %v3602
    %3604 = vdwg.mxu0
    %3605 = vmatpush.bf16.msra.mxu0 %v2909
    %3606 = vmatpush.bf16.msra.mxu0 %v2901
    %3607 = vmatpush.bf16.msra.mxu0 %v2893
    %3608 = vmatpush.bf16.msra.mxu0 %v2885
    %3609 = vmatpush.bf16.msra.mxu0 %v2877
    %3610 = vmatpush.bf16.msra.mxu0 %v2869
    %3611 = vmatpush.bf16.msra.mxu0 %v2861
    %3612 = vmatpush.bf16.msra.mxu0 %v2853
    %3613 = vmatmul.bf16.gmra.mxu0 %v1621
    %v3614 = vpop.f32.mrf.mxu0
    %v3615 = vadd.f32 %v3586, %v3614
    %v3616 = vpop.f32.mrf.mxu0
    %v3617 = vadd.f32 %v3588, %v3616
    %3618 = vmatmul.bf16.gmra.mxu0 %v1625
    %v3619 = vpop.f32.mrf.mxu0
    %v3620 = vadd.f32 %v3591, %v3619
    %v3621 = vpop.f32.mrf.mxu0
    %v3622 = vadd.f32 %v3593, %v3621
    %3623 = vmatmul.bf16.gmra.mxu0 %v1629
    %v3624 = vpop.f32.mrf.mxu0
    %v3625 = vadd.f32 %v3596, %v3624
    %v3626 = vpop.f32.mrf.mxu0
    %v3627 = vadd.f32 %v3598, %v3626
    %3628 = vmatmul.bf16.gmra.mxu0 %v1633
    %v3629 = vpop.f32.mrf.mxu0
    %v3630 = vadd.f32 %v3601, %v3629
    %v3631 = vpop.f32.mrf.mxu0
    %v3632 = vadd.f32 %v3603, %v3631
    %3633 = vdwg.mxu0
    %3634 = vmatpush.bf16.msra.mxu0 %v2718
    %3635 = vmatpush.bf16.msra.mxu0 %v2710
    %3636 = vmatpush.bf16.msra.mxu0 %v2702
    %3637 = vmatpush.bf16.msra.mxu0 %v2694
    %3638 = vmatpush.bf16.msra.mxu0 %v2686
    %3639 = vmatpush.bf16.msra.mxu0 %v2678
    %3640 = vmatpush.bf16.msra.mxu0 %v2670
    %3641 = vmatpush.bf16.msra.mxu0 %v2662
    %3642 = vmatmul.bf16.gmra.mxu0 %v1618
    %v3643 = vpop.f32.mrf.mxu0
    %v3644 = vadd.f32 0.0, %v3643
    %v3645 = vpop.f32.mrf.mxu0
    %v3646 = vadd.f32 0.0, %v3645
    %3647 = vmatmul.bf16.gmra.mxu0 %v1622
    %v3648 = vpop.f32.mrf.mxu0
    %v3649 = vadd.f32 0.0, %v3648
    %v3650 = vpop.f32.mrf.mxu0
    %v3651 = vadd.f32 0.0, %v3650
    %3652 = vmatmul.bf16.gmra.mxu0 %v1626
    %v3653 = vpop.f32.mrf.mxu0
    %v3654 = vadd.f32 0.0, %v3653
    %v3655 = vpop.f32.mrf.mxu0
    %v3656 = vadd.f32 0.0, %v3655
    %3657 = vmatmul.bf16.gmra.mxu0 %v1630
    %v3658 = vpop.f32.mrf.mxu0
    %v3659 = vadd.f32 0.0, %v3658
    %v3660 = vpop.f32.mrf.mxu0
    %v3661 = vadd.f32 0.0, %v3660
    %3662 = vdwg.mxu0
    %3663 = vmatpush.bf16.msra.mxu0 %v2782
    %3664 = vmatpush.bf16.msra.mxu0 %v2774
    %3665 = vmatpush.bf16.msra.mxu0 %v2766
    %3666 = vmatpush.bf16.msra.mxu0 %v2758
    %3667 = vmatpush.bf16.msra.mxu0 %v2750
    %3668 = vmatpush.bf16.msra.mxu0 %v2742
    %3669 = vmatpush.bf16.msra.mxu0 %v2734
    %3670 = vmatpush.bf16.msra.mxu0 %v2726
    %3671 = vmatmul.bf16.gmra.mxu0 %v1619
    %v3672 = vpop.f32.mrf.mxu0
    %v3673 = vadd.f32 %v3644, %v3672
    %v3674 = vpop.f32.mrf.mxu0
    %v3675 = vadd.f32 %v3646, %v3674
    %3676 = vmatmul.bf16.gmra.mxu0 %v1623
    %v3677 = vpop.f32.mrf.mxu0
    %v3678 = vadd.f32 %v3649, %v3677
    %v3679 = vpop.f32.mrf.mxu0
    %v3680 = vadd.f32 %v3651, %v3679
    %3681 = vmatmul.bf16.gmra.mxu0 %v1627
    %v3682 = vpop.f32.mrf.mxu0
    %v3683 = vadd.f32 %v3654, %v3682
    %v3684 = vpop.f32.mrf.mxu0
    %v3685 = vadd.f32 %v3656, %v3684
    %3686 = vmatmul.bf16.gmra.mxu0 %v1631
    %v3687 = vpop.f32.mrf.mxu0
    %v3688 = vadd.f32 %v3659, %v3687
    %v3689 = vpop.f32.mrf.mxu0
    %v3690 = vadd.f32 %v3661, %v3689
    %3691 = vdwg.mxu0
    %3692 = vmatpush.bf16.msra.mxu0 %v2846
    %3693 = vmatpush.bf16.msra.mxu0 %v2838
    %3694 = vmatpush.bf16.msra.mxu0 %v2830
    %3695 = vmatpush.bf16.msra.mxu0 %v2822
    %3696 = vmatpush.bf16.msra.mxu0 %v2814
    %3697 = vmatpush.bf16.msra.mxu0 %v2806
    %3698 = vmatpush.bf16.msra.mxu0 %v2798
    %3699 = vmatpush.bf16.msra.mxu0 %v2790
    %3700 = vmatmul.bf16.gmra.mxu0 %v1620
    %v3701 = vpop.f32.mrf.mxu0
    %v3702 = vadd.f32 %v3673, %v3701
    %v3703 = vpop.f32.mrf.mxu0
    %v3704 = vadd.f32 %v3675, %v3703
    %3705 = vmatmul.bf16.gmra.mxu0 %v1624
    %v3706 = vpop.f32.mrf.mxu0
    %v3707 = vadd.f32 %v3678, %v3706
    %v3708 = vpop.f32.mrf.mxu0
    %v3709 = vadd.f32 %v3680, %v3708
    %3710 = vmatmul.bf16.gmra.mxu0 %v1628
    %v3711 = vpop.f32.mrf.mxu0
    %v3712 = vadd.f32 %v3683, %v3711
    %v3713 = vpop.f32.mrf.mxu0
    %v3714 = vadd.f32 %v3685, %v3713
    %3715 = vmatmul.bf16.gmra.mxu0 %v1632
    %v3716 = vpop.f32.mrf.mxu0
    %v3717 = vadd.f32 %v3688, %v3716
    %v3718 = vpop.f32.mrf.mxu0
    %v3719 = vadd.f32 %v3690, %v3718
    %3720 = vdwg.mxu0
    %3721 = vmatpush.bf16.msra.mxu0 %v2910
    %3722 = vmatpush.bf16.msra.mxu0 %v2902
    %3723 = vmatpush.bf16.msra.mxu0 %v2894
    %3724 = vmatpush.bf16.msra.mxu0 %v2886
    %3725 = vmatpush.bf16.msra.mxu0 %v2878
    %3726 = vmatpush.bf16.msra.mxu0 %v2870
    %3727 = vmatpush.bf16.msra.mxu0 %v2862
    %3728 = vmatpush.bf16.msra.mxu0 %v2854
    %3729 = vmatmul.bf16.gmra.mxu0 %v1621
    %v3730 = vpop.f32.mrf.mxu0
    %v3731 = vadd.f32 %v3702, %v3730
    %v3732 = vpop.f32.mrf.mxu0
    %v3733 = vadd.f32 %v3704, %v3732
    %3734 = vmatmul.bf16.gmra.mxu0 %v1625
    %v3735 = vpop.f32.mrf.mxu0
    %v3736 = vadd.f32 %v3707, %v3735
    %v3737 = vpop.f32.mrf.mxu0
    %v3738 = vadd.f32 %v3709, %v3737
    %3739 = vmatmul.bf16.gmra.mxu0 %v1629
    %v3740 = vpop.f32.mrf.mxu0
    %v3741 = vadd.f32 %v3712, %v3740
    %v3742 = vpop.f32.mrf.mxu0
    %v3743 = vadd.f32 %v3714, %v3742
    %3744 = vmatmul.bf16.gmra.mxu0 %v1633
    %v3745 = vpop.f32.mrf.mxu0
    %v3746 = vadd.f32 %v3717, %v3745
    %v3747 = vpop.f32.mrf.mxu0
    %v3748 = vadd.f32 %v3719, %v3747
    %3749 = vdwg.mxu0
    %3750 = vmatpush.bf16.msra.mxu0 %v2719
    %3751 = vmatpush.bf16.msra.mxu0 %v2711
    %3752 = vmatpush.bf16.msra.mxu0 %v2703
    %3753 = vmatpush.bf16.msra.mxu0 %v2695
    %3754 = vmatpush.bf16.msra.mxu0 %v2687
    %3755 = vmatpush.bf16.msra.mxu0 %v2679
    %3756 = vmatpush.bf16.msra.mxu0 %v2671
    %3757 = vmatpush.bf16.msra.mxu0 %v2663
    %3758 = vmatmul.bf16.gmra.mxu0 %v1618
    %v3759 = vpop.f32.mrf.mxu0
    %v3760 = vadd.f32 0.0, %v3759
    %v3761 = vpop.f32.mrf.mxu0
    %v3762 = vadd.f32 0.0, %v3761
    %3763 = vmatmul.bf16.gmra.mxu0 %v1622
    %v3764 = vpop.f32.mrf.mxu0
    %v3765 = vadd.f32 0.0, %v3764
    %v3766 = vpop.f32.mrf.mxu0
    %v3767 = vadd.f32 0.0, %v3766
    %3768 = vmatmul.bf16.gmra.mxu0 %v1626
    %v3769 = vpop.f32.mrf.mxu0
    %v3770 = vadd.f32 0.0, %v3769
    %v3771 = vpop.f32.mrf.mxu0
    %v3772 = vadd.f32 0.0, %v3771
    %3773 = vmatmul.bf16.gmra.mxu0 %v1630
    %v3774 = vpop.f32.mrf.mxu0
    %v3775 = vadd.f32 0.0, %v3774
    %v3776 = vpop.f32.mrf.mxu0
    %v3777 = vadd.f32 0.0, %v3776
    %3778 = vdwg.mxu0
    %3779 = vmatpush.bf16.msra.mxu0 %v2783
    %3780 = vmatpush.bf16.msra.mxu0 %v2775
    %3781 = vmatpush.bf16.msra.mxu0 %v2767
    %3782 = vmatpush.bf16.msra.mxu0 %v2759
    %3783 = vmatpush.bf16.msra.mxu0 %v2751
    %3784 = vmatpush.bf16.msra.mxu0 %v2743
    %3785 = vmatpush.bf16.msra.mxu0 %v2735
    %3786 = vmatpush.bf16.msra.mxu0 %v2727
    %3787 = vmatmul.bf16.gmra.mxu0 %v1619
    %v3788 = vpop.f32.mrf.mxu0
    %v3789 = vadd.f32 %v3760, %v3788
    %v3790 = vpop.f32.mrf.mxu0
    %v3791 = vadd.f32 %v3762, %v3790
    %3792 = vmatmul.bf16.gmra.mxu0 %v1623
    %v3793 = vpop.f32.mrf.mxu0
    %v3794 = vadd.f32 %v3765, %v3793
    %v3795 = vpop.f32.mrf.mxu0
    %v3796 = vadd.f32 %v3767, %v3795
    %3797 = vmatmul.bf16.gmra.mxu0 %v1627
    %v3798 = vpop.f32.mrf.mxu0
    %v3799 = vadd.f32 %v3770, %v3798
    %v3800 = vpop.f32.mrf.mxu0
    %v3801 = vadd.f32 %v3772, %v3800
    %3802 = vmatmul.bf16.gmra.mxu0 %v1631
    %v3803 = vpop.f32.mrf.mxu0
    %v3804 = vadd.f32 %v3775, %v3803
    %v3805 = vpop.f32.mrf.mxu0
    %v3806 = vadd.f32 %v3777, %v3805
    %3807 = vdwg.mxu0
    %3808 = vmatpush.bf16.msra.mxu0 %v2847
    %3809 = vmatpush.bf16.msra.mxu0 %v2839
    %3810 = vmatpush.bf16.msra.mxu0 %v2831
    %3811 = vmatpush.bf16.msra.mxu0 %v2823
    %3812 = vmatpush.bf16.msra.mxu0 %v2815
    %3813 = vmatpush.bf16.msra.mxu0 %v2807
    %3814 = vmatpush.bf16.msra.mxu0 %v2799
    %3815 = vmatpush.bf16.msra.mxu0 %v2791
    %3816 = vmatmul.bf16.gmra.mxu0 %v1620
    %v3817 = vpop.f32.mrf.mxu0
    %v3818 = vadd.f32 %v3789, %v3817
    %v3819 = vpop.f32.mrf.mxu0
    %v3820 = vadd.f32 %v3791, %v3819
    %3821 = vmatmul.bf16.gmra.mxu0 %v1624
    %v3822 = vpop.f32.mrf.mxu0
    %v3823 = vadd.f32 %v3794, %v3822
    %v3824 = vpop.f32.mrf.mxu0
    %v3825 = vadd.f32 %v3796, %v3824
    %3826 = vmatmul.bf16.gmra.mxu0 %v1628
    %v3827 = vpop.f32.mrf.mxu0
    %v3828 = vadd.f32 %v3799, %v3827
    %v3829 = vpop.f32.mrf.mxu0
    %v3830 = vadd.f32 %v3801, %v3829
    %3831 = vmatmul.bf16.gmra.mxu0 %v1632
    %v3832 = vpop.f32.mrf.mxu0
    %v3833 = vadd.f32 %v3804, %v3832
    %v3834 = vpop.f32.mrf.mxu0
    %v3835 = vadd.f32 %v3806, %v3834
    %3836 = vdwg.mxu0
    %3837 = vmatpush.bf16.msra.mxu0 %v2911
    %3838 = vmatpush.bf16.msra.mxu0 %v2903
    %3839 = vmatpush.bf16.msra.mxu0 %v2895
    %3840 = vmatpush.bf16.msra.mxu0 %v2887
    %3841 = vmatpush.bf16.msra.mxu0 %v2879
    %3842 = vmatpush.bf16.msra.mxu0 %v2871
    %3843 = vmatpush.bf16.msra.mxu0 %v2863
    %3844 = vmatpush.bf16.msra.mxu0 %v2855
    %3845 = vmatmul.bf16.gmra.mxu0 %v1621
    %v3846 = vpop.f32.mrf.mxu0
    %v3847 = vadd.f32 %v3818, %v3846
    %v3848 = vpop.f32.mrf.mxu0
    %v3849 = vadd.f32 %v3820, %v3848
    %3850 = vmatmul.bf16.gmra.mxu0 %v1625
    %v3851 = vpop.f32.mrf.mxu0
    %v3852 = vadd.f32 %v3823, %v3851
    %v3853 = vpop.f32.mrf.mxu0
    %v3854 = vadd.f32 %v3825, %v3853
    %3855 = vmatmul.bf16.gmra.mxu0 %v1629
    %v3856 = vpop.f32.mrf.mxu0
    %v3857 = vadd.f32 %v3828, %v3856
    %v3858 = vpop.f32.mrf.mxu0
    %v3859 = vadd.f32 %v3830, %v3858
    %3860 = vmatmul.bf16.gmra.mxu0 %v1633
    %v3861 = vpop.f32.mrf.mxu0
    %v3862 = vadd.f32 %v3833, %v3861
    %v3863 = vpop.f32.mrf.mxu0
    %v3864 = vadd.f32 %v3835, %v3863
    %3865 = vdwg.mxu0
    %3866 = vmatpush.bf16.msra.mxu0 %v2720
    %3867 = vmatpush.bf16.msra.mxu0 %v2712
    %3868 = vmatpush.bf16.msra.mxu0 %v2704
    %3869 = vmatpush.bf16.msra.mxu0 %v2696
    %3870 = vmatpush.bf16.msra.mxu0 %v2688
    %3871 = vmatpush.bf16.msra.mxu0 %v2680
    %3872 = vmatpush.bf16.msra.mxu0 %v2672
    %3873 = vmatpush.bf16.msra.mxu0 %v2664
    %3874 = vmatmul.bf16.gmra.mxu0 %v1618
    %v3875 = vpop.f32.mrf.mxu0
    %v3876 = vadd.f32 0.0, %v3875
    %v3877 = vpop.f32.mrf.mxu0
    %v3878 = vadd.f32 0.0, %v3877
    %3879 = vmatmul.bf16.gmra.mxu0 %v1622
    %v3880 = vpop.f32.mrf.mxu0
    %v3881 = vadd.f32 0.0, %v3880
    %v3882 = vpop.f32.mrf.mxu0
    %v3883 = vadd.f32 0.0, %v3882
    %3884 = vmatmul.bf16.gmra.mxu0 %v1626
    %v3885 = vpop.f32.mrf.mxu0
    %v3886 = vadd.f32 0.0, %v3885
    %v3887 = vpop.f32.mrf.mxu0
    %v3888 = vadd.f32 0.0, %v3887
    %3889 = vmatmul.bf16.gmra.mxu0 %v1630
    %v3890 = vpop.f32.mrf.mxu0
    %v3891 = vadd.f32 0.0, %v3890
    %v3892 = vpop.f32.mrf.mxu0
    %v3893 = vadd.f32 0.0, %v3892
    %3894 = vdwg.mxu0
    %3895 = vmatpush.bf16.msra.mxu0 %v2784
    %3896 = vmatpush.bf16.msra.mxu0 %v2776
    %3897 = vmatpush.bf16.msra.mxu0 %v2768
    %3898 = vmatpush.bf16.msra.mxu0 %v2760
    %3899 = vmatpush.bf16.msra.mxu0 %v2752
    %3900 = vmatpush.bf16.msra.mxu0 %v2744
    %3901 = vmatpush.bf16.msra.mxu0 %v2736
    %3902 = vmatpush.bf16.msra.mxu0 %v2728
    %3903 = vmatmul.bf16.gmra.mxu0 %v1619
    %v3904 = vpop.f32.mrf.mxu0
    %v3905 = vadd.f32 %v3876, %v3904
    %v3906 = vpop.f32.mrf.mxu0
    %v3907 = vadd.f32 %v3878, %v3906
    %3908 = vmatmul.bf16.gmra.mxu0 %v1623
    %v3909 = vpop.f32.mrf.mxu0
    %v3910 = vadd.f32 %v3881, %v3909
    %v3911 = vpop.f32.mrf.mxu0
    %v3912 = vadd.f32 %v3883, %v3911
    %3913 = vmatmul.bf16.gmra.mxu0 %v1627
    %v3914 = vpop.f32.mrf.mxu0
    %v3915 = vadd.f32 %v3886, %v3914
    %v3916 = vpop.f32.mrf.mxu0
    %v3917 = vadd.f32 %v3888, %v3916
    %3918 = vmatmul.bf16.gmra.mxu0 %v1631
    %v3919 = vpop.f32.mrf.mxu0
    %v3920 = vadd.f32 %v3891, %v3919
    %v3921 = vpop.f32.mrf.mxu0
    %v3922 = vadd.f32 %v3893, %v3921
    %3923 = vdwg.mxu0
    %3924 = vmatpush.bf16.msra.mxu0 %v2848
    %3925 = vmatpush.bf16.msra.mxu0 %v2840
    %3926 = vmatpush.bf16.msra.mxu0 %v2832
    %3927 = vmatpush.bf16.msra.mxu0 %v2824
    %3928 = vmatpush.bf16.msra.mxu0 %v2816
    %3929 = vmatpush.bf16.msra.mxu0 %v2808
    %3930 = vmatpush.bf16.msra.mxu0 %v2800
    %3931 = vmatpush.bf16.msra.mxu0 %v2792
    %3932 = vmatmul.bf16.gmra.mxu0 %v1620
    %v3933 = vpop.f32.mrf.mxu0
    %v3934 = vadd.f32 %v3905, %v3933
    %v3935 = vpop.f32.mrf.mxu0
    %v3936 = vadd.f32 %v3907, %v3935
    %3937 = vmatmul.bf16.gmra.mxu0 %v1624
    %v3938 = vpop.f32.mrf.mxu0
    %v3939 = vadd.f32 %v3910, %v3938
    %v3940 = vpop.f32.mrf.mxu0
    %v3941 = vadd.f32 %v3912, %v3940
    %3942 = vmatmul.bf16.gmra.mxu0 %v1628
    %v3943 = vpop.f32.mrf.mxu0
    %v3944 = vadd.f32 %v3915, %v3943
    %v3945 = vpop.f32.mrf.mxu0
    %v3946 = vadd.f32 %v3917, %v3945
    %3947 = vmatmul.bf16.gmra.mxu0 %v1632
    %v3948 = vpop.f32.mrf.mxu0
    %v3949 = vadd.f32 %v3920, %v3948
    %v3950 = vpop.f32.mrf.mxu0
    %v3951 = vadd.f32 %v3922, %v3950
    %3952 = vdwg.mxu0
    %3953 = vmatpush.bf16.msra.mxu0 %v2912
    %3954 = vmatpush.bf16.msra.mxu0 %v2904
    %3955 = vmatpush.bf16.msra.mxu0 %v2896
    %3956 = vmatpush.bf16.msra.mxu0 %v2888
    %3957 = vmatpush.bf16.msra.mxu0 %v2880
    %3958 = vmatpush.bf16.msra.mxu0 %v2872
    %3959 = vmatpush.bf16.msra.mxu0 %v2864
    %3960 = vmatpush.bf16.msra.mxu0 %v2856
    %3961 = vmatmul.bf16.gmra.mxu0 %v1621
    %v3962 = vpop.f32.mrf.mxu0
    %v3963 = vadd.f32 %v3934, %v3962
    %v3964 = vpop.f32.mrf.mxu0
    %v3965 = vadd.f32 %v3936, %v3964
    %3966 = vmatmul.bf16.gmra.mxu0 %v1625
    %v3967 = vpop.f32.mrf.mxu0
    %v3968 = vadd.f32 %v3939, %v3967
    %v3969 = vpop.f32.mrf.mxu0
    %v3970 = vadd.f32 %v3941, %v3969
    %3971 = vmatmul.bf16.gmra.mxu0 %v1629
    %v3972 = vpop.f32.mrf.mxu0
    %v3973 = vadd.f32 %v3944, %v3972
    %v3974 = vpop.f32.mrf.mxu0
    %v3975 = vadd.f32 %v3946, %v3974
    %3976 = vmatmul.bf16.gmra.mxu0 %v1633
    %v3977 = vpop.f32.mrf.mxu0
    %v3978 = vadd.f32 %v3949, %v3977
    %v3979 = vpop.f32.mrf.mxu0
    %v3980 = vadd.f32 %v3951, %v3979
    %3981 = vdwg.mxu0
    %3982 = vmatpush.bf16.msra.mxu0 %v2721
    %3983 = vmatpush.bf16.msra.mxu0 %v2713
    %3984 = vmatpush.bf16.msra.mxu0 %v2705
    %3985 = vmatpush.bf16.msra.mxu0 %v2697
    %3986 = vmatpush.bf16.msra.mxu0 %v2689
    %3987 = vmatpush.bf16.msra.mxu0 %v2681
    %3988 = vmatpush.bf16.msra.mxu0 %v2673
    %3989 = vmatpush.bf16.msra.mxu0 %v2665
    %3990 = vmatmul.bf16.gmra.mxu0 %v1618
    %v3991 = vpop.f32.mrf.mxu0
    %v3992 = vadd.f32 0.0, %v3991
    %v3993 = vpop.f32.mrf.mxu0
    %v3994 = vadd.f32 0.0, %v3993
    %3995 = vmatmul.bf16.gmra.mxu0 %v1622
    %v3996 = vpop.f32.mrf.mxu0
    %v3997 = vadd.f32 0.0, %v3996
    %v3998 = vpop.f32.mrf.mxu0
    %v3999 = vadd.f32 0.0, %v3998
    %4000 = vmatmul.bf16.gmra.mxu0 %v1626
    %v4001 = vpop.f32.mrf.mxu0
    %v4002 = vadd.f32 0.0, %v4001
    %v4003 = vpop.f32.mrf.mxu0
    %v4004 = vadd.f32 0.0, %v4003
    %4005 = vmatmul.bf16.gmra.mxu0 %v1630
    %v4006 = vpop.f32.mrf.mxu0
    %v4007 = vadd.f32 0.0, %v4006
    %v4008 = vpop.f32.mrf.mxu0
    %v4009 = vadd.f32 0.0, %v4008
    %4010 = vdwg.mxu0
    %4011 = vmatpush.bf16.msra.mxu0 %v2785
    %4012 = vmatpush.bf16.msra.mxu0 %v2777
    %4013 = vmatpush.bf16.msra.mxu0 %v2769
    %4014 = vmatpush.bf16.msra.mxu0 %v2761
    %4015 = vmatpush.bf16.msra.mxu0 %v2753
    %4016 = vmatpush.bf16.msra.mxu0 %v2745
    %4017 = vmatpush.bf16.msra.mxu0 %v2737
    %4018 = vmatpush.bf16.msra.mxu0 %v2729
    %4019 = vmatmul.bf16.gmra.mxu0 %v1619
    %v4020 = vpop.f32.mrf.mxu0
    %v4021 = vadd.f32 %v3992, %v4020
    %v4022 = vpop.f32.mrf.mxu0
    %v4023 = vadd.f32 %v3994, %v4022
    %4024 = vmatmul.bf16.gmra.mxu0 %v1623
    %v4025 = vpop.f32.mrf.mxu0
    %v4026 = vadd.f32 %v3997, %v4025
    %v4027 = vpop.f32.mrf.mxu0
    %v4028 = vadd.f32 %v3999, %v4027
    %4029 = vmatmul.bf16.gmra.mxu0 %v1627
    %v4030 = vpop.f32.mrf.mxu0
    %v4031 = vadd.f32 %v4002, %v4030
    %v4032 = vpop.f32.mrf.mxu0
    %v4033 = vadd.f32 %v4004, %v4032
    %4034 = vmatmul.bf16.gmra.mxu0 %v1631
    %v4035 = vpop.f32.mrf.mxu0
    %v4036 = vadd.f32 %v4007, %v4035
    %v4037 = vpop.f32.mrf.mxu0
    %v4038 = vadd.f32 %v4009, %v4037
    %4039 = vdwg.mxu0
    %4040 = vmatpush.bf16.msra.mxu0 %v2849
    %4041 = vmatpush.bf16.msra.mxu0 %v2841
    %4042 = vmatpush.bf16.msra.mxu0 %v2833
    %4043 = vmatpush.bf16.msra.mxu0 %v2825
    %4044 = vmatpush.bf16.msra.mxu0 %v2817
    %4045 = vmatpush.bf16.msra.mxu0 %v2809
    %4046 = vmatpush.bf16.msra.mxu0 %v2801
    %4047 = vmatpush.bf16.msra.mxu0 %v2793
    %4048 = vmatmul.bf16.gmra.mxu0 %v1620
    %v4049 = vpop.f32.mrf.mxu0
    %v4050 = vadd.f32 %v4021, %v4049
    %v4051 = vpop.f32.mrf.mxu0
    %v4052 = vadd.f32 %v4023, %v4051
    %4053 = vmatmul.bf16.gmra.mxu0 %v1624
    %v4054 = vpop.f32.mrf.mxu0
    %v4055 = vadd.f32 %v4026, %v4054
    %v4056 = vpop.f32.mrf.mxu0
    %v4057 = vadd.f32 %v4028, %v4056
    %4058 = vmatmul.bf16.gmra.mxu0 %v1628
    %v4059 = vpop.f32.mrf.mxu0
    %v4060 = vadd.f32 %v4031, %v4059
    %v4061 = vpop.f32.mrf.mxu0
    %v4062 = vadd.f32 %v4033, %v4061
    %4063 = vmatmul.bf16.gmra.mxu0 %v1632
    %v4064 = vpop.f32.mrf.mxu0
    %v4065 = vadd.f32 %v4036, %v4064
    %v4066 = vpop.f32.mrf.mxu0
    %v4067 = vadd.f32 %v4038, %v4066
    %4068 = vdwg.mxu0
    %4069 = vmatpush.bf16.msra.mxu0 %v2913
    %4070 = vmatpush.bf16.msra.mxu0 %v2905
    %4071 = vmatpush.bf16.msra.mxu0 %v2897
    %4072 = vmatpush.bf16.msra.mxu0 %v2889
    %4073 = vmatpush.bf16.msra.mxu0 %v2881
    %4074 = vmatpush.bf16.msra.mxu0 %v2873
    %4075 = vmatpush.bf16.msra.mxu0 %v2865
    %4076 = vmatpush.bf16.msra.mxu0 %v2857
    %4077 = vmatmul.bf16.gmra.mxu0 %v1621
    %v4078 = vpop.f32.mrf.mxu0
    %v4079 = vadd.f32 %v4050, %v4078
    %v4080 = vpop.f32.mrf.mxu0
    %v4081 = vadd.f32 %v4052, %v4080
    %4082 = vmatmul.bf16.gmra.mxu0 %v1625
    %v4083 = vpop.f32.mrf.mxu0
    %v4084 = vadd.f32 %v4055, %v4083
    %v4085 = vpop.f32.mrf.mxu0
    %v4086 = vadd.f32 %v4057, %v4085
    %4087 = vmatmul.bf16.gmra.mxu0 %v1629
    %v4088 = vpop.f32.mrf.mxu0
    %v4089 = vadd.f32 %v4060, %v4088
    %v4090 = vpop.f32.mrf.mxu0
    %v4091 = vadd.f32 %v4062, %v4090
    %4092 = vmatmul.bf16.gmra.mxu0 %v1633
    %v4093 = vpop.f32.mrf.mxu0
    %v4094 = vadd.f32 %v4065, %v4093
    %v4095 = vpop.f32.mrf.mxu0
    %v4096 = vadd.f32 %v4067, %v4095
    %4097 = vdwg.mxu0
    %v4098 = vadd.f32 %v3267, %v3269
    %v4099 = vadd.f32 %v4098, %v3272
    %v4100 = vadd.f32 %v4099, %v3274
    %v4101 = vadd.f32 %v4100, %v3277
    %v4102 = vadd.f32 %v4101, %v3279
    %v4103 = vadd.f32 %v4102, %v3282
    %v4104 = vadd.f32 %v4103, %v3284
    %v4105 = vrot.slane %v4104, 4
    %v4106 = vadd.f32 %v4104, %v4105
    %v4107 = vrot.slane %v4106, 2
    %v4108 = vadd.f32 %v4106, %v4107
    %v4109 = vrot.slane %v4108, 1
    %v4110 = vadd.f32 %v4108, %v4109
    %v4111 = vadd.f32 %v3383, %v3385
    %v4112 = vadd.f32 %v4111, %v3388
    %v4113 = vadd.f32 %v4112, %v3390
    %v4114 = vadd.f32 %v4113, %v3393
    %v4115 = vadd.f32 %v4114, %v3395
    %v4116 = vadd.f32 %v4115, %v3398
    %v4117 = vadd.f32 %v4116, %v3400
    %v4118 = vrot.slane %v4117, 4
    %v4119 = vadd.f32 %v4117, %v4118
    %v4120 = vrot.slane %v4119, 2
    %v4121 = vadd.f32 %v4119, %v4120
    %v4122 = vrot.slane %v4121, 1
    %v4123 = vadd.f32 %v4121, %v4122
    %v4124 = vadd.f32 %v3499, %v3501
    %v4125 = vadd.f32 %v4124, %v3504
    %v4126 = vadd.f32 %v4125, %v3506
    %v4127 = vadd.f32 %v4126, %v3509
    %v4128 = vadd.f32 %v4127, %v3511
    %v4129 = vadd.f32 %v4128, %v3514
    %v4130 = vadd.f32 %v4129, %v3516
    %v4131 = vrot.slane %v4130, 4
    %v4132 = vadd.f32 %v4130, %v4131
    %v4133 = vrot.slane %v4132, 2
    %v4134 = vadd.f32 %v4132, %v4133
    %v4135 = vrot.slane %v4134, 1
    %v4136 = vadd.f32 %v4134, %v4135
    %v4137 = vadd.f32 %v3615, %v3617
    %v4138 = vadd.f32 %v4137, %v3620
    %v4139 = vadd.f32 %v4138, %v3622
    %v4140 = vadd.f32 %v4139, %v3625
    %v4141 = vadd.f32 %v4140, %v3627
    %v4142 = vadd.f32 %v4141, %v3630
    %v4143 = vadd.f32 %v4142, %v3632
    %v4144 = vrot.slane %v4143, 4
    %v4145 = vadd.f32 %v4143, %v4144
    %v4146 = vrot.slane %v4145, 2
    %v4147 = vadd.f32 %v4145, %v4146
    %v4148 = vrot.slane %v4147, 1
    %v4149 = vadd.f32 %v4147, %v4148
    %v4150 = vadd.f32 %v3731, %v3733
    %v4151 = vadd.f32 %v4150, %v3736
    %v4152 = vadd.f32 %v4151, %v3738
    %v4153 = vadd.f32 %v4152, %v3741
    %v4154 = vadd.f32 %v4153, %v3743
    %v4155 = vadd.f32 %v4154, %v3746
    %v4156 = vadd.f32 %v4155, %v3748
    %v4157 = vrot.slane %v4156, 4
    %v4158 = vadd.f32 %v4156, %v4157
    %v4159 = vrot.slane %v4158, 2
    %v4160 = vadd.f32 %v4158, %v4159
    %v4161 = vrot.slane %v4160, 1
    %v4162 = vadd.f32 %v4160, %v4161
    %v4163 = vadd.f32 %v3847, %v3849
    %v4164 = vadd.f32 %v4163, %v3852
    %v4165 = vadd.f32 %v4164, %v3854
    %v4166 = vadd.f32 %v4165, %v3857
    %v4167 = vadd.f32 %v4166, %v3859
    %v4168 = vadd.f32 %v4167, %v3862
    %v4169 = vadd.f32 %v4168, %v3864
    %v4170 = vrot.slane %v4169, 4
    %v4171 = vadd.f32 %v4169, %v4170
    %v4172 = vrot.slane %v4171, 2
    %v4173 = vadd.f32 %v4171, %v4172
    %v4174 = vrot.slane %v4173, 1
    %v4175 = vadd.f32 %v4173, %v4174
    %v4176 = vadd.f32 %v3963, %v3965
    %v4177 = vadd.f32 %v4176, %v3968
    %v4178 = vadd.f32 %v4177, %v3970
    %v4179 = vadd.f32 %v4178, %v3973
    %v4180 = vadd.f32 %v4179, %v3975
    %v4181 = vadd.f32 %v4180, %v3978
    %v4182 = vadd.f32 %v4181, %v3980
    %v4183 = vrot.slane %v4182, 4
    %v4184 = vadd.f32 %v4182, %v4183
    %v4185 = vrot.slane %v4184, 2
    %v4186 = vadd.f32 %v4184, %v4185
    %v4187 = vrot.slane %v4186, 1
    %v4188 = vadd.f32 %v4186, %v4187
    %v4189 = vadd.f32 %v4079, %v4081
    %v4190 = vadd.f32 %v4189, %v4084
    %v4191 = vadd.f32 %v4190, %v4086
    %v4192 = vadd.f32 %v4191, %v4089
    %v4193 = vadd.f32 %v4192, %v4091
    %v4194 = vadd.f32 %v4193, %v4094
    %v4195 = vadd.f32 %v4194, %v4096
    %v4196 = vrot.slane %v4195, 4
    %v4197 = vadd.f32 %v4195, %v4196
    %v4198 = vrot.slane %v4197, 2
    %v4199 = vadd.f32 %v4197, %v4198
    %v4200 = vrot.slane %v4199, 1
    %v4201 = vadd.f32 %v4199, %v4200
    %v4202 = vmul.f32 %v4110, %v496
    %v4203 = vmul.f32 %v4123, %v496
    %v4204 = vmul.f32 %v4136, %v496
    %v4205 = vmul.f32 %v4149, %v496
    %v4206 = vmul.f32 %v4162, %v496
    %v4207 = vmul.f32 %v4175, %v496
    %v4208 = vmul.f32 %v4188, %v496
    %v4209 = vmul.f32 %v4201, %v496
    %v4210 = vmul.f32 %v3267, %v3267
    %v4211 = vmul.f32 %v3383, %v3383
    %v4212 = vmul.f32 %v3499, %v3499
    %v4213 = vmul.f32 %v3615, %v3615
    %v4214 = vmul.f32 %v3731, %v3731
    %v4215 = vmul.f32 %v3847, %v3847
    %v4216 = vmul.f32 %v3963, %v3963
    %v4217 = vmul.f32 %v4079, %v4079
    %v4218 = vmul.f32 %v3269, %v3269
    %v4219 = vmul.f32 %v3385, %v3385
    %v4220 = vmul.f32 %v3501, %v3501
    %v4221 = vmul.f32 %v3617, %v3617
    %v4222 = vmul.f32 %v3733, %v3733
    %v4223 = vmul.f32 %v3849, %v3849
    %v4224 = vmul.f32 %v3965, %v3965
    %v4225 = vmul.f32 %v4081, %v4081
    %v4226 = vmul.f32 %v3272, %v3272
    %v4227 = vmul.f32 %v3388, %v3388
    %v4228 = vmul.f32 %v3504, %v3504
    %v4229 = vmul.f32 %v3620, %v3620
    %v4230 = vmul.f32 %v3736, %v3736
    %v4231 = vmul.f32 %v3852, %v3852
    %v4232 = vmul.f32 %v3968, %v3968
    %v4233 = vmul.f32 %v4084, %v4084
    %v4234 = vmul.f32 %v3274, %v3274
    %v4235 = vmul.f32 %v3390, %v3390
    %v4236 = vmul.f32 %v3506, %v3506
    %v4237 = vmul.f32 %v3622, %v3622
    %v4238 = vmul.f32 %v3738, %v3738
    %v4239 = vmul.f32 %v3854, %v3854
    %v4240 = vmul.f32 %v3970, %v3970
    %v4241 = vmul.f32 %v4086, %v4086
    %v4242 = vmul.f32 %v3277, %v3277
    %v4243 = vmul.f32 %v3393, %v3393
    %v4244 = vmul.f32 %v3509, %v3509
    %v4245 = vmul.f32 %v3625, %v3625
    %v4246 = vmul.f32 %v3741, %v3741
    %v4247 = vmul.f32 %v3857, %v3857
    %v4248 = vmul.f32 %v3973, %v3973
    %v4249 = vmul.f32 %v4089, %v4089
    %v4250 = vmul.f32 %v3279, %v3279
    %v4251 = vmul.f32 %v3395, %v3395
    %v4252 = vmul.f32 %v3511, %v3511
    %v4253 = vmul.f32 %v3627, %v3627
    %v4254 = vmul.f32 %v3743, %v3743
    %v4255 = vmul.f32 %v3859, %v3859
    %v4256 = vmul.f32 %v3975, %v3975
    %v4257 = vmul.f32 %v4091, %v4091
    %v4258 = vmul.f32 %v3282, %v3282
    %v4259 = vmul.f32 %v3398, %v3398
    %v4260 = vmul.f32 %v3514, %v3514
    %v4261 = vmul.f32 %v3630, %v3630
    %v4262 = vmul.f32 %v3746, %v3746
    %v4263 = vmul.f32 %v3862, %v3862
    %v4264 = vmul.f32 %v3978, %v3978
    %v4265 = vmul.f32 %v4094, %v4094
    %v4266 = vmul.f32 %v3284, %v3284
    %v4267 = vmul.f32 %v3400, %v3400
    %v4268 = vmul.f32 %v3516, %v3516
    %v4269 = vmul.f32 %v3632, %v3632
    %v4270 = vmul.f32 %v3748, %v3748
    %v4271 = vmul.f32 %v3864, %v3864
    %v4272 = vmul.f32 %v3980, %v3980
    %v4273 = vmul.f32 %v4096, %v4096
    %v4274 = vadd.f32 %v4210, %v4218
    %v4275 = vadd.f32 %v4274, %v4226
    %v4276 = vadd.f32 %v4275, %v4234
    %v4277 = vadd.f32 %v4276, %v4242
    %v4278 = vadd.f32 %v4277, %v4250
    %v4279 = vadd.f32 %v4278, %v4258
    %v4280 = vadd.f32 %v4279, %v4266
    %v4281 = vrot.slane %v4280, 4
    %v4282 = vadd.f32 %v4280, %v4281
    %v4283 = vrot.slane %v4282, 2
    %v4284 = vadd.f32 %v4282, %v4283
    %v4285 = vrot.slane %v4284, 1
    %v4286 = vadd.f32 %v4284, %v4285
    %v4287 = vadd.f32 %v4211, %v4219
    %v4288 = vadd.f32 %v4287, %v4227
    %v4289 = vadd.f32 %v4288, %v4235
    %v4290 = vadd.f32 %v4289, %v4243
    %v4291 = vadd.f32 %v4290, %v4251
    %v4292 = vadd.f32 %v4291, %v4259
    %v4293 = vadd.f32 %v4292, %v4267
    %v4294 = vrot.slane %v4293, 4
    %v4295 = vadd.f32 %v4293, %v4294
    %v4296 = vrot.slane %v4295, 2
    %v4297 = vadd.f32 %v4295, %v4296
    %v4298 = vrot.slane %v4297, 1
    %v4299 = vadd.f32 %v4297, %v4298
    %v4300 = vadd.f32 %v4212, %v4220
    %v4301 = vadd.f32 %v4300, %v4228
    %v4302 = vadd.f32 %v4301, %v4236
    %v4303 = vadd.f32 %v4302, %v4244
    %v4304 = vadd.f32 %v4303, %v4252
    %v4305 = vadd.f32 %v4304, %v4260
    %v4306 = vadd.f32 %v4305, %v4268
    %v4307 = vrot.slane %v4306, 4
    %v4308 = vadd.f32 %v4306, %v4307
    %v4309 = vrot.slane %v4308, 2
    %v4310 = vadd.f32 %v4308, %v4309
    %v4311 = vrot.slane %v4310, 1
    %v4312 = vadd.f32 %v4310, %v4311
    %v4313 = vadd.f32 %v4213, %v4221
    %v4314 = vadd.f32 %v4313, %v4229
    %v4315 = vadd.f32 %v4314, %v4237
    %v4316 = vadd.f32 %v4315, %v4245
    %v4317 = vadd.f32 %v4316, %v4253
    %v4318 = vadd.f32 %v4317, %v4261
    %v4319 = vadd.f32 %v4318, %v4269
    %v4320 = vrot.slane %v4319, 4
    %v4321 = vadd.f32 %v4319, %v4320
    %v4322 = vrot.slane %v4321, 2
    %v4323 = vadd.f32 %v4321, %v4322
    %v4324 = vrot.slane %v4323, 1
    %v4325 = vadd.f32 %v4323, %v4324
    %v4326 = vadd.f32 %v4214, %v4222
    %v4327 = vadd.f32 %v4326, %v4230
    %v4328 = vadd.f32 %v4327, %v4238
    %v4329 = vadd.f32 %v4328, %v4246
    %v4330 = vadd.f32 %v4329, %v4254
    %v4331 = vadd.f32 %v4330, %v4262
    %v4332 = vadd.f32 %v4331, %v4270
    %v4333 = vrot.slane %v4332, 4
    %v4334 = vadd.f32 %v4332, %v4333
    %v4335 = vrot.slane %v4334, 2
    %v4336 = vadd.f32 %v4334, %v4335
    %v4337 = vrot.slane %v4336, 1
    %v4338 = vadd.f32 %v4336, %v4337
    %v4339 = vadd.f32 %v4215, %v4223
    %v4340 = vadd.f32 %v4339, %v4231
    %v4341 = vadd.f32 %v4340, %v4239
    %v4342 = vadd.f32 %v4341, %v4247
    %v4343 = vadd.f32 %v4342, %v4255
    %v4344 = vadd.f32 %v4343, %v4263
    %v4345 = vadd.f32 %v4344, %v4271
    %v4346 = vrot.slane %v4345, 4
    %v4347 = vadd.f32 %v4345, %v4346
    %v4348 = vrot.slane %v4347, 2
    %v4349 = vadd.f32 %v4347, %v4348
    %v4350 = vrot.slane %v4349, 1
    %v4351 = vadd.f32 %v4349, %v4350
    %v4352 = vadd.f32 %v4216, %v4224
    %v4353 = vadd.f32 %v4352, %v4232
    %v4354 = vadd.f32 %v4353, %v4240
    %v4355 = vadd.f32 %v4354, %v4248
    %v4356 = vadd.f32 %v4355, %v4256
    %v4357 = vadd.f32 %v4356, %v4264
    %v4358 = vadd.f32 %v4357, %v4272
    %v4359 = vrot.slane %v4358, 4
    %v4360 = vadd.f32 %v4358, %v4359
    %v4361 = vrot.slane %v4360, 2
    %v4362 = vadd.f32 %v4360, %v4361
    %v4363 = vrot.slane %v4362, 1
    %v4364 = vadd.f32 %v4362, %v4363
    %v4365 = vadd.f32 %v4217, %v4225
    %v4366 = vadd.f32 %v4365, %v4233
    %v4367 = vadd.f32 %v4366, %v4241
    %v4368 = vadd.f32 %v4367, %v4249
    %v4369 = vadd.f32 %v4368, %v4257
    %v4370 = vadd.f32 %v4369, %v4265
    %v4371 = vadd.f32 %v4370, %v4273
    %v4372 = vrot.slane %v4371, 4
    %v4373 = vadd.f32 %v4371, %v4372
    %v4374 = vrot.slane %v4373, 2
    %v4375 = vadd.f32 %v4373, %v4374
    %v4376 = vrot.slane %v4375, 1
    %v4377 = vadd.f32 %v4375, %v4376
    %v4378 = vmul.f32 %v4286, %v496
    %v4379 = vmul.f32 %v4299, %v496
    %v4380 = vmul.f32 %v4312, %v496
    %v4381 = vmul.f32 %v4325, %v496
    %v4382 = vmul.f32 %v4338, %v496
    %v4383 = vmul.f32 %v4351, %v496
    %v4384 = vmul.f32 %v4364, %v496
    %v4385 = vmul.f32 %v4377, %v496
    %v4386 = vmul.f32 %v4202, %v4202
    %v4387 = vmul.f32 %v4203, %v4203
    %v4388 = vmul.f32 %v4204, %v4204
    %v4389 = vmul.f32 %v4205, %v4205
    %v4390 = vmul.f32 %v4206, %v4206
    %v4391 = vmul.f32 %v4207, %v4207
    %v4392 = vmul.f32 %v4208, %v4208
    %v4393 = vmul.f32 %v4209, %v4209
    %v4394 = vsub.f32 %v4378, %v4386
    %v4395 = vsub.f32 %v4379, %v4387
    %v4396 = vsub.f32 %v4380, %v4388
    %v4397 = vsub.f32 %v4381, %v4389
    %v4398 = vsub.f32 %v4382, %v4390
    %v4399 = vsub.f32 %v4383, %v4391
    %v4400 = vsub.f32 %v4384, %v4392
    %v4401 = vsub.f32 %v4385, %v4393
    %v4402 = vld [vmem:[#allocation18] sm:$0xff]
    %v4403 = vadd.f32 %v4394, 0.8
    %v4404 = vadd.f32 %v4395, 0.8
    %v4405 = vadd.f32 %v4396, 0.8
    %v4406 = vadd.f32 %v4397, 0.8
    %v4407 = vadd.f32 %v4398, 0.8
    %v4408 = vadd.f32 %v4399, 0.8
    %v4409 = vadd.f32 %v4400, 0.8
    %v4410 = vadd.f32 %v4401, 0.8
    %v4411 = vrsqrt.pop %v4403
    %v4412 = vmul.f32 %v4411, %v4403
    %v4413 = vmul.f32 %v4412, %v4411
    %v4414 = vmul.f32 0.5, %v4413
    %v4415 = vsub.f32 1.5, %v4414
    %v4416 = vmul.f32 %v4411, %v4415
    %vm4417 = vweird.f32 %v4403
    %vm4418 = vweird.f32 %v4411
    %vm4419 = vmor %vm4417, %vm4418
    %v4420 = vsel %vm4419, %v4411, %v4416
    %v4421 = vrsqrt.pop %v4404
    %v4422 = vmul.f32 %v4421, %v4404
    %v4423 = vmul.f32 %v4422, %v4421
    %v4424 = vmul.f32 0.5, %v4423
    %v4425 = vsub.f32 1.5, %v4424
    %v4426 = vmul.f32 %v4421, %v4425
    %vm4427 = vweird.f32 %v4404
    %vm4428 = vweird.f32 %v4421
    %vm4429 = vmor %vm4427, %vm4428
    %v4430 = vsel %vm4429, %v4421, %v4426
    %v4431 = vrsqrt.pop %v4405
    %v4432 = vmul.f32 %v4431, %v4405
    %v4433 = vmul.f32 %v4432, %v4431
    %v4434 = vmul.f32 0.5, %v4433
    %v4435 = vsub.f32 1.5, %v4434
    %v4436 = vmul.f32 %v4431, %v4435
    %vm4437 = vweird.f32 %v4405
    %vm4438 = vweird.f32 %v4431
    %vm4439 = vmor %vm4437, %vm4438
    %v4440 = vsel %vm4439, %v4431, %v4436
    %v4441 = vrsqrt.pop %v4406
    %v4442 = vmul.f32 %v4441, %v4406
    %v4443 = vmul.f32 %v4442, %v4441
    %v4444 = vmul.f32 0.5, %v4443
    %v4445 = vsub.f32 1.5, %v4444
    %v4446 = vmul.f32 %v4441, %v4445
    %vm4447 = vweird.f32 %v4406
    %vm4448 = vweird.f32 %v4441
    %vm4449 = vmor %vm4447, %vm4448
    %v4450 = vsel %vm4449, %v4441, %v4446
    %v4451 = vrsqrt.pop %v4407
    %v4452 = vmul.f32 %v4451, %v4407
    %v4453 = vmul.f32 %v4452, %v4451
    %v4454 = vmul.f32 0.5, %v4453
    %v4455 = vsub.f32 1.5, %v4454
    %v4456 = vmul.f32 %v4451, %v4455
    %vm4457 = vweird.f32 %v4407
    %vm4458 = vweird.f32 %v4451
    %vm4459 = vmor %vm4457, %vm4458
    %v4460 = vsel %vm4459, %v4451, %v4456
    %v4461 = vrsqrt.pop %v4408
    %v4462 = vmul.f32 %v4461, %v4408
    %v4463 = vmul.f32 %v4462, %v4461
    %v4464 = vmul.f32 0.5, %v4463
    %v4465 = vsub.f32 1.5, %v4464
    %v4466 = vmul.f32 %v4461, %v4465
    %vm4467 = vweird.f32 %v4408
    %vm4468 = vweird.f32 %v4461
    %vm4469 = vmor %vm4467, %vm4468
    %v4470 = vsel %vm4469, %v4461, %v4466
    %v4471 = vrsqrt.pop %v4409
    %v4472 = vmul.f32 %v4471, %v4409
    %v4473 = vmul.f32 %v4472, %v4471
    %v4474 = vmul.f32 0.5, %v4473
    %v4475 = vsub.f32 1.5, %v4474
    %v4476 = vmul.f32 %v4471, %v4475
    %vm4477 = vweird.f32 %v4409
    %vm4478 = vweird.f32 %v4471
    %vm4479 = vmor %vm4477, %vm4478
    %v4480 = vsel %vm4479, %v4471, %v4476
    %v4481 = vrsqrt.pop %v4410
    %v4482 = vmul.f32 %v4481, %v4410
    %v4483 = vmul.f32 %v4482, %v4481
    %v4484 = vmul.f32 0.5, %v4483
    %v4485 = vsub.f32 1.5, %v4484
    %v4486 = vmul.f32 %v4481, %v4485
    %vm4487 = vweird.f32 %v4410
    %vm4488 = vweird.f32 %v4481
    %vm4489 = vmor %vm4487, %vm4488
    %v4490 = vsel %vm4489, %v4481, %v4486
    %v4499 = vrot.slane %v4430, 7
    %v4500 = vrot.slane %v4440, 6
    %v4501 = vrot.slane %v4450, 5
    %v4502 = vrot.slane %v4460, 4
    %v4503 = vrot.slane %v4470, 3
    %v4504 = vrot.slane %v4480, 2
    %v4505 = vrot.slane %v4490, 1
    %v4506 = vsel %vm573, %v4420, %v4499
    %v4507 = vsel %vm1477, %v4500, %v4501
    %v4508 = vsel %vm1479, %v4506, %v4507
    %vm4509 = vcmask 1044484
    %v4510 = vsel %vm4509, %v4502, %v4503
    %vm4511 = vcmask 1046534
    %v4512 = vsel %vm4511, %v4504, %v4505
    %vm4513 = vcmask 1045508
    %v4514 = vsel %vm4513, %v4510, %v4512
    %vm4515 = vcmask 1043456
    %v4516 = vsel %vm4515, %v4508, %v4514
    %v4518 = vmul.f32 %v4402, %v4516
    %v4519 = vld [vmem:[#allocation19] sm:$0xff]
    %v4521 = vperm.slane %v4518, 0
    %v4522 = vperm.slane %v4518, 1
    %v4523 = vperm.slane %v4518, 2
    %v4524 = vperm.slane %v4518, 3
    %v4525 = vperm.slane %v4518, 4
    %v4526 = vperm.slane %v4518, 5
    %v4527 = vperm.slane %v4518, 6
    %v4528 = vperm.slane %v4518, 7
    %v4537 = vmul.f32 %v4202, %v4521
    %v4538 = vmul.f32 %v4203, %v4522
    %v4539 = vmul.f32 %v4204, %v4523
    %v4540 = vmul.f32 %v4205, %v4524
    %v4541 = vmul.f32 %v4206, %v4525
    %v4542 = vmul.f32 %v4207, %v4526
    %v4543 = vmul.f32 %v4208, %v4527
    %v4544 = vmul.f32 %v4209, %v4528
    %v4553 = vrot.slane %v4538, 7
    %v4554 = vrot.slane %v4539, 6
    %v4555 = vrot.slane %v4540, 5
    %v4556 = vrot.slane %v4541, 4
    %v4557 = vrot.slane %v4542, 3
    %v4558 = vrot.slane %v4543, 2
    %v4559 = vrot.slane %v4544, 1
    %v4560 = vsel %vm573, %v4537, %v4553
    %v4561 = vsel %vm1477, %v4554, %v4555
    %v4562 = vsel %vm1479, %v4560, %v4561
    %v4563 = vsel %vm4509, %v4556, %v4557
    %v4564 = vsel %vm4511, %v4558, %v4559
    %v4565 = vsel %vm4513, %v4563, %v4564
    %v4566 = vsel %vm4515, %v4562, %v4565
    %v4568 = vsub.f32 %v4519, %v4566
    %v4569 = vmul.f32 %v3267, %v4521
    %v4570 = vmul.f32 %v3383, %v4522
    %v4571 = vmul.f32 %v3499, %v4523
    %v4572 = vmul.f32 %v3615, %v4524
    %v4573 = vmul.f32 %v3731, %v4525
    %v4574 = vmul.f32 %v3847, %v4526
    %v4575 = vmul.f32 %v3963, %v4527
    %v4576 = vmul.f32 %v4079, %v4528
    %v4577 = vmul.f32 %v3269, %v4521
    %v4578 = vmul.f32 %v3385, %v4522
    %v4579 = vmul.f32 %v3501, %v4523
    %v4580 = vmul.f32 %v3617, %v4524
    %v4581 = vmul.f32 %v3733, %v4525
    %v4582 = vmul.f32 %v3849, %v4526
    %v4583 = vmul.f32 %v3965, %v4527
    %v4584 = vmul.f32 %v4081, %v4528
    %v4585 = vmul.f32 %v3272, %v4521
    %v4586 = vmul.f32 %v3388, %v4522
    %v4587 = vmul.f32 %v3504, %v4523
    %v4588 = vmul.f32 %v3620, %v4524
    %v4589 = vmul.f32 %v3736, %v4525
    %v4590 = vmul.f32 %v3852, %v4526
    %v4591 = vmul.f32 %v3968, %v4527
    %v4592 = vmul.f32 %v4084, %v4528
    %v4593 = vmul.f32 %v3274, %v4521
    %v4594 = vmul.f32 %v3390, %v4522
    %v4595 = vmul.f32 %v3506, %v4523
    %v4596 = vmul.f32 %v3622, %v4524
    %v4597 = vmul.f32 %v3738, %v4525
    %v4598 = vmul.f32 %v3854, %v4526
    %v4599 = vmul.f32 %v3970, %v4527
    %v4600 = vmul.f32 %v4086, %v4528
    %v4601 = vmul.f32 %v3277, %v4521
    %v4602 = vmul.f32 %v3393, %v4522
    %v4603 = vmul.f32 %v3509, %v4523
    %v4604 = vmul.f32 %v3625, %v4524
    %v4605 = vmul.f32 %v3741, %v4525
    %v4606 = vmul.f32 %v3857, %v4526
    %v4607 = vmul.f32 %v3973, %v4527
    %v4608 = vmul.f32 %v4089, %v4528
    %v4609 = vmul.f32 %v3279, %v4521
    %v4610 = vmul.f32 %v3395, %v4522
    %v4611 = vmul.f32 %v3511, %v4523
    %v4612 = vmul.f32 %v3627, %v4524
    %v4613 = vmul.f32 %v3743, %v4525
    %v4614 = vmul.f32 %v3859, %v4526
    %v4615 = vmul.f32 %v3975, %v4527
    %v4616 = vmul.f32 %v4091, %v4528
    %v4617 = vmul.f32 %v3282, %v4521
    %v4618 = vmul.f32 %v3398, %v4522
    %v4619 = vmul.f32 %v3514, %v4523
    %v4620 = vmul.f32 %v3630, %v4524
    %v4621 = vmul.f32 %v3746, %v4525
    %v4622 = vmul.f32 %v3862, %v4526
    %v4623 = vmul.f32 %v3978, %v4527
    %v4624 = vmul.f32 %v4094, %v4528
    %v4625 = vmul.f32 %v3284, %v4521
    %v4626 = vmul.f32 %v3400, %v4522
    %v4627 = vmul.f32 %v3516, %v4523
    %v4628 = vmul.f32 %v3632, %v4524
    %v4629 = vmul.f32 %v3748, %v4525
    %v4630 = vmul.f32 %v3864, %v4526
    %v4631 = vmul.f32 %v3980, %v4527
    %v4632 = vmul.f32 %v4096, %v4528
    %v4634 = vperm.slane %v4568, 0
    %v4635 = vperm.slane %v4568, 1
    %v4636 = vperm.slane %v4568, 2
    %v4637 = vperm.slane %v4568, 3
    %v4638 = vperm.slane %v4568, 4
    %v4639 = vperm.slane %v4568, 5
    %v4640 = vperm.slane %v4568, 6
    %v4641 = vperm.slane %v4568, 7
    %v4650 = vadd.f32 %v4569, %v4634
    %v4651 = vadd.f32 %v4570, %v4635
    %v4652 = vadd.f32 %v4571, %v4636
    %v4653 = vadd.f32 %v4572, %v4637
    %v4654 = vadd.f32 %v4573, %v4638
    %v4655 = vadd.f32 %v4574, %v4639
    %v4656 = vadd.f32 %v4575, %v4640
    %v4657 = vadd.f32 %v4576, %v4641
    %v4658 = vadd.f32 %v4577, %v4634
    %v4659 = vadd.f32 %v4578, %v4635
    %v4660 = vadd.f32 %v4579, %v4636
    %v4661 = vadd.f32 %v4580, %v4637
    %v4662 = vadd.f32 %v4581, %v4638
    %v4663 = vadd.f32 %v4582, %v4639
    %v4664 = vadd.f32 %v4583, %v4640
    %v4665 = vadd.f32 %v4584, %v4641
    %v4666 = vadd.f32 %v4585, %v4634
    %v4667 = vadd.f32 %v4586, %v4635
    %v4668 = vadd.f32 %v4587, %v4636
    %v4669 = vadd.f32 %v4588, %v4637
    %v4670 = vadd.f32 %v4589, %v4638
    %v4671 = vadd.f32 %v4590, %v4639
    %v4672 = vadd.f32 %v4591, %v4640
    %v4673 = vadd.f32 %v4592, %v4641
    %v4674 = vadd.f32 %v4593, %v4634
    %v4675 = vadd.f32 %v4594, %v4635
    %v4676 = vadd.f32 %v4595, %v4636
    %v4677 = vadd.f32 %v4596, %v4637
    %v4678 = vadd.f32 %v4597, %v4638
    %v4679 = vadd.f32 %v4598, %v4639
    %v4680 = vadd.f32 %v4599, %v4640
    %v4681 = vadd.f32 %v4600, %v4641
    %v4682 = vadd.f32 %v4601, %v4634
    %v4683 = vadd.f32 %v4602, %v4635
    %v4684 = vadd.f32 %v4603, %v4636
    %v4685 = vadd.f32 %v4604, %v4637
    %v4686 = vadd.f32 %v4605, %v4638
    %v4687 = vadd.f32 %v4606, %v4639
    %v4688 = vadd.f32 %v4607, %v4640
    %v4689 = vadd.f32 %v4608, %v4641
    %v4690 = vadd.f32 %v4609, %v4634
    %v4691 = vadd.f32 %v4610, %v4635
    %v4692 = vadd.f32 %v4611, %v4636
    %v4693 = vadd.f32 %v4612, %v4637
    %v4694 = vadd.f32 %v4613, %v4638
    %v4695 = vadd.f32 %v4614, %v4639
    %v4696 = vadd.f32 %v4615, %v4640
    %v4697 = vadd.f32 %v4616, %v4641
    %v4698 = vadd.f32 %v4617, %v4634
    %v4699 = vadd.f32 %v4618, %v4635
    %v4700 = vadd.f32 %v4619, %v4636
    %v4701 = vadd.f32 %v4620, %v4637
    %v4702 = vadd.f32 %v4621, %v4638
    %v4703 = vadd.f32 %v4622, %v4639
    %v4704 = vadd.f32 %v4623, %v4640
    %v4705 = vadd.f32 %v4624, %v4641
    %v4706 = vadd.f32 %v4625, %v4634
    %v4707 = vadd.f32 %v4626, %v4635
    %v4708 = vadd.f32 %v4627, %v4636
    %v4709 = vadd.f32 %v4628, %v4637
    %v4710 = vadd.f32 %v4629, %v4638
    %v4711 = vadd.f32 %v4630, %v4639
    %v4712 = vadd.f32 %v4631, %v4640
    %v4713 = vadd.f32 %v4632, %v4641
    %v4714 = vmax.f32 %v4650, 0.0
    %v4715 = vmax.f32 %v4651, 0.0
    %v4716 = vmax.f32 %v4652, 0.0
    %v4717 = vmax.f32 %v4653, 0.0
    %v4718 = vmax.f32 %v4654, 0.0
    %v4719 = vmax.f32 %v4655, 0.0
    %v4720 = vmax.f32 %v4656, 0.0
    %v4721 = vmax.f32 %v4657, 0.0
    %v4722 = vmax.f32 %v4658, 0.0
    %v4723 = vmax.f32 %v4659, 0.0
    %v4724 = vmax.f32 %v4660, 0.0
    %v4725 = vmax.f32 %v4661, 0.0
    %v4726 = vmax.f32 %v4662, 0.0
    %v4727 = vmax.f32 %v4663, 0.0
    %v4728 = vmax.f32 %v4664, 0.0
    %v4729 = vmax.f32 %v4665, 0.0
    %v4730 = vmax.f32 %v4666, 0.0
    %v4731 = vmax.f32 %v4667, 0.0
    %v4732 = vmax.f32 %v4668, 0.0
    %v4733 = vmax.f32 %v4669, 0.0
    %v4734 = vmax.f32 %v4670, 0.0
    %v4735 = vmax.f32 %v4671, 0.0
    %v4736 = vmax.f32 %v4672, 0.0
    %v4737 = vmax.f32 %v4673, 0.0
    %v4738 = vmax.f32 %v4674, 0.0
    %v4739 = vmax.f32 %v4675, 0.0
    %v4740 = vmax.f32 %v4676, 0.0
    %v4741 = vmax.f32 %v4677, 0.0
    %v4742 = vmax.f32 %v4678, 0.0
    %v4743 = vmax.f32 %v4679, 0.0
    %v4744 = vmax.f32 %v4680, 0.0
    %v4745 = vmax.f32 %v4681, 0.0
    %v4746 = vmax.f32 %v4682, 0.0
    %v4747 = vmax.f32 %v4683, 0.0
    %v4748 = vmax.f32 %v4684, 0.0
    %v4749 = vmax.f32 %v4685, 0.0
    %v4750 = vmax.f32 %v4686, 0.0
    %v4751 = vmax.f32 %v4687, 0.0
    %v4752 = vmax.f32 %v4688, 0.0
    %v4753 = vmax.f32 %v4689, 0.0
    %v4754 = vmax.f32 %v4690, 0.0
    %v4755 = vmax.f32 %v4691, 0.0
    %v4756 = vmax.f32 %v4692, 0.0
    %v4757 = vmax.f32 %v4693, 0.0
    %v4758 = vmax.f32 %v4694, 0.0
    %v4759 = vmax.f32 %v4695, 0.0
    %v4760 = vmax.f32 %v4696, 0.0
    %v4761 = vmax.f32 %v4697, 0.0
    %v4762 = vmax.f32 %v4698, 0.0
    %v4763 = vmax.f32 %v4699, 0.0
    %v4764 = vmax.f32 %v4700, 0.0
    %v4765 = vmax.f32 %v4701, 0.0
    %v4766 = vmax.f32 %v4702, 0.0
    %v4767 = vmax.f32 %v4703, 0.0
    %v4768 = vmax.f32 %v4704, 0.0
    %v4769 = vmax.f32 %v4705, 0.0
    %v4770 = vmax.f32 %v4706, 0.0
    %v4771 = vmax.f32 %v4707, 0.0
    %v4772 = vmax.f32 %v4708, 0.0
    %v4773 = vmax.f32 %v4709, 0.0
    %v4774 = vmax.f32 %v4710, 0.0
    %v4775 = vmax.f32 %v4711, 0.0
    %v4776 = vmax.f32 %v4712, 0.0
    %v4777 = vmax.f32 %v4713, 0.0
    %s4778 = smul.u32 4, 128
    %s4779 = smul.u32 %s4778, 8
    %s4780 = sshll.u32 %s4779, 4
    %4781 = dma.done %s206, %s4780
    %v4782 = vpack.c.bf16 %v4722, %v4714
    %v4783 = vpack.c.bf16 %v4723, %v4715
    %v4784 = vpack.c.bf16 %v4724, %v4716
    %v4785 = vpack.c.bf16 %v4725, %v4717
    %v4786 = vpack.c.bf16 %v4726, %v4718
    %v4787 = vpack.c.bf16 %v4727, %v4719
    %v4788 = vpack.c.bf16 %v4728, %v4720
    %v4789 = vpack.c.bf16 %v4729, %v4721
    %v4790 = vpack.c.bf16 %v4738, %v4730
    %v4791 = vpack.c.bf16 %v4739, %v4731
    %v4792 = vpack.c.bf16 %v4740, %v4732
    %v4793 = vpack.c.bf16 %v4741, %v4733
    %v4794 = vpack.c.bf16 %v4742, %v4734
    %v4795 = vpack.c.bf16 %v4743, %v4735
    %v4796 = vpack.c.bf16 %v4744, %v4736
    %v4797 = vpack.c.bf16 %v4745, %v4737
    %v4798 = vpack.c.bf16 %v4754, %v4746
    %v4799 = vpack.c.bf16 %v4755, %v4747
    %v4800 = vpack.c.bf16 %v4756, %v4748
    %v4801 = vpack.c.bf16 %v4757, %v4749
    %v4802 = vpack.c.bf16 %v4758, %v4750
    %v4803 = vpack.c.bf16 %v4759, %v4751
    %v4804 = vpack.c.bf16 %v4760, %v4752
    %v4805 = vpack.c.bf16 %v4761, %v4753
    %v4806 = vpack.c.bf16 %v4770, %v4762
    %v4807 = vpack.c.bf16 %v4771, %v4763
    %v4808 = vpack.c.bf16 %v4772, %v4764
    %v4809 = vpack.c.bf16 %v4773, %v4765
    %v4810 = vpack.c.bf16 %v4774, %v4766
    %v4811 = vpack.c.bf16 %v4775, %v4767
    %v4812 = vpack.c.bf16 %v4776, %v4768
    %v4813 = vpack.c.bf16 %v4777, %v4769
    %v4814 = vld [vmem:[#allocation5] sm:$0xff]
    %v4815 = vld [vmem:[#allocation5 + $0x8] sm:$0xff]
    %v4816 = vld [vmem:[#allocation5 + $0x10] sm:$0xff]
    %v4817 = vld [vmem:[#allocation5 + $0x18] sm:$0xff]
    %v4818 = vld [vmem:[#allocation5 + $0x20] sm:$0xff]
    %v4819 = vld [vmem:[#allocation5 + $0x28] sm:$0xff]
    %v4820 = vld [vmem:[#allocation5 + $0x30] sm:$0xff]
    %v4821 = vld [vmem:[#allocation5 + $0x38] sm:$0xff]
    %v4822 = vld [vmem:[#allocation5 + $0x40] sm:$0xff]
    %v4823 = vld [vmem:[#allocation5 + $0x48] sm:$0xff]
    %v4824 = vld [vmem:[#allocation5 + $0x50] sm:$0xff]
    %v4825 = vld [vmem:[#allocation5 + $0x58] sm:$0xff]
    %v4826 = vld [vmem:[#allocation5 + $0x60] sm:$0xff]
    %v4827 = vld [vmem:[#allocation5 + $0x68] sm:$0xff]
    %v4828 = vld [vmem:[#allocation5 + $0x70] sm:$0xff]
    %v4829 = vld [vmem:[#allocation5 + $0x78] sm:$0xff]
    %v4830 = vld [vmem:[#allocation5 + $0x80] sm:$0xff]
    %v4831 = vld [vmem:[#allocation5 + $0x88] sm:$0xff]
    %v4832 = vld [vmem:[#allocation5 + $0x90] sm:$0xff]
    %v4833 = vld [vmem:[#allocation5 + $0x98] sm:$0xff]
    %v4834 = vld [vmem:[#allocation5 + $0xa0] sm:$0xff]
    %v4835 = vld [vmem:[#allocation5 + $0xa8] sm:$0xff]
    %v4836 = vld [vmem:[#allocation5 + $0xb0] sm:$0xff]
    %v4837 = vld [vmem:[#allocation5 + $0xb8] sm:$0xff]
    %v4838 = vld [vmem:[#allocation5 + $0xc0] sm:$0xff]
    %v4839 = vld [vmem:[#allocation5 + $0xc8] sm:$0xff]
    %v4840 = vld [vmem:[#allocation5 + $0xd0] sm:$0xff]
    %v4841 = vld [vmem:[#allocation5 + $0xd8] sm:$0xff]
    %v4842 = vld [vmem:[#allocation5 + $0xe0] sm:$0xff]
    %v4843 = vld [vmem:[#allocation5 + $0xe8] sm:$0xff]
    %v4844 = vld [vmem:[#allocation5 + $0xf0] sm:$0xff]
    %v4845 = vld [vmem:[#allocation5 + $0xf8] sm:$0xff]
    %v4846 = vld [vmem:[#allocation5 + $0x100] sm:$0xff]
    %v4847 = vld [vmem:[#allocation5 + $0x108] sm:$0xff]
    %v4848 = vld [vmem:[#allocation5 + $0x110] sm:$0xff]
    %v4849 = vld [vmem:[#allocation5 + $0x118] sm:$0xff]
    %v4850 = vld [vmem:[#allocation5 + $0x120] sm:$0xff]
    %v4851 = vld [vmem:[#allocation5 + $0x128] sm:$0xff]
    %v4852 = vld [vmem:[#allocation5 + $0x130] sm:$0xff]
    %v4853 = vld [vmem:[#allocation5 + $0x138] sm:$0xff]
    %v4854 = vld [vmem:[#allocation5 + $0x140] sm:$0xff]
    %v4855 = vld [vmem:[#allocation5 + $0x148] sm:$0xff]
    %v4856 = vld [vmem:[#allocation5 + $0x150] sm:$0xff]
    %v4857 = vld [vmem:[#allocation5 + $0x158] sm:$0xff]
    %v4858 = vld [vmem:[#allocation5 + $0x160] sm:$0xff]
    %v4859 = vld [vmem:[#allocation5 + $0x168] sm:$0xff]
    %v4860 = vld [vmem:[#allocation5 + $0x170] sm:$0xff]
    %v4861 = vld [vmem:[#allocation5 + $0x178] sm:$0xff]
    %v4862 = vld [vmem:[#allocation5 + $0x180] sm:$0xff]
    %v4863 = vld [vmem:[#allocation5 + $0x188] sm:$0xff]
    %v4864 = vld [vmem:[#allocation5 + $0x190] sm:$0xff]
    %v4865 = vld [vmem:[#allocation5 + $0x198] sm:$0xff]
    %v4866 = vld [vmem:[#allocation5 + $0x1a0] sm:$0xff]
    %v4867 = vld [vmem:[#allocation5 + $0x1a8] sm:$0xff]
    %v4868 = vld [vmem:[#allocation5 + $0x1b0] sm:$0xff]
    %v4869 = vld [vmem:[#allocation5 + $0x1b8] sm:$0xff]
    %v4870 = vld [vmem:[#allocation5 + $0x1c0] sm:$0xff]
    %v4871 = vld [vmem:[#allocation5 + $0x1c8] sm:$0xff]
    %v4872 = vld [vmem:[#allocation5 + $0x1d0] sm:$0xff]
    %v4873 = vld [vmem:[#allocation5 + $0x1d8] sm:$0xff]
    %v4874 = vld [vmem:[#allocation5 + $0x1e0] sm:$0xff]
    %v4875 = vld [vmem:[#allocation5 + $0x1e8] sm:$0xff]
    %v4876 = vld [vmem:[#allocation5 + $0x1f0] sm:$0xff]
    %v4877 = vld [vmem:[#allocation5 + $0x1f8] sm:$0xff]
    %v4878 = vld [vmem:[#allocation5 + $0x200] sm:$0xff]
    %v4879 = vld [vmem:[#allocation5 + $0x208] sm:$0xff]
    %v4880 = vld [vmem:[#allocation5 + $0x210] sm:$0xff]
    %v4881 = vld [vmem:[#allocation5 + $0x218] sm:$0xff]
    %v4882 = vld [vmem:[#allocation5 + $0x220] sm:$0xff]
    %v4883 = vld [vmem:[#allocation5 + $0x228] sm:$0xff]
    %v4884 = vld [vmem:[#allocation5 + $0x230] sm:$0xff]
    %v4885 = vld [vmem:[#allocation5 + $0x238] sm:$0xff]
    %v4886 = vld [vmem:[#allocation5 + $0x240] sm:$0xff]
    %v4887 = vld [vmem:[#allocation5 + $0x248] sm:$0xff]
    %v4888 = vld [vmem:[#allocation5 + $0x250] sm:$0xff]
    %v4889 = vld [vmem:[#allocation5 + $0x258] sm:$0xff]
    %v4890 = vld [vmem:[#allocation5 + $0x260] sm:$0xff]
    %v4891 = vld [vmem:[#allocation5 + $0x268] sm:$0xff]
    %v4892 = vld [vmem:[#allocation5 + $0x270] sm:$0xff]
    %v4893 = vld [vmem:[#allocation5 + $0x278] sm:$0xff]
    %v4894 = vld [vmem:[#allocation5 + $0x280] sm:$0xff]
    %v4895 = vld [vmem:[#allocation5 + $0x288] sm:$0xff]
    %v4896 = vld [vmem:[#allocation5 + $0x290] sm:$0xff]
    %v4897 = vld [vmem:[#allocation5 + $0x298] sm:$0xff]
    %v4898 = vld [vmem:[#allocation5 + $0x2a0] sm:$0xff]
    %v4899 = vld [vmem:[#allocation5 + $0x2a8] sm:$0xff]
    %v4900 = vld [vmem:[#allocation5 + $0x2b0] sm:$0xff]
    %v4901 = vld [vmem:[#allocation5 + $0x2b8] sm:$0xff]
    %v4902 = vld [vmem:[#allocation5 + $0x2c0] sm:$0xff]
    %v4903 = vld [vmem:[#allocation5 + $0x2c8] sm:$0xff]
    %v4904 = vld [vmem:[#allocation5 + $0x2d0] sm:$0xff]
    %v4905 = vld [vmem:[#allocation5 + $0x2d8] sm:$0xff]
    %v4906 = vld [vmem:[#allocation5 + $0x2e0] sm:$0xff]
    %v4907 = vld [vmem:[#allocation5 + $0x2e8] sm:$0xff]
    %v4908 = vld [vmem:[#allocation5 + $0x2f0] sm:$0xff]
    %v4909 = vld [vmem:[#allocation5 + $0x2f8] sm:$0xff]
    %v4910 = vld [vmem:[#allocation5 + $0x300] sm:$0xff]
    %v4911 = vld [vmem:[#allocation5 + $0x308] sm:$0xff]
    %v4912 = vld [vmem:[#allocation5 + $0x310] sm:$0xff]
    %v4913 = vld [vmem:[#allocation5 + $0x318] sm:$0xff]
    %v4914 = vld [vmem:[#allocation5 + $0x320] sm:$0xff]
    %v4915 = vld [vmem:[#allocation5 + $0x328] sm:$0xff]
    %v4916 = vld [vmem:[#allocation5 + $0x330] sm:$0xff]
    %v4917 = vld [vmem:[#allocation5 + $0x338] sm:$0xff]
    %v4918 = vld [vmem:[#allocation5 + $0x340] sm:$0xff]
    %v4919 = vld [vmem:[#allocation5 + $0x348] sm:$0xff]
    %v4920 = vld [vmem:[#allocation5 + $0x350] sm:$0xff]
    %v4921 = vld [vmem:[#allocation5 + $0x358] sm:$0xff]
    %v4922 = vld [vmem:[#allocation5 + $0x360] sm:$0xff]
    %v4923 = vld [vmem:[#allocation5 + $0x368] sm:$0xff]
    %v4924 = vld [vmem:[#allocation5 + $0x370] sm:$0xff]
    %v4925 = vld [vmem:[#allocation5 + $0x378] sm:$0xff]
    %v4926 = vld [vmem:[#allocation5 + $0x380] sm:$0xff]
    %v4927 = vld [vmem:[#allocation5 + $0x388] sm:$0xff]
    %v4928 = vld [vmem:[#allocation5 + $0x390] sm:$0xff]
    %v4929 = vld [vmem:[#allocation5 + $0x398] sm:$0xff]
    %v4930 = vld [vmem:[#allocation5 + $0x3a0] sm:$0xff]
    %v4931 = vld [vmem:[#allocation5 + $0x3a8] sm:$0xff]
    %v4932 = vld [vmem:[#allocation5 + $0x3b0] sm:$0xff]
    %v4933 = vld [vmem:[#allocation5 + $0x3b8] sm:$0xff]
    %v4934 = vld [vmem:[#allocation5 + $0x3c0] sm:$0xff]
    %v4935 = vld [vmem:[#allocation5 + $0x3c8] sm:$0xff]
    %v4936 = vld [vmem:[#allocation5 + $0x3d0] sm:$0xff]
    %v4937 = vld [vmem:[#allocation5 + $0x3d8] sm:$0xff]
    %v4938 = vld [vmem:[#allocation5 + $0x3e0] sm:$0xff]
    %v4939 = vld [vmem:[#allocation5 + $0x3e8] sm:$0xff]
    %v4940 = vld [vmem:[#allocation5 + $0x3f0] sm:$0xff]
    %v4941 = vld [vmem:[#allocation5 + $0x3f8] sm:$0xff]
    %v4942 = vld [vmem:[#allocation5 + $0x400] sm:$0xff]
    %v4943 = vld [vmem:[#allocation5 + $0x408] sm:$0xff]
    %v4944 = vld [vmem:[#allocation5 + $0x410] sm:$0xff]
    %v4945 = vld [vmem:[#allocation5 + $0x418] sm:$0xff]
    %v4946 = vld [vmem:[#allocation5 + $0x420] sm:$0xff]
    %v4947 = vld [vmem:[#allocation5 + $0x428] sm:$0xff]
    %v4948 = vld [vmem:[#allocation5 + $0x430] sm:$0xff]
    %v4949 = vld [vmem:[#allocation5 + $0x438] sm:$0xff]
    %v4950 = vld [vmem:[#allocation5 + $0x440] sm:$0xff]
    %v4951 = vld [vmem:[#allocation5 + $0x448] sm:$0xff]
    %v4952 = vld [vmem:[#allocation5 + $0x450] sm:$0xff]
    %v4953 = vld [vmem:[#allocation5 + $0x458] sm:$0xff]
    %v4954 = vld [vmem:[#allocation5 + $0x460] sm:$0xff]
    %v4955 = vld [vmem:[#allocation5 + $0x468] sm:$0xff]
    %v4956 = vld [vmem:[#allocation5 + $0x470] sm:$0xff]
    %v4957 = vld [vmem:[#allocation5 + $0x478] sm:$0xff]
    %v4958 = vld [vmem:[#allocation5 + $0x480] sm:$0xff]
    %v4959 = vld [vmem:[#allocation5 + $0x488] sm:$0xff]
    %v4960 = vld [vmem:[#allocation5 + $0x490] sm:$0xff]
    %v4961 = vld [vmem:[#allocation5 + $0x498] sm:$0xff]
    %v4962 = vld [vmem:[#allocation5 + $0x4a0] sm:$0xff]
    %v4963 = vld [vmem:[#allocation5 + $0x4a8] sm:$0xff]
    %v4964 = vld [vmem:[#allocation5 + $0x4b0] sm:$0xff]
    %v4965 = vld [vmem:[#allocation5 + $0x4b8] sm:$0xff]
    %v4966 = vld [vmem:[#allocation5 + $0x4c0] sm:$0xff]
    %v4967 = vld [vmem:[#allocation5 + $0x4c8] sm:$0xff]
    %v4968 = vld [vmem:[#allocation5 + $0x4d0] sm:$0xff]
    %v4969 = vld [vmem:[#allocation5 + $0x4d8] sm:$0xff]
    %v4970 = vld [vmem:[#allocation5 + $0x4e0] sm:$0xff]
    %v4971 = vld [vmem:[#allocation5 + $0x4e8] sm:$0xff]
    %v4972 = vld [vmem:[#allocation5 + $0x4f0] sm:$0xff]
    %v4973 = vld [vmem:[#allocation5 + $0x4f8] sm:$0xff]
    %v4974 = vld [vmem:[#allocation5 + $0x500] sm:$0xff]
    %v4975 = vld [vmem:[#allocation5 + $0x508] sm:$0xff]
    %v4976 = vld [vmem:[#allocation5 + $0x510] sm:$0xff]
    %v4977 = vld [vmem:[#allocation5 + $0x518] sm:$0xff]
    %v4978 = vld [vmem:[#allocation5 + $0x520] sm:$0xff]
    %v4979 = vld [vmem:[#allocation5 + $0x528] sm:$0xff]
    %v4980 = vld [vmem:[#allocation5 + $0x530] sm:$0xff]
    %v4981 = vld [vmem:[#allocation5 + $0x538] sm:$0xff]
    %v4982 = vld [vmem:[#allocation5 + $0x540] sm:$0xff]
    %v4983 = vld [vmem:[#allocation5 + $0x548] sm:$0xff]
    %v4984 = vld [vmem:[#allocation5 + $0x550] sm:$0xff]
    %v4985 = vld [vmem:[#allocation5 + $0x558] sm:$0xff]
    %v4986 = vld [vmem:[#allocation5 + $0x560] sm:$0xff]
    %v4987 = vld [vmem:[#allocation5 + $0x568] sm:$0xff]
    %v4988 = vld [vmem:[#allocation5 + $0x570] sm:$0xff]
    %v4989 = vld [vmem:[#allocation5 + $0x578] sm:$0xff]
    %v4990 = vld [vmem:[#allocation5 + $0x580] sm:$0xff]
    %v4991 = vld [vmem:[#allocation5 + $0x588] sm:$0xff]
    %v4992 = vld [vmem:[#allocation5 + $0x590] sm:$0xff]
    %v4993 = vld [vmem:[#allocation5 + $0x598] sm:$0xff]
    %v4994 = vld [vmem:[#allocation5 + $0x5a0] sm:$0xff]
    %v4995 = vld [vmem:[#allocation5 + $0x5a8] sm:$0xff]
    %v4996 = vld [vmem:[#allocation5 + $0x5b0] sm:$0xff]
    %v4997 = vld [vmem:[#allocation5 + $0x5b8] sm:$0xff]
    %v4998 = vld [vmem:[#allocation5 + $0x5c0] sm:$0xff]
    %v4999 = vld [vmem:[#allocation5 + $0x5c8] sm:$0xff]
    %v5000 = vld [vmem:[#allocation5 + $0x5d0] sm:$0xff]
    %v5001 = vld [vmem:[#allocation5 + $0x5d8] sm:$0xff]
    %v5002 = vld [vmem:[#allocation5 + $0x5e0] sm:$0xff]
    %v5003 = vld [vmem:[#allocation5 + $0x5e8] sm:$0xff]
    %v5004 = vld [vmem:[#allocation5 + $0x5f0] sm:$0xff]
    %v5005 = vld [vmem:[#allocation5 + $0x5f8] sm:$0xff]
    %v5006 = vld [vmem:[#allocation5 + $0x600] sm:$0xff]
    %v5007 = vld [vmem:[#allocation5 + $0x608] sm:$0xff]
    %v5008 = vld [vmem:[#allocation5 + $0x610] sm:$0xff]
    %v5009 = vld [vmem:[#allocation5 + $0x618] sm:$0xff]
    %v5010 = vld [vmem:[#allocation5 + $0x620] sm:$0xff]
    %v5011 = vld [vmem:[#allocation5 + $0x628] sm:$0xff]
    %v5012 = vld [vmem:[#allocation5 + $0x630] sm:$0xff]
    %v5013 = vld [vmem:[#allocation5 + $0x638] sm:$0xff]
    %v5014 = vld [vmem:[#allocation5 + $0x640] sm:$0xff]
    %v5015 = vld [vmem:[#allocation5 + $0x648] sm:$0xff]
    %v5016 = vld [vmem:[#allocation5 + $0x650] sm:$0xff]
    %v5017 = vld [vmem:[#allocation5 + $0x658] sm:$0xff]
    %v5018 = vld [vmem:[#allocation5 + $0x660] sm:$0xff]
    %v5019 = vld [vmem:[#allocation5 + $0x668] sm:$0xff]
    %v5020 = vld [vmem:[#allocation5 + $0x670] sm:$0xff]
    %v5021 = vld [vmem:[#allocation5 + $0x678] sm:$0xff]
    %v5022 = vld [vmem:[#allocation5 + $0x680] sm:$0xff]
    %v5023 = vld [vmem:[#allocation5 + $0x688] sm:$0xff]
    %v5024 = vld [vmem:[#allocation5 + $0x690] sm:$0xff]
    %v5025 = vld [vmem:[#allocation5 + $0x698] sm:$0xff]
    %v5026 = vld [vmem:[#allocation5 + $0x6a0] sm:$0xff]
    %v5027 = vld [vmem:[#allocation5 + $0x6a8] sm:$0xff]
    %v5028 = vld [vmem:[#allocation5 + $0x6b0] sm:$0xff]
    %v5029 = vld [vmem:[#allocation5 + $0x6b8] sm:$0xff]
    %v5030 = vld [vmem:[#allocation5 + $0x6c0] sm:$0xff]
    %v5031 = vld [vmem:[#allocation5 + $0x6c8] sm:$0xff]
    %v5032 = vld [vmem:[#allocation5 + $0x6d0] sm:$0xff]
    %v5033 = vld [vmem:[#allocation5 + $0x6d8] sm:$0xff]
    %v5034 = vld [vmem:[#allocation5 + $0x6e0] sm:$0xff]
    %v5035 = vld [vmem:[#allocation5 + $0x6e8] sm:$0xff]
    %v5036 = vld [vmem:[#allocation5 + $0x6f0] sm:$0xff]
    %v5037 = vld [vmem:[#allocation5 + $0x6f8] sm:$0xff]
    %v5038 = vld [vmem:[#allocation5 + $0x700] sm:$0xff]
    %v5039 = vld [vmem:[#allocation5 + $0x708] sm:$0xff]
    %v5040 = vld [vmem:[#allocation5 + $0x710] sm:$0xff]
    %v5041 = vld [vmem:[#allocation5 + $0x718] sm:$0xff]
    %v5042 = vld [vmem:[#allocation5 + $0x720] sm:$0xff]
    %v5043 = vld [vmem:[#allocation5 + $0x728] sm:$0xff]
    %v5044 = vld [vmem:[#allocation5 + $0x730] sm:$0xff]
    %v5045 = vld [vmem:[#allocation5 + $0x738] sm:$0xff]
    %v5046 = vld [vmem:[#allocation5 + $0x740] sm:$0xff]
    %v5047 = vld [vmem:[#allocation5 + $0x748] sm:$0xff]
    %v5048 = vld [vmem:[#allocation5 + $0x750] sm:$0xff]
    %v5049 = vld [vmem:[#allocation5 + $0x758] sm:$0xff]
    %v5050 = vld [vmem:[#allocation5 + $0x760] sm:$0xff]
    %v5051 = vld [vmem:[#allocation5 + $0x768] sm:$0xff]
    %v5052 = vld [vmem:[#allocation5 + $0x770] sm:$0xff]
    %v5053 = vld [vmem:[#allocation5 + $0x778] sm:$0xff]
    %v5054 = vld [vmem:[#allocation5 + $0x780] sm:$0xff]
    %v5055 = vld [vmem:[#allocation5 + $0x788] sm:$0xff]
    %v5056 = vld [vmem:[#allocation5 + $0x790] sm:$0xff]
    %v5057 = vld [vmem:[#allocation5 + $0x798] sm:$0xff]
    %v5058 = vld [vmem:[#allocation5 + $0x7a0] sm:$0xff]
    %v5059 = vld [vmem:[#allocation5 + $0x7a8] sm:$0xff]
    %v5060 = vld [vmem:[#allocation5 + $0x7b0] sm:$0xff]
    %v5061 = vld [vmem:[#allocation5 + $0x7b8] sm:$0xff]
    %v5062 = vld [vmem:[#allocation5 + $0x7c0] sm:$0xff]
    %v5063 = vld [vmem:[#allocation5 + $0x7c8] sm:$0xff]
    %v5064 = vld [vmem:[#allocation5 + $0x7d0] sm:$0xff]
    %v5065 = vld [vmem:[#allocation5 + $0x7d8] sm:$0xff]
    %v5066 = vld [vmem:[#allocation5 + $0x7e0] sm:$0xff]
    %v5067 = vld [vmem:[#allocation5 + $0x7e8] sm:$0xff]
    %v5068 = vld [vmem:[#allocation5 + $0x7f0] sm:$0xff]
    %v5069 = vld [vmem:[#allocation5 + $0x7f8] sm:$0xff]
    %v5070 = vld [vmem:[#allocation5 + $0x800] sm:$0xff]
    %v5071 = vld [vmem:[#allocation5 + $0x808] sm:$0xff]
    %v5072 = vld [vmem:[#allocation5 + $0x810] sm:$0xff]
    %v5073 = vld [vmem:[#allocation5 + $0x818] sm:$0xff]
    %v5074 = vld [vmem:[#allocation5 + $0x820] sm:$0xff]
    %v5075 = vld [vmem:[#allocation5 + $0x828] sm:$0xff]
    %v5076 = vld [vmem:[#allocation5 + $0x830] sm:$0xff]
    %v5077 = vld [vmem:[#allocation5 + $0x838] sm:$0xff]
    %v5078 = vld [vmem:[#allocation5 + $0x840] sm:$0xff]
    %v5079 = vld [vmem:[#allocation5 + $0x848] sm:$0xff]
    %v5080 = vld [vmem:[#allocation5 + $0x850] sm:$0xff]
    %v5081 = vld [vmem:[#allocation5 + $0x858] sm:$0xff]
    %v5082 = vld [vmem:[#allocation5 + $0x860] sm:$0xff]
    %v5083 = vld [vmem:[#allocation5 + $0x868] sm:$0xff]
    %v5084 = vld [vmem:[#allocation5 + $0x870] sm:$0xff]
    %v5085 = vld [vmem:[#allocation5 + $0x878] sm:$0xff]
    %v5086 = vld [vmem:[#allocation5 + $0x880] sm:$0xff]
    %v5087 = vld [vmem:[#allocation5 + $0x888] sm:$0xff]
    %v5088 = vld [vmem:[#allocation5 + $0x890] sm:$0xff]
    %v5089 = vld [vmem:[#allocation5 + $0x898] sm:$0xff]
    %v5090 = vld [vmem:[#allocation5 + $0x8a0] sm:$0xff]
    %v5091 = vld [vmem:[#allocation5 + $0x8a8] sm:$0xff]
    %v5092 = vld [vmem:[#allocation5 + $0x8b0] sm:$0xff]
    %v5093 = vld [vmem:[#allocation5 + $0x8b8] sm:$0xff]
    %v5094 = vld [vmem:[#allocation5 + $0x8c0] sm:$0xff]
    %v5095 = vld [vmem:[#allocation5 + $0x8c8] sm:$0xff]
    %v5096 = vld [vmem:[#allocation5 + $0x8d0] sm:$0xff]
    %v5097 = vld [vmem:[#allocation5 + $0x8d8] sm:$0xff]
    %v5098 = vld [vmem:[#allocation5 + $0x8e0] sm:$0xff]
    %v5099 = vld [vmem:[#allocation5 + $0x8e8] sm:$0xff]
    %v5100 = vld [vmem:[#allocation5 + $0x8f0] sm:$0xff]
    %v5101 = vld [vmem:[#allocation5 + $0x8f8] sm:$0xff]
    %v5102 = vld [vmem:[#allocation5 + $0x900] sm:$0xff]
    %v5103 = vld [vmem:[#allocation5 + $0x908] sm:$0xff]
    %v5104 = vld [vmem:[#allocation5 + $0x910] sm:$0xff]
    %v5105 = vld [vmem:[#allocation5 + $0x918] sm:$0xff]
    %v5106 = vld [vmem:[#allocation5 + $0x920] sm:$0xff]
    %v5107 = vld [vmem:[#allocation5 + $0x928] sm:$0xff]
    %v5108 = vld [vmem:[#allocation5 + $0x930] sm:$0xff]
    %v5109 = vld [vmem:[#allocation5 + $0x938] sm:$0xff]
    %v5110 = vld [vmem:[#allocation5 + $0x940] sm:$0xff]
    %v5111 = vld [vmem:[#allocation5 + $0x948] sm:$0xff]
    %v5112 = vld [vmem:[#allocation5 + $0x950] sm:$0xff]
    %v5113 = vld [vmem:[#allocation5 + $0x958] sm:$0xff]
    %v5114 = vld [vmem:[#allocation5 + $0x960] sm:$0xff]
    %v5115 = vld [vmem:[#allocation5 + $0x968] sm:$0xff]
    %v5116 = vld [vmem:[#allocation5 + $0x970] sm:$0xff]
    %v5117 = vld [vmem:[#allocation5 + $0x978] sm:$0xff]
    %v5118 = vld [vmem:[#allocation5 + $0x980] sm:$0xff]
    %v5119 = vld [vmem:[#allocation5 + $0x988] sm:$0xff]
    %v5120 = vld [vmem:[#allocation5 + $0x990] sm:$0xff]
    %v5121 = vld [vmem:[#allocation5 + $0x998] sm:$0xff]
    %v5122 = vld [vmem:[#allocation5 + $0x9a0] sm:$0xff]
    %v5123 = vld [vmem:[#allocation5 + $0x9a8] sm:$0xff]
    %v5124 = vld [vmem:[#allocation5 + $0x9b0] sm:$0xff]
    %v5125 = vld [vmem:[#allocation5 + $0x9b8] sm:$0xff]
    %v5126 = vld [vmem:[#allocation5 + $0x9c0] sm:$0xff]
    %v5127 = vld [vmem:[#allocation5 + $0x9c8] sm:$0xff]
    %v5128 = vld [vmem:[#allocation5 + $0x9d0] sm:$0xff]
    %v5129 = vld [vmem:[#allocation5 + $0x9d8] sm:$0xff]
    %v5130 = vld [vmem:[#allocation5 + $0x9e0] sm:$0xff]
    %v5131 = vld [vmem:[#allocation5 + $0x9e8] sm:$0xff]
    %v5132 = vld [vmem:[#allocation5 + $0x9f0] sm:$0xff]
    %v5133 = vld [vmem:[#allocation5 + $0x9f8] sm:$0xff]
    %v5134 = vld [vmem:[#allocation5 + $0xa00] sm:$0xff]
    %v5135 = vld [vmem:[#allocation5 + $0xa08] sm:$0xff]
    %v5136 = vld [vmem:[#allocation5 + $0xa10] sm:$0xff]
    %v5137 = vld [vmem:[#allocation5 + $0xa18] sm:$0xff]
    %v5138 = vld [vmem:[#allocation5 + $0xa20] sm:$0xff]
    %v5139 = vld [vmem:[#allocation5 + $0xa28] sm:$0xff]
    %v5140 = vld [vmem:[#allocation5 + $0xa30] sm:$0xff]
    %v5141 = vld [vmem:[#allocation5 + $0xa38] sm:$0xff]
    %v5142 = vld [vmem:[#allocation5 + $0xa40] sm:$0xff]
    %v5143 = vld [vmem:[#allocation5 + $0xa48] sm:$0xff]
    %v5144 = vld [vmem:[#allocation5 + $0xa50] sm:$0xff]
    %v5145 = vld [vmem:[#allocation5 + $0xa58] sm:$0xff]
    %v5146 = vld [vmem:[#allocation5 + $0xa60] sm:$0xff]
    %v5147 = vld [vmem:[#allocation5 + $0xa68] sm:$0xff]
    %v5148 = vld [vmem:[#allocation5 + $0xa70] sm:$0xff]
    %v5149 = vld [vmem:[#allocation5 + $0xa78] sm:$0xff]
    %v5150 = vld [vmem:[#allocation5 + $0xa80] sm:$0xff]
    %v5151 = vld [vmem:[#allocation5 + $0xa88] sm:$0xff]
    %v5152 = vld [vmem:[#allocation5 + $0xa90] sm:$0xff]
    %v5153 = vld [vmem:[#allocation5 + $0xa98] sm:$0xff]
    %v5154 = vld [vmem:[#allocation5 + $0xaa0] sm:$0xff]
    %v5155 = vld [vmem:[#allocation5 + $0xaa8] sm:$0xff]
    %v5156 = vld [vmem:[#allocation5 + $0xab0] sm:$0xff]
    %v5157 = vld [vmem:[#allocation5 + $0xab8] sm:$0xff]
    %v5158 = vld [vmem:[#allocation5 + $0xac0] sm:$0xff]
    %v5159 = vld [vmem:[#allocation5 + $0xac8] sm:$0xff]
    %v5160 = vld [vmem:[#allocation5 + $0xad0] sm:$0xff]
    %v5161 = vld [vmem:[#allocation5 + $0xad8] sm:$0xff]
    %v5162 = vld [vmem:[#allocation5 + $0xae0] sm:$0xff]
    %v5163 = vld [vmem:[#allocation5 + $0xae8] sm:$0xff]
    %v5164 = vld [vmem:[#allocation5 + $0xaf0] sm:$0xff]
    %v5165 = vld [vmem:[#allocation5 + $0xaf8] sm:$0xff]
    %v5166 = vld [vmem:[#allocation5 + $0xb00] sm:$0xff]
    %v5167 = vld [vmem:[#allocation5 + $0xb08] sm:$0xff]
    %v5168 = vld [vmem:[#allocation5 + $0xb10] sm:$0xff]
    %v5169 = vld [vmem:[#allocation5 + $0xb18] sm:$0xff]
    %v5170 = vld [vmem:[#allocation5 + $0xb20] sm:$0xff]
    %v5171 = vld [vmem:[#allocation5 + $0xb28] sm:$0xff]
    %v5172 = vld [vmem:[#allocation5 + $0xb30] sm:$0xff]
    %v5173 = vld [vmem:[#allocation5 + $0xb38] sm:$0xff]
    %v5174 = vld [vmem:[#allocation5 + $0xb40] sm:$0xff]
    %v5175 = vld [vmem:[#allocation5 + $0xb48] sm:$0xff]
    %v5176 = vld [vmem:[#allocation5 + $0xb50] sm:$0xff]
    %v5177 = vld [vmem:[#allocation5 + $0xb58] sm:$0xff]
    %v5178 = vld [vmem:[#allocation5 + $0xb60] sm:$0xff]
    %v5179 = vld [vmem:[#allocation5 + $0xb68] sm:$0xff]
    %v5180 = vld [vmem:[#allocation5 + $0xb70] sm:$0xff]
    %v5181 = vld [vmem:[#allocation5 + $0xb78] sm:$0xff]
    %v5182 = vld [vmem:[#allocation5 + $0xb80] sm:$0xff]
    %v5183 = vld [vmem:[#allocation5 + $0xb88] sm:$0xff]
    %v5184 = vld [vmem:[#allocation5 + $0xb90] sm:$0xff]
    %v5185 = vld [vmem:[#allocation5 + $0xb98] sm:$0xff]
    %v5186 = vld [vmem:[#allocation5 + $0xba0] sm:$0xff]
    %v5187 = vld [vmem:[#allocation5 + $0xba8] sm:$0xff]
    %v5188 = vld [vmem:[#allocation5 + $0xbb0] sm:$0xff]
    %v5189 = vld [vmem:[#allocation5 + $0xbb8] sm:$0xff]
    %v5190 = vld [vmem:[#allocation5 + $0xbc0] sm:$0xff]
    %v5191 = vld [vmem:[#allocation5 + $0xbc8] sm:$0xff]
    %v5192 = vld [vmem:[#allocation5 + $0xbd0] sm:$0xff]
    %v5193 = vld [vmem:[#allocation5 + $0xbd8] sm:$0xff]
    %v5194 = vld [vmem:[#allocation5 + $0xbe0] sm:$0xff]
    %v5195 = vld [vmem:[#allocation5 + $0xbe8] sm:$0xff]
    %v5196 = vld [vmem:[#allocation5 + $0xbf0] sm:$0xff]
    %v5197 = vld [vmem:[#allocation5 + $0xbf8] sm:$0xff]
    %v5198 = vld [vmem:[#allocation5 + $0xc00] sm:$0xff]
    %v5199 = vld [vmem:[#allocation5 + $0xc08] sm:$0xff]
    %v5200 = vld [vmem:[#allocation5 + $0xc10] sm:$0xff]
    %v5201 = vld [vmem:[#allocation5 + $0xc18] sm:$0xff]
    %v5202 = vld [vmem:[#allocation5 + $0xc20] sm:$0xff]
    %v5203 = vld [vmem:[#allocation5 + $0xc28] sm:$0xff]
    %v5204 = vld [vmem:[#allocation5 + $0xc30] sm:$0xff]
    %v5205 = vld [vmem:[#allocation5 + $0xc38] sm:$0xff]
    %v5206 = vld [vmem:[#allocation5 + $0xc40] sm:$0xff]
    %v5207 = vld [vmem:[#allocation5 + $0xc48] sm:$0xff]
    %v5208 = vld [vmem:[#allocation5 + $0xc50] sm:$0xff]
    %v5209 = vld [vmem:[#allocation5 + $0xc58] sm:$0xff]
    %v5210 = vld [vmem:[#allocation5 + $0xc60] sm:$0xff]
    %v5211 = vld [vmem:[#allocation5 + $0xc68] sm:$0xff]
    %v5212 = vld [vmem:[#allocation5 + $0xc70] sm:$0xff]
    %v5213 = vld [vmem:[#allocation5 + $0xc78] sm:$0xff]
    %v5214 = vld [vmem:[#allocation5 + $0xc80] sm:$0xff]
    %v5215 = vld [vmem:[#allocation5 + $0xc88] sm:$0xff]
    %v5216 = vld [vmem:[#allocation5 + $0xc90] sm:$0xff]
    %v5217 = vld [vmem:[#allocation5 + $0xc98] sm:$0xff]
    %v5218 = vld [vmem:[#allocation5 + $0xca0] sm:$0xff]
    %v5219 = vld [vmem:[#allocation5 + $0xca8] sm:$0xff]
    %v5220 = vld [vmem:[#allocation5 + $0xcb0] sm:$0xff]
    %v5221 = vld [vmem:[#allocation5 + $0xcb8] sm:$0xff]
    %v5222 = vld [vmem:[#allocation5 + $0xcc0] sm:$0xff]
    %v5223 = vld [vmem:[#allocation5 + $0xcc8] sm:$0xff]
    %v5224 = vld [vmem:[#allocation5 + $0xcd0] sm:$0xff]
    %v5225 = vld [vmem:[#allocation5 + $0xcd8] sm:$0xff]
    %v5226 = vld [vmem:[#allocation5 + $0xce0] sm:$0xff]
    %v5227 = vld [vmem:[#allocation5 + $0xce8] sm:$0xff]
    %v5228 = vld [vmem:[#allocation5 + $0xcf0] sm:$0xff]
    %v5229 = vld [vmem:[#allocation5 + $0xcf8] sm:$0xff]
    %v5230 = vld [vmem:[#allocation5 + $0xd00] sm:$0xff]
    %v5231 = vld [vmem:[#allocation5 + $0xd08] sm:$0xff]
    %v5232 = vld [vmem:[#allocation5 + $0xd10] sm:$0xff]
    %v5233 = vld [vmem:[#allocation5 + $0xd18] sm:$0xff]
    %v5234 = vld [vmem:[#allocation5 + $0xd20] sm:$0xff]
    %v5235 = vld [vmem:[#allocation5 + $0xd28] sm:$0xff]
    %v5236 = vld [vmem:[#allocation5 + $0xd30] sm:$0xff]
    %v5237 = vld [vmem:[#allocation5 + $0xd38] sm:$0xff]
    %v5238 = vld [vmem:[#allocation5 + $0xd40] sm:$0xff]
    %v5239 = vld [vmem:[#allocation5 + $0xd48] sm:$0xff]
    %v5240 = vld [vmem:[#allocation5 + $0xd50] sm:$0xff]
    %v5241 = vld [vmem:[#allocation5 + $0xd58] sm:$0xff]
    %v5242 = vld [vmem:[#allocation5 + $0xd60] sm:$0xff]
    %v5243 = vld [vmem:[#allocation5 + $0xd68] sm:$0xff]
    %v5244 = vld [vmem:[#allocation5 + $0xd70] sm:$0xff]
    %v5245 = vld [vmem:[#allocation5 + $0xd78] sm:$0xff]
    %v5246 = vld [vmem:[#allocation5 + $0xd80] sm:$0xff]
    %v5247 = vld [vmem:[#allocation5 + $0xd88] sm:$0xff]
    %v5248 = vld [vmem:[#allocation5 + $0xd90] sm:$0xff]
    %v5249 = vld [vmem:[#allocation5 + $0xd98] sm:$0xff]
    %v5250 = vld [vmem:[#allocation5 + $0xda0] sm:$0xff]
    %v5251 = vld [vmem:[#allocation5 + $0xda8] sm:$0xff]
    %v5252 = vld [vmem:[#allocation5 + $0xdb0] sm:$0xff]
    %v5253 = vld [vmem:[#allocation5 + $0xdb8] sm:$0xff]
    %v5254 = vld [vmem:[#allocation5 + $0xdc0] sm:$0xff]
    %v5255 = vld [vmem:[#allocation5 + $0xdc8] sm:$0xff]
    %v5256 = vld [vmem:[#allocation5 + $0xdd0] sm:$0xff]
    %v5257 = vld [vmem:[#allocation5 + $0xdd8] sm:$0xff]
    %v5258 = vld [vmem:[#allocation5 + $0xde0] sm:$0xff]
    %v5259 = vld [vmem:[#allocation5 + $0xde8] sm:$0xff]
    %v5260 = vld [vmem:[#allocation5 + $0xdf0] sm:$0xff]
    %v5261 = vld [vmem:[#allocation5 + $0xdf8] sm:$0xff]
    %v5262 = vld [vmem:[#allocation5 + $0xe00] sm:$0xff]
    %v5263 = vld [vmem:[#allocation5 + $0xe08] sm:$0xff]
    %v5264 = vld [vmem:[#allocation5 + $0xe10] sm:$0xff]
    %v5265 = vld [vmem:[#allocation5 + $0xe18] sm:$0xff]
    %v5266 = vld [vmem:[#allocation5 + $0xe20] sm:$0xff]
    %v5267 = vld [vmem:[#allocation5 + $0xe28] sm:$0xff]
    %v5268 = vld [vmem:[#allocation5 + $0xe30] sm:$0xff]
    %v5269 = vld [vmem:[#allocation5 + $0xe38] sm:$0xff]
    %v5270 = vld [vmem:[#allocation5 + $0xe40] sm:$0xff]
    %v5271 = vld [vmem:[#allocation5 + $0xe48] sm:$0xff]
    %v5272 = vld [vmem:[#allocation5 + $0xe50] sm:$0xff]
    %v5273 = vld [vmem:[#allocation5 + $0xe58] sm:$0xff]
    %v5274 = vld [vmem:[#allocation5 + $0xe60] sm:$0xff]
    %v5275 = vld [vmem:[#allocation5 + $0xe68] sm:$0xff]
    %v5276 = vld [vmem:[#allocation5 + $0xe70] sm:$0xff]
    %v5277 = vld [vmem:[#allocation5 + $0xe78] sm:$0xff]
    %v5278 = vld [vmem:[#allocation5 + $0xe80] sm:$0xff]
    %v5279 = vld [vmem:[#allocation5 + $0xe88] sm:$0xff]
    %v5280 = vld [vmem:[#allocation5 + $0xe90] sm:$0xff]
    %v5281 = vld [vmem:[#allocation5 + $0xe98] sm:$0xff]
    %v5282 = vld [vmem:[#allocation5 + $0xea0] sm:$0xff]
    %v5283 = vld [vmem:[#allocation5 + $0xea8] sm:$0xff]
    %v5284 = vld [vmem:[#allocation5 + $0xeb0] sm:$0xff]
    %v5285 = vld [vmem:[#allocation5 + $0xeb8] sm:$0xff]
    %v5286 = vld [vmem:[#allocation5 + $0xec0] sm:$0xff]
    %v5287 = vld [vmem:[#allocation5 + $0xec8] sm:$0xff]
    %v5288 = vld [vmem:[#allocation5 + $0xed0] sm:$0xff]
    %v5289 = vld [vmem:[#allocation5 + $0xed8] sm:$0xff]
    %v5290 = vld [vmem:[#allocation5 + $0xee0] sm:$0xff]
    %v5291 = vld [vmem:[#allocation5 + $0xee8] sm:$0xff]
    %v5292 = vld [vmem:[#allocation5 + $0xef0] sm:$0xff]
    %v5293 = vld [vmem:[#allocation5 + $0xef8] sm:$0xff]
    %v5294 = vld [vmem:[#allocation5 + $0xf00] sm:$0xff]
    %v5295 = vld [vmem:[#allocation5 + $0xf08] sm:$0xff]
    %v5296 = vld [vmem:[#allocation5 + $0xf10] sm:$0xff]
    %v5297 = vld [vmem:[#allocation5 + $0xf18] sm:$0xff]
    %v5298 = vld [vmem:[#allocation5 + $0xf20] sm:$0xff]
    %v5299 = vld [vmem:[#allocation5 + $0xf28] sm:$0xff]
    %v5300 = vld [vmem:[#allocation5 + $0xf30] sm:$0xff]
    %v5301 = vld [vmem:[#allocation5 + $0xf38] sm:$0xff]
    %v5302 = vld [vmem:[#allocation5 + $0xf40] sm:$0xff]
    %v5303 = vld [vmem:[#allocation5 + $0xf48] sm:$0xff]
    %v5304 = vld [vmem:[#allocation5 + $0xf50] sm:$0xff]
    %v5305 = vld [vmem:[#allocation5 + $0xf58] sm:$0xff]
    %v5306 = vld [vmem:[#allocation5 + $0xf60] sm:$0xff]
    %v5307 = vld [vmem:[#allocation5 + $0xf68] sm:$0xff]
    %v5308 = vld [vmem:[#allocation5 + $0xf70] sm:$0xff]
    %v5309 = vld [vmem:[#allocation5 + $0xf78] sm:$0xff]
    %v5310 = vld [vmem:[#allocation5 + $0xf80] sm:$0xff]
    %v5311 = vld [vmem:[#allocation5 + $0xf88] sm:$0xff]
    %v5312 = vld [vmem:[#allocation5 + $0xf90] sm:$0xff]
    %v5313 = vld [vmem:[#allocation5 + $0xf98] sm:$0xff]
    %v5314 = vld [vmem:[#allocation5 + $0xfa0] sm:$0xff]
    %v5315 = vld [vmem:[#allocation5 + $0xfa8] sm:$0xff]
    %v5316 = vld [vmem:[#allocation5 + $0xfb0] sm:$0xff]
    %v5317 = vld [vmem:[#allocation5 + $0xfb8] sm:$0xff]
    %v5318 = vld [vmem:[#allocation5 + $0xfc0] sm:$0xff]
    %v5319 = vld [vmem:[#allocation5 + $0xfc8] sm:$0xff]
    %v5320 = vld [vmem:[#allocation5 + $0xfd0] sm:$0xff]
    %v5321 = vld [vmem:[#allocation5 + $0xfd8] sm:$0xff]
    %v5322 = vld [vmem:[#allocation5 + $0xfe0] sm:$0xff]
    %v5323 = vld [vmem:[#allocation5 + $0xfe8] sm:$0xff]
    %v5324 = vld [vmem:[#allocation5 + $0xff0] sm:$0xff]
    %v5325 = vld [vmem:[#allocation5 + $0xff8] sm:$0xff]
    %v5326 = vld [vmem:[#allocation21] sm:$0xff]
    %v5328 = vperm.slane %v5326, 0
    %v5329 = vperm.slane %v5326, 1
    %v5330 = vperm.slane %v5326, 2
    %v5331 = vperm.slane %v5326, 3
    %v5332 = vperm.slane %v5326, 4
    %v5333 = vperm.slane %v5326, 5
    %v5334 = vperm.slane %v5326, 6
    %v5335 = vperm.slane %v5326, 7
    %v5856 = vunpack.c.l.b16 %v4814
    %v5857 = vunpack.c.h.b16 %v4814
    %v5858 = vunpack.c.l.b16 %v4815
    %v5859 = vunpack.c.h.b16 %v4815
    %v5860 = vunpack.c.l.b16 %v4816
    %v5861 = vunpack.c.h.b16 %v4816
    %v5862 = vunpack.c.l.b16 %v4817
    %v5863 = vunpack.c.h.b16 %v4817
    %v5864 = vunpack.c.l.b16 %v4818
    %v5865 = vunpack.c.h.b16 %v4818
    %v5866 = vunpack.c.l.b16 %v4819
    %v5867 = vunpack.c.h.b16 %v4819
    %v5868 = vunpack.c.l.b16 %v4820
    %v5869 = vunpack.c.h.b16 %v4820
    %v5870 = vunpack.c.l.b16 %v4821
    %v5871 = vunpack.c.h.b16 %v4821
    %v5872 = vunpack.c.l.b16 %v4822
    %v5873 = vunpack.c.h.b16 %v4822
    %v5874 = vunpack.c.l.b16 %v4823
    %v5875 = vunpack.c.h.b16 %v4823
    %v5876 = vunpack.c.l.b16 %v4824
    %v5877 = vunpack.c.h.b16 %v4824
    %v5878 = vunpack.c.l.b16 %v4825
    %v5879 = vunpack.c.h.b16 %v4825
    %v5880 = vunpack.c.l.b16 %v4826
    %v5881 = vunpack.c.h.b16 %v4826
    %v5882 = vunpack.c.l.b16 %v4827
    %v5883 = vunpack.c.h.b16 %v4827
    %v5884 = vunpack.c.l.b16 %v4828
    %v5885 = vunpack.c.h.b16 %v4828
    %v5886 = vunpack.c.l.b16 %v4829
    %v5887 = vunpack.c.h.b16 %v4829
    %v5888 = vunpack.c.l.b16 %v4830
    %v5889 = vunpack.c.h.b16 %v4830
    %v5890 = vunpack.c.l.b16 %v4831
    %v5891 = vunpack.c.h.b16 %v4831
    %v5892 = vunpack.c.l.b16 %v4832
    %v5893 = vunpack.c.h.b16 %v4832
    %v5894 = vunpack.c.l.b16 %v4833
    %v5895 = vunpack.c.h.b16 %v4833
    %v5896 = vunpack.c.l.b16 %v4834
    %v5897 = vunpack.c.h.b16 %v4834
    %v5898 = vunpack.c.l.b16 %v4835
    %v5899 = vunpack.c.h.b16 %v4835
    %v5900 = vunpack.c.l.b16 %v4836
    %v5901 = vunpack.c.h.b16 %v4836
    %v5902 = vunpack.c.l.b16 %v4837
    %v5903 = vunpack.c.h.b16 %v4837
    %v5904 = vunpack.c.l.b16 %v4838
    %v5905 = vunpack.c.h.b16 %v4838
    %v5906 = vunpack.c.l.b16 %v4839
    %v5907 = vunpack.c.h.b16 %v4839
    %v5908 = vunpack.c.l.b16 %v4840
    %v5909 = vunpack.c.h.b16 %v4840
    %v5910 = vunpack.c.l.b16 %v4841
    %v5911 = vunpack.c.h.b16 %v4841
    %v5912 = vunpack.c.l.b16 %v4842
    %v5913 = vunpack.c.h.b16 %v4842
    %v5914 = vunpack.c.l.b16 %v4843
    %v5915 = vunpack.c.h.b16 %v4843
    %v5916 = vunpack.c.l.b16 %v4844
    %v5917 = vunpack.c.h.b16 %v4844
    %v5918 = vunpack.c.l.b16 %v4845
    %v5919 = vunpack.c.h.b16 %v4845
    %v5920 = vunpack.c.l.b16 %v4846
    %v5921 = vunpack.c.h.b16 %v4846
    %v5922 = vunpack.c.l.b16 %v4847
    %v5923 = vunpack.c.h.b16 %v4847
    %v5924 = vunpack.c.l.b16 %v4848
    %v5925 = vunpack.c.h.b16 %v4848
    %v5926 = vunpack.c.l.b16 %v4849
    %v5927 = vunpack.c.h.b16 %v4849
    %v5928 = vunpack.c.l.b16 %v4850
    %v5929 = vunpack.c.h.b16 %v4850
    %v5930 = vunpack.c.l.b16 %v4851
    %v5931 = vunpack.c.h.b16 %v4851
    %v5932 = vunpack.c.l.b16 %v4852
    %v5933 = vunpack.c.h.b16 %v4852
    %v5934 = vunpack.c.l.b16 %v4853
    %v5935 = vunpack.c.h.b16 %v4853
    %v5936 = vunpack.c.l.b16 %v4854
    %v5937 = vunpack.c.h.b16 %v4854
    %v5938 = vunpack.c.l.b16 %v4855
    %v5939 = vunpack.c.h.b16 %v4855
    %v5940 = vunpack.c.l.b16 %v4856
    %v5941 = vunpack.c.h.b16 %v4856
    %v5942 = vunpack.c.l.b16 %v4857
    %v5943 = vunpack.c.h.b16 %v4857
    %v5944 = vunpack.c.l.b16 %v4858
    %v5945 = vunpack.c.h.b16 %v4858
    %v5946 = vunpack.c.l.b16 %v4859
    %v5947 = vunpack.c.h.b16 %v4859
    %v5948 = vunpack.c.l.b16 %v4860
    %v5949 = vunpack.c.h.b16 %v4860
    %v5950 = vunpack.c.l.b16 %v4861
    %v5951 = vunpack.c.h.b16 %v4861
    %v5952 = vunpack.c.l.b16 %v4862
    %v5953 = vunpack.c.h.b16 %v4862
    %v5954 = vunpack.c.l.b16 %v4863
    %v5955 = vunpack.c.h.b16 %v4863
    %v5956 = vunpack.c.l.b16 %v4864
    %v5957 = vunpack.c.h.b16 %v4864
    %v5958 = vunpack.c.l.b16 %v4865
    %v5959 = vunpack.c.h.b16 %v4865
    %v5960 = vunpack.c.l.b16 %v4866
    %v5961 = vunpack.c.h.b16 %v4866
    %v5962 = vunpack.c.l.b16 %v4867
    %v5963 = vunpack.c.h.b16 %v4867
    %v5964 = vunpack.c.l.b16 %v4868
    %v5965 = vunpack.c.h.b16 %v4868
    %v5966 = vunpack.c.l.b16 %v4869
    %v5967 = vunpack.c.h.b16 %v4869
    %v5968 = vunpack.c.l.b16 %v4870
    %v5969 = vunpack.c.h.b16 %v4870
    %v5970 = vunpack.c.l.b16 %v4871
    %v5971 = vunpack.c.h.b16 %v4871
    %v5972 = vunpack.c.l.b16 %v4872
    %v5973 = vunpack.c.h.b16 %v4872
    %v5974 = vunpack.c.l.b16 %v4873
    %v5975 = vunpack.c.h.b16 %v4873
    %v5976 = vunpack.c.l.b16 %v4874
    %v5977 = vunpack.c.h.b16 %v4874
    %v5978 = vunpack.c.l.b16 %v4875
    %v5979 = vunpack.c.h.b16 %v4875
    %v5980 = vunpack.c.l.b16 %v4876
    %v5981 = vunpack.c.h.b16 %v4876
    %v5982 = vunpack.c.l.b16 %v4877
    %v5983 = vunpack.c.h.b16 %v4877
    %v5984 = vunpack.c.l.b16 %v4878
    %v5985 = vunpack.c.h.b16 %v4878
    %v5986 = vunpack.c.l.b16 %v4879
    %v5987 = vunpack.c.h.b16 %v4879
    %v5988 = vunpack.c.l.b16 %v4880
    %v5989 = vunpack.c.h.b16 %v4880
    %v5990 = vunpack.c.l.b16 %v4881
    %v5991 = vunpack.c.h.b16 %v4881
    %v5992 = vunpack.c.l.b16 %v4882
    %v5993 = vunpack.c.h.b16 %v4882
    %v5994 = vunpack.c.l.b16 %v4883
    %v5995 = vunpack.c.h.b16 %v4883
    %v5996 = vunpack.c.l.b16 %v4884
    %v5997 = vunpack.c.h.b16 %v4884
    %v5998 = vunpack.c.l.b16 %v4885
    %v5999 = vunpack.c.h.b16 %v4885
    %v6000 = vunpack.c.l.b16 %v4886
    %v6001 = vunpack.c.h.b16 %v4886
    %v6002 = vunpack.c.l.b16 %v4887
    %v6003 = vunpack.c.h.b16 %v4887
    %v6004 = vunpack.c.l.b16 %v4888
    %v6005 = vunpack.c.h.b16 %v4888
    %v6006 = vunpack.c.l.b16 %v4889
    %v6007 = vunpack.c.h.b16 %v4889
    %v6008 = vunpack.c.l.b16 %v4890
    %v6009 = vunpack.c.h.b16 %v4890
    %v6010 = vunpack.c.l.b16 %v4891
    %v6011 = vunpack.c.h.b16 %v4891
    %v6012 = vunpack.c.l.b16 %v4892
    %v6013 = vunpack.c.h.b16 %v4892
    %v6014 = vunpack.c.l.b16 %v4893
    %v6015 = vunpack.c.h.b16 %v4893
    %v6016 = vunpack.c.l.b16 %v4894
    %v6017 = vunpack.c.h.b16 %v4894
    %v6018 = vunpack.c.l.b16 %v4895
    %v6019 = vunpack.c.h.b16 %v4895
    %v6020 = vunpack.c.l.b16 %v4896
    %v6021 = vunpack.c.h.b16 %v4896
    %v6022 = vunpack.c.l.b16 %v4897
    %v6023 = vunpack.c.h.b16 %v4897
    %v6024 = vunpack.c.l.b16 %v4898
    %v6025 = vunpack.c.h.b16 %v4898
    %v6026 = vunpack.c.l.b16 %v4899
    %v6027 = vunpack.c.h.b16 %v4899
    %v6028 = vunpack.c.l.b16 %v4900
    %v6029 = vunpack.c.h.b16 %v4900
    %v6030 = vunpack.c.l.b16 %v4901
    %v6031 = vunpack.c.h.b16 %v4901
    %v6032 = vunpack.c.l.b16 %v4902
    %v6033 = vunpack.c.h.b16 %v4902
    %v6034 = vunpack.c.l.b16 %v4903
    %v6035 = vunpack.c.h.b16 %v4903
    %v6036 = vunpack.c.l.b16 %v4904
    %v6037 = vunpack.c.h.b16 %v4904
    %v6038 = vunpack.c.l.b16 %v4905
    %v6039 = vunpack.c.h.b16 %v4905
    %v6040 = vunpack.c.l.b16 %v4906
    %v6041 = vunpack.c.h.b16 %v4906
    %v6042 = vunpack.c.l.b16 %v4907
    %v6043 = vunpack.c.h.b16 %v4907
    %v6044 = vunpack.c.l.b16 %v4908
    %v6045 = vunpack.c.h.b16 %v4908
    %v6046 = vunpack.c.l.b16 %v4909
    %v6047 = vunpack.c.h.b16 %v4909
    %v6048 = vunpack.c.l.b16 %v4910
    %v6049 = vunpack.c.h.b16 %v4910
    %v6050 = vunpack.c.l.b16 %v4911
    %v6051 = vunpack.c.h.b16 %v4911
    %v6052 = vunpack.c.l.b16 %v4912
    %v6053 = vunpack.c.h.b16 %v4912
    %v6054 = vunpack.c.l.b16 %v4913
    %v6055 = vunpack.c.h.b16 %v4913
    %v6056 = vunpack.c.l.b16 %v4914
    %v6057 = vunpack.c.h.b16 %v4914
    %v6058 = vunpack.c.l.b16 %v4915
    %v6059 = vunpack.c.h.b16 %v4915
    %v6060 = vunpack.c.l.b16 %v4916
    %v6061 = vunpack.c.h.b16 %v4916
    %v6062 = vunpack.c.l.b16 %v4917
    %v6063 = vunpack.c.h.b16 %v4917
    %v6064 = vunpack.c.l.b16 %v4918
    %v6065 = vunpack.c.h.b16 %v4918
    %v6066 = vunpack.c.l.b16 %v4919
    %v6067 = vunpack.c.h.b16 %v4919
    %v6068 = vunpack.c.l.b16 %v4920
    %v6069 = vunpack.c.h.b16 %v4920
    %v6070 = vunpack.c.l.b16 %v4921
    %v6071 = vunpack.c.h.b16 %v4921
    %v6072 = vunpack.c.l.b16 %v4922
    %v6073 = vunpack.c.h.b16 %v4922
    %v6074 = vunpack.c.l.b16 %v4923
    %v6075 = vunpack.c.h.b16 %v4923
    %v6076 = vunpack.c.l.b16 %v4924
    %v6077 = vunpack.c.h.b16 %v4924
    %v6078 = vunpack.c.l.b16 %v4925
    %v6079 = vunpack.c.h.b16 %v4925
    %v6080 = vunpack.c.l.b16 %v4926
    %v6081 = vunpack.c.h.b16 %v4926
    %v6082 = vunpack.c.l.b16 %v4927
    %v6083 = vunpack.c.h.b16 %v4927
    %v6084 = vunpack.c.l.b16 %v4928
    %v6085 = vunpack.c.h.b16 %v4928
    %v6086 = vunpack.c.l.b16 %v4929
    %v6087 = vunpack.c.h.b16 %v4929
    %v6088 = vunpack.c.l.b16 %v4930
    %v6089 = vunpack.c.h.b16 %v4930
    %v6090 = vunpack.c.l.b16 %v4931
    %v6091 = vunpack.c.h.b16 %v4931
    %v6092 = vunpack.c.l.b16 %v4932
    %v6093 = vunpack.c.h.b16 %v4932
    %v6094 = vunpack.c.l.b16 %v4933
    %v6095 = vunpack.c.h.b16 %v4933
    %v6096 = vunpack.c.l.b16 %v4934
    %v6097 = vunpack.c.h.b16 %v4934
    %v6098 = vunpack.c.l.b16 %v4935
    %v6099 = vunpack.c.h.b16 %v4935
    %v6100 = vunpack.c.l.b16 %v4936
    %v6101 = vunpack.c.h.b16 %v4936
    %v6102 = vunpack.c.l.b16 %v4937
    %v6103 = vunpack.c.h.b16 %v4937
    %v6104 = vunpack.c.l.b16 %v4938
    %v6105 = vunpack.c.h.b16 %v4938
    %v6106 = vunpack.c.l.b16 %v4939
    %v6107 = vunpack.c.h.b16 %v4939
    %v6108 = vunpack.c.l.b16 %v4940
    %v6109 = vunpack.c.h.b16 %v4940
    %v6110 = vunpack.c.l.b16 %v4941
    %v6111 = vunpack.c.h.b16 %v4941
    %v6112 = vunpack.c.l.b16 %v4942
    %v6113 = vunpack.c.h.b16 %v4942
    %v6114 = vunpack.c.l.b16 %v4943
    %v6115 = vunpack.c.h.b16 %v4943
    %v6116 = vunpack.c.l.b16 %v4944
    %v6117 = vunpack.c.h.b16 %v4944
    %v6118 = vunpack.c.l.b16 %v4945
    %v6119 = vunpack.c.h.b16 %v4945
    %v6120 = vunpack.c.l.b16 %v4946
    %v6121 = vunpack.c.h.b16 %v4946
    %v6122 = vunpack.c.l.b16 %v4947
    %v6123 = vunpack.c.h.b16 %v4947
    %v6124 = vunpack.c.l.b16 %v4948
    %v6125 = vunpack.c.h.b16 %v4948
    %v6126 = vunpack.c.l.b16 %v4949
    %v6127 = vunpack.c.h.b16 %v4949
    %v6128 = vunpack.c.l.b16 %v4950
    %v6129 = vunpack.c.h.b16 %v4950
    %v6130 = vunpack.c.l.b16 %v4951
    %v6131 = vunpack.c.h.b16 %v4951
    %v6132 = vunpack.c.l.b16 %v4952
    %v6133 = vunpack.c.h.b16 %v4952
    %v6134 = vunpack.c.l.b16 %v4953
    %v6135 = vunpack.c.h.b16 %v4953
    %v6136 = vunpack.c.l.b16 %v4954
    %v6137 = vunpack.c.h.b16 %v4954
    %v6138 = vunpack.c.l.b16 %v4955
    %v6139 = vunpack.c.h.b16 %v4955
    %v6140 = vunpack.c.l.b16 %v4956
    %v6141 = vunpack.c.h.b16 %v4956
    %v6142 = vunpack.c.l.b16 %v4957
    %v6143 = vunpack.c.h.b16 %v4957
    %v6144 = vunpack.c.l.b16 %v4958
    %v6145 = vunpack.c.h.b16 %v4958
    %v6146 = vunpack.c.l.b16 %v4959
    %v6147 = vunpack.c.h.b16 %v4959
    %v6148 = vunpack.c.l.b16 %v4960
    %v6149 = vunpack.c.h.b16 %v4960
    %v6150 = vunpack.c.l.b16 %v4961
    %v6151 = vunpack.c.h.b16 %v4961
    %v6152 = vunpack.c.l.b16 %v4962
    %v6153 = vunpack.c.h.b16 %v4962
    %v6154 = vunpack.c.l.b16 %v4963
    %v6155 = vunpack.c.h.b16 %v4963
    %v6156 = vunpack.c.l.b16 %v4964
    %v6157 = vunpack.c.h.b16 %v4964
    %v6158 = vunpack.c.l.b16 %v4965
    %v6159 = vunpack.c.h.b16 %v4965
    %v6160 = vunpack.c.l.b16 %v4966
    %v6161 = vunpack.c.h.b16 %v4966
    %v6162 = vunpack.c.l.b16 %v4967
    %v6163 = vunpack.c.h.b16 %v4967
    %v6164 = vunpack.c.l.b16 %v4968
    %v6165 = vunpack.c.h.b16 %v4968
    %v6166 = vunpack.c.l.b16 %v4969
    %v6167 = vunpack.c.h.b16 %v4969
    %v6168 = vunpack.c.l.b16 %v4970
    %v6169 = vunpack.c.h.b16 %v4970
    %v6170 = vunpack.c.l.b16 %v4971
    %v6171 = vunpack.c.h.b16 %v4971
    %v6172 = vunpack.c.l.b16 %v4972
    %v6173 = vunpack.c.h.b16 %v4972
    %v6174 = vunpack.c.l.b16 %v4973
    %v6175 = vunpack.c.h.b16 %v4973
    %v6176 = vunpack.c.l.b16 %v4974
    %v6177 = vunpack.c.h.b16 %v4974
    %v6178 = vunpack.c.l.b16 %v4975
    %v6179 = vunpack.c.h.b16 %v4975
    %v6180 = vunpack.c.l.b16 %v4976
    %v6181 = vunpack.c.h.b16 %v4976
    %v6182 = vunpack.c.l.b16 %v4977
    %v6183 = vunpack.c.h.b16 %v4977
    %v6184 = vunpack.c.l.b16 %v4978
    %v6185 = vunpack.c.h.b16 %v4978
    %v6186 = vunpack.c.l.b16 %v4979
    %v6187 = vunpack.c.h.b16 %v4979
    %v6188 = vunpack.c.l.b16 %v4980
    %v6189 = vunpack.c.h.b16 %v4980
    %v6190 = vunpack.c.l.b16 %v4981
    %v6191 = vunpack.c.h.b16 %v4981
    %v6192 = vunpack.c.l.b16 %v4982
    %v6193 = vunpack.c.h.b16 %v4982
    %v6194 = vunpack.c.l.b16 %v4983
    %v6195 = vunpack.c.h.b16 %v4983
    %v6196 = vunpack.c.l.b16 %v4984
    %v6197 = vunpack.c.h.b16 %v4984
    %v6198 = vunpack.c.l.b16 %v4985
    %v6199 = vunpack.c.h.b16 %v4985
    %v6200 = vunpack.c.l.b16 %v4986
    %v6201 = vunpack.c.h.b16 %v4986
    %v6202 = vunpack.c.l.b16 %v4987
    %v6203 = vunpack.c.h.b16 %v4987
    %v6204 = vunpack.c.l.b16 %v4988
    %v6205 = vunpack.c.h.b16 %v4988
    %v6206 = vunpack.c.l.b16 %v4989
    %v6207 = vunpack.c.h.b16 %v4989
    %v6208 = vunpack.c.l.b16 %v4990
    %v6209 = vunpack.c.h.b16 %v4990
    %v6210 = vunpack.c.l.b16 %v4991
    %v6211 = vunpack.c.h.b16 %v4991
    %v6212 = vunpack.c.l.b16 %v4992
    %v6213 = vunpack.c.h.b16 %v4992
    %v6214 = vunpack.c.l.b16 %v4993
    %v6215 = vunpack.c.h.b16 %v4993
    %v6216 = vunpack.c.l.b16 %v4994
    %v6217 = vunpack.c.h.b16 %v4994
    %v6218 = vunpack.c.l.b16 %v4995
    %v6219 = vunpack.c.h.b16 %v4995
    %v6220 = vunpack.c.l.b16 %v4996
    %v6221 = vunpack.c.h.b16 %v4996
    %v6222 = vunpack.c.l.b16 %v4997
    %v6223 = vunpack.c.h.b16 %v4997
    %v6224 = vunpack.c.l.b16 %v4998
    %v6225 = vunpack.c.h.b16 %v4998
    %v6226 = vunpack.c.l.b16 %v4999
    %v6227 = vunpack.c.h.b16 %v4999
    %v6228 = vunpack.c.l.b16 %v5000
    %v6229 = vunpack.c.h.b16 %v5000
    %v6230 = vunpack.c.l.b16 %v5001
    %v6231 = vunpack.c.h.b16 %v5001
    %v6232 = vunpack.c.l.b16 %v5002
    %v6233 = vunpack.c.h.b16 %v5002
    %v6234 = vunpack.c.l.b16 %v5003
    %v6235 = vunpack.c.h.b16 %v5003
    %v6236 = vunpack.c.l.b16 %v5004
    %v6237 = vunpack.c.h.b16 %v5004
    %v6238 = vunpack.c.l.b16 %v5005
    %v6239 = vunpack.c.h.b16 %v5005
    %v6240 = vunpack.c.l.b16 %v5006
    %v6241 = vunpack.c.h.b16 %v5006
    %v6242 = vunpack.c.l.b16 %v5007
    %v6243 = vunpack.c.h.b16 %v5007
    %v6244 = vunpack.c.l.b16 %v5008
    %v6245 = vunpack.c.h.b16 %v5008
    %v6246 = vunpack.c.l.b16 %v5009
    %v6247 = vunpack.c.h.b16 %v5009
    %v6248 = vunpack.c.l.b16 %v5010
    %v6249 = vunpack.c.h.b16 %v5010
    %v6250 = vunpack.c.l.b16 %v5011
    %v6251 = vunpack.c.h.b16 %v5011
    %v6252 = vunpack.c.l.b16 %v5012
    %v6253 = vunpack.c.h.b16 %v5012
    %v6254 = vunpack.c.l.b16 %v5013
    %v6255 = vunpack.c.h.b16 %v5013
    %v6256 = vunpack.c.l.b16 %v5014
    %v6257 = vunpack.c.h.b16 %v5014
    %v6258 = vunpack.c.l.b16 %v5015
    %v6259 = vunpack.c.h.b16 %v5015
    %v6260 = vunpack.c.l.b16 %v5016
    %v6261 = vunpack.c.h.b16 %v5016
    %v6262 = vunpack.c.l.b16 %v5017
    %v6263 = vunpack.c.h.b16 %v5017
    %v6264 = vunpack.c.l.b16 %v5018
    %v6265 = vunpack.c.h.b16 %v5018
    %v6266 = vunpack.c.l.b16 %v5019
    %v6267 = vunpack.c.h.b16 %v5019
    %v6268 = vunpack.c.l.b16 %v5020
    %v6269 = vunpack.c.h.b16 %v5020
    %v6270 = vunpack.c.l.b16 %v5021
    %v6271 = vunpack.c.h.b16 %v5021
    %v6272 = vunpack.c.l.b16 %v5022
    %v6273 = vunpack.c.h.b16 %v5022
    %v6274 = vunpack.c.l.b16 %v5023
    %v6275 = vunpack.c.h.b16 %v5023
    %v6276 = vunpack.c.l.b16 %v5024
    %v6277 = vunpack.c.h.b16 %v5024
    %v6278 = vunpack.c.l.b16 %v5025
    %v6279 = vunpack.c.h.b16 %v5025
    %v6280 = vunpack.c.l.b16 %v5026
    %v6281 = vunpack.c.h.b16 %v5026
    %v6282 = vunpack.c.l.b16 %v5027
    %v6283 = vunpack.c.h.b16 %v5027
    %v6284 = vunpack.c.l.b16 %v5028
    %v6285 = vunpack.c.h.b16 %v5028
    %v6286 = vunpack.c.l.b16 %v5029
    %v6287 = vunpack.c.h.b16 %v5029
    %v6288 = vunpack.c.l.b16 %v5030
    %v6289 = vunpack.c.h.b16 %v5030
    %v6290 = vunpack.c.l.b16 %v5031
    %v6291 = vunpack.c.h.b16 %v5031
    %v6292 = vunpack.c.l.b16 %v5032
    %v6293 = vunpack.c.h.b16 %v5032
    %v6294 = vunpack.c.l.b16 %v5033
    %v6295 = vunpack.c.h.b16 %v5033
    %v6296 = vunpack.c.l.b16 %v5034
    %v6297 = vunpack.c.h.b16 %v5034
    %v6298 = vunpack.c.l.b16 %v5035
    %v6299 = vunpack.c.h.b16 %v5035
    %v6300 = vunpack.c.l.b16 %v5036
    %v6301 = vunpack.c.h.b16 %v5036
    %v6302 = vunpack.c.l.b16 %v5037
    %v6303 = vunpack.c.h.b16 %v5037
    %v6304 = vunpack.c.l.b16 %v5038
    %v6305 = vunpack.c.h.b16 %v5038
    %v6306 = vunpack.c.l.b16 %v5039
    %v6307 = vunpack.c.h.b16 %v5039
    %v6308 = vunpack.c.l.b16 %v5040
    %v6309 = vunpack.c.h.b16 %v5040
    %v6310 = vunpack.c.l.b16 %v5041
    %v6311 = vunpack.c.h.b16 %v5041
    %v6312 = vunpack.c.l.b16 %v5042
    %v6313 = vunpack.c.h.b16 %v5042
    %v6314 = vunpack.c.l.b16 %v5043
    %v6315 = vunpack.c.h.b16 %v5043
    %v6316 = vunpack.c.l.b16 %v5044
    %v6317 = vunpack.c.h.b16 %v5044
    %v6318 = vunpack.c.l.b16 %v5045
    %v6319 = vunpack.c.h.b16 %v5045
    %v6320 = vunpack.c.l.b16 %v5046
    %v6321 = vunpack.c.h.b16 %v5046
    %v6322 = vunpack.c.l.b16 %v5047
    %v6323 = vunpack.c.h.b16 %v5047
    %v6324 = vunpack.c.l.b16 %v5048
    %v6325 = vunpack.c.h.b16 %v5048
    %v6326 = vunpack.c.l.b16 %v5049
    %v6327 = vunpack.c.h.b16 %v5049
    %v6328 = vunpack.c.l.b16 %v5050
    %v6329 = vunpack.c.h.b16 %v5050
    %v6330 = vunpack.c.l.b16 %v5051
    %v6331 = vunpack.c.h.b16 %v5051
    %v6332 = vunpack.c.l.b16 %v5052
    %v6333 = vunpack.c.h.b16 %v5052
    %v6334 = vunpack.c.l.b16 %v5053
    %v6335 = vunpack.c.h.b16 %v5053
    %v6336 = vunpack.c.l.b16 %v5054
    %v6337 = vunpack.c.h.b16 %v5054
    %v6338 = vunpack.c.l.b16 %v5055
    %v6339 = vunpack.c.h.b16 %v5055
    %v6340 = vunpack.c.l.b16 %v5056
    %v6341 = vunpack.c.h.b16 %v5056
    %v6342 = vunpack.c.l.b16 %v5057
    %v6343 = vunpack.c.h.b16 %v5057
    %v6344 = vunpack.c.l.b16 %v5058
    %v6345 = vunpack.c.h.b16 %v5058
    %v6346 = vunpack.c.l.b16 %v5059
    %v6347 = vunpack.c.h.b16 %v5059
    %v6348 = vunpack.c.l.b16 %v5060
    %v6349 = vunpack.c.h.b16 %v5060
    %v6350 = vunpack.c.l.b16 %v5061
    %v6351 = vunpack.c.h.b16 %v5061
    %v6352 = vunpack.c.l.b16 %v5062
    %v6353 = vunpack.c.h.b16 %v5062
    %v6354 = vunpack.c.l.b16 %v5063
    %v6355 = vunpack.c.h.b16 %v5063
    %v6356 = vunpack.c.l.b16 %v5064
    %v6357 = vunpack.c.h.b16 %v5064
    %v6358 = vunpack.c.l.b16 %v5065
    %v6359 = vunpack.c.h.b16 %v5065
    %v6360 = vunpack.c.l.b16 %v5066
    %v6361 = vunpack.c.h.b16 %v5066
    %v6362 = vunpack.c.l.b16 %v5067
    %v6363 = vunpack.c.h.b16 %v5067
    %v6364 = vunpack.c.l.b16 %v5068
    %v6365 = vunpack.c.h.b16 %v5068
    %v6366 = vunpack.c.l.b16 %v5069
    %v6367 = vunpack.c.h.b16 %v5069
    %v6368 = vunpack.c.l.b16 %v5070
    %v6369 = vunpack.c.h.b16 %v5070
    %v6370 = vunpack.c.l.b16 %v5071
    %v6371 = vunpack.c.h.b16 %v5071
    %v6372 = vunpack.c.l.b16 %v5072
    %v6373 = vunpack.c.h.b16 %v5072
    %v6374 = vunpack.c.l.b16 %v5073
    %v6375 = vunpack.c.h.b16 %v5073
    %v6376 = vunpack.c.l.b16 %v5074
    %v6377 = vunpack.c.h.b16 %v5074
    %v6378 = vunpack.c.l.b16 %v5075
    %v6379 = vunpack.c.h.b16 %v5075
    %v6380 = vunpack.c.l.b16 %v5076
    %v6381 = vunpack.c.h.b16 %v5076
    %v6382 = vunpack.c.l.b16 %v5077
    %v6383 = vunpack.c.h.b16 %v5077
    %v6384 = vunpack.c.l.b16 %v5078
    %v6385 = vunpack.c.h.b16 %v5078
    %v6386 = vunpack.c.l.b16 %v5079
    %v6387 = vunpack.c.h.b16 %v5079
    %v6388 = vunpack.c.l.b16 %v5080
    %v6389 = vunpack.c.h.b16 %v5080
    %v6390 = vunpack.c.l.b16 %v5081
    %v6391 = vunpack.c.h.b16 %v5081
    %v6392 = vunpack.c.l.b16 %v5082
    %v6393 = vunpack.c.h.b16 %v5082
    %v6394 = vunpack.c.l.b16 %v5083
    %v6395 = vunpack.c.h.b16 %v5083
    %v6396 = vunpack.c.l.b16 %v5084
    %v6397 = vunpack.c.h.b16 %v5084
    %v6398 = vunpack.c.l.b16 %v5085
    %v6399 = vunpack.c.h.b16 %v5085
    %v6400 = vunpack.c.l.b16 %v5086
    %v6401 = vunpack.c.h.b16 %v5086
    %v6402 = vunpack.c.l.b16 %v5087
    %v6403 = vunpack.c.h.b16 %v5087
    %v6404 = vunpack.c.l.b16 %v5088
    %v6405 = vunpack.c.h.b16 %v5088
    %v6406 = vunpack.c.l.b16 %v5089
    %v6407 = vunpack.c.h.b16 %v5089
    %v6408 = vunpack.c.l.b16 %v5090
    %v6409 = vunpack.c.h.b16 %v5090
    %v6410 = vunpack.c.l.b16 %v5091
    %v6411 = vunpack.c.h.b16 %v5091
    %v6412 = vunpack.c.l.b16 %v5092
    %v6413 = vunpack.c.h.b16 %v5092
    %v6414 = vunpack.c.l.b16 %v5093
    %v6415 = vunpack.c.h.b16 %v5093
    %v6416 = vunpack.c.l.b16 %v5094
    %v6417 = vunpack.c.h.b16 %v5094
    %v6418 = vunpack.c.l.b16 %v5095
    %v6419 = vunpack.c.h.b16 %v5095
    %v6420 = vunpack.c.l.b16 %v5096
    %v6421 = vunpack.c.h.b16 %v5096
    %v6422 = vunpack.c.l.b16 %v5097
    %v6423 = vunpack.c.h.b16 %v5097
    %v6424 = vunpack.c.l.b16 %v5098
    %v6425 = vunpack.c.h.b16 %v5098
    %v6426 = vunpack.c.l.b16 %v5099
    %v6427 = vunpack.c.h.b16 %v5099
    %v6428 = vunpack.c.l.b16 %v5100
    %v6429 = vunpack.c.h.b16 %v5100
    %v6430 = vunpack.c.l.b16 %v5101
    %v6431 = vunpack.c.h.b16 %v5101
    %v6432 = vunpack.c.l.b16 %v5102
    %v6433 = vunpack.c.h.b16 %v5102
    %v6434 = vunpack.c.l.b16 %v5103
    %v6435 = vunpack.c.h.b16 %v5103
    %v6436 = vunpack.c.l.b16 %v5104
    %v6437 = vunpack.c.h.b16 %v5104
    %v6438 = vunpack.c.l.b16 %v5105
    %v6439 = vunpack.c.h.b16 %v5105
    %v6440 = vunpack.c.l.b16 %v5106
    %v6441 = vunpack.c.h.b16 %v5106
    %v6442 = vunpack.c.l.b16 %v5107
    %v6443 = vunpack.c.h.b16 %v5107
    %v6444 = vunpack.c.l.b16 %v5108
    %v6445 = vunpack.c.h.b16 %v5108
    %v6446 = vunpack.c.l.b16 %v5109
    %v6447 = vunpack.c.h.b16 %v5109
    %v6448 = vunpack.c.l.b16 %v5110
    %v6449 = vunpack.c.h.b16 %v5110
    %v6450 = vunpack.c.l.b16 %v5111
    %v6451 = vunpack.c.h.b16 %v5111
    %v6452 = vunpack.c.l.b16 %v5112
    %v6453 = vunpack.c.h.b16 %v5112
    %v6454 = vunpack.c.l.b16 %v5113
    %v6455 = vunpack.c.h.b16 %v5113
    %v6456 = vunpack.c.l.b16 %v5114
    %v6457 = vunpack.c.h.b16 %v5114
    %v6458 = vunpack.c.l.b16 %v5115
    %v6459 = vunpack.c.h.b16 %v5115
    %v6460 = vunpack.c.l.b16 %v5116
    %v6461 = vunpack.c.h.b16 %v5116
    %v6462 = vunpack.c.l.b16 %v5117
    %v6463 = vunpack.c.h.b16 %v5117
    %v6464 = vunpack.c.l.b16 %v5118
    %v6465 = vunpack.c.h.b16 %v5118
    %v6466 = vunpack.c.l.b16 %v5119
    %v6467 = vunpack.c.h.b16 %v5119
    %v6468 = vunpack.c.l.b16 %v5120
    %v6469 = vunpack.c.h.b16 %v5120
    %v6470 = vunpack.c.l.b16 %v5121
    %v6471 = vunpack.c.h.b16 %v5121
    %v6472 = vunpack.c.l.b16 %v5122
    %v6473 = vunpack.c.h.b16 %v5122
    %v6474 = vunpack.c.l.b16 %v5123
    %v6475 = vunpack.c.h.b16 %v5123
    %v6476 = vunpack.c.l.b16 %v5124
    %v6477 = vunpack.c.h.b16 %v5124
    %v6478 = vunpack.c.l.b16 %v5125
    %v6479 = vunpack.c.h.b16 %v5125
    %v6480 = vunpack.c.l.b16 %v5126
    %v6481 = vunpack.c.h.b16 %v5126
    %v6482 = vunpack.c.l.b16 %v5127
    %v6483 = vunpack.c.h.b16 %v5127
    %v6484 = vunpack.c.l.b16 %v5128
    %v6485 = vunpack.c.h.b16 %v5128
    %v6486 = vunpack.c.l.b16 %v5129
    %v6487 = vunpack.c.h.b16 %v5129
    %v6488 = vunpack.c.l.b16 %v5130
    %v6489 = vunpack.c.h.b16 %v5130
    %v6490 = vunpack.c.l.b16 %v5131
    %v6491 = vunpack.c.h.b16 %v5131
    %v6492 = vunpack.c.l.b16 %v5132
    %v6493 = vunpack.c.h.b16 %v5132
    %v6494 = vunpack.c.l.b16 %v5133
    %v6495 = vunpack.c.h.b16 %v5133
    %v6496 = vunpack.c.l.b16 %v5134
    %v6497 = vunpack.c.h.b16 %v5134
    %v6498 = vunpack.c.l.b16 %v5135
    %v6499 = vunpack.c.h.b16 %v5135
    %v6500 = vunpack.c.l.b16 %v5136
    %v6501 = vunpack.c.h.b16 %v5136
    %v6502 = vunpack.c.l.b16 %v5137
    %v6503 = vunpack.c.h.b16 %v5137
    %v6504 = vunpack.c.l.b16 %v5138
    %v6505 = vunpack.c.h.b16 %v5138
    %v6506 = vunpack.c.l.b16 %v5139
    %v6507 = vunpack.c.h.b16 %v5139
    %v6508 = vunpack.c.l.b16 %v5140
    %v6509 = vunpack.c.h.b16 %v5140
    %v6510 = vunpack.c.l.b16 %v5141
    %v6511 = vunpack.c.h.b16 %v5141
    %v6512 = vunpack.c.l.b16 %v5142
    %v6513 = vunpack.c.h.b16 %v5142
    %v6514 = vunpack.c.l.b16 %v5143
    %v6515 = vunpack.c.h.b16 %v5143
    %v6516 = vunpack.c.l.b16 %v5144
    %v6517 = vunpack.c.h.b16 %v5144
    %v6518 = vunpack.c.l.b16 %v5145
    %v6519 = vunpack.c.h.b16 %v5145
    %v6520 = vunpack.c.l.b16 %v5146
    %v6521 = vunpack.c.h.b16 %v5146
    %v6522 = vunpack.c.l.b16 %v5147
    %v6523 = vunpack.c.h.b16 %v5147
    %v6524 = vunpack.c.l.b16 %v5148
    %v6525 = vunpack.c.h.b16 %v5148
    %v6526 = vunpack.c.l.b16 %v5149
    %v6527 = vunpack.c.h.b16 %v5149
    %v6528 = vunpack.c.l.b16 %v5150
    %v6529 = vunpack.c.h.b16 %v5150
    %v6530 = vunpack.c.l.b16 %v5151
    %v6531 = vunpack.c.h.b16 %v5151
    %v6532 = vunpack.c.l.b16 %v5152
    %v6533 = vunpack.c.h.b16 %v5152
    %v6534 = vunpack.c.l.b16 %v5153
    %v6535 = vunpack.c.h.b16 %v5153
    %v6536 = vunpack.c.l.b16 %v5154
    %v6537 = vunpack.c.h.b16 %v5154
    %v6538 = vunpack.c.l.b16 %v5155
    %v6539 = vunpack.c.h.b16 %v5155
    %v6540 = vunpack.c.l.b16 %v5156
    %v6541 = vunpack.c.h.b16 %v5156
    %v6542 = vunpack.c.l.b16 %v5157
    %v6543 = vunpack.c.h.b16 %v5157
    %v6544 = vunpack.c.l.b16 %v5158
    %v6545 = vunpack.c.h.b16 %v5158
    %v6546 = vunpack.c.l.b16 %v5159
    %v6547 = vunpack.c.h.b16 %v5159
    %v6548 = vunpack.c.l.b16 %v5160
    %v6549 = vunpack.c.h.b16 %v5160
    %v6550 = vunpack.c.l.b16 %v5161
    %v6551 = vunpack.c.h.b16 %v5161
    %v6552 = vunpack.c.l.b16 %v5162
    %v6553 = vunpack.c.h.b16 %v5162
    %v6554 = vunpack.c.l.b16 %v5163
    %v6555 = vunpack.c.h.b16 %v5163
    %v6556 = vunpack.c.l.b16 %v5164
    %v6557 = vunpack.c.h.b16 %v5164
    %v6558 = vunpack.c.l.b16 %v5165
    %v6559 = vunpack.c.h.b16 %v5165
    %v6560 = vunpack.c.l.b16 %v5166
    %v6561 = vunpack.c.h.b16 %v5166
    %v6562 = vunpack.c.l.b16 %v5167
    %v6563 = vunpack.c.h.b16 %v5167
    %v6564 = vunpack.c.l.b16 %v5168
    %v6565 = vunpack.c.h.b16 %v5168
    %v6566 = vunpack.c.l.b16 %v5169
    %v6567 = vunpack.c.h.b16 %v5169
    %v6568 = vunpack.c.l.b16 %v5170
    %v6569 = vunpack.c.h.b16 %v5170
    %v6570 = vunpack.c.l.b16 %v5171
    %v6571 = vunpack.c.h.b16 %v5171
    %v6572 = vunpack.c.l.b16 %v5172
    %v6573 = vunpack.c.h.b16 %v5172
    %v6574 = vunpack.c.l.b16 %v5173
    %v6575 = vunpack.c.h.b16 %v5173
    %v6576 = vunpack.c.l.b16 %v5174
    %v6577 = vunpack.c.h.b16 %v5174
    %v6578 = vunpack.c.l.b16 %v5175
    %v6579 = vunpack.c.h.b16 %v5175
    %v6580 = vunpack.c.l.b16 %v5176
    %v6581 = vunpack.c.h.b16 %v5176
    %v6582 = vunpack.c.l.b16 %v5177
    %v6583 = vunpack.c.h.b16 %v5177
    %v6584 = vunpack.c.l.b16 %v5178
    %v6585 = vunpack.c.h.b16 %v5178
    %v6586 = vunpack.c.l.b16 %v5179
    %v6587 = vunpack.c.h.b16 %v5179
    %v6588 = vunpack.c.l.b16 %v5180
    %v6589 = vunpack.c.h.b16 %v5180
    %v6590 = vunpack.c.l.b16 %v5181
    %v6591 = vunpack.c.h.b16 %v5181
    %v6592 = vunpack.c.l.b16 %v5182
    %v6593 = vunpack.c.h.b16 %v5182
    %v6594 = vunpack.c.l.b16 %v5183
    %v6595 = vunpack.c.h.b16 %v5183
    %v6596 = vunpack.c.l.b16 %v5184
    %v6597 = vunpack.c.h.b16 %v5184
    %v6598 = vunpack.c.l.b16 %v5185
    %v6599 = vunpack.c.h.b16 %v5185
    %v6600 = vunpack.c.l.b16 %v5186
    %v6601 = vunpack.c.h.b16 %v5186
    %v6602 = vunpack.c.l.b16 %v5187
    %v6603 = vunpack.c.h.b16 %v5187
    %v6604 = vunpack.c.l.b16 %v5188
    %v6605 = vunpack.c.h.b16 %v5188
    %v6606 = vunpack.c.l.b16 %v5189
    %v6607 = vunpack.c.h.b16 %v5189
    %v6608 = vunpack.c.l.b16 %v5190
    %v6609 = vunpack.c.h.b16 %v5190
    %v6610 = vunpack.c.l.b16 %v5191
    %v6611 = vunpack.c.h.b16 %v5191
    %v6612 = vunpack.c.l.b16 %v5192
    %v6613 = vunpack.c.h.b16 %v5192
    %v6614 = vunpack.c.l.b16 %v5193
    %v6615 = vunpack.c.h.b16 %v5193
    %v6616 = vunpack.c.l.b16 %v5194
    %v6617 = vunpack.c.h.b16 %v5194
    %v6618 = vunpack.c.l.b16 %v5195
    %v6619 = vunpack.c.h.b16 %v5195
    %v6620 = vunpack.c.l.b16 %v5196
    %v6621 = vunpack.c.h.b16 %v5196
    %v6622 = vunpack.c.l.b16 %v5197
    %v6623 = vunpack.c.h.b16 %v5197
    %v6624 = vunpack.c.l.b16 %v5198
    %v6625 = vunpack.c.h.b16 %v5198
    %v6626 = vunpack.c.l.b16 %v5199
    %v6627 = vunpack.c.h.b16 %v5199
    %v6628 = vunpack.c.l.b16 %v5200
    %v6629 = vunpack.c.h.b16 %v5200
    %v6630 = vunpack.c.l.b16 %v5201
    %v6631 = vunpack.c.h.b16 %v5201
    %v6632 = vunpack.c.l.b16 %v5202
    %v6633 = vunpack.c.h.b16 %v5202
    %v6634 = vunpack.c.l.b16 %v5203
    %v6635 = vunpack.c.h.b16 %v5203
    %v6636 = vunpack.c.l.b16 %v5204
    %v6637 = vunpack.c.h.b16 %v5204
    %v6638 = vunpack.c.l.b16 %v5205
    %v6639 = vunpack.c.h.b16 %v5205
    %v6640 = vunpack.c.l.b16 %v5206
    %v6641 = vunpack.c.h.b16 %v5206
    %v6642 = vunpack.c.l.b16 %v5207
    %v6643 = vunpack.c.h.b16 %v5207
    %v6644 = vunpack.c.l.b16 %v5208
    %v6645 = vunpack.c.h.b16 %v5208
    %v6646 = vunpack.c.l.b16 %v5209
    %v6647 = vunpack.c.h.b16 %v5209
    %v6648 = vunpack.c.l.b16 %v5210
    %v6649 = vunpack.c.h.b16 %v5210
    %v6650 = vunpack.c.l.b16 %v5211
    %v6651 = vunpack.c.h.b16 %v5211
    %v6652 = vunpack.c.l.b16 %v5212
    %v6653 = vunpack.c.h.b16 %v5212
    %v6654 = vunpack.c.l.b16 %v5213
    %v6655 = vunpack.c.h.b16 %v5213
    %v6656 = vunpack.c.l.b16 %v5214
    %v6657 = vunpack.c.h.b16 %v5214
    %v6658 = vunpack.c.l.b16 %v5215
    %v6659 = vunpack.c.h.b16 %v5215
    %v6660 = vunpack.c.l.b16 %v5216
    %v6661 = vunpack.c.h.b16 %v5216
    %v6662 = vunpack.c.l.b16 %v5217
    %v6663 = vunpack.c.h.b16 %v5217
    %v6664 = vunpack.c.l.b16 %v5218
    %v6665 = vunpack.c.h.b16 %v5218
    %v6666 = vunpack.c.l.b16 %v5219
    %v6667 = vunpack.c.h.b16 %v5219
    %v6668 = vunpack.c.l.b16 %v5220
    %v6669 = vunpack.c.h.b16 %v5220
    %v6670 = vunpack.c.l.b16 %v5221
    %v6671 = vunpack.c.h.b16 %v5221
    %v6672 = vunpack.c.l.b16 %v5222
    %v6673 = vunpack.c.h.b16 %v5222
    %v6674 = vunpack.c.l.b16 %v5223
    %v6675 = vunpack.c.h.b16 %v5223
    %v6676 = vunpack.c.l.b16 %v5224
    %v6677 = vunpack.c.h.b16 %v5224
    %v6678 = vunpack.c.l.b16 %v5225
    %v6679 = vunpack.c.h.b16 %v5225
    %v6680 = vunpack.c.l.b16 %v5226
    %v6681 = vunpack.c.h.b16 %v5226
    %v6682 = vunpack.c.l.b16 %v5227
    %v6683 = vunpack.c.h.b16 %v5227
    %v6684 = vunpack.c.l.b16 %v5228
    %v6685 = vunpack.c.h.b16 %v5228
    %v6686 = vunpack.c.l.b16 %v5229
    %v6687 = vunpack.c.h.b16 %v5229
    %v6688 = vunpack.c.l.b16 %v5230
    %v6689 = vunpack.c.h.b16 %v5230
    %v6690 = vunpack.c.l.b16 %v5231
    %v6691 = vunpack.c.h.b16 %v5231
    %v6692 = vunpack.c.l.b16 %v5232
    %v6693 = vunpack.c.h.b16 %v5232
    %v6694 = vunpack.c.l.b16 %v5233
    %v6695 = vunpack.c.h.b16 %v5233
    %v6696 = vunpack.c.l.b16 %v5234
    %v6697 = vunpack.c.h.b16 %v5234
    %v6698 = vunpack.c.l.b16 %v5235
    %v6699 = vunpack.c.h.b16 %v5235
    %v6700 = vunpack.c.l.b16 %v5236
    %v6701 = vunpack.c.h.b16 %v5236
    %v6702 = vunpack.c.l.b16 %v5237
    %v6703 = vunpack.c.h.b16 %v5237
    %v6704 = vunpack.c.l.b16 %v5238
    %v6705 = vunpack.c.h.b16 %v5238
    %v6706 = vunpack.c.l.b16 %v5239
    %v6707 = vunpack.c.h.b16 %v5239
    %v6708 = vunpack.c.l.b16 %v5240
    %v6709 = vunpack.c.h.b16 %v5240
    %v6710 = vunpack.c.l.b16 %v5241
    %v6711 = vunpack.c.h.b16 %v5241
    %v6712 = vunpack.c.l.b16 %v5242
    %v6713 = vunpack.c.h.b16 %v5242
    %v6714 = vunpack.c.l.b16 %v5243
    %v6715 = vunpack.c.h.b16 %v5243
    %v6716 = vunpack.c.l.b16 %v5244
    %v6717 = vunpack.c.h.b16 %v5244
    %v6718 = vunpack.c.l.b16 %v5245
    %v6719 = vunpack.c.h.b16 %v5245
    %v6720 = vunpack.c.l.b16 %v5246
    %v6721 = vunpack.c.h.b16 %v5246
    %v6722 = vunpack.c.l.b16 %v5247
    %v6723 = vunpack.c.h.b16 %v5247
    %v6724 = vunpack.c.l.b16 %v5248
    %v6725 = vunpack.c.h.b16 %v5248
    %v6726 = vunpack.c.l.b16 %v5249
    %v6727 = vunpack.c.h.b16 %v5249
    %v6728 = vunpack.c.l.b16 %v5250
    %v6729 = vunpack.c.h.b16 %v5250
    %v6730 = vunpack.c.l.b16 %v5251
    %v6731 = vunpack.c.h.b16 %v5251
    %v6732 = vunpack.c.l.b16 %v5252
    %v6733 = vunpack.c.h.b16 %v5252
    %v6734 = vunpack.c.l.b16 %v5253
    %v6735 = vunpack.c.h.b16 %v5253
    %v6736 = vunpack.c.l.b16 %v5254
    %v6737 = vunpack.c.h.b16 %v5254
    %v6738 = vunpack.c.l.b16 %v5255
    %v6739 = vunpack.c.h.b16 %v5255
    %v6740 = vunpack.c.l.b16 %v5256
    %v6741 = vunpack.c.h.b16 %v5256
    %v6742 = vunpack.c.l.b16 %v5257
    %v6743 = vunpack.c.h.b16 %v5257
    %v6744 = vunpack.c.l.b16 %v5258
    %v6745 = vunpack.c.h.b16 %v5258
    %v6746 = vunpack.c.l.b16 %v5259
    %v6747 = vunpack.c.h.b16 %v5259
    %v6748 = vunpack.c.l.b16 %v5260
    %v6749 = vunpack.c.h.b16 %v5260
    %v6750 = vunpack.c.l.b16 %v5261
    %v6751 = vunpack.c.h.b16 %v5261
    %v6752 = vunpack.c.l.b16 %v5262
    %v6753 = vunpack.c.h.b16 %v5262
    %v6754 = vunpack.c.l.b16 %v5263
    %v6755 = vunpack.c.h.b16 %v5263
    %v6756 = vunpack.c.l.b16 %v5264
    %v6757 = vunpack.c.h.b16 %v5264
    %v6758 = vunpack.c.l.b16 %v5265
    %v6759 = vunpack.c.h.b16 %v5265
    %v6760 = vunpack.c.l.b16 %v5266
    %v6761 = vunpack.c.h.b16 %v5266
    %v6762 = vunpack.c.l.b16 %v5267
    %v6763 = vunpack.c.h.b16 %v5267
    %v6764 = vunpack.c.l.b16 %v5268
    %v6765 = vunpack.c.h.b16 %v5268
    %v6766 = vunpack.c.l.b16 %v5269
    %v6767 = vunpack.c.h.b16 %v5269
    %v6768 = vunpack.c.l.b16 %v5270
    %v6769 = vunpack.c.h.b16 %v5270
    %v6770 = vunpack.c.l.b16 %v5271
    %v6771 = vunpack.c.h.b16 %v5271
    %v6772 = vunpack.c.l.b16 %v5272
    %v6773 = vunpack.c.h.b16 %v5272
    %v6774 = vunpack.c.l.b16 %v5273
    %v6775 = vunpack.c.h.b16 %v5273
    %v6776 = vunpack.c.l.b16 %v5274
    %v6777 = vunpack.c.h.b16 %v5274
    %v6778 = vunpack.c.l.b16 %v5275
    %v6779 = vunpack.c.h.b16 %v5275
    %v6780 = vunpack.c.l.b16 %v5276
    %v6781 = vunpack.c.h.b16 %v5276
    %v6782 = vunpack.c.l.b16 %v5277
    %v6783 = vunpack.c.h.b16 %v5277
    %v6784 = vunpack.c.l.b16 %v5278
    %v6785 = vunpack.c.h.b16 %v5278
    %v6786 = vunpack.c.l.b16 %v5279
    %v6787 = vunpack.c.h.b16 %v5279
    %v6788 = vunpack.c.l.b16 %v5280
    %v6789 = vunpack.c.h.b16 %v5280
    %v6790 = vunpack.c.l.b16 %v5281
    %v6791 = vunpack.c.h.b16 %v5281
    %v6792 = vunpack.c.l.b16 %v5282
    %v6793 = vunpack.c.h.b16 %v5282
    %v6794 = vunpack.c.l.b16 %v5283
    %v6795 = vunpack.c.h.b16 %v5283
    %v6796 = vunpack.c.l.b16 %v5284
    %v6797 = vunpack.c.h.b16 %v5284
    %v6798 = vunpack.c.l.b16 %v5285
    %v6799 = vunpack.c.h.b16 %v5285
    %v6800 = vunpack.c.l.b16 %v5286
    %v6801 = vunpack.c.h.b16 %v5286
    %v6802 = vunpack.c.l.b16 %v5287
    %v6803 = vunpack.c.h.b16 %v5287
    %v6804 = vunpack.c.l.b16 %v5288
    %v6805 = vunpack.c.h.b16 %v5288
    %v6806 = vunpack.c.l.b16 %v5289
    %v6807 = vunpack.c.h.b16 %v5289
    %v6808 = vunpack.c.l.b16 %v5290
    %v6809 = vunpack.c.h.b16 %v5290
    %v6810 = vunpack.c.l.b16 %v5291
    %v6811 = vunpack.c.h.b16 %v5291
    %v6812 = vunpack.c.l.b16 %v5292
    %v6813 = vunpack.c.h.b16 %v5292
    %v6814 = vunpack.c.l.b16 %v5293
    %v6815 = vunpack.c.h.b16 %v5293
    %v6816 = vunpack.c.l.b16 %v5294
    %v6817 = vunpack.c.h.b16 %v5294
    %v6818 = vunpack.c.l.b16 %v5295
    %v6819 = vunpack.c.h.b16 %v5295
    %v6820 = vunpack.c.l.b16 %v5296
    %v6821 = vunpack.c.h.b16 %v5296
    %v6822 = vunpack.c.l.b16 %v5297
    %v6823 = vunpack.c.h.b16 %v5297
    %v6824 = vunpack.c.l.b16 %v5298
    %v6825 = vunpack.c.h.b16 %v5298
    %v6826 = vunpack.c.l.b16 %v5299
    %v6827 = vunpack.c.h.b16 %v5299
    %v6828 = vunpack.c.l.b16 %v5300
    %v6829 = vunpack.c.h.b16 %v5300
    %v6830 = vunpack.c.l.b16 %v5301
    %v6831 = vunpack.c.h.b16 %v5301
    %v6832 = vunpack.c.l.b16 %v5302
    %v6833 = vunpack.c.h.b16 %v5302
    %v6834 = vunpack.c.l.b16 %v5303
    %v6835 = vunpack.c.h.b16 %v5303
    %v6836 = vunpack.c.l.b16 %v5304
    %v6837 = vunpack.c.h.b16 %v5304
    %v6838 = vunpack.c.l.b16 %v5305
    %v6839 = vunpack.c.h.b16 %v5305
    %v6840 = vunpack.c.l.b16 %v5306
    %v6841 = vunpack.c.h.b16 %v5306
    %v6842 = vunpack.c.l.b16 %v5307
    %v6843 = vunpack.c.h.b16 %v5307
    %v6844 = vunpack.c.l.b16 %v5308
    %v6845 = vunpack.c.h.b16 %v5308
    %v6846 = vunpack.c.l.b16 %v5309
    %v6847 = vunpack.c.h.b16 %v5309
    %v6848 = vunpack.c.l.b16 %v5310
    %v6849 = vunpack.c.h.b16 %v5310
    %v6850 = vunpack.c.l.b16 %v5311
    %v6851 = vunpack.c.h.b16 %v5311
    %v6852 = vunpack.c.l.b16 %v5312
    %v6853 = vunpack.c.h.b16 %v5312
    %v6854 = vunpack.c.l.b16 %v5313
    %v6855 = vunpack.c.h.b16 %v5313
    %v6856 = vunpack.c.l.b16 %v5314
    %v6857 = vunpack.c.h.b16 %v5314
    %v6858 = vunpack.c.l.b16 %v5315
    %v6859 = vunpack.c.h.b16 %v5315
    %v6860 = vunpack.c.l.b16 %v5316
    %v6861 = vunpack.c.h.b16 %v5316
    %v6862 = vunpack.c.l.b16 %v5317
    %v6863 = vunpack.c.h.b16 %v5317
    %v6864 = vunpack.c.l.b16 %v5318
    %v6865 = vunpack.c.h.b16 %v5318
    %v6866 = vunpack.c.l.b16 %v5319
    %v6867 = vunpack.c.h.b16 %v5319
    %v6868 = vunpack.c.l.b16 %v5320
    %v6869 = vunpack.c.h.b16 %v5320
    %v6870 = vunpack.c.l.b16 %v5321
    %v6871 = vunpack.c.h.b16 %v5321
    %v6872 = vunpack.c.l.b16 %v5322
    %v6873 = vunpack.c.h.b16 %v5322
    %v6874 = vunpack.c.l.b16 %v5323
    %v6875 = vunpack.c.h.b16 %v5323
    %v6876 = vunpack.c.l.b16 %v5324
    %v6877 = vunpack.c.h.b16 %v5324
    %v6878 = vunpack.c.l.b16 %v5325
    %v6879 = vunpack.c.h.b16 %v5325
    %v6880 = vpack.c.b16 %v5864, %v5856
    %v6881 = vpack.c.b16 %v5865, %v5857
    %v6882 = vpack.c.b16 %v5866, %v5858
    %v6883 = vpack.c.b16 %v5867, %v5859
    %v6884 = vpack.c.b16 %v5868, %v5860
    %v6885 = vpack.c.b16 %v5869, %v5861
    %v6886 = vpack.c.b16 %v5870, %v5862
    %v6887 = vpack.c.b16 %v5871, %v5863
    %v6888 = vpack.c.b16 %v5880, %v5872
    %v6889 = vpack.c.b16 %v5881, %v5873
    %v6890 = vpack.c.b16 %v5882, %v5874
    %v6891 = vpack.c.b16 %v5883, %v5875
    %v6892 = vpack.c.b16 %v5884, %v5876
    %v6893 = vpack.c.b16 %v5885, %v5877
    %v6894 = vpack.c.b16 %v5886, %v5878
    %v6895 = vpack.c.b16 %v5887, %v5879
    %v6896 = vpack.c.b16 %v5896, %v5888
    %v6897 = vpack.c.b16 %v5897, %v5889
    %v6898 = vpack.c.b16 %v5898, %v5890
    %v6899 = vpack.c.b16 %v5899, %v5891
    %v6900 = vpack.c.b16 %v5900, %v5892
    %v6901 = vpack.c.b16 %v5901, %v5893
    %v6902 = vpack.c.b16 %v5902, %v5894
    %v6903 = vpack.c.b16 %v5903, %v5895
    %v6904 = vpack.c.b16 %v5912, %v5904
    %v6905 = vpack.c.b16 %v5913, %v5905
    %v6906 = vpack.c.b16 %v5914, %v5906
    %v6907 = vpack.c.b16 %v5915, %v5907
    %v6908 = vpack.c.b16 %v5916, %v5908
    %v6909 = vpack.c.b16 %v5917, %v5909
    %v6910 = vpack.c.b16 %v5918, %v5910
    %v6911 = vpack.c.b16 %v5919, %v5911
    %v6912 = vpack.c.b16 %v5928, %v5920
    %v6913 = vpack.c.b16 %v5929, %v5921
    %v6914 = vpack.c.b16 %v5930, %v5922
    %v6915 = vpack.c.b16 %v5931, %v5923
    %v6916 = vpack.c.b16 %v5932, %v5924
    %v6917 = vpack.c.b16 %v5933, %v5925
    %v6918 = vpack.c.b16 %v5934, %v5926
    %v6919 = vpack.c.b16 %v5935, %v5927
    %v6920 = vpack.c.b16 %v5944, %v5936
    %v6921 = vpack.c.b16 %v5945, %v5937
    %v6922 = vpack.c.b16 %v5946, %v5938
    %v6923 = vpack.c.b16 %v5947, %v5939
    %v6924 = vpack.c.b16 %v5948, %v5940
    %v6925 = vpack.c.b16 %v5949, %v5941
    %v6926 = vpack.c.b16 %v5950, %v5942
    %v6927 = vpack.c.b16 %v5951, %v5943
    %v6928 = vpack.c.b16 %v5960, %v5952
    %v6929 = vpack.c.b16 %v5961, %v5953
    %v6930 = vpack.c.b16 %v5962, %v5954
    %v6931 = vpack.c.b16 %v5963, %v5955
    %v6932 = vpack.c.b16 %v5964, %v5956
    %v6933 = vpack.c.b16 %v5965, %v5957
    %v6934 = vpack.c.b16 %v5966, %v5958
    %v6935 = vpack.c.b16 %v5967, %v5959
    %v6936 = vpack.c.b16 %v5976, %v5968
    %v6937 = vpack.c.b16 %v5977, %v5969
    %v6938 = vpack.c.b16 %v5978, %v5970
    %v6939 = vpack.c.b16 %v5979, %v5971
    %v6940 = vpack.c.b16 %v5980, %v5972
    %v6941 = vpack.c.b16 %v5981, %v5973
    %v6942 = vpack.c.b16 %v5982, %v5974
    %v6943 = vpack.c.b16 %v5983, %v5975
    %v6944 = vpack.c.b16 %v5992, %v5984
    %v6945 = vpack.c.b16 %v5993, %v5985
    %v6946 = vpack.c.b16 %v5994, %v5986
    %v6947 = vpack.c.b16 %v5995, %v5987
    %v6948 = vpack.c.b16 %v5996, %v5988
    %v6949 = vpack.c.b16 %v5997, %v5989
    %v6950 = vpack.c.b16 %v5998, %v5990
    %v6951 = vpack.c.b16 %v5999, %v5991
    %v6952 = vpack.c.b16 %v6008, %v6000
    %v6953 = vpack.c.b16 %v6009, %v6001
    %v6954 = vpack.c.b16 %v6010, %v6002
    %v6955 = vpack.c.b16 %v6011, %v6003
    %v6956 = vpack.c.b16 %v6012, %v6004
    %v6957 = vpack.c.b16 %v6013, %v6005
    %v6958 = vpack.c.b16 %v6014, %v6006
    %v6959 = vpack.c.b16 %v6015, %v6007
    %v6960 = vpack.c.b16 %v6024, %v6016
    %v6961 = vpack.c.b16 %v6025, %v6017
    %v6962 = vpack.c.b16 %v6026, %v6018
    %v6963 = vpack.c.b16 %v6027, %v6019
    %v6964 = vpack.c.b16 %v6028, %v6020
    %v6965 = vpack.c.b16 %v6029, %v6021
    %v6966 = vpack.c.b16 %v6030, %v6022
    %v6967 = vpack.c.b16 %v6031, %v6023
    %v6968 = vpack.c.b16 %v6040, %v6032
    %v6969 = vpack.c.b16 %v6041, %v6033
    %v6970 = vpack.c.b16 %v6042, %v6034
    %v6971 = vpack.c.b16 %v6043, %v6035
    %v6972 = vpack.c.b16 %v6044, %v6036
    %v6973 = vpack.c.b16 %v6045, %v6037
    %v6974 = vpack.c.b16 %v6046, %v6038
    %v6975 = vpack.c.b16 %v6047, %v6039
    %v6976 = vpack.c.b16 %v6056, %v6048
    %v6977 = vpack.c.b16 %v6057, %v6049
    %v6978 = vpack.c.b16 %v6058, %v6050
    %v6979 = vpack.c.b16 %v6059, %v6051
    %v6980 = vpack.c.b16 %v6060, %v6052
    %v6981 = vpack.c.b16 %v6061, %v6053
    %v6982 = vpack.c.b16 %v6062, %v6054
    %v6983 = vpack.c.b16 %v6063, %v6055
    %v6984 = vpack.c.b16 %v6072, %v6064
    %v6985 = vpack.c.b16 %v6073, %v6065
    %v6986 = vpack.c.b16 %v6074, %v6066
    %v6987 = vpack.c.b16 %v6075, %v6067
    %v6988 = vpack.c.b16 %v6076, %v6068
    %v6989 = vpack.c.b16 %v6077, %v6069
    %v6990 = vpack.c.b16 %v6078, %v6070
    %v6991 = vpack.c.b16 %v6079, %v6071
    %v6992 = vpack.c.b16 %v6088, %v6080
    %v6993 = vpack.c.b16 %v6089, %v6081
    %v6994 = vpack.c.b16 %v6090, %v6082
    %v6995 = vpack.c.b16 %v6091, %v6083
    %v6996 = vpack.c.b16 %v6092, %v6084
    %v6997 = vpack.c.b16 %v6093, %v6085
    %v6998 = vpack.c.b16 %v6094, %v6086
    %v6999 = vpack.c.b16 %v6095, %v6087
    %v7000 = vpack.c.b16 %v6104, %v6096
    %v7001 = vpack.c.b16 %v6105, %v6097
    %v7002 = vpack.c.b16 %v6106, %v6098
    %v7003 = vpack.c.b16 %v6107, %v6099
    %v7004 = vpack.c.b16 %v6108, %v6100
    %v7005 = vpack.c.b16 %v6109, %v6101
    %v7006 = vpack.c.b16 %v6110, %v6102
    %v7007 = vpack.c.b16 %v6111, %v6103
    %v7008 = vpack.c.b16 %v6120, %v6112
    %v7009 = vpack.c.b16 %v6121, %v6113
    %v7010 = vpack.c.b16 %v6122, %v6114
    %v7011 = vpack.c.b16 %v6123, %v6115
    %v7012 = vpack.c.b16 %v6124, %v6116
    %v7013 = vpack.c.b16 %v6125, %v6117
    %v7014 = vpack.c.b16 %v6126, %v6118
    %v7015 = vpack.c.b16 %v6127, %v6119
    %v7016 = vpack.c.b16 %v6136, %v6128
    %v7017 = vpack.c.b16 %v6137, %v6129
    %v7018 = vpack.c.b16 %v6138, %v6130
    %v7019 = vpack.c.b16 %v6139, %v6131
    %v7020 = vpack.c.b16 %v6140, %v6132
    %v7021 = vpack.c.b16 %v6141, %v6133
    %v7022 = vpack.c.b16 %v6142, %v6134
    %v7023 = vpack.c.b16 %v6143, %v6135
    %v7024 = vpack.c.b16 %v6152, %v6144
    %v7025 = vpack.c.b16 %v6153, %v6145
    %v7026 = vpack.c.b16 %v6154, %v6146
    %v7027 = vpack.c.b16 %v6155, %v6147
    %v7028 = vpack.c.b16 %v6156, %v6148
    %v7029 = vpack.c.b16 %v6157, %v6149
    %v7030 = vpack.c.b16 %v6158, %v6150
    %v7031 = vpack.c.b16 %v6159, %v6151
    %v7032 = vpack.c.b16 %v6168, %v6160
    %v7033 = vpack.c.b16 %v6169, %v6161
    %v7034 = vpack.c.b16 %v6170, %v6162
    %v7035 = vpack.c.b16 %v6171, %v6163
    %v7036 = vpack.c.b16 %v6172, %v6164
    %v7037 = vpack.c.b16 %v6173, %v6165
    %v7038 = vpack.c.b16 %v6174, %v6166
    %v7039 = vpack.c.b16 %v6175, %v6167
    %v7040 = vpack.c.b16 %v6184, %v6176
    %v7041 = vpack.c.b16 %v6185, %v6177
    %v7042 = vpack.c.b16 %v6186, %v6178
    %v7043 = vpack.c.b16 %v6187, %v6179
    %v7044 = vpack.c.b16 %v6188, %v6180
    %v7045 = vpack.c.b16 %v6189, %v6181
    %v7046 = vpack.c.b16 %v6190, %v6182
    %v7047 = vpack.c.b16 %v6191, %v6183
    %v7048 = vpack.c.b16 %v6200, %v6192
    %v7049 = vpack.c.b16 %v6201, %v6193
    %v7050 = vpack.c.b16 %v6202, %v6194
    %v7051 = vpack.c.b16 %v6203, %v6195
    %v7052 = vpack.c.b16 %v6204, %v6196
    %v7053 = vpack.c.b16 %v6205, %v6197
    %v7054 = vpack.c.b16 %v6206, %v6198
    %v7055 = vpack.c.b16 %v6207, %v6199
    %v7056 = vpack.c.b16 %v6216, %v6208
    %v7057 = vpack.c.b16 %v6217, %v6209
    %v7058 = vpack.c.b16 %v6218, %v6210
    %v7059 = vpack.c.b16 %v6219, %v6211
    %v7060 = vpack.c.b16 %v6220, %v6212
    %v7061 = vpack.c.b16 %v6221, %v6213
    %v7062 = vpack.c.b16 %v6222, %v6214
    %v7063 = vpack.c.b16 %v6223, %v6215
    %v7064 = vpack.c.b16 %v6232, %v6224
    %v7065 = vpack.c.b16 %v6233, %v6225
    %v7066 = vpack.c.b16 %v6234, %v6226
    %v7067 = vpack.c.b16 %v6235, %v6227
    %v7068 = vpack.c.b16 %v6236, %v6228
    %v7069 = vpack.c.b16 %v6237, %v6229
    %v7070 = vpack.c.b16 %v6238, %v6230
    %v7071 = vpack.c.b16 %v6239, %v6231
    %v7072 = vpack.c.b16 %v6248, %v6240
    %v7073 = vpack.c.b16 %v6249, %v6241
    %v7074 = vpack.c.b16 %v6250, %v6242
    %v7075 = vpack.c.b16 %v6251, %v6243
    %v7076 = vpack.c.b16 %v6252, %v6244
    %v7077 = vpack.c.b16 %v6253, %v6245
    %v7078 = vpack.c.b16 %v6254, %v6246
    %v7079 = vpack.c.b16 %v6255, %v6247
    %v7080 = vpack.c.b16 %v6264, %v6256
    %v7081 = vpack.c.b16 %v6265, %v6257
    %v7082 = vpack.c.b16 %v6266, %v6258
    %v7083 = vpack.c.b16 %v6267, %v6259
    %v7084 = vpack.c.b16 %v6268, %v6260
    %v7085 = vpack.c.b16 %v6269, %v6261
    %v7086 = vpack.c.b16 %v6270, %v6262
    %v7087 = vpack.c.b16 %v6271, %v6263
    %v7088 = vpack.c.b16 %v6280, %v6272
    %v7089 = vpack.c.b16 %v6281, %v6273
    %v7090 = vpack.c.b16 %v6282, %v6274
    %v7091 = vpack.c.b16 %v6283, %v6275
    %v7092 = vpack.c.b16 %v6284, %v6276
    %v7093 = vpack.c.b16 %v6285, %v6277
    %v7094 = vpack.c.b16 %v6286, %v6278
    %v7095 = vpack.c.b16 %v6287, %v6279
    %v7096 = vpack.c.b16 %v6296, %v6288
    %v7097 = vpack.c.b16 %v6297, %v6289
    %v7098 = vpack.c.b16 %v6298, %v6290
    %v7099 = vpack.c.b16 %v6299, %v6291
    %v7100 = vpack.c.b16 %v6300, %v6292
    %v7101 = vpack.c.b16 %v6301, %v6293
    %v7102 = vpack.c.b16 %v6302, %v6294
    %v7103 = vpack.c.b16 %v6303, %v6295
    %v7104 = vpack.c.b16 %v6312, %v6304
    %v7105 = vpack.c.b16 %v6313, %v6305
    %v7106 = vpack.c.b16 %v6314, %v6306
    %v7107 = vpack.c.b16 %v6315, %v6307
    %v7108 = vpack.c.b16 %v6316, %v6308
    %v7109 = vpack.c.b16 %v6317, %v6309
    %v7110 = vpack.c.b16 %v6318, %v6310
    %v7111 = vpack.c.b16 %v6319, %v6311
    %v7112 = vpack.c.b16 %v6328, %v6320
    %v7113 = vpack.c.b16 %v6329, %v6321
    %v7114 = vpack.c.b16 %v6330, %v6322
    %v7115 = vpack.c.b16 %v6331, %v6323
    %v7116 = vpack.c.b16 %v6332, %v6324
    %v7117 = vpack.c.b16 %v6333, %v6325
    %v7118 = vpack.c.b16 %v6334, %v6326
    %v7119 = vpack.c.b16 %v6335, %v6327
    %v7120 = vpack.c.b16 %v6344, %v6336
    %v7121 = vpack.c.b16 %v6345, %v6337
    %v7122 = vpack.c.b16 %v6346, %v6338
    %v7123 = vpack.c.b16 %v6347, %v6339
    %v7124 = vpack.c.b16 %v6348, %v6340
    %v7125 = vpack.c.b16 %v6349, %v6341
    %v7126 = vpack.c.b16 %v6350, %v6342
    %v7127 = vpack.c.b16 %v6351, %v6343
    %v7128 = vpack.c.b16 %v6360, %v6352
    %v7129 = vpack.c.b16 %v6361, %v6353
    %v7130 = vpack.c.b16 %v6362, %v6354
    %v7131 = vpack.c.b16 %v6363, %v6355
    %v7132 = vpack.c.b16 %v6364, %v6356
    %v7133 = vpack.c.b16 %v6365, %v6357
    %v7134 = vpack.c.b16 %v6366, %v6358
    %v7135 = vpack.c.b16 %v6367, %v6359
    %v7136 = vpack.c.b16 %v6376, %v6368
    %v7137 = vpack.c.b16 %v6377, %v6369
    %v7138 = vpack.c.b16 %v6378, %v6370
    %v7139 = vpack.c.b16 %v6379, %v6371
    %v7140 = vpack.c.b16 %v6380, %v6372
    %v7141 = vpack.c.b16 %v6381, %v6373
    %v7142 = vpack.c.b16 %v6382, %v6374
    %v7143 = vpack.c.b16 %v6383, %v6375
    %v7144 = vpack.c.b16 %v6392, %v6384
    %v7145 = vpack.c.b16 %v6393, %v6385
    %v7146 = vpack.c.b16 %v6394, %v6386
    %v7147 = vpack.c.b16 %v6395, %v6387
    %v7148 = vpack.c.b16 %v6396, %v6388
    %v7149 = vpack.c.b16 %v6397, %v6389
    %v7150 = vpack.c.b16 %v6398, %v6390
    %v7151 = vpack.c.b16 %v6399, %v6391
    %v7152 = vpack.c.b16 %v6408, %v6400
    %v7153 = vpack.c.b16 %v6409, %v6401
    %v7154 = vpack.c.b16 %v6410, %v6402
    %v7155 = vpack.c.b16 %v6411, %v6403
    %v7156 = vpack.c.b16 %v6412, %v6404
    %v7157 = vpack.c.b16 %v6413, %v6405
    %v7158 = vpack.c.b16 %v6414, %v6406
    %v7159 = vpack.c.b16 %v6415, %v6407
    %v7160 = vpack.c.b16 %v6424, %v6416
    %v7161 = vpack.c.b16 %v6425, %v6417
    %v7162 = vpack.c.b16 %v6426, %v6418
    %v7163 = vpack.c.b16 %v6427, %v6419
    %v7164 = vpack.c.b16 %v6428, %v6420
    %v7165 = vpack.c.b16 %v6429, %v6421
    %v7166 = vpack.c.b16 %v6430, %v6422
    %v7167 = vpack.c.b16 %v6431, %v6423
    %v7168 = vpack.c.b16 %v6440, %v6432
    %v7169 = vpack.c.b16 %v6441, %v6433
    %v7170 = vpack.c.b16 %v6442, %v6434
    %v7171 = vpack.c.b16 %v6443, %v6435
    %v7172 = vpack.c.b16 %v6444, %v6436
    %v7173 = vpack.c.b16 %v6445, %v6437
    %v7174 = vpack.c.b16 %v6446, %v6438
    %v7175 = vpack.c.b16 %v6447, %v6439
    %v7176 = vpack.c.b16 %v6456, %v6448
    %v7177 = vpack.c.b16 %v6457, %v6449
    %v7178 = vpack.c.b16 %v6458, %v6450
    %v7179 = vpack.c.b16 %v6459, %v6451
    %v7180 = vpack.c.b16 %v6460, %v6452
    %v7181 = vpack.c.b16 %v6461, %v6453
    %v7182 = vpack.c.b16 %v6462, %v6454
    %v7183 = vpack.c.b16 %v6463, %v6455
    %v7184 = vpack.c.b16 %v6472, %v6464
    %v7185 = vpack.c.b16 %v6473, %v6465
    %v7186 = vpack.c.b16 %v6474, %v6466
    %v7187 = vpack.c.b16 %v6475, %v6467
    %v7188 = vpack.c.b16 %v6476, %v6468
    %v7189 = vpack.c.b16 %v6477, %v6469
    %v7190 = vpack.c.b16 %v6478, %v6470
    %v7191 = vpack.c.b16 %v6479, %v6471
    %v7192 = vpack.c.b16 %v6488, %v6480
    %v7193 = vpack.c.b16 %v6489, %v6481
    %v7194 = vpack.c.b16 %v6490, %v6482
    %v7195 = vpack.c.b16 %v6491, %v6483
    %v7196 = vpack.c.b16 %v6492, %v6484
    %v7197 = vpack.c.b16 %v6493, %v6485
    %v7198 = vpack.c.b16 %v6494, %v6486
    %v7199 = vpack.c.b16 %v6495, %v6487
    %v7200 = vpack.c.b16 %v6504, %v6496
    %v7201 = vpack.c.b16 %v6505, %v6497
    %v7202 = vpack.c.b16 %v6506, %v6498
    %v7203 = vpack.c.b16 %v6507, %v6499
    %v7204 = vpack.c.b16 %v6508, %v6500
    %v7205 = vpack.c.b16 %v6509, %v6501
    %v7206 = vpack.c.b16 %v6510, %v6502
    %v7207 = vpack.c.b16 %v6511, %v6503
    %v7208 = vpack.c.b16 %v6520, %v6512
    %v7209 = vpack.c.b16 %v6521, %v6513
    %v7210 = vpack.c.b16 %v6522, %v6514
    %v7211 = vpack.c.b16 %v6523, %v6515
    %v7212 = vpack.c.b16 %v6524, %v6516
    %v7213 = vpack.c.b16 %v6525, %v6517
    %v7214 = vpack.c.b16 %v6526, %v6518
    %v7215 = vpack.c.b16 %v6527, %v6519
    %v7216 = vpack.c.b16 %v6536, %v6528
    %v7217 = vpack.c.b16 %v6537, %v6529
    %v7218 = vpack.c.b16 %v6538, %v6530
    %v7219 = vpack.c.b16 %v6539, %v6531
    %v7220 = vpack.c.b16 %v6540, %v6532
    %v7221 = vpack.c.b16 %v6541, %v6533
    %v7222 = vpack.c.b16 %v6542, %v6534
    %v7223 = vpack.c.b16 %v6543, %v6535
    %v7224 = vpack.c.b16 %v6552, %v6544
    %v7225 = vpack.c.b16 %v6553, %v6545
    %v7226 = vpack.c.b16 %v6554, %v6546
    %v7227 = vpack.c.b16 %v6555, %v6547
    %v7228 = vpack.c.b16 %v6556, %v6548
    %v7229 = vpack.c.b16 %v6557, %v6549
    %v7230 = vpack.c.b16 %v6558, %v6550
    %v7231 = vpack.c.b16 %v6559, %v6551
    %v7232 = vpack.c.b16 %v6568, %v6560
    %v7233 = vpack.c.b16 %v6569, %v6561
    %v7234 = vpack.c.b16 %v6570, %v6562
    %v7235 = vpack.c.b16 %v6571, %v6563
    %v7236 = vpack.c.b16 %v6572, %v6564
    %v7237 = vpack.c.b16 %v6573, %v6565
    %v7238 = vpack.c.b16 %v6574, %v6566
    %v7239 = vpack.c.b16 %v6575, %v6567
    %v7240 = vpack.c.b16 %v6584, %v6576
    %v7241 = vpack.c.b16 %v6585, %v6577
    %v7242 = vpack.c.b16 %v6586, %v6578
    %v7243 = vpack.c.b16 %v6587, %v6579
    %v7244 = vpack.c.b16 %v6588, %v6580
    %v7245 = vpack.c.b16 %v6589, %v6581
    %v7246 = vpack.c.b16 %v6590, %v6582
    %v7247 = vpack.c.b16 %v6591, %v6583
    %v7248 = vpack.c.b16 %v6600, %v6592
    %v7249 = vpack.c.b16 %v6601, %v6593
    %v7250 = vpack.c.b16 %v6602, %v6594
    %v7251 = vpack.c.b16 %v6603, %v6595
    %v7252 = vpack.c.b16 %v6604, %v6596
    %v7253 = vpack.c.b16 %v6605, %v6597
    %v7254 = vpack.c.b16 %v6606, %v6598
    %v7255 = vpack.c.b16 %v6607, %v6599
    %v7256 = vpack.c.b16 %v6616, %v6608
    %v7257 = vpack.c.b16 %v6617, %v6609
    %v7258 = vpack.c.b16 %v6618, %v6610
    %v7259 = vpack.c.b16 %v6619, %v6611
    %v7260 = vpack.c.b16 %v6620, %v6612
    %v7261 = vpack.c.b16 %v6621, %v6613
    %v7262 = vpack.c.b16 %v6622, %v6614
    %v7263 = vpack.c.b16 %v6623, %v6615
    %v7264 = vpack.c.b16 %v6632, %v6624
    %v7265 = vpack.c.b16 %v6633, %v6625
    %v7266 = vpack.c.b16 %v6634, %v6626
    %v7267 = vpack.c.b16 %v6635, %v6627
    %v7268 = vpack.c.b16 %v6636, %v6628
    %v7269 = vpack.c.b16 %v6637, %v6629
    %v7270 = vpack.c.b16 %v6638, %v6630
    %v7271 = vpack.c.b16 %v6639, %v6631
    %v7272 = vpack.c.b16 %v6648, %v6640
    %v7273 = vpack.c.b16 %v6649, %v6641
    %v7274 = vpack.c.b16 %v6650, %v6642
    %v7275 = vpack.c.b16 %v6651, %v6643
    %v7276 = vpack.c.b16 %v6652, %v6644
    %v7277 = vpack.c.b16 %v6653, %v6645
    %v7278 = vpack.c.b16 %v6654, %v6646
    %v7279 = vpack.c.b16 %v6655, %v6647
    %v7280 = vpack.c.b16 %v6664, %v6656
    %v7281 = vpack.c.b16 %v6665, %v6657
    %v7282 = vpack.c.b16 %v6666, %v6658
    %v7283 = vpack.c.b16 %v6667, %v6659
    %v7284 = vpack.c.b16 %v6668, %v6660
    %v7285 = vpack.c.b16 %v6669, %v6661
    %v7286 = vpack.c.b16 %v6670, %v6662
    %v7287 = vpack.c.b16 %v6671, %v6663
    %v7288 = vpack.c.b16 %v6680, %v6672
    %v7289 = vpack.c.b16 %v6681, %v6673
    %v7290 = vpack.c.b16 %v6682, %v6674
    %v7291 = vpack.c.b16 %v6683, %v6675
    %v7292 = vpack.c.b16 %v6684, %v6676
    %v7293 = vpack.c.b16 %v6685, %v6677
    %v7294 = vpack.c.b16 %v6686, %v6678
    %v7295 = vpack.c.b16 %v6687, %v6679
    %v7296 = vpack.c.b16 %v6696, %v6688
    %v7297 = vpack.c.b16 %v6697, %v6689
    %v7298 = vpack.c.b16 %v6698, %v6690
    %v7299 = vpack.c.b16 %v6699, %v6691
    %v7300 = vpack.c.b16 %v6700, %v6692
    %v7301 = vpack.c.b16 %v6701, %v6693
    %v7302 = vpack.c.b16 %v6702, %v6694
    %v7303 = vpack.c.b16 %v6703, %v6695
    %v7304 = vpack.c.b16 %v6712, %v6704
    %v7305 = vpack.c.b16 %v6713, %v6705
    %v7306 = vpack.c.b16 %v6714, %v6706
    %v7307 = vpack.c.b16 %v6715, %v6707
    %v7308 = vpack.c.b16 %v6716, %v6708
    %v7309 = vpack.c.b16 %v6717, %v6709
    %v7310 = vpack.c.b16 %v6718, %v6710
    %v7311 = vpack.c.b16 %v6719, %v6711
    %v7312 = vpack.c.b16 %v6728, %v6720
    %v7313 = vpack.c.b16 %v6729, %v6721
    %v7314 = vpack.c.b16 %v6730, %v6722
    %v7315 = vpack.c.b16 %v6731, %v6723
    %v7316 = vpack.c.b16 %v6732, %v6724
    %v7317 = vpack.c.b16 %v6733, %v6725
    %v7318 = vpack.c.b16 %v6734, %v6726
    %v7319 = vpack.c.b16 %v6735, %v6727
    %v7320 = vpack.c.b16 %v6744, %v6736
    %v7321 = vpack.c.b16 %v6745, %v6737
    %v7322 = vpack.c.b16 %v6746, %v6738
    %v7323 = vpack.c.b16 %v6747, %v6739
    %v7324 = vpack.c.b16 %v6748, %v6740
    %v7325 = vpack.c.b16 %v6749, %v6741
    %v7326 = vpack.c.b16 %v6750, %v6742
    %v7327 = vpack.c.b16 %v6751, %v6743
    %v7328 = vpack.c.b16 %v6760, %v6752
    %v7329 = vpack.c.b16 %v6761, %v6753
    %v7330 = vpack.c.b16 %v6762, %v6754
    %v7331 = vpack.c.b16 %v6763, %v6755
    %v7332 = vpack.c.b16 %v6764, %v6756
    %v7333 = vpack.c.b16 %v6765, %v6757
    %v7334 = vpack.c.b16 %v6766, %v6758
    %v7335 = vpack.c.b16 %v6767, %v6759
    %v7336 = vpack.c.b16 %v6776, %v6768
    %v7337 = vpack.c.b16 %v6777, %v6769
    %v7338 = vpack.c.b16 %v6778, %v6770
    %v7339 = vpack.c.b16 %v6779, %v6771
    %v7340 = vpack.c.b16 %v6780, %v6772
    %v7341 = vpack.c.b16 %v6781, %v6773
    %v7342 = vpack.c.b16 %v6782, %v6774
    %v7343 = vpack.c.b16 %v6783, %v6775
    %v7344 = vpack.c.b16 %v6792, %v6784
    %v7345 = vpack.c.b16 %v6793, %v6785
    %v7346 = vpack.c.b16 %v6794, %v6786
    %v7347 = vpack.c.b16 %v6795, %v6787
    %v7348 = vpack.c.b16 %v6796, %v6788
    %v7349 = vpack.c.b16 %v6797, %v6789
    %v7350 = vpack.c.b16 %v6798, %v6790
    %v7351 = vpack.c.b16 %v6799, %v6791
    %v7352 = vpack.c.b16 %v6808, %v6800
    %v7353 = vpack.c.b16 %v6809, %v6801
    %v7354 = vpack.c.b16 %v6810, %v6802
    %v7355 = vpack.c.b16 %v6811, %v6803
    %v7356 = vpack.c.b16 %v6812, %v6804
    %v7357 = vpack.c.b16 %v6813, %v6805
    %v7358 = vpack.c.b16 %v6814, %v6806
    %v7359 = vpack.c.b16 %v6815, %v6807
    %v7360 = vpack.c.b16 %v6824, %v6816
    %v7361 = vpack.c.b16 %v6825, %v6817
    %v7362 = vpack.c.b16 %v6826, %v6818
    %v7363 = vpack.c.b16 %v6827, %v6819
    %v7364 = vpack.c.b16 %v6828, %v6820
    %v7365 = vpack.c.b16 %v6829, %v6821
    %v7366 = vpack.c.b16 %v6830, %v6822
    %v7367 = vpack.c.b16 %v6831, %v6823
    %v7368 = vpack.c.b16 %v6840, %v6832
    %v7369 = vpack.c.b16 %v6841, %v6833
    %v7370 = vpack.c.b16 %v6842, %v6834
    %v7371 = vpack.c.b16 %v6843, %v6835
    %v7372 = vpack.c.b16 %v6844, %v6836
    %v7373 = vpack.c.b16 %v6845, %v6837
    %v7374 = vpack.c.b16 %v6846, %v6838
    %v7375 = vpack.c.b16 %v6847, %v6839
    %v7376 = vpack.c.b16 %v6856, %v6848
    %v7377 = vpack.c.b16 %v6857, %v6849
    %v7378 = vpack.c.b16 %v6858, %v6850
    %v7379 = vpack.c.b16 %v6859, %v6851
    %v7380 = vpack.c.b16 %v6860, %v6852
    %v7381 = vpack.c.b16 %v6861, %v6853
    %v7382 = vpack.c.b16 %v6862, %v6854
    %v7383 = vpack.c.b16 %v6863, %v6855
    %v7384 = vpack.c.b16 %v6872, %v6864
    %v7385 = vpack.c.b16 %v6873, %v6865
    %v7386 = vpack.c.b16 %v6874, %v6866
    %v7387 = vpack.c.b16 %v6875, %v6867
    %v7388 = vpack.c.b16 %v6876, %v6868
    %v7389 = vpack.c.b16 %v6877, %v6869
    %v7390 = vpack.c.b16 %v6878, %v6870
    %v7391 = vpack.c.b16 %v6879, %v6871
    %7904 = vmatpush.bf16.msra.mxu0 %v6936
    %7905 = vmatpush.bf16.msra.mxu0 %v6928
    %7906 = vmatpush.bf16.msra.mxu0 %v6920
    %7907 = vmatpush.bf16.msra.mxu0 %v6912
    %7908 = vmatpush.bf16.msra.mxu0 %v6904
    %7909 = vmatpush.bf16.msra.mxu0 %v6896
    %7910 = vmatpush.bf16.msra.mxu0 %v6888
    %7911 = vmatpush.bf16.msra.mxu0 %v6880
    %7912 = vmatmul.bf16.gmra.mxu0 %v4782
    %v7913 = vpop.f32.mrf.mxu0
    %v7914 = vadd.f32 %v5328, %v7913
    %v7915 = vpop.f32.mrf.mxu0
    %v7916 = vadd.f32 %v5328, %v7915
    %7917 = vmatmul.bf16.gmra.mxu0 %v4790
    %v7918 = vpop.f32.mrf.mxu0
    %v7919 = vadd.f32 %v5328, %v7918
    %v7920 = vpop.f32.mrf.mxu0
    %v7921 = vadd.f32 %v5328, %v7920
    %7922 = vmatmul.bf16.gmra.mxu0 %v4798
    %v7923 = vpop.f32.mrf.mxu0
    %v7924 = vadd.f32 %v5328, %v7923
    %v7925 = vpop.f32.mrf.mxu0
    %v7926 = vadd.f32 %v5328, %v7925
    %7927 = vmatmul.bf16.gmra.mxu0 %v4806
    %v7928 = vpop.f32.mrf.mxu0
    %v7929 = vadd.f32 %v5328, %v7928
    %v7930 = vpop.f32.mrf.mxu0
    %v7931 = vadd.f32 %v5328, %v7930
    %7932 = vdwg.mxu0
    %7933 = vmatpush.bf16.msra.mxu0 %v7000
    %7934 = vmatpush.bf16.msra.mxu0 %v6992
    %7935 = vmatpush.bf16.msra.mxu0 %v6984
    %7936 = vmatpush.bf16.msra.mxu0 %v6976
    %7937 = vmatpush.bf16.msra.mxu0 %v6968
    %7938 = vmatpush.bf16.msra.mxu0 %v6960
    %7939 = vmatpush.bf16.msra.mxu0 %v6952
    %7940 = vmatpush.bf16.msra.mxu0 %v6944
    %7941 = vmatmul.bf16.gmra.mxu0 %v4783
    %v7942 = vpop.f32.mrf.mxu0
    %v7943 = vadd.f32 %v7914, %v7942
    %v7944 = vpop.f32.mrf.mxu0
    %v7945 = vadd.f32 %v7916, %v7944
    %7946 = vmatmul.bf16.gmra.mxu0 %v4791
    %v7947 = vpop.f32.mrf.mxu0
    %v7948 = vadd.f32 %v7919, %v7947
    %v7949 = vpop.f32.mrf.mxu0
    %v7950 = vadd.f32 %v7921, %v7949
    %7951 = vmatmul.bf16.gmra.mxu0 %v4799
    %v7952 = vpop.f32.mrf.mxu0
    %v7953 = vadd.f32 %v7924, %v7952
    %v7954 = vpop.f32.mrf.mxu0
    %v7955 = vadd.f32 %v7926, %v7954
    %7956 = vmatmul.bf16.gmra.mxu0 %v4807
    %v7957 = vpop.f32.mrf.mxu0
    %v7958 = vadd.f32 %v7929, %v7957
    %v7959 = vpop.f32.mrf.mxu0
    %v7960 = vadd.f32 %v7931, %v7959
    %7961 = vdwg.mxu0
    %7962 = vmatpush.bf16.msra.mxu0 %v7064
    %7963 = vmatpush.bf16.msra.mxu0 %v7056
    %7964 = vmatpush.bf16.msra.mxu0 %v7048
    %7965 = vmatpush.bf16.msra.mxu0 %v7040
    %7966 = vmatpush.bf16.msra.mxu0 %v7032
    %7967 = vmatpush.bf16.msra.mxu0 %v7024
    %7968 = vmatpush.bf16.msra.mxu0 %v7016
    %7969 = vmatpush.bf16.msra.mxu0 %v7008
    %7970 = vmatmul.bf16.gmra.mxu0 %v4784
    %v7971 = vpop.f32.mrf.mxu0
    %v7972 = vadd.f32 %v7943, %v7971
    %v7973 = vpop.f32.mrf.mxu0
    %v7974 = vadd.f32 %v7945, %v7973
    %7975 = vmatmul.bf16.gmra.mxu0 %v4792
    %v7976 = vpop.f32.mrf.mxu0
    %v7977 = vadd.f32 %v7948, %v7976
    %v7978 = vpop.f32.mrf.mxu0
    %v7979 = vadd.f32 %v7950, %v7978
    %7980 = vmatmul.bf16.gmra.mxu0 %v4800
    %v7981 = vpop.f32.mrf.mxu0
    %v7982 = vadd.f32 %v7953, %v7981
    %v7983 = vpop.f32.mrf.mxu0
    %v7984 = vadd.f32 %v7955, %v7983
    %7985 = vmatmul.bf16.gmra.mxu0 %v4808
    %v7986 = vpop.f32.mrf.mxu0
    %v7987 = vadd.f32 %v7958, %v7986
    %v7988 = vpop.f32.mrf.mxu0
    %v7989 = vadd.f32 %v7960, %v7988
    %7990 = vdwg.mxu0
    %7991 = vmatpush.bf16.msra.mxu0 %v7128
    %7992 = vmatpush.bf16.msra.mxu0 %v7120
    %7993 = vmatpush.bf16.msra.mxu0 %v7112
    %7994 = vmatpush.bf16.msra.mxu0 %v7104
    %7995 = vmatpush.bf16.msra.mxu0 %v7096
    %7996 = vmatpush.bf16.msra.mxu0 %v7088
    %7997 = vmatpush.bf16.msra.mxu0 %v7080
    %7998 = vmatpush.bf16.msra.mxu0 %v7072
    %7999 = vmatmul.bf16.gmra.mxu0 %v4785
    %v8000 = vpop.f32.mrf.mxu0
    %v8001 = vadd.f32 %v7972, %v8000
    %v8002 = vpop.f32.mrf.mxu0
    %v8003 = vadd.f32 %v7974, %v8002
    %8004 = vmatmul.bf16.gmra.mxu0 %v4793
    %v8005 = vpop.f32.mrf.mxu0
    %v8006 = vadd.f32 %v7977, %v8005
    %v8007 = vpop.f32.mrf.mxu0
    %v8008 = vadd.f32 %v7979, %v8007
    %8009 = vmatmul.bf16.gmra.mxu0 %v4801
    %v8010 = vpop.f32.mrf.mxu0
    %v8011 = vadd.f32 %v7982, %v8010
    %v8012 = vpop.f32.mrf.mxu0
    %v8013 = vadd.f32 %v7984, %v8012
    %8014 = vmatmul.bf16.gmra.mxu0 %v4809
    %v8015 = vpop.f32.mrf.mxu0
    %v8016 = vadd.f32 %v7987, %v8015
    %v8017 = vpop.f32.mrf.mxu0
    %v8018 = vadd.f32 %v7989, %v8017
    %8019 = vdwg.mxu0
    %8020 = vmatpush.bf16.msra.mxu0 %v7192
    %8021 = vmatpush.bf16.msra.mxu0 %v7184
    %8022 = vmatpush.bf16.msra.mxu0 %v7176
    %8023 = vmatpush.bf16.msra.mxu0 %v7168
    %8024 = vmatpush.bf16.msra.mxu0 %v7160
    %8025 = vmatpush.bf16.msra.mxu0 %v7152
    %8026 = vmatpush.bf16.msra.mxu0 %v7144
    %8027 = vmatpush.bf16.msra.mxu0 %v7136
    %8028 = vmatmul.bf16.gmra.mxu0 %v4786
    %v8029 = vpop.f32.mrf.mxu0
    %v8030 = vadd.f32 %v8001, %v8029
    %v8031 = vpop.f32.mrf.mxu0
    %v8032 = vadd.f32 %v8003, %v8031
    %8033 = vmatmul.bf16.gmra.mxu0 %v4794
    %v8034 = vpop.f32.mrf.mxu0
    %v8035 = vadd.f32 %v8006, %v8034
    %v8036 = vpop.f32.mrf.mxu0
    %v8037 = vadd.f32 %v8008, %v8036
    %8038 = vmatmul.bf16.gmra.mxu0 %v4802
    %v8039 = vpop.f32.mrf.mxu0
    %v8040 = vadd.f32 %v8011, %v8039
    %v8041 = vpop.f32.mrf.mxu0
    %v8042 = vadd.f32 %v8013, %v8041
    %8043 = vmatmul.bf16.gmra.mxu0 %v4810
    %v8044 = vpop.f32.mrf.mxu0
    %v8045 = vadd.f32 %v8016, %v8044
    %v8046 = vpop.f32.mrf.mxu0
    %v8047 = vadd.f32 %v8018, %v8046
    %8048 = vdwg.mxu0
    %8049 = vmatpush.bf16.msra.mxu0 %v7256
    %8050 = vmatpush.bf16.msra.mxu0 %v7248
    %8051 = vmatpush.bf16.msra.mxu0 %v7240
    %8052 = vmatpush.bf16.msra.mxu0 %v7232
    %8053 = vmatpush.bf16.msra.mxu0 %v7224
    %8054 = vmatpush.bf16.msra.mxu0 %v7216
    %8055 = vmatpush.bf16.msra.mxu0 %v7208
    %8056 = vmatpush.bf16.msra.mxu0 %v7200
    %8057 = vmatmul.bf16.gmra.mxu0 %v4787
    %v8058 = vpop.f32.mrf.mxu0
    %v8059 = vadd.f32 %v8030, %v8058
    %v8060 = vpop.f32.mrf.mxu0
    %v8061 = vadd.f32 %v8032, %v8060
    %8062 = vmatmul.bf16.gmra.mxu0 %v4795
    %v8063 = vpop.f32.mrf.mxu0
    %v8064 = vadd.f32 %v8035, %v8063
    %v8065 = vpop.f32.mrf.mxu0
    %v8066 = vadd.f32 %v8037, %v8065
    %8067 = vmatmul.bf16.gmra.mxu0 %v4803
    %v8068 = vpop.f32.mrf.mxu0
    %v8069 = vadd.f32 %v8040, %v8068
    %v8070 = vpop.f32.mrf.mxu0
    %v8071 = vadd.f32 %v8042, %v8070
    %8072 = vmatmul.bf16.gmra.mxu0 %v4811
    %v8073 = vpop.f32.mrf.mxu0
    %v8074 = vadd.f32 %v8045, %v8073
    %v8075 = vpop.f32.mrf.mxu0
    %v8076 = vadd.f32 %v8047, %v8075
    %8077 = vdwg.mxu0
    %8078 = vmatpush.bf16.msra.mxu0 %v7320
    %8079 = vmatpush.bf16.msra.mxu0 %v7312
    %8080 = vmatpush.bf16.msra.mxu0 %v7304
    %8081 = vmatpush.bf16.msra.mxu0 %v7296
    %8082 = vmatpush.bf16.msra.mxu0 %v7288
    %8083 = vmatpush.bf16.msra.mxu0 %v7280
    %8084 = vmatpush.bf16.msra.mxu0 %v7272
    %8085 = vmatpush.bf16.msra.mxu0 %v7264
    %8086 = vmatmul.bf16.gmra.mxu0 %v4788
    %v8087 = vpop.f32.mrf.mxu0
    %v8088 = vadd.f32 %v8059, %v8087
    %v8089 = vpop.f32.mrf.mxu0
    %v8090 = vadd.f32 %v8061, %v8089
    %8091 = vmatmul.bf16.gmra.mxu0 %v4796
    %v8092 = vpop.f32.mrf.mxu0
    %v8093 = vadd.f32 %v8064, %v8092
    %v8094 = vpop.f32.mrf.mxu0
    %v8095 = vadd.f32 %v8066, %v8094
    %8096 = vmatmul.bf16.gmra.mxu0 %v4804
    %v8097 = vpop.f32.mrf.mxu0
    %v8098 = vadd.f32 %v8069, %v8097
    %v8099 = vpop.f32.mrf.mxu0
    %v8100 = vadd.f32 %v8071, %v8099
    %8101 = vmatmul.bf16.gmra.mxu0 %v4812
    %v8102 = vpop.f32.mrf.mxu0
    %v8103 = vadd.f32 %v8074, %v8102
    %v8104 = vpop.f32.mrf.mxu0
    %v8105 = vadd.f32 %v8076, %v8104
    %8106 = vdwg.mxu0
    %8107 = vmatpush.bf16.msra.mxu0 %v7384
    %8108 = vmatpush.bf16.msra.mxu0 %v7376
    %8109 = vmatpush.bf16.msra.mxu0 %v7368
    %8110 = vmatpush.bf16.msra.mxu0 %v7360
    %8111 = vmatpush.bf16.msra.mxu0 %v7352
    %8112 = vmatpush.bf16.msra.mxu0 %v7344
    %8113 = vmatpush.bf16.msra.mxu0 %v7336
    %8114 = vmatpush.bf16.msra.mxu0 %v7328
    %8115 = vmatmul.bf16.gmra.mxu0 %v4789
    %v8116 = vpop.f32.mrf.mxu0
    %v8117 = vadd.f32 %v8088, %v8116
    %v8118 = vpop.f32.mrf.mxu0
    %v8119 = vadd.f32 %v8090, %v8118
    %8120 = vmatmul.bf16.gmra.mxu0 %v4797
    %v8121 = vpop.f32.mrf.mxu0
    %v8122 = vadd.f32 %v8093, %v8121
    %v8123 = vpop.f32.mrf.mxu0
    %v8124 = vadd.f32 %v8095, %v8123
    %8125 = vmatmul.bf16.gmra.mxu0 %v4805
    %v8126 = vpop.f32.mrf.mxu0
    %v8127 = vadd.f32 %v8098, %v8126
    %v8128 = vpop.f32.mrf.mxu0
    %v8129 = vadd.f32 %v8100, %v8128
    %8130 = vmatmul.bf16.gmra.mxu0 %v4813
    %v8131 = vpop.f32.mrf.mxu0
    %v8132 = vadd.f32 %v8103, %v8131
    %v8133 = vpop.f32.mrf.mxu0
    %v8134 = vadd.f32 %v8105, %v8133
    %8135 = vdwg.mxu0
    %8136 = vmatpush.bf16.msra.mxu0 %v6937
    %8137 = vmatpush.bf16.msra.mxu0 %v6929
    %8138 = vmatpush.bf16.msra.mxu0 %v6921
    %8139 = vmatpush.bf16.msra.mxu0 %v6913
    %8140 = vmatpush.bf16.msra.mxu0 %v6905
    %8141 = vmatpush.bf16.msra.mxu0 %v6897
    %8142 = vmatpush.bf16.msra.mxu0 %v6889
    %8143 = vmatpush.bf16.msra.mxu0 %v6881
    %8144 = vmatmul.bf16.gmra.mxu0 %v4782
    %v8145 = vpop.f32.mrf.mxu0
    %v8146 = vadd.f32 %v5329, %v8145
    %v8147 = vpop.f32.mrf.mxu0
    %v8148 = vadd.f32 %v5329, %v8147
    %8149 = vmatmul.bf16.gmra.mxu0 %v4790
    %v8150 = vpop.f32.mrf.mxu0
    %v8151 = vadd.f32 %v5329, %v8150
    %v8152 = vpop.f32.mrf.mxu0
    %v8153 = vadd.f32 %v5329, %v8152
    %8154 = vmatmul.bf16.gmra.mxu0 %v4798
    %v8155 = vpop.f32.mrf.mxu0
    %v8156 = vadd.f32 %v5329, %v8155
    %v8157 = vpop.f32.mrf.mxu0
    %v8158 = vadd.f32 %v5329, %v8157
    %8159 = vmatmul.bf16.gmra.mxu0 %v4806
    %v8160 = vpop.f32.mrf.mxu0
    %v8161 = vadd.f32 %v5329, %v8160
    %v8162 = vpop.f32.mrf.mxu0
    %v8163 = vadd.f32 %v5329, %v8162
    %8164 = vdwg.mxu0
    %8165 = vmatpush.bf16.msra.mxu0 %v7001
    %8166 = vmatpush.bf16.msra.mxu0 %v6993
    %8167 = vmatpush.bf16.msra.mxu0 %v6985
    %8168 = vmatpush.bf16.msra.mxu0 %v6977
    %8169 = vmatpush.bf16.msra.mxu0 %v6969
    %8170 = vmatpush.bf16.msra.mxu0 %v6961
    %8171 = vmatpush.bf16.msra.mxu0 %v6953
    %8172 = vmatpush.bf16.msra.mxu0 %v6945
    %8173 = vmatmul.bf16.gmra.mxu0 %v4783
    %v8174 = vpop.f32.mrf.mxu0
    %v8175 = vadd.f32 %v8146, %v8174
    %v8176 = vpop.f32.mrf.mxu0
    %v8177 = vadd.f32 %v8148, %v8176
    %8178 = vmatmul.bf16.gmra.mxu0 %v4791
    %v8179 = vpop.f32.mrf.mxu0
    %v8180 = vadd.f32 %v8151, %v8179
    %v8181 = vpop.f32.mrf.mxu0
    %v8182 = vadd.f32 %v8153, %v8181
    %8183 = vmatmul.bf16.gmra.mxu0 %v4799
    %v8184 = vpop.f32.mrf.mxu0
    %v8185 = vadd.f32 %v8156, %v8184
    %v8186 = vpop.f32.mrf.mxu0
    %v8187 = vadd.f32 %v8158, %v8186
    %8188 = vmatmul.bf16.gmra.mxu0 %v4807
    %v8189 = vpop.f32.mrf.mxu0
    %v8190 = vadd.f32 %v8161, %v8189
    %v8191 = vpop.f32.mrf.mxu0
    %v8192 = vadd.f32 %v8163, %v8191
    %8193 = vdwg.mxu0
    %8194 = vmatpush.bf16.msra.mxu0 %v7065
    %8195 = vmatpush.bf16.msra.mxu0 %v7057
    %8196 = vmatpush.bf16.msra.mxu0 %v7049
    %8197 = vmatpush.bf16.msra.mxu0 %v7041
    %8198 = vmatpush.bf16.msra.mxu0 %v7033
    %8199 = vmatpush.bf16.msra.mxu0 %v7025
    %8200 = vmatpush.bf16.msra.mxu0 %v7017
    %8201 = vmatpush.bf16.msra.mxu0 %v7009
    %8202 = vmatmul.bf16.gmra.mxu0 %v4784
    %v8203 = vpop.f32.mrf.mxu0
    %v8204 = vadd.f32 %v8175, %v8203
    %v8205 = vpop.f32.mrf.mxu0
    %v8206 = vadd.f32 %v8177, %v8205
    %8207 = vmatmul.bf16.gmra.mxu0 %v4792
    %v8208 = vpop.f32.mrf.mxu0
    %v8209 = vadd.f32 %v8180, %v8208
    %v8210 = vpop.f32.mrf.mxu0
    %v8211 = vadd.f32 %v8182, %v8210
    %8212 = vmatmul.bf16.gmra.mxu0 %v4800
    %v8213 = vpop.f32.mrf.mxu0
    %v8214 = vadd.f32 %v8185, %v8213
    %v8215 = vpop.f32.mrf.mxu0
    %v8216 = vadd.f32 %v8187, %v8215
    %8217 = vmatmul.bf16.gmra.mxu0 %v4808
    %v8218 = vpop.f32.mrf.mxu0
    %v8219 = vadd.f32 %v8190, %v8218
    %v8220 = vpop.f32.mrf.mxu0
    %v8221 = vadd.f32 %v8192, %v8220
    %8222 = vdwg.mxu0
    %8223 = vmatpush.bf16.msra.mxu0 %v7129
    %8224 = vmatpush.bf16.msra.mxu0 %v7121
    %8225 = vmatpush.bf16.msra.mxu0 %v7113
    %8226 = vmatpush.bf16.msra.mxu0 %v7105
    %8227 = vmatpush.bf16.msra.mxu0 %v7097
    %8228 = vmatpush.bf16.msra.mxu0 %v7089
    %8229 = vmatpush.bf16.msra.mxu0 %v7081
    %8230 = vmatpush.bf16.msra.mxu0 %v7073
    %8231 = vmatmul.bf16.gmra.mxu0 %v4785
    %v8232 = vpop.f32.mrf.mxu0
    %v8233 = vadd.f32 %v8204, %v8232
    %v8234 = vpop.f32.mrf.mxu0
    %v8235 = vadd.f32 %v8206, %v8234
    %8236 = vmatmul.bf16.gmra.mxu0 %v4793
    %v8237 = vpop.f32.mrf.mxu0
    %v8238 = vadd.f32 %v8209, %v8237
    %v8239 = vpop.f32.mrf.mxu0
    %v8240 = vadd.f32 %v8211, %v8239
    %8241 = vmatmul.bf16.gmra.mxu0 %v4801
    %v8242 = vpop.f32.mrf.mxu0
    %v8243 = vadd.f32 %v8214, %v8242
    %v8244 = vpop.f32.mrf.mxu0
    %v8245 = vadd.f32 %v8216, %v8244
    %8246 = vmatmul.bf16.gmra.mxu0 %v4809
    %v8247 = vpop.f32.mrf.mxu0
    %v8248 = vadd.f32 %v8219, %v8247
    %v8249 = vpop.f32.mrf.mxu0
    %v8250 = vadd.f32 %v8221, %v8249
    %8251 = vdwg.mxu0
    %8252 = vmatpush.bf16.msra.mxu0 %v7193
    %8253 = vmatpush.bf16.msra.mxu0 %v7185
    %8254 = vmatpush.bf16.msra.mxu0 %v7177
    %8255 = vmatpush.bf16.msra.mxu0 %v7169
    %8256 = vmatpush.bf16.msra.mxu0 %v7161
    %8257 = vmatpush.bf16.msra.mxu0 %v7153
    %8258 = vmatpush.bf16.msra.mxu0 %v7145
    %8259 = vmatpush.bf16.msra.mxu0 %v7137
    %8260 = vmatmul.bf16.gmra.mxu0 %v4786
    %v8261 = vpop.f32.mrf.mxu0
    %v8262 = vadd.f32 %v8233, %v8261
    %v8263 = vpop.f32.mrf.mxu0
    %v8264 = vadd.f32 %v8235, %v8263
    %8265 = vmatmul.bf16.gmra.mxu0 %v4794
    %v8266 = vpop.f32.mrf.mxu0
    %v8267 = vadd.f32 %v8238, %v8266
    %v8268 = vpop.f32.mrf.mxu0
    %v8269 = vadd.f32 %v8240, %v8268
    %8270 = vmatmul.bf16.gmra.mxu0 %v4802
    %v8271 = vpop.f32.mrf.mxu0
    %v8272 = vadd.f32 %v8243, %v8271
    %v8273 = vpop.f32.mrf.mxu0
    %v8274 = vadd.f32 %v8245, %v8273
    %8275 = vmatmul.bf16.gmra.mxu0 %v4810
    %v8276 = vpop.f32.mrf.mxu0
    %v8277 = vadd.f32 %v8248, %v8276
    %v8278 = vpop.f32.mrf.mxu0
    %v8279 = vadd.f32 %v8250, %v8278
    %8280 = vdwg.mxu0
    %8281 = vmatpush.bf16.msra.mxu0 %v7257
    %8282 = vmatpush.bf16.msra.mxu0 %v7249
    %8283 = vmatpush.bf16.msra.mxu0 %v7241
    %8284 = vmatpush.bf16.msra.mxu0 %v7233
    %8285 = vmatpush.bf16.msra.mxu0 %v7225
    %8286 = vmatpush.bf16.msra.mxu0 %v7217
    %8287 = vmatpush.bf16.msra.mxu0 %v7209
    %8288 = vmatpush.bf16.msra.mxu0 %v7201
    %8289 = vmatmul.bf16.gmra.mxu0 %v4787
    %v8290 = vpop.f32.mrf.mxu0
    %v8291 = vadd.f32 %v8262, %v8290
    %v8292 = vpop.f32.mrf.mxu0
    %v8293 = vadd.f32 %v8264, %v8292
    %8294 = vmatmul.bf16.gmra.mxu0 %v4795
    %v8295 = vpop.f32.mrf.mxu0
    %v8296 = vadd.f32 %v8267, %v8295
    %v8297 = vpop.f32.mrf.mxu0
    %v8298 = vadd.f32 %v8269, %v8297
    %8299 = vmatmul.bf16.gmra.mxu0 %v4803
    %v8300 = vpop.f32.mrf.mxu0
    %v8301 = vadd.f32 %v8272, %v8300
    %v8302 = vpop.f32.mrf.mxu0
    %v8303 = vadd.f32 %v8274, %v8302
    %8304 = vmatmul.bf16.gmra.mxu0 %v4811
    %v8305 = vpop.f32.mrf.mxu0
    %v8306 = vadd.f32 %v8277, %v8305
    %v8307 = vpop.f32.mrf.mxu0
    %v8308 = vadd.f32 %v8279, %v8307
    %8309 = vdwg.mxu0
    %8310 = vmatpush.bf16.msra.mxu0 %v7321
    %8311 = vmatpush.bf16.msra.mxu0 %v7313
    %8312 = vmatpush.bf16.msra.mxu0 %v7305
    %8313 = vmatpush.bf16.msra.mxu0 %v7297
    %8314 = vmatpush.bf16.msra.mxu0 %v7289
    %8315 = vmatpush.bf16.msra.mxu0 %v7281
    %8316 = vmatpush.bf16.msra.mxu0 %v7273
    %8317 = vmatpush.bf16.msra.mxu0 %v7265
    %8318 = vmatmul.bf16.gmra.mxu0 %v4788
    %v8319 = vpop.f32.mrf.mxu0
    %v8320 = vadd.f32 %v8291, %v8319
    %v8321 = vpop.f32.mrf.mxu0
    %v8322 = vadd.f32 %v8293, %v8321
    %8323 = vmatmul.bf16.gmra.mxu0 %v4796
    %v8324 = vpop.f32.mrf.mxu0
    %v8325 = vadd.f32 %v8296, %v8324
    %v8326 = vpop.f32.mrf.mxu0
    %v8327 = vadd.f32 %v8298, %v8326
    %8328 = vmatmul.bf16.gmra.mxu0 %v4804
    %v8329 = vpop.f32.mrf.mxu0
    %v8330 = vadd.f32 %v8301, %v8329
    %v8331 = vpop.f32.mrf.mxu0
    %v8332 = vadd.f32 %v8303, %v8331
    %8333 = vmatmul.bf16.gmra.mxu0 %v4812
    %v8334 = vpop.f32.mrf.mxu0
    %v8335 = vadd.f32 %v8306, %v8334
    %v8336 = vpop.f32.mrf.mxu0
    %v8337 = vadd.f32 %v8308, %v8336
    %8338 = vdwg.mxu0
    %8339 = vmatpush.bf16.msra.mxu0 %v7385
    %8340 = vmatpush.bf16.msra.mxu0 %v7377
    %8341 = vmatpush.bf16.msra.mxu0 %v7369
    %8342 = vmatpush.bf16.msra.mxu0 %v7361
    %8343 = vmatpush.bf16.msra.mxu0 %v7353
    %8344 = vmatpush.bf16.msra.mxu0 %v7345
    %8345 = vmatpush.bf16.msra.mxu0 %v7337
    %8346 = vmatpush.bf16.msra.mxu0 %v7329
    %8347 = vmatmul.bf16.gmra.mxu0 %v4789
    %v8348 = vpop.f32.mrf.mxu0
    %v8349 = vadd.f32 %v8320, %v8348
    %v8350 = vpop.f32.mrf.mxu0
    %v8351 = vadd.f32 %v8322, %v8350
    %8352 = vmatmul.bf16.gmra.mxu0 %v4797
    %v8353 = vpop.f32.mrf.mxu0
    %v8354 = vadd.f32 %v8325, %v8353
    %v8355 = vpop.f32.mrf.mxu0
    %v8356 = vadd.f32 %v8327, %v8355
    %8357 = vmatmul.bf16.gmra.mxu0 %v4805
    %v8358 = vpop.f32.mrf.mxu0
    %v8359 = vadd.f32 %v8330, %v8358
    %v8360 = vpop.f32.mrf.mxu0
    %v8361 = vadd.f32 %v8332, %v8360
    %8362 = vmatmul.bf16.gmra.mxu0 %v4813
    %v8363 = vpop.f32.mrf.mxu0
    %v8364 = vadd.f32 %v8335, %v8363
    %v8365 = vpop.f32.mrf.mxu0
    %v8366 = vadd.f32 %v8337, %v8365
    %8367 = vdwg.mxu0
    %8368 = vmatpush.bf16.msra.mxu0 %v6938
    %8369 = vmatpush.bf16.msra.mxu0 %v6930
    %8370 = vmatpush.bf16.msra.mxu0 %v6922
    %8371 = vmatpush.bf16.msra.mxu0 %v6914
    %8372 = vmatpush.bf16.msra.mxu0 %v6906
    %8373 = vmatpush.bf16.msra.mxu0 %v6898
    %8374 = vmatpush.bf16.msra.mxu0 %v6890
    %8375 = vmatpush.bf16.msra.mxu0 %v6882
    %8376 = vmatmul.bf16.gmra.mxu0 %v4782
    %v8377 = vpop.f32.mrf.mxu0
    %v8378 = vadd.f32 %v5330, %v8377
    %v8379 = vpop.f32.mrf.mxu0
    %v8380 = vadd.f32 %v5330, %v8379
    %8381 = vmatmul.bf16.gmra.mxu0 %v4790
    %v8382 = vpop.f32.mrf.mxu0
    %v8383 = vadd.f32 %v5330, %v8382
    %v8384 = vpop.f32.mrf.mxu0
    %v8385 = vadd.f32 %v5330, %v8384
    %8386 = vmatmul.bf16.gmra.mxu0 %v4798
    %v8387 = vpop.f32.mrf.mxu0
    %v8388 = vadd.f32 %v5330, %v8387
    %v8389 = vpop.f32.mrf.mxu0
    %v8390 = vadd.f32 %v5330, %v8389
    %8391 = vmatmul.bf16.gmra.mxu0 %v4806
    %v8392 = vpop.f32.mrf.mxu0
    %v8393 = vadd.f32 %v5330, %v8392
    %v8394 = vpop.f32.mrf.mxu0
    %v8395 = vadd.f32 %v5330, %v8394
    %8396 = vdwg.mxu0
    %8397 = vmatpush.bf16.msra.mxu0 %v7002
    %8398 = vmatpush.bf16.msra.mxu0 %v6994
    %8399 = vmatpush.bf16.msra.mxu0 %v6986
    %8400 = vmatpush.bf16.msra.mxu0 %v6978
    %8401 = vmatpush.bf16.msra.mxu0 %v6970
    %8402 = vmatpush.bf16.msra.mxu0 %v6962
    %8403 = vmatpush.bf16.msra.mxu0 %v6954
    %8404 = vmatpush.bf16.msra.mxu0 %v6946
    %8405 = vmatmul.bf16.gmra.mxu0 %v4783
    %v8406 = vpop.f32.mrf.mxu0
    %v8407 = vadd.f32 %v8378, %v8406
    %v8408 = vpop.f32.mrf.mxu0
    %v8409 = vadd.f32 %v8380, %v8408
    %8410 = vmatmul.bf16.gmra.mxu0 %v4791
    %v8411 = vpop.f32.mrf.mxu0
    %v8412 = vadd.f32 %v8383, %v8411
    %v8413 = vpop.f32.mrf.mxu0
    %v8414 = vadd.f32 %v8385, %v8413
    %8415 = vmatmul.bf16.gmra.mxu0 %v4799
    %v8416 = vpop.f32.mrf.mxu0
    %v8417 = vadd.f32 %v8388, %v8416
    %v8418 = vpop.f32.mrf.mxu0
    %v8419 = vadd.f32 %v8390, %v8418
    %8420 = vmatmul.bf16.gmra.mxu0 %v4807
    %v8421 = vpop.f32.mrf.mxu0
    %v8422 = vadd.f32 %v8393, %v8421
    %v8423 = vpop.f32.mrf.mxu0
    %v8424 = vadd.f32 %v8395, %v8423
    %8425 = vdwg.mxu0
    %8426 = vmatpush.bf16.msra.mxu0 %v7066
    %8427 = vmatpush.bf16.msra.mxu0 %v7058
    %8428 = vmatpush.bf16.msra.mxu0 %v7050
    %8429 = vmatpush.bf16.msra.mxu0 %v7042
    %8430 = vmatpush.bf16.msra.mxu0 %v7034
    %8431 = vmatpush.bf16.msra.mxu0 %v7026
    %8432 = vmatpush.bf16.msra.mxu0 %v7018
    %8433 = vmatpush.bf16.msra.mxu0 %v7010
    %8434 = vmatmul.bf16.gmra.mxu0 %v4784
    %v8435 = vpop.f32.mrf.mxu0
    %v8436 = vadd.f32 %v8407, %v8435
    %v8437 = vpop.f32.mrf.mxu0
    %v8438 = vadd.f32 %v8409, %v8437
    %8439 = vmatmul.bf16.gmra.mxu0 %v4792
    %v8440 = vpop.f32.mrf.mxu0
    %v8441 = vadd.f32 %v8412, %v8440
    %v8442 = vpop.f32.mrf.mxu0
    %v8443 = vadd.f32 %v8414, %v8442
    %8444 = vmatmul.bf16.gmra.mxu0 %v4800
    %v8445 = vpop.f32.mrf.mxu0
    %v8446 = vadd.f32 %v8417, %v8445
    %v8447 = vpop.f32.mrf.mxu0
    %v8448 = vadd.f32 %v8419, %v8447
    %8449 = vmatmul.bf16.gmra.mxu0 %v4808
    %v8450 = vpop.f32.mrf.mxu0
    %v8451 = vadd.f32 %v8422, %v8450
    %v8452 = vpop.f32.mrf.mxu0
    %v8453 = vadd.f32 %v8424, %v8452
    %8454 = vdwg.mxu0
    %8455 = vmatpush.bf16.msra.mxu0 %v7130
    %8456 = vmatpush.bf16.msra.mxu0 %v7122
    %8457 = vmatpush.bf16.msra.mxu0 %v7114
    %8458 = vmatpush.bf16.msra.mxu0 %v7106
    %8459 = vmatpush.bf16.msra.mxu0 %v7098
    %8460 = vmatpush.bf16.msra.mxu0 %v7090
    %8461 = vmatpush.bf16.msra.mxu0 %v7082
    %8462 = vmatpush.bf16.msra.mxu0 %v7074
    %8463 = vmatmul.bf16.gmra.mxu0 %v4785
    %v8464 = vpop.f32.mrf.mxu0
    %v8465 = vadd.f32 %v8436, %v8464
    %v8466 = vpop.f32.mrf.mxu0
    %v8467 = vadd.f32 %v8438, %v8466
    %8468 = vmatmul.bf16.gmra.mxu0 %v4793
    %v8469 = vpop.f32.mrf.mxu0
    %v8470 = vadd.f32 %v8441, %v8469
    %v8471 = vpop.f32.mrf.mxu0
    %v8472 = vadd.f32 %v8443, %v8471
    %8473 = vmatmul.bf16.gmra.mxu0 %v4801
    %v8474 = vpop.f32.mrf.mxu0
    %v8475 = vadd.f32 %v8446, %v8474
    %v8476 = vpop.f32.mrf.mxu0
    %v8477 = vadd.f32 %v8448, %v8476
    %8478 = vmatmul.bf16.gmra.mxu0 %v4809
    %v8479 = vpop.f32.mrf.mxu0
    %v8480 = vadd.f32 %v8451, %v8479
    %v8481 = vpop.f32.mrf.mxu0
    %v8482 = vadd.f32 %v8453, %v8481
    %8483 = vdwg.mxu0
    %8484 = vmatpush.bf16.msra.mxu0 %v7194
    %8485 = vmatpush.bf16.msra.mxu0 %v7186
    %8486 = vmatpush.bf16.msra.mxu0 %v7178
    %8487 = vmatpush.bf16.msra.mxu0 %v7170
    %8488 = vmatpush.bf16.msra.mxu0 %v7162
    %8489 = vmatpush.bf16.msra.mxu0 %v7154
    %8490 = vmatpush.bf16.msra.mxu0 %v7146
    %8491 = vmatpush.bf16.msra.mxu0 %v7138
    %8492 = vmatmul.bf16.gmra.mxu0 %v4786
    %v8493 = vpop.f32.mrf.mxu0
    %v8494 = vadd.f32 %v8465, %v8493
    %v8495 = vpop.f32.mrf.mxu0
    %v8496 = vadd.f32 %v8467, %v8495
    %8497 = vmatmul.bf16.gmra.mxu0 %v4794
    %v8498 = vpop.f32.mrf.mxu0
    %v8499 = vadd.f32 %v8470, %v8498
    %v8500 = vpop.f32.mrf.mxu0
    %v8501 = vadd.f32 %v8472, %v8500
    %8502 = vmatmul.bf16.gmra.mxu0 %v4802
    %v8503 = vpop.f32.mrf.mxu0
    %v8504 = vadd.f32 %v8475, %v8503
    %v8505 = vpop.f32.mrf.mxu0
    %v8506 = vadd.f32 %v8477, %v8505
    %8507 = vmatmul.bf16.gmra.mxu0 %v4810
    %v8508 = vpop.f32.mrf.mxu0
    %v8509 = vadd.f32 %v8480, %v8508
    %v8510 = vpop.f32.mrf.mxu0
    %v8511 = vadd.f32 %v8482, %v8510
    %8512 = vdwg.mxu0
    %8513 = vmatpush.bf16.msra.mxu0 %v7258
    %8514 = vmatpush.bf16.msra.mxu0 %v7250
    %8515 = vmatpush.bf16.msra.mxu0 %v7242
    %8516 = vmatpush.bf16.msra.mxu0 %v7234
    %8517 = vmatpush.bf16.msra.mxu0 %v7226
    %8518 = vmatpush.bf16.msra.mxu0 %v7218
    %8519 = vmatpush.bf16.msra.mxu0 %v7210
    %8520 = vmatpush.bf16.msra.mxu0 %v7202
    %8521 = vmatmul.bf16.gmra.mxu0 %v4787
    %v8522 = vpop.f32.mrf.mxu0
    %v8523 = vadd.f32 %v8494, %v8522
    %v8524 = vpop.f32.mrf.mxu0
    %v8525 = vadd.f32 %v8496, %v8524
    %8526 = vmatmul.bf16.gmra.mxu0 %v4795
    %v8527 = vpop.f32.mrf.mxu0
    %v8528 = vadd.f32 %v8499, %v8527
    %v8529 = vpop.f32.mrf.mxu0
    %v8530 = vadd.f32 %v8501, %v8529
    %8531 = vmatmul.bf16.gmra.mxu0 %v4803
    %v8532 = vpop.f32.mrf.mxu0
    %v8533 = vadd.f32 %v8504, %v8532
    %v8534 = vpop.f32.mrf.mxu0
    %v8535 = vadd.f32 %v8506, %v8534
    %8536 = vmatmul.bf16.gmra.mxu0 %v4811
    %v8537 = vpop.f32.mrf.mxu0
    %v8538 = vadd.f32 %v8509, %v8537
    %v8539 = vpop.f32.mrf.mxu0
    %v8540 = vadd.f32 %v8511, %v8539
    %8541 = vdwg.mxu0
    %8542 = vmatpush.bf16.msra.mxu0 %v7322
    %8543 = vmatpush.bf16.msra.mxu0 %v7314
    %8544 = vmatpush.bf16.msra.mxu0 %v7306
    %8545 = vmatpush.bf16.msra.mxu0 %v7298
    %8546 = vmatpush.bf16.msra.mxu0 %v7290
    %8547 = vmatpush.bf16.msra.mxu0 %v7282
    %8548 = vmatpush.bf16.msra.mxu0 %v7274
    %8549 = vmatpush.bf16.msra.mxu0 %v7266
    %8550 = vmatmul.bf16.gmra.mxu0 %v4788
    %v8551 = vpop.f32.mrf.mxu0
    %v8552 = vadd.f32 %v8523, %v8551
    %v8553 = vpop.f32.mrf.mxu0
    %v8554 = vadd.f32 %v8525, %v8553
    %8555 = vmatmul.bf16.gmra.mxu0 %v4796
    %v8556 = vpop.f32.mrf.mxu0
    %v8557 = vadd.f32 %v8528, %v8556
    %v8558 = vpop.f32.mrf.mxu0
    %v8559 = vadd.f32 %v8530, %v8558
    %8560 = vmatmul.bf16.gmra.mxu0 %v4804
    %v8561 = vpop.f32.mrf.mxu0
    %v8562 = vadd.f32 %v8533, %v8561
    %v8563 = vpop.f32.mrf.mxu0
    %v8564 = vadd.f32 %v8535, %v8563
    %8565 = vmatmul.bf16.gmra.mxu0 %v4812
    %v8566 = vpop.f32.mrf.mxu0
    %v8567 = vadd.f32 %v8538, %v8566
    %v8568 = vpop.f32.mrf.mxu0
    %v8569 = vadd.f32 %v8540, %v8568
    %8570 = vdwg.mxu0
    %8571 = vmatpush.bf16.msra.mxu0 %v7386
    %8572 = vmatpush.bf16.msra.mxu0 %v7378
    %8573 = vmatpush.bf16.msra.mxu0 %v7370
    %8574 = vmatpush.bf16.msra.mxu0 %v7362
    %8575 = vmatpush.bf16.msra.mxu0 %v7354
    %8576 = vmatpush.bf16.msra.mxu0 %v7346
    %8577 = vmatpush.bf16.msra.mxu0 %v7338
    %8578 = vmatpush.bf16.msra.mxu0 %v7330
    %8579 = vmatmul.bf16.gmra.mxu0 %v4789
    %v8580 = vpop.f32.mrf.mxu0
    %v8581 = vadd.f32 %v8552, %v8580
    %v8582 = vpop.f32.mrf.mxu0
    %v8583 = vadd.f32 %v8554, %v8582
    %8584 = vmatmul.bf16.gmra.mxu0 %v4797
    %v8585 = vpop.f32.mrf.mxu0
    %v8586 = vadd.f32 %v8557, %v8585
    %v8587 = vpop.f32.mrf.mxu0
    %v8588 = vadd.f32 %v8559, %v8587
    %8589 = vmatmul.bf16.gmra.mxu0 %v4805
    %v8590 = vpop.f32.mrf.mxu0
    %v8591 = vadd.f32 %v8562, %v8590
    %v8592 = vpop.f32.mrf.mxu0
    %v8593 = vadd.f32 %v8564, %v8592
    %8594 = vmatmul.bf16.gmra.mxu0 %v4813
    %v8595 = vpop.f32.mrf.mxu0
    %v8596 = vadd.f32 %v8567, %v8595
    %v8597 = vpop.f32.mrf.mxu0
    %v8598 = vadd.f32 %v8569, %v8597
    %8599 = vdwg.mxu0
    %8600 = vmatpush.bf16.msra.mxu0 %v6939
    %8601 = vmatpush.bf16.msra.mxu0 %v6931
    %8602 = vmatpush.bf16.msra.mxu0 %v6923
    %8603 = vmatpush.bf16.msra.mxu0 %v6915
    %8604 = vmatpush.bf16.msra.mxu0 %v6907
    %8605 = vmatpush.bf16.msra.mxu0 %v6899
    %8606 = vmatpush.bf16.msra.mxu0 %v6891
    %8607 = vmatpush.bf16.msra.mxu0 %v6883
    %8608 = vmatmul.bf16.gmra.mxu0 %v4782
    %v8609 = vpop.f32.mrf.mxu0
    %v8610 = vadd.f32 %v5331, %v8609
    %v8611 = vpop.f32.mrf.mxu0
    %v8612 = vadd.f32 %v5331, %v8611
    %8613 = vmatmul.bf16.gmra.mxu0 %v4790
    %v8614 = vpop.f32.mrf.mxu0
    %v8615 = vadd.f32 %v5331, %v8614
    %v8616 = vpop.f32.mrf.mxu0
    %v8617 = vadd.f32 %v5331, %v8616
    %8618 = vmatmul.bf16.gmra.mxu0 %v4798
    %v8619 = vpop.f32.mrf.mxu0
    %v8620 = vadd.f32 %v5331, %v8619
    %v8621 = vpop.f32.mrf.mxu0
    %v8622 = vadd.f32 %v5331, %v8621
    %8623 = vmatmul.bf16.gmra.mxu0 %v4806
    %v8624 = vpop.f32.mrf.mxu0
    %v8625 = vadd.f32 %v5331, %v8624
    %v8626 = vpop.f32.mrf.mxu0
    %v8627 = vadd.f32 %v5331, %v8626
    %8628 = vdwg.mxu0
    %8629 = vmatpush.bf16.msra.mxu0 %v7003
    %8630 = vmatpush.bf16.msra.mxu0 %v6995
    %8631 = vmatpush.bf16.msra.mxu0 %v6987
    %8632 = vmatpush.bf16.msra.mxu0 %v6979
    %8633 = vmatpush.bf16.msra.mxu0 %v6971
    %8634 = vmatpush.bf16.msra.mxu0 %v6963
    %8635 = vmatpush.bf16.msra.mxu0 %v6955
    %8636 = vmatpush.bf16.msra.mxu0 %v6947
    %8637 = vmatmul.bf16.gmra.mxu0 %v4783
    %v8638 = vpop.f32.mrf.mxu0
    %v8639 = vadd.f32 %v8610, %v8638
    %v8640 = vpop.f32.mrf.mxu0
    %v8641 = vadd.f32 %v8612, %v8640
    %8642 = vmatmul.bf16.gmra.mxu0 %v4791
    %v8643 = vpop.f32.mrf.mxu0
    %v8644 = vadd.f32 %v8615, %v8643
    %v8645 = vpop.f32.mrf.mxu0
    %v8646 = vadd.f32 %v8617, %v8645
    %8647 = vmatmul.bf16.gmra.mxu0 %v4799
    %v8648 = vpop.f32.mrf.mxu0
    %v8649 = vadd.f32 %v8620, %v8648
    %v8650 = vpop.f32.mrf.mxu0
    %v8651 = vadd.f32 %v8622, %v8650
    %8652 = vmatmul.bf16.gmra.mxu0 %v4807
    %v8653 = vpop.f32.mrf.mxu0
    %v8654 = vadd.f32 %v8625, %v8653
    %v8655 = vpop.f32.mrf.mxu0
    %v8656 = vadd.f32 %v8627, %v8655
    %8657 = vdwg.mxu0
    %8658 = vmatpush.bf16.msra.mxu0 %v7067
    %8659 = vmatpush.bf16.msra.mxu0 %v7059
    %8660 = vmatpush.bf16.msra.mxu0 %v7051
    %8661 = vmatpush.bf16.msra.mxu0 %v7043
    %8662 = vmatpush.bf16.msra.mxu0 %v7035
    %8663 = vmatpush.bf16.msra.mxu0 %v7027
    %8664 = vmatpush.bf16.msra.mxu0 %v7019
    %8665 = vmatpush.bf16.msra.mxu0 %v7011
    %8666 = vmatmul.bf16.gmra.mxu0 %v4784
    %v8667 = vpop.f32.mrf.mxu0
    %v8668 = vadd.f32 %v8639, %v8667
    %v8669 = vpop.f32.mrf.mxu0
    %v8670 = vadd.f32 %v8641, %v8669
    %8671 = vmatmul.bf16.gmra.mxu0 %v4792
    %v8672 = vpop.f32.mrf.mxu0
    %v8673 = vadd.f32 %v8644, %v8672
    %v8674 = vpop.f32.mrf.mxu0
    %v8675 = vadd.f32 %v8646, %v8674
    %8676 = vmatmul.bf16.gmra.mxu0 %v4800
    %v8677 = vpop.f32.mrf.mxu0
    %v8678 = vadd.f32 %v8649, %v8677
    %v8679 = vpop.f32.mrf.mxu0
    %v8680 = vadd.f32 %v8651, %v8679
    %8681 = vmatmul.bf16.gmra.mxu0 %v4808
    %v8682 = vpop.f32.mrf.mxu0
    %v8683 = vadd.f32 %v8654, %v8682
    %v8684 = vpop.f32.mrf.mxu0
    %v8685 = vadd.f32 %v8656, %v8684
    %8686 = vdwg.mxu0
    %8687 = vmatpush.bf16.msra.mxu0 %v7131
    %8688 = vmatpush.bf16.msra.mxu0 %v7123
    %8689 = vmatpush.bf16.msra.mxu0 %v7115
    %8690 = vmatpush.bf16.msra.mxu0 %v7107
    %8691 = vmatpush.bf16.msra.mxu0 %v7099
    %8692 = vmatpush.bf16.msra.mxu0 %v7091
    %8693 = vmatpush.bf16.msra.mxu0 %v7083
    %8694 = vmatpush.bf16.msra.mxu0 %v7075
    %8695 = vmatmul.bf16.gmra.mxu0 %v4785
    %v8696 = vpop.f32.mrf.mxu0
    %v8697 = vadd.f32 %v8668, %v8696
    %v8698 = vpop.f32.mrf.mxu0
    %v8699 = vadd.f32 %v8670, %v8698
    %8700 = vmatmul.bf16.gmra.mxu0 %v4793
    %v8701 = vpop.f32.mrf.mxu0
    %v8702 = vadd.f32 %v8673, %v8701
    %v8703 = vpop.f32.mrf.mxu0
    %v8704 = vadd.f32 %v8675, %v8703
    %8705 = vmatmul.bf16.gmra.mxu0 %v4801
    %v8706 = vpop.f32.mrf.mxu0
    %v8707 = vadd.f32 %v8678, %v8706
    %v8708 = vpop.f32.mrf.mxu0
    %v8709 = vadd.f32 %v8680, %v8708
    %8710 = vmatmul.bf16.gmra.mxu0 %v4809
    %v8711 = vpop.f32.mrf.mxu0
    %v8712 = vadd.f32 %v8683, %v8711
    %v8713 = vpop.f32.mrf.mxu0
    %v8714 = vadd.f32 %v8685, %v8713
    %8715 = vdwg.mxu0
    %8716 = vmatpush.bf16.msra.mxu0 %v7195
    %8717 = vmatpush.bf16.msra.mxu0 %v7187
    %8718 = vmatpush.bf16.msra.mxu0 %v7179
    %8719 = vmatpush.bf16.msra.mxu0 %v7171
    %8720 = vmatpush.bf16.msra.mxu0 %v7163
    %8721 = vmatpush.bf16.msra.mxu0 %v7155
    %8722 = vmatpush.bf16.msra.mxu0 %v7147
    %8723 = vmatpush.bf16.msra.mxu0 %v7139
    %8724 = vmatmul.bf16.gmra.mxu0 %v4786
    %v8725 = vpop.f32.mrf.mxu0
    %v8726 = vadd.f32 %v8697, %v8725
    %v8727 = vpop.f32.mrf.mxu0
    %v8728 = vadd.f32 %v8699, %v8727
    %8729 = vmatmul.bf16.gmra.mxu0 %v4794
    %v8730 = vpop.f32.mrf.mxu0
    %v8731 = vadd.f32 %v8702, %v8730
    %v8732 = vpop.f32.mrf.mxu0
    %v8733 = vadd.f32 %v8704, %v8732
    %8734 = vmatmul.bf16.gmra.mxu0 %v4802
    %v8735 = vpop.f32.mrf.mxu0
    %v8736 = vadd.f32 %v8707, %v8735
    %v8737 = vpop.f32.mrf.mxu0
    %v8738 = vadd.f32 %v8709, %v8737
    %8739 = vmatmul.bf16.gmra.mxu0 %v4810
    %v8740 = vpop.f32.mrf.mxu0
    %v8741 = vadd.f32 %v8712, %v8740
    %v8742 = vpop.f32.mrf.mxu0
    %v8743 = vadd.f32 %v8714, %v8742
    %8744 = vdwg.mxu0
    %8745 = vmatpush.bf16.msra.mxu0 %v7259
    %8746 = vmatpush.bf16.msra.mxu0 %v7251
    %8747 = vmatpush.bf16.msra.mxu0 %v7243
    %8748 = vmatpush.bf16.msra.mxu0 %v7235
    %8749 = vmatpush.bf16.msra.mxu0 %v7227
    %8750 = vmatpush.bf16.msra.mxu0 %v7219
    %8751 = vmatpush.bf16.msra.mxu0 %v7211
    %8752 = vmatpush.bf16.msra.mxu0 %v7203
    %8753 = vmatmul.bf16.gmra.mxu0 %v4787
    %v8754 = vpop.f32.mrf.mxu0
    %v8755 = vadd.f32 %v8726, %v8754
    %v8756 = vpop.f32.mrf.mxu0
    %v8757 = vadd.f32 %v8728, %v8756
    %8758 = vmatmul.bf16.gmra.mxu0 %v4795
    %v8759 = vpop.f32.mrf.mxu0
    %v8760 = vadd.f32 %v8731, %v8759
    %v8761 = vpop.f32.mrf.mxu0
    %v8762 = vadd.f32 %v8733, %v8761
    %8763 = vmatmul.bf16.gmra.mxu0 %v4803
    %v8764 = vpop.f32.mrf.mxu0
    %v8765 = vadd.f32 %v8736, %v8764
    %v8766 = vpop.f32.mrf.mxu0
    %v8767 = vadd.f32 %v8738, %v8766
    %8768 = vmatmul.bf16.gmra.mxu0 %v4811
    %v8769 = vpop.f32.mrf.mxu0
    %v8770 = vadd.f32 %v8741, %v8769
    %v8771 = vpop.f32.mrf.mxu0
    %v8772 = vadd.f32 %v8743, %v8771
    %8773 = vdwg.mxu0
    %8774 = vmatpush.bf16.msra.mxu0 %v7323
    %8775 = vmatpush.bf16.msra.mxu0 %v7315
    %8776 = vmatpush.bf16.msra.mxu0 %v7307
    %8777 = vmatpush.bf16.msra.mxu0 %v7299
    %8778 = vmatpush.bf16.msra.mxu0 %v7291
    %8779 = vmatpush.bf16.msra.mxu0 %v7283
    %8780 = vmatpush.bf16.msra.mxu0 %v7275
    %8781 = vmatpush.bf16.msra.mxu0 %v7267
    %8782 = vmatmul.bf16.gmra.mxu0 %v4788
    %v8783 = vpop.f32.mrf.mxu0
    %v8784 = vadd.f32 %v8755, %v8783
    %v8785 = vpop.f32.mrf.mxu0
    %v8786 = vadd.f32 %v8757, %v8785
    %8787 = vmatmul.bf16.gmra.mxu0 %v4796
    %v8788 = vpop.f32.mrf.mxu0
    %v8789 = vadd.f32 %v8760, %v8788
    %v8790 = vpop.f32.mrf.mxu0
    %v8791 = vadd.f32 %v8762, %v8790
    %8792 = vmatmul.bf16.gmra.mxu0 %v4804
    %v8793 = vpop.f32.mrf.mxu0
    %v8794 = vadd.f32 %v8765, %v8793
    %v8795 = vpop.f32.mrf.mxu0
    %v8796 = vadd.f32 %v8767, %v8795
    %8797 = vmatmul.bf16.gmra.mxu0 %v4812
    %v8798 = vpop.f32.mrf.mxu0
    %v8799 = vadd.f32 %v8770, %v8798
    %v8800 = vpop.f32.mrf.mxu0
    %v8801 = vadd.f32 %v8772, %v8800
    %8802 = vdwg.mxu0
    %8803 = vmatpush.bf16.msra.mxu0 %v7387
    %8804 = vmatpush.bf16.msra.mxu0 %v7379
    %8805 = vmatpush.bf16.msra.mxu0 %v7371
    %8806 = vmatpush.bf16.msra.mxu0 %v7363
    %8807 = vmatpush.bf16.msra.mxu0 %v7355
    %8808 = vmatpush.bf16.msra.mxu0 %v7347
    %8809 = vmatpush.bf16.msra.mxu0 %v7339
    %8810 = vmatpush.bf16.msra.mxu0 %v7331
    %8811 = vmatmul.bf16.gmra.mxu0 %v4789
    %v8812 = vpop.f32.mrf.mxu0
    %v8813 = vadd.f32 %v8784, %v8812
    %v8814 = vpop.f32.mrf.mxu0
    %v8815 = vadd.f32 %v8786, %v8814
    %8816 = vmatmul.bf16.gmra.mxu0 %v4797
    %v8817 = vpop.f32.mrf.mxu0
    %v8818 = vadd.f32 %v8789, %v8817
    %v8819 = vpop.f32.mrf.mxu0
    %v8820 = vadd.f32 %v8791, %v8819
    %8821 = vmatmul.bf16.gmra.mxu0 %v4805
    %v8822 = vpop.f32.mrf.mxu0
    %v8823 = vadd.f32 %v8794, %v8822
    %v8824 = vpop.f32.mrf.mxu0
    %v8825 = vadd.f32 %v8796, %v8824
    %8826 = vmatmul.bf16.gmra.mxu0 %v4813
    %v8827 = vpop.f32.mrf.mxu0
    %v8828 = vadd.f32 %v8799, %v8827
    %v8829 = vpop.f32.mrf.mxu0
    %v8830 = vadd.f32 %v8801, %v8829
    %8831 = vdwg.mxu0
    %8832 = vmatpush.bf16.msra.mxu0 %v6940
    %8833 = vmatpush.bf16.msra.mxu0 %v6932
    %8834 = vmatpush.bf16.msra.mxu0 %v6924
    %8835 = vmatpush.bf16.msra.mxu0 %v6916
    %8836 = vmatpush.bf16.msra.mxu0 %v6908
    %8837 = vmatpush.bf16.msra.mxu0 %v6900
    %8838 = vmatpush.bf16.msra.mxu0 %v6892
    %8839 = vmatpush.bf16.msra.mxu0 %v6884
    %8840 = vmatmul.bf16.gmra.mxu0 %v4782
    %v8841 = vpop.f32.mrf.mxu0
    %v8842 = vadd.f32 %v5332, %v8841
    %v8843 = vpop.f32.mrf.mxu0
    %v8844 = vadd.f32 %v5332, %v8843
    %8845 = vmatmul.bf16.gmra.mxu0 %v4790
    %v8846 = vpop.f32.mrf.mxu0
    %v8847 = vadd.f32 %v5332, %v8846
    %v8848 = vpop.f32.mrf.mxu0
    %v8849 = vadd.f32 %v5332, %v8848
    %8850 = vmatmul.bf16.gmra.mxu0 %v4798
    %v8851 = vpop.f32.mrf.mxu0
    %v8852 = vadd.f32 %v5332, %v8851
    %v8853 = vpop.f32.mrf.mxu0
    %v8854 = vadd.f32 %v5332, %v8853
    %8855 = vmatmul.bf16.gmra.mxu0 %v4806
    %v8856 = vpop.f32.mrf.mxu0
    %v8857 = vadd.f32 %v5332, %v8856
    %v8858 = vpop.f32.mrf.mxu0
    %v8859 = vadd.f32 %v5332, %v8858
    %8860 = vdwg.mxu0
    %8861 = vmatpush.bf16.msra.mxu0 %v7004
    %8862 = vmatpush.bf16.msra.mxu0 %v6996
    %8863 = vmatpush.bf16.msra.mxu0 %v6988
    %8864 = vmatpush.bf16.msra.mxu0 %v6980
    %8865 = vmatpush.bf16.msra.mxu0 %v6972
    %8866 = vmatpush.bf16.msra.mxu0 %v6964
    %8867 = vmatpush.bf16.msra.mxu0 %v6956
    %8868 = vmatpush.bf16.msra.mxu0 %v6948
    %8869 = vmatmul.bf16.gmra.mxu0 %v4783
    %v8870 = vpop.f32.mrf.mxu0
    %v8871 = vadd.f32 %v8842, %v8870
    %v8872 = vpop.f32.mrf.mxu0
    %v8873 = vadd.f32 %v8844, %v8872
    %8874 = vmatmul.bf16.gmra.mxu0 %v4791
    %v8875 = vpop.f32.mrf.mxu0
    %v8876 = vadd.f32 %v8847, %v8875
    %v8877 = vpop.f32.mrf.mxu0
    %v8878 = vadd.f32 %v8849, %v8877
    %8879 = vmatmul.bf16.gmra.mxu0 %v4799
    %v8880 = vpop.f32.mrf.mxu0
    %v8881 = vadd.f32 %v8852, %v8880
    %v8882 = vpop.f32.mrf.mxu0
    %v8883 = vadd.f32 %v8854, %v8882
    %8884 = vmatmul.bf16.gmra.mxu0 %v4807
    %v8885 = vpop.f32.mrf.mxu0
    %v8886 = vadd.f32 %v8857, %v8885
    %v8887 = vpop.f32.mrf.mxu0
    %v8888 = vadd.f32 %v8859, %v8887
    %8889 = vdwg.mxu0
    %8890 = vmatpush.bf16.msra.mxu0 %v7068
    %8891 = vmatpush.bf16.msra.mxu0 %v7060
    %8892 = vmatpush.bf16.msra.mxu0 %v7052
    %8893 = vmatpush.bf16.msra.mxu0 %v7044
    %8894 = vmatpush.bf16.msra.mxu0 %v7036
    %8895 = vmatpush.bf16.msra.mxu0 %v7028
    %8896 = vmatpush.bf16.msra.mxu0 %v7020
    %8897 = vmatpush.bf16.msra.mxu0 %v7012
    %8898 = vmatmul.bf16.gmra.mxu0 %v4784
    %v8899 = vpop.f32.mrf.mxu0
    %v8900 = vadd.f32 %v8871, %v8899
    %v8901 = vpop.f32.mrf.mxu0
    %v8902 = vadd.f32 %v8873, %v8901
    %8903 = vmatmul.bf16.gmra.mxu0 %v4792
    %v8904 = vpop.f32.mrf.mxu0
    %v8905 = vadd.f32 %v8876, %v8904
    %v8906 = vpop.f32.mrf.mxu0
    %v8907 = vadd.f32 %v8878, %v8906
    %8908 = vmatmul.bf16.gmra.mxu0 %v4800
    %v8909 = vpop.f32.mrf.mxu0
    %v8910 = vadd.f32 %v8881, %v8909
    %v8911 = vpop.f32.mrf.mxu0
    %v8912 = vadd.f32 %v8883, %v8911
    %8913 = vmatmul.bf16.gmra.mxu0 %v4808
    %v8914 = vpop.f32.mrf.mxu0
    %v8915 = vadd.f32 %v8886, %v8914
    %v8916 = vpop.f32.mrf.mxu0
    %v8917 = vadd.f32 %v8888, %v8916
    %8918 = vdwg.mxu0
    %8919 = vmatpush.bf16.msra.mxu0 %v7132
    %8920 = vmatpush.bf16.msra.mxu0 %v7124
    %8921 = vmatpush.bf16.msra.mxu0 %v7116
    %8922 = vmatpush.bf16.msra.mxu0 %v7108
    %8923 = vmatpush.bf16.msra.mxu0 %v7100
    %8924 = vmatpush.bf16.msra.mxu0 %v7092
    %8925 = vmatpush.bf16.msra.mxu0 %v7084
    %8926 = vmatpush.bf16.msra.mxu0 %v7076
    %8927 = vmatmul.bf16.gmra.mxu0 %v4785
    %v8928 = vpop.f32.mrf.mxu0
    %v8929 = vadd.f32 %v8900, %v8928
    %v8930 = vpop.f32.mrf.mxu0
    %v8931 = vadd.f32 %v8902, %v8930
    %8932 = vmatmul.bf16.gmra.mxu0 %v4793
    %v8933 = vpop.f32.mrf.mxu0
    %v8934 = vadd.f32 %v8905, %v8933
    %v8935 = vpop.f32.mrf.mxu0
    %v8936 = vadd.f32 %v8907, %v8935
    %8937 = vmatmul.bf16.gmra.mxu0 %v4801
    %v8938 = vpop.f32.mrf.mxu0
    %v8939 = vadd.f32 %v8910, %v8938
    %v8940 = vpop.f32.mrf.mxu0
    %v8941 = vadd.f32 %v8912, %v8940
    %8942 = vmatmul.bf16.gmra.mxu0 %v4809
    %v8943 = vpop.f32.mrf.mxu0
    %v8944 = vadd.f32 %v8915, %v8943
    %v8945 = vpop.f32.mrf.mxu0
    %v8946 = vadd.f32 %v8917, %v8945
    %8947 = vdwg.mxu0
    %8948 = vmatpush.bf16.msra.mxu0 %v7196
    %8949 = vmatpush.bf16.msra.mxu0 %v7188
    %8950 = vmatpush.bf16.msra.mxu0 %v7180
    %8951 = vmatpush.bf16.msra.mxu0 %v7172
    %8952 = vmatpush.bf16.msra.mxu0 %v7164
    %8953 = vmatpush.bf16.msra.mxu0 %v7156
    %8954 = vmatpush.bf16.msra.mxu0 %v7148
    %8955 = vmatpush.bf16.msra.mxu0 %v7140
    %8956 = vmatmul.bf16.gmra.mxu0 %v4786
    %v8957 = vpop.f32.mrf.mxu0
    %v8958 = vadd.f32 %v8929, %v8957
    %v8959 = vpop.f32.mrf.mxu0
    %v8960 = vadd.f32 %v8931, %v8959
    %8961 = vmatmul.bf16.gmra.mxu0 %v4794
    %v8962 = vpop.f32.mrf.mxu0
    %v8963 = vadd.f32 %v8934, %v8962
    %v8964 = vpop.f32.mrf.mxu0
    %v8965 = vadd.f32 %v8936, %v8964
    %8966 = vmatmul.bf16.gmra.mxu0 %v4802
    %v8967 = vpop.f32.mrf.mxu0
    %v8968 = vadd.f32 %v8939, %v8967
    %v8969 = vpop.f32.mrf.mxu0
    %v8970 = vadd.f32 %v8941, %v8969
    %8971 = vmatmul.bf16.gmra.mxu0 %v4810
    %v8972 = vpop.f32.mrf.mxu0
    %v8973 = vadd.f32 %v8944, %v8972
    %v8974 = vpop.f32.mrf.mxu0
    %v8975 = vadd.f32 %v8946, %v8974
    %8976 = vdwg.mxu0
    %8977 = vmatpush.bf16.msra.mxu0 %v7260
    %8978 = vmatpush.bf16.msra.mxu0 %v7252
    %8979 = vmatpush.bf16.msra.mxu0 %v7244
    %8980 = vmatpush.bf16.msra.mxu0 %v7236
    %8981 = vmatpush.bf16.msra.mxu0 %v7228
    %8982 = vmatpush.bf16.msra.mxu0 %v7220
    %8983 = vmatpush.bf16.msra.mxu0 %v7212
    %8984 = vmatpush.bf16.msra.mxu0 %v7204
    %8985 = vmatmul.bf16.gmra.mxu0 %v4787
    %v8986 = vpop.f32.mrf.mxu0
    %v8987 = vadd.f32 %v8958, %v8986
    %v8988 = vpop.f32.mrf.mxu0
    %v8989 = vadd.f32 %v8960, %v8988
    %8990 = vmatmul.bf16.gmra.mxu0 %v4795
    %v8991 = vpop.f32.mrf.mxu0
    %v8992 = vadd.f32 %v8963, %v8991
    %v8993 = vpop.f32.mrf.mxu0
    %v8994 = vadd.f32 %v8965, %v8993
    %8995 = vmatmul.bf16.gmra.mxu0 %v4803
    %v8996 = vpop.f32.mrf.mxu0
    %v8997 = vadd.f32 %v8968, %v8996
    %v8998 = vpop.f32.mrf.mxu0
    %v8999 = vadd.f32 %v8970, %v8998
    %9000 = vmatmul.bf16.gmra.mxu0 %v4811
    %v9001 = vpop.f32.mrf.mxu0
    %v9002 = vadd.f32 %v8973, %v9001
    %v9003 = vpop.f32.mrf.mxu0
    %v9004 = vadd.f32 %v8975, %v9003
    %9005 = vdwg.mxu0
    %9006 = vmatpush.bf16.msra.mxu0 %v7324
    %9007 = vmatpush.bf16.msra.mxu0 %v7316
    %9008 = vmatpush.bf16.msra.mxu0 %v7308
    %9009 = vmatpush.bf16.msra.mxu0 %v7300
    %9010 = vmatpush.bf16.msra.mxu0 %v7292
    %9011 = vmatpush.bf16.msra.mxu0 %v7284
    %9012 = vmatpush.bf16.msra.mxu0 %v7276
    %9013 = vmatpush.bf16.msra.mxu0 %v7268
    %9014 = vmatmul.bf16.gmra.mxu0 %v4788
    %v9015 = vpop.f32.mrf.mxu0
    %v9016 = vadd.f32 %v8987, %v9015
    %v9017 = vpop.f32.mrf.mxu0
    %v9018 = vadd.f32 %v8989, %v9017
    %9019 = vmatmul.bf16.gmra.mxu0 %v4796
    %v9020 = vpop.f32.mrf.mxu0
    %v9021 = vadd.f32 %v8992, %v9020
    %v9022 = vpop.f32.mrf.mxu0
    %v9023 = vadd.f32 %v8994, %v9022
    %9024 = vmatmul.bf16.gmra.mxu0 %v4804
    %v9025 = vpop.f32.mrf.mxu0
    %v9026 = vadd.f32 %v8997, %v9025
    %v9027 = vpop.f32.mrf.mxu0
    %v9028 = vadd.f32 %v8999, %v9027
    %9029 = vmatmul.bf16.gmra.mxu0 %v4812
    %v9030 = vpop.f32.mrf.mxu0
    %v9031 = vadd.f32 %v9002, %v9030
    %v9032 = vpop.f32.mrf.mxu0
    %v9033 = vadd.f32 %v9004, %v9032
    %9034 = vdwg.mxu0
    %9035 = vmatpush.bf16.msra.mxu0 %v7388
    %9036 = vmatpush.bf16.msra.mxu0 %v7380
    %9037 = vmatpush.bf16.msra.mxu0 %v7372
    %9038 = vmatpush.bf16.msra.mxu0 %v7364
    %9039 = vmatpush.bf16.msra.mxu0 %v7356
    %9040 = vmatpush.bf16.msra.mxu0 %v7348
    %9041 = vmatpush.bf16.msra.mxu0 %v7340
    %9042 = vmatpush.bf16.msra.mxu0 %v7332
    %9043 = vmatmul.bf16.gmra.mxu0 %v4789
    %v9044 = vpop.f32.mrf.mxu0
    %v9045 = vadd.f32 %v9016, %v9044
    %v9046 = vpop.f32.mrf.mxu0
    %v9047 = vadd.f32 %v9018, %v9046
    %9048 = vmatmul.bf16.gmra.mxu0 %v4797
    %v9049 = vpop.f32.mrf.mxu0
    %v9050 = vadd.f32 %v9021, %v9049
    %v9051 = vpop.f32.mrf.mxu0
    %v9052 = vadd.f32 %v9023, %v9051
    %9053 = vmatmul.bf16.gmra.mxu0 %v4805
    %v9054 = vpop.f32.mrf.mxu0
    %v9055 = vadd.f32 %v9026, %v9054
    %v9056 = vpop.f32.mrf.mxu0
    %v9057 = vadd.f32 %v9028, %v9056
    %9058 = vmatmul.bf16.gmra.mxu0 %v4813
    %v9059 = vpop.f32.mrf.mxu0
    %v9060 = vadd.f32 %v9031, %v9059
    %v9061 = vpop.f32.mrf.mxu0
    %v9062 = vadd.f32 %v9033, %v9061
    %9063 = vdwg.mxu0
    %9064 = vmatpush.bf16.msra.mxu0 %v6941
    %9065 = vmatpush.bf16.msra.mxu0 %v6933
    %9066 = vmatpush.bf16.msra.mxu0 %v6925
    %9067 = vmatpush.bf16.msra.mxu0 %v6917
    %9068 = vmatpush.bf16.msra.mxu0 %v6909
    %9069 = vmatpush.bf16.msra.mxu0 %v6901
    %9070 = vmatpush.bf16.msra.mxu0 %v6893
    %9071 = vmatpush.bf16.msra.mxu0 %v6885
    %9072 = vmatmul.bf16.gmra.mxu0 %v4782
    %v9073 = vpop.f32.mrf.mxu0
    %v9074 = vadd.f32 %v5333, %v9073
    %v9075 = vpop.f32.mrf.mxu0
    %v9076 = vadd.f32 %v5333, %v9075
    %9077 = vmatmul.bf16.gmra.mxu0 %v4790
    %v9078 = vpop.f32.mrf.mxu0
    %v9079 = vadd.f32 %v5333, %v9078
    %v9080 = vpop.f32.mrf.mxu0
    %v9081 = vadd.f32 %v5333, %v9080
    %9082 = vmatmul.bf16.gmra.mxu0 %v4798
    %v9083 = vpop.f32.mrf.mxu0
    %v9084 = vadd.f32 %v5333, %v9083
    %v9085 = vpop.f32.mrf.mxu0
    %v9086 = vadd.f32 %v5333, %v9085
    %9087 = vmatmul.bf16.gmra.mxu0 %v4806
    %v9088 = vpop.f32.mrf.mxu0
    %v9089 = vadd.f32 %v5333, %v9088
    %v9090 = vpop.f32.mrf.mxu0
    %v9091 = vadd.f32 %v5333, %v9090
    %9092 = vdwg.mxu0
    %9093 = vmatpush.bf16.msra.mxu0 %v7005
    %9094 = vmatpush.bf16.msra.mxu0 %v6997
    %9095 = vmatpush.bf16.msra.mxu0 %v6989
    %9096 = vmatpush.bf16.msra.mxu0 %v6981
    %9097 = vmatpush.bf16.msra.mxu0 %v6973
    %9098 = vmatpush.bf16.msra.mxu0 %v6965
    %9099 = vmatpush.bf16.msra.mxu0 %v6957
    %9100 = vmatpush.bf16.msra.mxu0 %v6949
    %9101 = vmatmul.bf16.gmra.mxu0 %v4783
    %v9102 = vpop.f32.mrf.mxu0
    %v9103 = vadd.f32 %v9074, %v9102
    %v9104 = vpop.f32.mrf.mxu0
    %v9105 = vadd.f32 %v9076, %v9104
    %9106 = vmatmul.bf16.gmra.mxu0 %v4791
    %v9107 = vpop.f32.mrf.mxu0
    %v9108 = vadd.f32 %v9079, %v9107
    %v9109 = vpop.f32.mrf.mxu0
    %v9110 = vadd.f32 %v9081, %v9109
    %9111 = vmatmul.bf16.gmra.mxu0 %v4799
    %v9112 = vpop.f32.mrf.mxu0
    %v9113 = vadd.f32 %v9084, %v9112
    %v9114 = vpop.f32.mrf.mxu0
    %v9115 = vadd.f32 %v9086, %v9114
    %9116 = vmatmul.bf16.gmra.mxu0 %v4807
    %v9117 = vpop.f32.mrf.mxu0
    %v9118 = vadd.f32 %v9089, %v9117
    %v9119 = vpop.f32.mrf.mxu0
    %v9120 = vadd.f32 %v9091, %v9119
    %9121 = vdwg.mxu0
    %9122 = vmatpush.bf16.msra.mxu0 %v7069
    %9123 = vmatpush.bf16.msra.mxu0 %v7061
    %9124 = vmatpush.bf16.msra.mxu0 %v7053
    %9125 = vmatpush.bf16.msra.mxu0 %v7045
    %9126 = vmatpush.bf16.msra.mxu0 %v7037
    %9127 = vmatpush.bf16.msra.mxu0 %v7029
    %9128 = vmatpush.bf16.msra.mxu0 %v7021
    %9129 = vmatpush.bf16.msra.mxu0 %v7013
    %9130 = vmatmul.bf16.gmra.mxu0 %v4784
    %v9131 = vpop.f32.mrf.mxu0
    %v9132 = vadd.f32 %v9103, %v9131
    %v9133 = vpop.f32.mrf.mxu0
    %v9134 = vadd.f32 %v9105, %v9133
    %9135 = vmatmul.bf16.gmra.mxu0 %v4792
    %v9136 = vpop.f32.mrf.mxu0
    %v9137 = vadd.f32 %v9108, %v9136
    %v9138 = vpop.f32.mrf.mxu0
    %v9139 = vadd.f32 %v9110, %v9138
    %9140 = vmatmul.bf16.gmra.mxu0 %v4800
    %v9141 = vpop.f32.mrf.mxu0
    %v9142 = vadd.f32 %v9113, %v9141
    %v9143 = vpop.f32.mrf.mxu0
    %v9144 = vadd.f32 %v9115, %v9143
    %9145 = vmatmul.bf16.gmra.mxu0 %v4808
    %v9146 = vpop.f32.mrf.mxu0
    %v9147 = vadd.f32 %v9118, %v9146
    %v9148 = vpop.f32.mrf.mxu0
    %v9149 = vadd.f32 %v9120, %v9148
    %9150 = vdwg.mxu0
    %9151 = vmatpush.bf16.msra.mxu0 %v7133
    %9152 = vmatpush.bf16.msra.mxu0 %v7125
    %9153 = vmatpush.bf16.msra.mxu0 %v7117
    %9154 = vmatpush.bf16.msra.mxu0 %v7109
    %9155 = vmatpush.bf16.msra.mxu0 %v7101
    %9156 = vmatpush.bf16.msra.mxu0 %v7093
    %9157 = vmatpush.bf16.msra.mxu0 %v7085
    %9158 = vmatpush.bf16.msra.mxu0 %v7077
    %9159 = vmatmul.bf16.gmra.mxu0 %v4785
    %v9160 = vpop.f32.mrf.mxu0
    %v9161 = vadd.f32 %v9132, %v9160
    %v9162 = vpop.f32.mrf.mxu0
    %v9163 = vadd.f32 %v9134, %v9162
    %9164 = vmatmul.bf16.gmra.mxu0 %v4793
    %v9165 = vpop.f32.mrf.mxu0
    %v9166 = vadd.f32 %v9137, %v9165
    %v9167 = vpop.f32.mrf.mxu0
    %v9168 = vadd.f32 %v9139, %v9167
    %9169 = vmatmul.bf16.gmra.mxu0 %v4801
    %v9170 = vpop.f32.mrf.mxu0
    %v9171 = vadd.f32 %v9142, %v9170
    %v9172 = vpop.f32.mrf.mxu0
    %v9173 = vadd.f32 %v9144, %v9172
    %9174 = vmatmul.bf16.gmra.mxu0 %v4809
    %v9175 = vpop.f32.mrf.mxu0
    %v9176 = vadd.f32 %v9147, %v9175
    %v9177 = vpop.f32.mrf.mxu0
    %v9178 = vadd.f32 %v9149, %v9177
    %9179 = vdwg.mxu0
    %9180 = vmatpush.bf16.msra.mxu0 %v7197
    %9181 = vmatpush.bf16.msra.mxu0 %v7189
    %9182 = vmatpush.bf16.msra.mxu0 %v7181
    %9183 = vmatpush.bf16.msra.mxu0 %v7173
    %9184 = vmatpush.bf16.msra.mxu0 %v7165
    %9185 = vmatpush.bf16.msra.mxu0 %v7157
    %9186 = vmatpush.bf16.msra.mxu0 %v7149
    %9187 = vmatpush.bf16.msra.mxu0 %v7141
    %9188 = vmatmul.bf16.gmra.mxu0 %v4786
    %v9189 = vpop.f32.mrf.mxu0
    %v9190 = vadd.f32 %v9161, %v9189
    %v9191 = vpop.f32.mrf.mxu0
    %v9192 = vadd.f32 %v9163, %v9191
    %9193 = vmatmul.bf16.gmra.mxu0 %v4794
    %v9194 = vpop.f32.mrf.mxu0
    %v9195 = vadd.f32 %v9166, %v9194
    %v9196 = vpop.f32.mrf.mxu0
    %v9197 = vadd.f32 %v9168, %v9196
    %9198 = vmatmul.bf16.gmra.mxu0 %v4802
    %v9199 = vpop.f32.mrf.mxu0
    %v9200 = vadd.f32 %v9171, %v9199
    %v9201 = vpop.f32.mrf.mxu0
    %v9202 = vadd.f32 %v9173, %v9201
    %9203 = vmatmul.bf16.gmra.mxu0 %v4810
    %v9204 = vpop.f32.mrf.mxu0
    %v9205 = vadd.f32 %v9176, %v9204
    %v9206 = vpop.f32.mrf.mxu0
    %v9207 = vadd.f32 %v9178, %v9206
    %9208 = vdwg.mxu0
    %9209 = vmatpush.bf16.msra.mxu0 %v7261
    %9210 = vmatpush.bf16.msra.mxu0 %v7253
    %9211 = vmatpush.bf16.msra.mxu0 %v7245
    %9212 = vmatpush.bf16.msra.mxu0 %v7237
    %9213 = vmatpush.bf16.msra.mxu0 %v7229
    %9214 = vmatpush.bf16.msra.mxu0 %v7221
    %9215 = vmatpush.bf16.msra.mxu0 %v7213
    %9216 = vmatpush.bf16.msra.mxu0 %v7205
    %9217 = vmatmul.bf16.gmra.mxu0 %v4787
    %v9218 = vpop.f32.mrf.mxu0
    %v9219 = vadd.f32 %v9190, %v9218
    %v9220 = vpop.f32.mrf.mxu0
    %v9221 = vadd.f32 %v9192, %v9220
    %9222 = vmatmul.bf16.gmra.mxu0 %v4795
    %v9223 = vpop.f32.mrf.mxu0
    %v9224 = vadd.f32 %v9195, %v9223
    %v9225 = vpop.f32.mrf.mxu0
    %v9226 = vadd.f32 %v9197, %v9225
    %9227 = vmatmul.bf16.gmra.mxu0 %v4803
    %v9228 = vpop.f32.mrf.mxu0
    %v9229 = vadd.f32 %v9200, %v9228
    %v9230 = vpop.f32.mrf.mxu0
    %v9231 = vadd.f32 %v9202, %v9230
    %9232 = vmatmul.bf16.gmra.mxu0 %v4811
    %v9233 = vpop.f32.mrf.mxu0
    %v9234 = vadd.f32 %v9205, %v9233
    %v9235 = vpop.f32.mrf.mxu0
    %v9236 = vadd.f32 %v9207, %v9235
    %9237 = vdwg.mxu0
    %9238 = vmatpush.bf16.msra.mxu0 %v7325
    %9239 = vmatpush.bf16.msra.mxu0 %v7317
    %9240 = vmatpush.bf16.msra.mxu0 %v7309
    %9241 = vmatpush.bf16.msra.mxu0 %v7301
    %9242 = vmatpush.bf16.msra.mxu0 %v7293
    %9243 = vmatpush.bf16.msra.mxu0 %v7285
    %9244 = vmatpush.bf16.msra.mxu0 %v7277
    %9245 = vmatpush.bf16.msra.mxu0 %v7269
    %9246 = vmatmul.bf16.gmra.mxu0 %v4788
    %v9247 = vpop.f32.mrf.mxu0
    %v9248 = vadd.f32 %v9219, %v9247
    %v9249 = vpop.f32.mrf.mxu0
    %v9250 = vadd.f32 %v9221, %v9249
    %9251 = vmatmul.bf16.gmra.mxu0 %v4796
    %v9252 = vpop.f32.mrf.mxu0
    %v9253 = vadd.f32 %v9224, %v9252
    %v9254 = vpop.f32.mrf.mxu0
    %v9255 = vadd.f32 %v9226, %v9254
    %9256 = vmatmul.bf16.gmra.mxu0 %v4804
    %v9257 = vpop.f32.mrf.mxu0
    %v9258 = vadd.f32 %v9229, %v9257
    %v9259 = vpop.f32.mrf.mxu0
    %v9260 = vadd.f32 %v9231, %v9259
    %9261 = vmatmul.bf16.gmra.mxu0 %v4812
    %v9262 = vpop.f32.mrf.mxu0
    %v9263 = vadd.f32 %v9234, %v9262
    %v9264 = vpop.f32.mrf.mxu0
    %v9265 = vadd.f32 %v9236, %v9264
    %9266 = vdwg.mxu0
    %9267 = vmatpush.bf16.msra.mxu0 %v7389
    %9268 = vmatpush.bf16.msra.mxu0 %v7381
    %9269 = vmatpush.bf16.msra.mxu0 %v7373
    %9270 = vmatpush.bf16.msra.mxu0 %v7365
    %9271 = vmatpush.bf16.msra.mxu0 %v7357
    %9272 = vmatpush.bf16.msra.mxu0 %v7349
    %9273 = vmatpush.bf16.msra.mxu0 %v7341
    %9274 = vmatpush.bf16.msra.mxu0 %v7333
    %9275 = vmatmul.bf16.gmra.mxu0 %v4789
    %v9276 = vpop.f32.mrf.mxu0
    %v9277 = vadd.f32 %v9248, %v9276
    %v9278 = vpop.f32.mrf.mxu0
    %v9279 = vadd.f32 %v9250, %v9278
    %9280 = vmatmul.bf16.gmra.mxu0 %v4797
    %v9281 = vpop.f32.mrf.mxu0
    %v9282 = vadd.f32 %v9253, %v9281
    %v9283 = vpop.f32.mrf.mxu0
    %v9284 = vadd.f32 %v9255, %v9283
    %9285 = vmatmul.bf16.gmra.mxu0 %v4805
    %v9286 = vpop.f32.mrf.mxu0
    %v9287 = vadd.f32 %v9258, %v9286
    %v9288 = vpop.f32.mrf.mxu0
    %v9289 = vadd.f32 %v9260, %v9288
    %9290 = vmatmul.bf16.gmra.mxu0 %v4813
    %v9291 = vpop.f32.mrf.mxu0
    %v9292 = vadd.f32 %v9263, %v9291
    %v9293 = vpop.f32.mrf.mxu0
    %v9294 = vadd.f32 %v9265, %v9293
    %9295 = vdwg.mxu0
    %9296 = vmatpush.bf16.msra.mxu0 %v6942
    %9297 = vmatpush.bf16.msra.mxu0 %v6934
    %9298 = vmatpush.bf16.msra.mxu0 %v6926
    %9299 = vmatpush.bf16.msra.mxu0 %v6918
    %9300 = vmatpush.bf16.msra.mxu0 %v6910
    %9301 = vmatpush.bf16.msra.mxu0 %v6902
    %9302 = vmatpush.bf16.msra.mxu0 %v6894
    %9303 = vmatpush.bf16.msra.mxu0 %v6886
    %9304 = vmatmul.bf16.gmra.mxu0 %v4782
    %v9305 = vpop.f32.mrf.mxu0
    %v9306 = vadd.f32 %v5334, %v9305
    %v9307 = vpop.f32.mrf.mxu0
    %v9308 = vadd.f32 %v5334, %v9307
    %9309 = vmatmul.bf16.gmra.mxu0 %v4790
    %v9310 = vpop.f32.mrf.mxu0
    %v9311 = vadd.f32 %v5334, %v9310
    %v9312 = vpop.f32.mrf.mxu0
    %v9313 = vadd.f32 %v5334, %v9312
    %9314 = vmatmul.bf16.gmra.mxu0 %v4798
    %v9315 = vpop.f32.mrf.mxu0
    %v9316 = vadd.f32 %v5334, %v9315
    %v9317 = vpop.f32.mrf.mxu0
    %v9318 = vadd.f32 %v5334, %v9317
    %9319 = vmatmul.bf16.gmra.mxu0 %v4806
    %v9320 = vpop.f32.mrf.mxu0
    %v9321 = vadd.f32 %v5334, %v9320
    %v9322 = vpop.f32.mrf.mxu0
    %v9323 = vadd.f32 %v5334, %v9322
    %9324 = vdwg.mxu0
    %9325 = vmatpush.bf16.msra.mxu0 %v7006
    %9326 = vmatpush.bf16.msra.mxu0 %v6998
    %9327 = vmatpush.bf16.msra.mxu0 %v6990
    %9328 = vmatpush.bf16.msra.mxu0 %v6982
    %9329 = vmatpush.bf16.msra.mxu0 %v6974
    %9330 = vmatpush.bf16.msra.mxu0 %v6966
    %9331 = vmatpush.bf16.msra.mxu0 %v6958
    %9332 = vmatpush.bf16.msra.mxu0 %v6950
    %9333 = vmatmul.bf16.gmra.mxu0 %v4783
    %v9334 = vpop.f32.mrf.mxu0
    %v9335 = vadd.f32 %v9306, %v9334
    %v9336 = vpop.f32.mrf.mxu0
    %v9337 = vadd.f32 %v9308, %v9336
    %9338 = vmatmul.bf16.gmra.mxu0 %v4791
    %v9339 = vpop.f32.mrf.mxu0
    %v9340 = vadd.f32 %v9311, %v9339
    %v9341 = vpop.f32.mrf.mxu0
    %v9342 = vadd.f32 %v9313, %v9341
    %9343 = vmatmul.bf16.gmra.mxu0 %v4799
    %v9344 = vpop.f32.mrf.mxu0
    %v9345 = vadd.f32 %v9316, %v9344
    %v9346 = vpop.f32.mrf.mxu0
    %v9347 = vadd.f32 %v9318, %v9346
    %9348 = vmatmul.bf16.gmra.mxu0 %v4807
    %v9349 = vpop.f32.mrf.mxu0
    %v9350 = vadd.f32 %v9321, %v9349
    %v9351 = vpop.f32.mrf.mxu0
    %v9352 = vadd.f32 %v9323, %v9351
    %9353 = vdwg.mxu0
    %9354 = vmatpush.bf16.msra.mxu0 %v7070
    %9355 = vmatpush.bf16.msra.mxu0 %v7062
    %9356 = vmatpush.bf16.msra.mxu0 %v7054
    %9357 = vmatpush.bf16.msra.mxu0 %v7046
    %9358 = vmatpush.bf16.msra.mxu0 %v7038
    %9359 = vmatpush.bf16.msra.mxu0 %v7030
    %9360 = vmatpush.bf16.msra.mxu0 %v7022
    %9361 = vmatpush.bf16.msra.mxu0 %v7014
    %9362 = vmatmul.bf16.gmra.mxu0 %v4784
    %v9363 = vpop.f32.mrf.mxu0
    %v9364 = vadd.f32 %v9335, %v9363
    %v9365 = vpop.f32.mrf.mxu0
    %v9366 = vadd.f32 %v9337, %v9365
    %9367 = vmatmul.bf16.gmra.mxu0 %v4792
    %v9368 = vpop.f32.mrf.mxu0
    %v9369 = vadd.f32 %v9340, %v9368
    %v9370 = vpop.f32.mrf.mxu0
    %v9371 = vadd.f32 %v9342, %v9370
    %9372 = vmatmul.bf16.gmra.mxu0 %v4800
    %v9373 = vpop.f32.mrf.mxu0
    %v9374 = vadd.f32 %v9345, %v9373
    %v9375 = vpop.f32.mrf.mxu0
    %v9376 = vadd.f32 %v9347, %v9375
    %9377 = vmatmul.bf16.gmra.mxu0 %v4808
    %v9378 = vpop.f32.mrf.mxu0
    %v9379 = vadd.f32 %v9350, %v9378
    %v9380 = vpop.f32.mrf.mxu0
    %v9381 = vadd.f32 %v9352, %v9380
    %9382 = vdwg.mxu0
    %9383 = vmatpush.bf16.msra.mxu0 %v7134
    %9384 = vmatpush.bf16.msra.mxu0 %v7126
    %9385 = vmatpush.bf16.msra.mxu0 %v7118
    %9386 = vmatpush.bf16.msra.mxu0 %v7110
    %9387 = vmatpush.bf16.msra.mxu0 %v7102
    %9388 = vmatpush.bf16.msra.mxu0 %v7094
    %9389 = vmatpush.bf16.msra.mxu0 %v7086
    %9390 = vmatpush.bf16.msra.mxu0 %v7078
    %9391 = vmatmul.bf16.gmra.mxu0 %v4785
    %v9392 = vpop.f32.mrf.mxu0
    %v9393 = vadd.f32 %v9364, %v9392
    %v9394 = vpop.f32.mrf.mxu0
    %v9395 = vadd.f32 %v9366, %v9394
    %9396 = vmatmul.bf16.gmra.mxu0 %v4793
    %v9397 = vpop.f32.mrf.mxu0
    %v9398 = vadd.f32 %v9369, %v9397
    %v9399 = vpop.f32.mrf.mxu0
    %v9400 = vadd.f32 %v9371, %v9399
    %9401 = vmatmul.bf16.gmra.mxu0 %v4801
    %v9402 = vpop.f32.mrf.mxu0
    %v9403 = vadd.f32 %v9374, %v9402
    %v9404 = vpop.f32.mrf.mxu0
    %v9405 = vadd.f32 %v9376, %v9404
    %9406 = vmatmul.bf16.gmra.mxu0 %v4809
    %v9407 = vpop.f32.mrf.mxu0
    %v9408 = vadd.f32 %v9379, %v9407
    %v9409 = vpop.f32.mrf.mxu0
    %v9410 = vadd.f32 %v9381, %v9409
    %9411 = vdwg.mxu0
    %9412 = vmatpush.bf16.msra.mxu0 %v7198
    %9413 = vmatpush.bf16.msra.mxu0 %v7190
    %9414 = vmatpush.bf16.msra.mxu0 %v7182
    %9415 = vmatpush.bf16.msra.mxu0 %v7174
    %9416 = vmatpush.bf16.msra.mxu0 %v7166
    %9417 = vmatpush.bf16.msra.mxu0 %v7158
    %9418 = vmatpush.bf16.msra.mxu0 %v7150
    %9419 = vmatpush.bf16.msra.mxu0 %v7142
    %9420 = vmatmul.bf16.gmra.mxu0 %v4786
    %v9421 = vpop.f32.mrf.mxu0
    %v9422 = vadd.f32 %v9393, %v9421
    %v9423 = vpop.f32.mrf.mxu0
    %v9424 = vadd.f32 %v9395, %v9423
    %9425 = vmatmul.bf16.gmra.mxu0 %v4794
    %v9426 = vpop.f32.mrf.mxu0
    %v9427 = vadd.f32 %v9398, %v9426
    %v9428 = vpop.f32.mrf.mxu0
    %v9429 = vadd.f32 %v9400, %v9428
    %9430 = vmatmul.bf16.gmra.mxu0 %v4802
    %v9431 = vpop.f32.mrf.mxu0
    %v9432 = vadd.f32 %v9403, %v9431
    %v9433 = vpop.f32.mrf.mxu0
    %v9434 = vadd.f32 %v9405, %v9433
    %9435 = vmatmul.bf16.gmra.mxu0 %v4810
    %v9436 = vpop.f32.mrf.mxu0
    %v9437 = vadd.f32 %v9408, %v9436
    %v9438 = vpop.f32.mrf.mxu0
    %v9439 = vadd.f32 %v9410, %v9438
    %9440 = vdwg.mxu0
    %9441 = vmatpush.bf16.msra.mxu0 %v7262
    %9442 = vmatpush.bf16.msra.mxu0 %v7254
    %9443 = vmatpush.bf16.msra.mxu0 %v7246
    %9444 = vmatpush.bf16.msra.mxu0 %v7238
    %9445 = vmatpush.bf16.msra.mxu0 %v7230
    %9446 = vmatpush.bf16.msra.mxu0 %v7222
    %9447 = vmatpush.bf16.msra.mxu0 %v7214
    %9448 = vmatpush.bf16.msra.mxu0 %v7206
    %9449 = vmatmul.bf16.gmra.mxu0 %v4787
    %v9450 = vpop.f32.mrf.mxu0
    %v9451 = vadd.f32 %v9422, %v9450
    %v9452 = vpop.f32.mrf.mxu0
    %v9453 = vadd.f32 %v9424, %v9452
    %9454 = vmatmul.bf16.gmra.mxu0 %v4795
    %v9455 = vpop.f32.mrf.mxu0
    %v9456 = vadd.f32 %v9427, %v9455
    %v9457 = vpop.f32.mrf.mxu0
    %v9458 = vadd.f32 %v9429, %v9457
    %9459 = vmatmul.bf16.gmra.mxu0 %v4803
    %v9460 = vpop.f32.mrf.mxu0
    %v9461 = vadd.f32 %v9432, %v9460
    %v9462 = vpop.f32.mrf.mxu0
    %v9463 = vadd.f32 %v9434, %v9462
    %9464 = vmatmul.bf16.gmra.mxu0 %v4811
    %v9465 = vpop.f32.mrf.mxu0
    %v9466 = vadd.f32 %v9437, %v9465
    %v9467 = vpop.f32.mrf.mxu0
    %v9468 = vadd.f32 %v9439, %v9467
    %9469 = vdwg.mxu0
    %9470 = vmatpush.bf16.msra.mxu0 %v7326
    %9471 = vmatpush.bf16.msra.mxu0 %v7318
    %9472 = vmatpush.bf16.msra.mxu0 %v7310
    %9473 = vmatpush.bf16.msra.mxu0 %v7302
    %9474 = vmatpush.bf16.msra.mxu0 %v7294
    %9475 = vmatpush.bf16.msra.mxu0 %v7286
    %9476 = vmatpush.bf16.msra.mxu0 %v7278
    %9477 = vmatpush.bf16.msra.mxu0 %v7270
    %9478 = vmatmul.bf16.gmra.mxu0 %v4788
    %v9479 = vpop.f32.mrf.mxu0
    %v9480 = vadd.f32 %v9451, %v9479
    %v9481 = vpop.f32.mrf.mxu0
    %v9482 = vadd.f32 %v9453, %v9481
    %9483 = vmatmul.bf16.gmra.mxu0 %v4796
    %v9484 = vpop.f32.mrf.mxu0
    %v9485 = vadd.f32 %v9456, %v9484
    %v9486 = vpop.f32.mrf.mxu0
    %v9487 = vadd.f32 %v9458, %v9486
    %9488 = vmatmul.bf16.gmra.mxu0 %v4804
    %v9489 = vpop.f32.mrf.mxu0
    %v9490 = vadd.f32 %v9461, %v9489
    %v9491 = vpop.f32.mrf.mxu0
    %v9492 = vadd.f32 %v9463, %v9491
    %9493 = vmatmul.bf16.gmra.mxu0 %v4812
    %v9494 = vpop.f32.mrf.mxu0
    %v9495 = vadd.f32 %v9466, %v9494
    %v9496 = vpop.f32.mrf.mxu0
    %v9497 = vadd.f32 %v9468, %v9496
    %9498 = vdwg.mxu0
    %9499 = vmatpush.bf16.msra.mxu0 %v7390
    %9500 = vmatpush.bf16.msra.mxu0 %v7382
    %9501 = vmatpush.bf16.msra.mxu0 %v7374
    %9502 = vmatpush.bf16.msra.mxu0 %v7366
    %9503 = vmatpush.bf16.msra.mxu0 %v7358
    %9504 = vmatpush.bf16.msra.mxu0 %v7350
    %9505 = vmatpush.bf16.msra.mxu0 %v7342
    %9506 = vmatpush.bf16.msra.mxu0 %v7334
    %9507 = vmatmul.bf16.gmra.mxu0 %v4789
    %v9508 = vpop.f32.mrf.mxu0
    %v9509 = vadd.f32 %v9480, %v9508
    %v9510 = vpop.f32.mrf.mxu0
    %v9511 = vadd.f32 %v9482, %v9510
    %9512 = vmatmul.bf16.gmra.mxu0 %v4797
    %v9513 = vpop.f32.mrf.mxu0
    %v9514 = vadd.f32 %v9485, %v9513
    %v9515 = vpop.f32.mrf.mxu0
    %v9516 = vadd.f32 %v9487, %v9515
    %9517 = vmatmul.bf16.gmra.mxu0 %v4805
    %v9518 = vpop.f32.mrf.mxu0
    %v9519 = vadd.f32 %v9490, %v9518
    %v9520 = vpop.f32.mrf.mxu0
    %v9521 = vadd.f32 %v9492, %v9520
    %9522 = vmatmul.bf16.gmra.mxu0 %v4813
    %v9523 = vpop.f32.mrf.mxu0
    %v9524 = vadd.f32 %v9495, %v9523
    %v9525 = vpop.f32.mrf.mxu0
    %v9526 = vadd.f32 %v9497, %v9525
    %9527 = vdwg.mxu0
    %9528 = vmatpush.bf16.msra.mxu0 %v6943
    %9529 = vmatpush.bf16.msra.mxu0 %v6935
    %9530 = vmatpush.bf16.msra.mxu0 %v6927
    %9531 = vmatpush.bf16.msra.mxu0 %v6919
    %9532 = vmatpush.bf16.msra.mxu0 %v6911
    %9533 = vmatpush.bf16.msra.mxu0 %v6903
    %9534 = vmatpush.bf16.msra.mxu0 %v6895
    %9535 = vmatpush.bf16.msra.mxu0 %v6887
    %9536 = vmatmul.bf16.gmra.mxu0 %v4782
    %v9537 = vpop.f32.mrf.mxu0
    %v9538 = vadd.f32 %v5335, %v9537
    %v9539 = vpop.f32.mrf.mxu0
    %v9540 = vadd.f32 %v5335, %v9539
    %9541 = vmatmul.bf16.gmra.mxu0 %v4790
    %v9542 = vpop.f32.mrf.mxu0
    %v9543 = vadd.f32 %v5335, %v9542
    %v9544 = vpop.f32.mrf.mxu0
    %v9545 = vadd.f32 %v5335, %v9544
    %9546 = vmatmul.bf16.gmra.mxu0 %v4798
    %v9547 = vpop.f32.mrf.mxu0
    %v9548 = vadd.f32 %v5335, %v9547
    %v9549 = vpop.f32.mrf.mxu0
    %v9550 = vadd.f32 %v5335, %v9549
    %9551 = vmatmul.bf16.gmra.mxu0 %v4806
    %v9552 = vpop.f32.mrf.mxu0
    %v9553 = vadd.f32 %v5335, %v9552
    %v9554 = vpop.f32.mrf.mxu0
    %v9555 = vadd.f32 %v5335, %v9554
    %9556 = vdwg.mxu0
    %9557 = vmatpush.bf16.msra.mxu0 %v7007
    %9558 = vmatpush.bf16.msra.mxu0 %v6999
    %9559 = vmatpush.bf16.msra.mxu0 %v6991
    %9560 = vmatpush.bf16.msra.mxu0 %v6983
    %9561 = vmatpush.bf16.msra.mxu0 %v6975
    %9562 = vmatpush.bf16.msra.mxu0 %v6967
    %9563 = vmatpush.bf16.msra.mxu0 %v6959
    %9564 = vmatpush.bf16.msra.mxu0 %v6951
    %9565 = vmatmul.bf16.gmra.mxu0 %v4783
    %v9566 = vpop.f32.mrf.mxu0
    %v9567 = vadd.f32 %v9538, %v9566
    %v9568 = vpop.f32.mrf.mxu0
    %v9569 = vadd.f32 %v9540, %v9568
    %9570 = vmatmul.bf16.gmra.mxu0 %v4791
    %v9571 = vpop.f32.mrf.mxu0
    %v9572 = vadd.f32 %v9543, %v9571
    %v9573 = vpop.f32.mrf.mxu0
    %v9574 = vadd.f32 %v9545, %v9573
    %9575 = vmatmul.bf16.gmra.mxu0 %v4799
    %v9576 = vpop.f32.mrf.mxu0
    %v9577 = vadd.f32 %v9548, %v9576
    %v9578 = vpop.f32.mrf.mxu0
    %v9579 = vadd.f32 %v9550, %v9578
    %9580 = vmatmul.bf16.gmra.mxu0 %v4807
    %v9581 = vpop.f32.mrf.mxu0
    %v9582 = vadd.f32 %v9553, %v9581
    %v9583 = vpop.f32.mrf.mxu0
    %v9584 = vadd.f32 %v9555, %v9583
    %9585 = vdwg.mxu0
    %9586 = vmatpush.bf16.msra.mxu0 %v7071
    %9587 = vmatpush.bf16.msra.mxu0 %v7063
    %9588 = vmatpush.bf16.msra.mxu0 %v7055
    %9589 = vmatpush.bf16.msra.mxu0 %v7047
    %9590 = vmatpush.bf16.msra.mxu0 %v7039
    %9591 = vmatpush.bf16.msra.mxu0 %v7031
    %9592 = vmatpush.bf16.msra.mxu0 %v7023
    %9593 = vmatpush.bf16.msra.mxu0 %v7015
    %9594 = vmatmul.bf16.gmra.mxu0 %v4784
    %v9595 = vpop.f32.mrf.mxu0
    %v9596 = vadd.f32 %v9567, %v9595
    %v9597 = vpop.f32.mrf.mxu0
    %v9598 = vadd.f32 %v9569, %v9597
    %9599 = vmatmul.bf16.gmra.mxu0 %v4792
    %v9600 = vpop.f32.mrf.mxu0
    %v9601 = vadd.f32 %v9572, %v9600
    %v9602 = vpop.f32.mrf.mxu0
    %v9603 = vadd.f32 %v9574, %v9602
    %9604 = vmatmul.bf16.gmra.mxu0 %v4800
    %v9605 = vpop.f32.mrf.mxu0
    %v9606 = vadd.f32 %v9577, %v9605
    %v9607 = vpop.f32.mrf.mxu0
    %v9608 = vadd.f32 %v9579, %v9607
    %9609 = vmatmul.bf16.gmra.mxu0 %v4808
    %v9610 = vpop.f32.mrf.mxu0
    %v9611 = vadd.f32 %v9582, %v9610
    %v9612 = vpop.f32.mrf.mxu0
    %v9613 = vadd.f32 %v9584, %v9612
    %9614 = vdwg.mxu0
    %9615 = vmatpush.bf16.msra.mxu0 %v7135
    %9616 = vmatpush.bf16.msra.mxu0 %v7127
    %9617 = vmatpush.bf16.msra.mxu0 %v7119
    %9618 = vmatpush.bf16.msra.mxu0 %v7111
    %9619 = vmatpush.bf16.msra.mxu0 %v7103
    %9620 = vmatpush.bf16.msra.mxu0 %v7095
    %9621 = vmatpush.bf16.msra.mxu0 %v7087
    %9622 = vmatpush.bf16.msra.mxu0 %v7079
    %9623 = vmatmul.bf16.gmra.mxu0 %v4785
    %v9624 = vpop.f32.mrf.mxu0
    %v9625 = vadd.f32 %v9596, %v9624
    %v9626 = vpop.f32.mrf.mxu0
    %v9627 = vadd.f32 %v9598, %v9626
    %9628 = vmatmul.bf16.gmra.mxu0 %v4793
    %v9629 = vpop.f32.mrf.mxu0
    %v9630 = vadd.f32 %v9601, %v9629
    %v9631 = vpop.f32.mrf.mxu0
    %v9632 = vadd.f32 %v9603, %v9631
    %9633 = vmatmul.bf16.gmra.mxu0 %v4801
    %v9634 = vpop.f32.mrf.mxu0
    %v9635 = vadd.f32 %v9606, %v9634
    %v9636 = vpop.f32.mrf.mxu0
    %v9637 = vadd.f32 %v9608, %v9636
    %9638 = vmatmul.bf16.gmra.mxu0 %v4809
    %v9639 = vpop.f32.mrf.mxu0
    %v9640 = vadd.f32 %v9611, %v9639
    %v9641 = vpop.f32.mrf.mxu0
    %v9642 = vadd.f32 %v9613, %v9641
    %9643 = vdwg.mxu0
    %9644 = vmatpush.bf16.msra.mxu0 %v7199
    %9645 = vmatpush.bf16.msra.mxu0 %v7191
    %9646 = vmatpush.bf16.msra.mxu0 %v7183
    %9647 = vmatpush.bf16.msra.mxu0 %v7175
    %9648 = vmatpush.bf16.msra.mxu0 %v7167
    %9649 = vmatpush.bf16.msra.mxu0 %v7159
    %9650 = vmatpush.bf16.msra.mxu0 %v7151
    %9651 = vmatpush.bf16.msra.mxu0 %v7143
    %9652 = vmatmul.bf16.gmra.mxu0 %v4786
    %v9653 = vpop.f32.mrf.mxu0
    %v9654 = vadd.f32 %v9625, %v9653
    %v9655 = vpop.f32.mrf.mxu0
    %v9656 = vadd.f32 %v9627, %v9655
    %9657 = vmatmul.bf16.gmra.mxu0 %v4794
    %v9658 = vpop.f32.mrf.mxu0
    %v9659 = vadd.f32 %v9630, %v9658
    %v9660 = vpop.f32.mrf.mxu0
    %v9661 = vadd.f32 %v9632, %v9660
    %9662 = vmatmul.bf16.gmra.mxu0 %v4802
    %v9663 = vpop.f32.mrf.mxu0
    %v9664 = vadd.f32 %v9635, %v9663
    %v9665 = vpop.f32.mrf.mxu0
    %v9666 = vadd.f32 %v9637, %v9665
    %9667 = vmatmul.bf16.gmra.mxu0 %v4810
    %v9668 = vpop.f32.mrf.mxu0
    %v9669 = vadd.f32 %v9640, %v9668
    %v9670 = vpop.f32.mrf.mxu0
    %v9671 = vadd.f32 %v9642, %v9670
    %9672 = vdwg.mxu0
    %9673 = vmatpush.bf16.msra.mxu0 %v7263
    %9674 = vmatpush.bf16.msra.mxu0 %v7255
    %9675 = vmatpush.bf16.msra.mxu0 %v7247
    %9676 = vmatpush.bf16.msra.mxu0 %v7239
    %9677 = vmatpush.bf16.msra.mxu0 %v7231
    %9678 = vmatpush.bf16.msra.mxu0 %v7223
    %9679 = vmatpush.bf16.msra.mxu0 %v7215
    %9680 = vmatpush.bf16.msra.mxu0 %v7207
    %9681 = vmatmul.bf16.gmra.mxu0 %v4787
    %v9682 = vpop.f32.mrf.mxu0
    %v9683 = vadd.f32 %v9654, %v9682
    %v9684 = vpop.f32.mrf.mxu0
    %v9685 = vadd.f32 %v9656, %v9684
    %9686 = vmatmul.bf16.gmra.mxu0 %v4795
    %v9687 = vpop.f32.mrf.mxu0
    %v9688 = vadd.f32 %v9659, %v9687
    %v9689 = vpop.f32.mrf.mxu0
    %v9690 = vadd.f32 %v9661, %v9689
    %9691 = vmatmul.bf16.gmra.mxu0 %v4803
    %v9692 = vpop.f32.mrf.mxu0
    %v9693 = vadd.f32 %v9664, %v9692
    %v9694 = vpop.f32.mrf.mxu0
    %v9695 = vadd.f32 %v9666, %v9694
    %9696 = vmatmul.bf16.gmra.mxu0 %v4811
    %v9697 = vpop.f32.mrf.mxu0
    %v9698 = vadd.f32 %v9669, %v9697
    %v9699 = vpop.f32.mrf.mxu0
    %v9700 = vadd.f32 %v9671, %v9699
    %9701 = vdwg.mxu0
    %9702 = vmatpush.bf16.msra.mxu0 %v7327
    %9703 = vmatpush.bf16.msra.mxu0 %v7319
    %9704 = vmatpush.bf16.msra.mxu0 %v7311
    %9705 = vmatpush.bf16.msra.mxu0 %v7303
    %9706 = vmatpush.bf16.msra.mxu0 %v7295
    %9707 = vmatpush.bf16.msra.mxu0 %v7287
    %9708 = vmatpush.bf16.msra.mxu0 %v7279
    %9709 = vmatpush.bf16.msra.mxu0 %v7271
    %9710 = vmatmul.bf16.gmra.mxu0 %v4788
    %v9711 = vpop.f32.mrf.mxu0
    %v9712 = vadd.f32 %v9683, %v9711
    %v9713 = vpop.f32.mrf.mxu0
    %v9714 = vadd.f32 %v9685, %v9713
    %9715 = vmatmul.bf16.gmra.mxu0 %v4796
    %v9716 = vpop.f32.mrf.mxu0
    %v9717 = vadd.f32 %v9688, %v9716
    %v9718 = vpop.f32.mrf.mxu0
    %v9719 = vadd.f32 %v9690, %v9718
    %9720 = vmatmul.bf16.gmra.mxu0 %v4804
    %v9721 = vpop.f32.mrf.mxu0
    %v9722 = vadd.f32 %v9693, %v9721
    %v9723 = vpop.f32.mrf.mxu0
    %v9724 = vadd.f32 %v9695, %v9723
    %9725 = vmatmul.bf16.gmra.mxu0 %v4812
    %v9726 = vpop.f32.mrf.mxu0
    %v9727 = vadd.f32 %v9698, %v9726
    %v9728 = vpop.f32.mrf.mxu0
    %v9729 = vadd.f32 %v9700, %v9728
    %9730 = vdwg.mxu0
    %9731 = vmatpush.bf16.msra.mxu0 %v7391
    %9732 = vmatpush.bf16.msra.mxu0 %v7383
    %9733 = vmatpush.bf16.msra.mxu0 %v7375
    %9734 = vmatpush.bf16.msra.mxu0 %v7367
    %9735 = vmatpush.bf16.msra.mxu0 %v7359
    %9736 = vmatpush.bf16.msra.mxu0 %v7351
    %9737 = vmatpush.bf16.msra.mxu0 %v7343
    %9738 = vmatpush.bf16.msra.mxu0 %v7335
    %9739 = vmatmul.bf16.gmra.mxu0 %v4789
    %v9740 = vpop.f32.mrf.mxu0
    %v9741 = vadd.f32 %v9712, %v9740
    %v9742 = vpop.f32.mrf.mxu0
    %v9743 = vadd.f32 %v9714, %v9742
    %9744 = vmatmul.bf16.gmra.mxu0 %v4797
    %v9745 = vpop.f32.mrf.mxu0
    %v9746 = vadd.f32 %v9717, %v9745
    %v9747 = vpop.f32.mrf.mxu0
    %v9748 = vadd.f32 %v9719, %v9747
    %9749 = vmatmul.bf16.gmra.mxu0 %v4805
    %v9750 = vpop.f32.mrf.mxu0
    %v9751 = vadd.f32 %v9722, %v9750
    %v9752 = vpop.f32.mrf.mxu0
    %v9753 = vadd.f32 %v9724, %v9752
    %9754 = vmatmul.bf16.gmra.mxu0 %v4813
    %v9755 = vpop.f32.mrf.mxu0
    %v9756 = vadd.f32 %v9727, %v9755
    %v9757 = vpop.f32.mrf.mxu0
    %v9758 = vadd.f32 %v9729, %v9757
    %9759 = vdwg.mxu0
    %v9760 = vtanh.pop %v8117
    %v9761 = vtanh.pop %v8349
    %v9762 = vtanh.pop %v8581
    %v9763 = vtanh.pop %v8813
    %v9764 = vtanh.pop %v9045
    %v9765 = vtanh.pop %v9277
    %v9766 = vtanh.pop %v9509
    %v9767 = vtanh.pop %v9741
    %v9768 = vtanh.pop %v8119
    %v9769 = vtanh.pop %v8351
    %v9770 = vtanh.pop %v8583
    %v9771 = vtanh.pop %v8815
    %v9772 = vtanh.pop %v9047
    %v9773 = vtanh.pop %v9279
    %v9774 = vtanh.pop %v9511
    %v9775 = vtanh.pop %v9743
    %v9776 = vtanh.pop %v8122
    %v9777 = vtanh.pop %v8354
    %v9778 = vtanh.pop %v8586
    %v9779 = vtanh.pop %v8818
    %v9780 = vtanh.pop %v9050
    %v9781 = vtanh.pop %v9282
    %v9782 = vtanh.pop %v9514
    %v9783 = vtanh.pop %v9746
    %v9784 = vtanh.pop %v8124
    %v9785 = vtanh.pop %v8356
    %v9786 = vtanh.pop %v8588
    %v9787 = vtanh.pop %v8820
    %v9788 = vtanh.pop %v9052
    %v9789 = vtanh.pop %v9284
    %v9790 = vtanh.pop %v9516
    %v9791 = vtanh.pop %v9748
    %v9792 = vtanh.pop %v8127
    %v9793 = vtanh.pop %v8359
    %v9794 = vtanh.pop %v8591
    %v9795 = vtanh.pop %v8823
    %v9796 = vtanh.pop %v9055
    %v9797 = vtanh.pop %v9287
    %v9798 = vtanh.pop %v9519
    %v9799 = vtanh.pop %v9751
    %v9800 = vtanh.pop %v8129
    %v9801 = vtanh.pop %v8361
    %v9802 = vtanh.pop %v8593
    %v9803 = vtanh.pop %v8825
    %v9804 = vtanh.pop %v9057
    %v9805 = vtanh.pop %v9289
    %v9806 = vtanh.pop %v9521
    %v9807 = vtanh.pop %v9753
    %v9808 = vtanh.pop %v8132
    %v9809 = vtanh.pop %v8364
    %v9810 = vtanh.pop %v8596
    %v9811 = vtanh.pop %v8828
    %v9812 = vtanh.pop %v9060
    %v9813 = vtanh.pop %v9292
    %v9814 = vtanh.pop %v9524
    %v9815 = vtanh.pop %v9756
    %v9816 = vtanh.pop %v8134
    %v9817 = vtanh.pop %v8366
    %v9818 = vtanh.pop %v8598
    %v9819 = vtanh.pop %v8830
    %v9820 = vtanh.pop %v9062
    %v9821 = vtanh.pop %v9294
    %v9822 = vtanh.pop %v9526
    %v9823 = vtanh.pop %v9758
    %9824 = vst [vmem:[#allocation22] sm:$0xff] %v9760
    %9825 = vst [vmem:[#allocation22 + $0x8] sm:$0xff] %v9761
    %9826 = vst [vmem:[#allocation22 + $0x10] sm:$0xff] %v9762
    %9827 = vst [vmem:[#allocation22 + $0x18] sm:$0xff] %v9763
    %9828 = vst [vmem:[#allocation22 + $0x20] sm:$0xff] %v9764
    %9829 = vst [vmem:[#allocation22 + $0x28] sm:$0xff] %v9765
    %9830 = vst [vmem:[#allocation22 + $0x30] sm:$0xff] %v9766
    %9831 = vst [vmem:[#allocation22 + $0x38] sm:$0xff] %v9767
    %9832 = vst [vmem:[#allocation22 + $0x40] sm:$0xff] %v9768
    %9833 = vst [vmem:[#allocation22 + $0x48] sm:$0xff] %v9769
    %9834 = vst [vmem:[#allocation22 + $0x50] sm:$0xff] %v9770
    %9835 = vst [vmem:[#allocation22 + $0x58] sm:$0xff] %v9771
    %9836 = vst [vmem:[#allocation22 + $0x60] sm:$0xff] %v9772
    %9837 = vst [vmem:[#allocation22 + $0x68] sm:$0xff] %v9773
    %9838 = vst [vmem:[#allocation22 + $0x70] sm:$0xff] %v9774
    %9839 = vst [vmem:[#allocation22 + $0x78] sm:$0xff] %v9775
    %9840 = vst [vmem:[#allocation22 + $0x80] sm:$0xff] %v9776
    %9841 = vst [vmem:[#allocation22 + $0x88] sm:$0xff] %v9777
    %9842 = vst [vmem:[#allocation22 + $0x90] sm:$0xff] %v9778
    %9843 = vst [vmem:[#allocation22 + $0x98] sm:$0xff] %v9779
    %9844 = vst [vmem:[#allocation22 + $0xa0] sm:$0xff] %v9780
    %9845 = vst [vmem:[#allocation22 + $0xa8] sm:$0xff] %v9781
    %9846 = vst [vmem:[#allocation22 + $0xb0] sm:$0xff] %v9782
    %9847 = vst [vmem:[#allocation22 + $0xb8] sm:$0xff] %v9783
    %9848 = vst [vmem:[#allocation22 + $0xc0] sm:$0xff] %v9784
    %9849 = vst [vmem:[#allocation22 + $0xc8] sm:$0xff] %v9785
    %9850 = vst [vmem:[#allocation22 + $0xd0] sm:$0xff] %v9786
    %9851 = vst [vmem:[#allocation22 + $0xd8] sm:$0xff] %v9787
    %9852 = vst [vmem:[#allocation22 + $0xe0] sm:$0xff] %v9788
    %9853 = vst [vmem:[#allocation22 + $0xe8] sm:$0xff] %v9789
    %9854 = vst [vmem:[#allocation22 + $0xf0] sm:$0xff] %v9790
    %9855 = vst [vmem:[#allocation22 + $0xf8] sm:$0xff] %v9791
    %9856 = vst [vmem:[#allocation22 + $0x100] sm:$0xff] %v9792
    %9857 = vst [vmem:[#allocation22 + $0x108] sm:$0xff] %v9793
    %9858 = vst [vmem:[#allocation22 + $0x110] sm:$0xff] %v9794
    %9859 = vst [vmem:[#allocation22 + $0x118] sm:$0xff] %v9795
    %9860 = vst [vmem:[#allocation22 + $0x120] sm:$0xff] %v9796
    %9861 = vst [vmem:[#allocation22 + $0x128] sm:$0xff] %v9797
    %9862 = vst [vmem:[#allocation22 + $0x130] sm:$0xff] %v9798
    %9863 = vst [vmem:[#allocation22 + $0x138] sm:$0xff] %v9799
    %9864 = vst [vmem:[#allocation22 + $0x140] sm:$0xff] %v9800
    %9865 = vst [vmem:[#allocation22 + $0x148] sm:$0xff] %v9801
    %9866 = vst [vmem:[#allocation22 + $0x150] sm:$0xff] %v9802
    %9867 = vst [vmem:[#allocation22 + $0x158] sm:$0xff] %v9803
    %9868 = vst [vmem:[#allocation22 + $0x160] sm:$0xff] %v9804
    %9869 = vst [vmem:[#allocation22 + $0x168] sm:$0xff] %v9805
    %9870 = vst [vmem:[#allocation22 + $0x170] sm:$0xff] %v9806
    %9871 = vst [vmem:[#allocation22 + $0x178] sm:$0xff] %v9807
    %9872 = vst [vmem:[#allocation22 + $0x180] sm:$0xff] %v9808
    %9873 = vst [vmem:[#allocation22 + $0x188] sm:$0xff] %v9809
    %9874 = vst [vmem:[#allocation22 + $0x190] sm:$0xff] %v9810
    %9875 = vst [vmem:[#allocation22 + $0x198] sm:$0xff] %v9811
    %9876 = vst [vmem:[#allocation22 + $0x1a0] sm:$0xff] %v9812
    %9877 = vst [vmem:[#allocation22 + $0x1a8] sm:$0xff] %v9813
    %9878 = vst [vmem:[#allocation22 + $0x1b0] sm:$0xff] %v9814
    %9879 = vst [vmem:[#allocation22 + $0x1b8] sm:$0xff] %v9815
    %9880 = vst [vmem:[#allocation22 + $0x1c0] sm:$0xff] %v9816
    %9881 = vst [vmem:[#allocation22 + $0x1c8] sm:$0xff] %v9817
    %9882 = vst [vmem:[#allocation22 + $0x1d0] sm:$0xff] %v9818
    %9883 = vst [vmem:[#allocation22 + $0x1d8] sm:$0xff] %v9819
    %9884 = vst [vmem:[#allocation22 + $0x1e0] sm:$0xff] %v9820
    %9885 = vst [vmem:[#allocation22 + $0x1e8] sm:$0xff] %v9821
    %9886 = vst [vmem:[#allocation22 + $0x1f0] sm:$0xff] %v9822
    %9887 = vst [vmem:[#allocation22 + $0x1f8] sm:$0xff] %v9823
    // Predicated region
    $region94: #{tpu_custom_call.1} parent=1 // pred_check
      _
    $region95: #{tpu_custom_call.1} parent=1 // pred_check_branch
      %9889 = sbr.rel (0) target = $region97
    $region96: #{tpu_custom_call.1} parent=1 // pred_region
      %9891 = vsyncadd [#allocation9], 0
      %s9892 = sshll.u32 [#allocation22], 4
      %s9893 = int_to_ptr.vmem [resolvable:$true] %s9892
      %s9894 = sshll.u32 %s14, 4
      %s9895 = int_to_ptr.hbm [resolvable:$true] %s9894
      %9900 = dma.vmem_to_hbm [thread:$0]  %s9893, 8192, %s9895, [#allocation9], 1024, 1024, 64
    $region97: #{tpu_custom_call.1} parent=1 // pred_fallthru
      _
    // Predicated region
    $region98: #{tpu_custom_call.1} parent=1 // pred_check
      _
    $region99: #{tpu_custom_call.1} parent=1 // pred_check_branch
      %9902 = sbr.rel (0) target = $region101
    $region100: #{tpu_custom_call.1} parent=1 // pred_region
      %9904 = dma.done [#allocation9], 8192
    $region101: #{tpu_custom_call.1} parent=1 // pred_fallthru
      _
    %9905 = vsyncpa [#allocation8], 1
    %9906 = vsyncpa [#allocation11], 1
    %9907 = vsyncpa [#allocation14], 1
    %9908 = vsyncpa [#allocation17], 1
    %9909 = vsyncpa [#allocation20], 1
    %9910 = vsyncpa [#allocation9], 1
  %9911 = vsyncmov [#allocation6]
  %s9912 = vpop.sfrf %9911
  %p9913 = scmp.eq.s32.totalorder %s9912, 0
  %p9914 = pneg %p9913
  %9916 = shalt.err (%p9914)
  %s9917 = scalar_lea.sflag [#allocation6], 1
  %9918 = vsyncmov %s9917
  %s9919 = vpop.sfrf %9918
  %p9920 = scmp.eq.s32.totalorder %s9919, 0
  %p9921 = pneg %p9920
  %9923 = shalt.err (%p9921)
  %s9924 = scalar_lea.sflag [#allocation6], 2
  %9925 = vsyncmov %s9924
  %s9926 = vpop.sfrf %9925
  %p9927 = scmp.eq.s32.totalorder %s9926, 0
  %p9928 = pneg %p9927
  %9930 = shalt.err (%p9928)
  %s9931 = scalar_lea.sflag [#allocation6], 3
  %9932 = vsyncmov %s9931
  %s9933 = vpop.sfrf %9932
  %p9934 = scmp.eq.s32.totalorder %s9933, 0
  %p9935 = pneg %p9934
  %9937 = shalt.err (%p9935)

</llo_original>
